<compile_context>
chip_gen: v6e
topology: v6e:2x2x1
jax: 0.10.0
libtpu: 0.0.40
codegen_flags: <defaults>
</compile_context>

<pallas_src>
import math

import jax
import jax.numpy as jnp
from jax.experimental import pallas as pl
from jax.experimental.pallas import tpu as pltpu

BN_EPS = 1e-5
RES_GAMMA2 = 0.05          # demo init of the 2nd BN gamma in each residual layer (see header)
_HI = jax.lax.Precision.HIGHEST
_VMEM = pl.BlockSpec(memory_space=pltpu.MemorySpace.VMEM)


def _rup8(n):
    return ((n + 7) // 8) * 8


def _dot(a, b):
    return jnp.dot(a, b, precision=_HI, preferred_element_type=jnp.float32)


def _bn(h, g_row, b_row, inv_n):
    """BatchNorm1d with batch (training-mode) statistics; identical formula to the reference."""
    mu = jnp.sum(h, axis=0, keepdims=True) * inv_n
    d = h - mu
    var = jnp.sum(d * d, axis=0, keepdims=True) * inv_n
    return d * jax.lax.rsqrt(var + BN_EPS) * g_row + b_row


# ----------------------------- fused stack kernel ------------------------------


def make_stack_kernel(cfg, n_batch):
    """Build a kernel that runs a whole Enc or Dec stack with everything resident in VMEM.

    cfg is a list of ("basic",) / ("resblock", n_layers) / ("linear",) entries; the flattened
    parameter refs are consumed in that order.
    """
    inv_n = 1.0 / n_batch

    def kernel(*refs):
        x_ref, o_ref = refs[0], refs[-1]
        prm = refs[1:-1]
        i = 0
        x = x_ref[...]
        for entry in cfg:
            kind = entry[0]
            if kind == "basic":
                w_ref, g_ref, b_ref = prm[i:i + 3]
                i += 3
                h = _dot(x, w_ref[...])
                x = jnp.maximum(_bn(h, g_ref[...], b_ref[...], inv_n), 0.0)
            elif kind == "resblock":
                n_layers = entry[1]
                w1_ref, g1_ref, b1_ref, w2_ref, g2_ref, b2_ref = prm[i:i + 6]
                i += 6

                def body(l, xc, w1=w1_ref, g1=g1_ref, b1=b1_ref,
                         w2=w2_ref, g2=g2_ref, b2=b2_ref):
                    # Linear(ci->ch, bias=False) -> BN -> ReLU
                    h = _dot(xc, w1[l])
                    h = jnp.maximum(_bn(h, g1[l], b1[l], inv_n), 0.0)
                    # Linear(ch->ci, bias=False) -> BN
                    y = _dot(h, w2[l])
                    y = _bn(y, g2[l], b2[l], inv_n)
                    # residual add + final ReLU
                    return jnp.maximum(xc + y, 0.0)

                x = jax.lax.fori_loop(0, n_layers, body, x)
            else:  # "linear"
                w_ref = prm[i]
                i += 1
                x = _dot(x, w_ref[...])
        o_ref[...] = x

    return kernel


def run_stack(x, cfg, flat, out_dim):
    """Run a whole Enc or Dec stack as ONE pallas_call."""
    n = x.shape[0]
    return pl.pallas_call(
        make_stack_kernel(cfg, n),
        out_shape=jax.ShapeDtypeStruct((n, out_dim), jnp.float32),
        in_specs=[_VMEM] * (1 + len(flat)),
        out_specs=_VMEM,
        compiler_params=pltpu.CompilerParams(vmem_limit_bytes=32 * 1024 * 1024),
    )(x, *flat)


# ----------------------------- model config / params ---------------------------


def _enc_cfg(n_in, scaling=(8, 16, 32, 64, 128)):
    cfg = [("basic", n_in, n_in // scaling[0])]
    for i in range(len(scaling) - 1):
        s, s_out = scaling[i], scaling[i + 1]
        cfg.append(("resblock", n_in // s, n_in // (s * 4), s))
        cfg.append(("basic", n_in // s, n_in // s_out))
    cfg.append(("linear", n_in // scaling[-1], n_in // scaling[-1]))
    return cfg


def _dec_cfg(n_out, scaling=(128, 64, 32, 16, 8)):
    cfg = []
    for i in range(len(scaling) - 1):
        s, s_out = scaling[i], scaling[i + 1]
        cfg.append(("resblock", n_out // s, n_out // (s * 4), s))
        cfg.append(("basic", n_out // s, n_out // s_out))
    cfg.append(("linear", n_out // scaling[-1], n_out))
    return cfg


def _uniform_linear(key, shape, fan_in):
    # PyTorch nn.Linear init U(-1/sqrt(fan_in), 1/sqrt(fan_in)); stored pre-transposed (in, out).
    bound = 1.0 / math.sqrt(fan_in)
    return jax.random.uniform(key, shape, jnp.float32, -bound, bound)


def init_params(key, cfg):
    params = []
    for entry in cfg:
        kind = entry[0]
        if kind == "basic":
            _, ci, co = entry
            key, k = jax.random.split(key)
            params.append(dict(kind="basic",
                               w=_uniform_linear(k, (ci, co), ci),
                               g=jnp.ones((co,), jnp.float32),
                               b=jnp.zeros((co,), jnp.float32)))
        elif kind == "resblock":
            _, ci, ch, nl = entry
            key, k1, k2 = jax.random.split(key, 3)
            params.append(dict(kind="resblock",
                               w1=_uniform_linear(k1, (nl, ci, ch), ci),
                               g1=jnp.ones((nl, ch), jnp.float32),
                               b1=jnp.zeros((nl, ch), jnp.float32),
                               w2=_uniform_linear(k2, (nl, ch, ci), ch),
                               g2=jnp.full((nl, ci), RES_GAMMA2, jnp.float32),
                               b2=jnp.zeros((nl, ci), jnp.float32)))
        else:  # linear
            _, ci, co = entry
            key, k = jax.random.split(key)
            params.append(dict(kind="linear", w=_uniform_linear(k, (ci, co), ci)))
    return params, key


def _pad2(a, r, c):
    return jnp.pad(a, ((0, r - a.shape[0]), (0, c - a.shape[1])))


def pad_and_flatten(params):
    """Pad feature dims to multiples of 8 and flatten params for the fused kernel.

    Padded weight rows/cols and padded gamma/beta are zero, so padded lanes stay exactly 0
    through the whole network and BN statistics of real features are unchanged.
    """
    cfg, flat = [], []
    for p in params:
        if p["kind"] == "basic":
            ci, co = p["w"].shape
            cip, cop = _rup8(ci), _rup8(co)
            cfg.append(("basic",))
            flat += [_pad2(p["w"], cip, cop),
                     jnp.pad(p["g"], (0, cop - co)).reshape(1, cop),
                     jnp.pad(p["b"], (0, cop - co)).reshape(1, cop)]
        elif p["kind"] == "resblock":
            nl, ci, ch = p["w1"].shape
            cip, chp = _rup8(ci), _rup8(ch)
            cfg.append(("resblock", nl))
            flat += [jnp.pad(p["w1"], ((0, 0), (0, cip - ci), (0, chp - ch))),
                     jnp.pad(p["g1"], ((0, 0), (0, chp - ch))).reshape(nl, 1, chp),
                     jnp.pad(p["b1"], ((0, 0), (0, chp - ch))).reshape(nl, 1, chp),
                     jnp.pad(p["w2"], ((0, 0), (0, chp - ch), (0, cip - ci))),
                     jnp.pad(p["g2"], ((0, 0), (0, cip - ci))).reshape(nl, 1, cip),
                     jnp.pad(p["b2"], ((0, 0), (0, cip - ci))).reshape(nl, 1, cip)]
        else:
            ci, co = p["w"].shape
            cfg.append(("linear",))
            flat += [_pad2(p["w"], _rup8(ci), _rup8(co))]
    return cfg, flat


# ----------------------------- forward passes -----------------------------------


def autoencoder_forward(x, enc_cf, dec_cf, n_in, n_latent):
    """Pallas forward: returns (reconstruction, latent) like the PyTorch module."""
    n, c = x.shape
    cp = _rup8(c)
    xp = jnp.pad(x.astype(jnp.float32), ((0, 0), (0, cp - c)))
    enc_cfg, enc_flat = enc_cf
    dec_cfg, dec_flat = dec_cf
    z_p = run_stack(xp, enc_cfg, enc_flat, _rup8(n_latent))
    y_p = run_stack(z_p, dec_cfg, dec_flat, _rup8(n_in))
    return y_p[:, :n_in], z_p[:, :n_latent]


# ----------------------------- pure-JAX reference --------------------------------


def _ref_bn(h, g, b):
    inv_n = 1.0 / h.shape[0]
    mu = jnp.sum(h, axis=0, keepdims=True) * inv_n
    d = h - mu
    var = jnp.sum(d * d, axis=0, keepdims=True) * inv_n
    return d * jax.lax.rsqrt(var + BN_EPS) * g + b


def _ref_run(x, params):
    for p in params:
        if p["kind"] == "basic":
            h = jnp.dot(x, p["w"], precision=_HI)
            x = jnp.maximum(_ref_bn(h, p["g"], p["b"]), 0.0)
        elif p["kind"] == "resblock":
            def body(carry, lp):
                w1, g1, b1, w2, g2, b2 = lp
                h = jnp.dot(carry, w1, precision=_HI)
                h = jnp.maximum(_ref_bn(h, g1, b1), 0.0)
                y = jnp.dot(h, w2, precision=_HI)
                y = _ref_bn(y, g2, b2)
                return jnp.maximum(carry + y, 0.0), None
            x, _ = jax.lax.scan(body, x, (p["w1"], p["g1"], p["b1"],
                                          p["w2"], p["g2"], p["b2"]))
        else:
            x = jnp.dot(x, p["w"], precision=_HI)
    return x


def ref_forward(x, enc_params, dec_params):
    z = _ref_run(x.astype(jnp.float32), enc_params)
    y = _ref_run(z, dec_params)
    return y, z


# ----------------------------- demo ----------------------------------------------

if __name__ == "__main__":
    n_in = 512          # smallest n_in with integer channel sizes (needs n_in % 512 == 0)
    batch = 16          # true batch (no batch padding -> BN batch stats exact)

    key = jax.random.PRNGKey(0)
    key, kx = jax.random.split(key)
    x = jax.random.normal(kx, (batch, n_in), dtype=jnp.float32)

    enc_params, key = init_params(key, _enc_cfg(n_in))
    dec_params, key = init_params(key, _dec_cfg(n_in))
    enc_cf = pad_and_flatten(enc_params)
    dec_cf = pad_and_flatten(dec_params)

    n_latent = n_in // 128   # encoder output width (4)

    y, z = autoencoder_forward(x, enc_cf, dec_cf, n_in, n_latent)
    y, z = jax.block_until_ready((y, z))

    y_ref, z_ref = ref_forward(x, enc_params, dec_params)
    y_ref, z_ref = jax.block_until_ready((y_ref, z_ref))

    def _max_rel_err(a, b):
        return float(jnp.max(jnp.abs(a - b)) / (jnp.max(jnp.abs(b)) + 1e-6))

    assert y.shape == (batch, n_in) and z.shape == (batch, n_latent)
    assert _max_rel_err(z, z_ref) < 5e-2, "latent mismatch vs reference"
    assert _max_rel_err(y, y_ref) < 5e-2, "reconstruction mismatch vs reference"
    print("KERNEL_OK")
</pallas_src>

<mosaic_0001>
module attributes {stable_mosaic.version = 11 : i64} {
  func.func @kernel(%arg0: memref<16x512xf32, #tpu.memory_space<vmem>>, %arg1: memref<512x64xf32, #tpu.memory_space<vmem>>, %arg2: memref<1x64xf32, #tpu.memory_space<vmem>>, %arg3: memref<1x64xf32, #tpu.memory_space<vmem>>, %arg4: memref<8x64x16xf32, #tpu.memory_space<vmem>>, %arg5: memref<8x1x16xf32, #tpu.memory_space<vmem>>, %arg6: memref<8x1x16xf32, #tpu.memory_space<vmem>>, %arg7: memref<8x16x64xf32, #tpu.memory_space<vmem>>, %arg8: memref<8x1x64xf32, #tpu.memory_space<vmem>>, %arg9: memref<8x1x64xf32, #tpu.memory_space<vmem>>, %arg10: memref<64x32xf32, #tpu.memory_space<vmem>>, %arg11: memref<1x32xf32, #tpu.memory_space<vmem>>, %arg12: memref<1x32xf32, #tpu.memory_space<vmem>>, %arg13: memref<16x32x8xf32, #tpu.memory_space<vmem>>, %arg14: memref<16x1x8xf32, #tpu.memory_space<vmem>>, %arg15: memref<16x1x8xf32, #tpu.memory_space<vmem>>, %arg16: memref<16x8x32xf32, #tpu.memory_space<vmem>>, %arg17: memref<16x1x32xf32, #tpu.memory_space<vmem>>, %arg18: memref<16x1x32xf32, #tpu.memory_space<vmem>>, %arg19: memref<32x16xf32, #tpu.memory_space<vmem>>, %arg20: memref<1x16xf32, #tpu.memory_space<vmem>>, %arg21: memref<1x16xf32, #tpu.memory_space<vmem>>, %arg22: memref<32x16x8xf32, #tpu.memory_space<vmem>>, %arg23: memref<32x1x8xf32, #tpu.memory_space<vmem>>, %arg24: memref<32x1x8xf32, #tpu.memory_space<vmem>>, %arg25: memref<32x8x16xf32, #tpu.memory_space<vmem>>, %arg26: memref<32x1x16xf32, #tpu.memory_space<vmem>>, %arg27: memref<32x1x16xf32, #tpu.memory_space<vmem>>, %arg28: memref<16x8xf32, #tpu.memory_space<vmem>>, %arg29: memref<1x8xf32, #tpu.memory_space<vmem>>, %arg30: memref<1x8xf32, #tpu.memory_space<vmem>>, %arg31: memref<64x8x8xf32, #tpu.memory_space<vmem>>, %arg32: memref<64x1x8xf32, #tpu.memory_space<vmem>>, %arg33: memref<64x1x8xf32, #tpu.memory_space<vmem>>, %arg34: memref<64x8x8xf32, #tpu.memory_space<vmem>>, %arg35: memref<64x1x8xf32, #tpu.memory_space<vmem>>, %arg36: memref<64x1x8xf32, #tpu.memory_space<vmem>>, %arg37: memref<8x8xf32, #tpu.memory_space<vmem>>, %arg38: memref<1x8xf32, #tpu.memory_space<vmem>>, %arg39: memref<1x8xf32, #tpu.memory_space<vmem>>, %arg40: memref<8x8xf32, #tpu.memory_space<vmem>>, %arg41: memref<16x8xf32, #tpu.memory_space<vmem>>) attributes {dimension_semantics = [], scalar_prefetch = 0 : i64, scratch_operands = 0 : i64, tpu.core_type = #tpu.core_type<tc>} {
    %c0 = arith.constant 0 : index
    %c0_0 = arith.constant 0 : index
    %0 = vector.load %arg0[%c0, %c0_0] : memref<16x512xf32, #tpu.memory_space<vmem>>, vector<16x512xf32>
    %c0_1 = arith.constant 0 : index
    %c0_2 = arith.constant 0 : index
    %1 = vector.load %arg1[%c0_1, %c0_2] : memref<512x64xf32, #tpu.memory_space<vmem>>, vector<512x64xf32>
    %cst = arith.constant dense<0.000000e+00> : vector<16x64xf32>
    %2 = tpu.matmul %0, %1, %cst {dimension_numbers = #tpu.dot_dimension_numbers<[1], [0], [0], [1], [0, 0, 1, 1], [], []>, precision = #tpu.contract_precision<fp32>} : vector<16x512xf32>, vector<512x64xf32>, vector<16x64xf32> -> vector<16x64xf32>
    %c0_3 = arith.constant 0 : index
    %c0_4 = arith.constant 0 : index
    %3 = vector.load %arg2[%c0_3, %c0_4] : memref<1x64xf32, #tpu.memory_space<vmem>>, vector<1x64xf32>
    %c0_5 = arith.constant 0 : index
    %c0_6 = arith.constant 0 : index
    %4 = vector.load %arg3[%c0_5, %c0_6] : memref<1x64xf32, #tpu.memory_space<vmem>>, vector<1x64xf32>
    %cst_7 = arith.constant dense<0.000000e+00> : vector<64xf32>
    %5 = vector.multi_reduction <add>, %2, %cst_7 [0] : vector<16x64xf32> to vector<64xf32>
    %6 = vector.shape_cast %5 : vector<64xf32> to vector<1x64xf32>
    %cst_8 = arith.constant 6.250000e-02 : f32
    %7 = vector.broadcast %cst_8 : f32 to vector<1x64xf32>
    %8 = arith.mulf %6, %7 : vector<1x64xf32>
    %9 = vector.broadcast %8 : vector<1x64xf32> to vector<16x64xf32>
    %10 = arith.subf %2, %9 : vector<16x64xf32>
    %11 = arith.mulf %10, %10 : vector<16x64xf32>
    %cst_9 = arith.constant dense<0.000000e+00> : vector<64xf32>
    %12 = vector.multi_reduction <add>, %11, %cst_9 [0] : vector<16x64xf32> to vector<64xf32>
    %13 = vector.shape_cast %12 : vector<64xf32> to vector<1x64xf32>
    %cst_10 = arith.constant 6.250000e-02 : f32
    %14 = vector.broadcast %cst_10 : f32 to vector<1x64xf32>
    %15 = arith.mulf %13, %14 : vector<1x64xf32>
    %cst_11 = arith.constant 9.99999974E-6 : f32
    %16 = vector.broadcast %cst_11 : f32 to vector<1x64xf32>
    %17 = arith.addf %15, %16 : vector<1x64xf32>
    %18 = math.rsqrt %17 : vector<1x64xf32>
    %19 = vector.broadcast %18 : vector<1x64xf32> to vector<16x64xf32>
    %20 = arith.mulf %10, %19 : vector<16x64xf32>
    %21 = vector.broadcast %3 : vector<1x64xf32> to vector<16x64xf32>
    %22 = arith.mulf %20, %21 : vector<16x64xf32>
    %23 = vector.broadcast %4 : vector<1x64xf32> to vector<16x64xf32>
    %24 = arith.addf %22, %23 : vector<16x64xf32>
    %cst_12 = arith.constant 0.000000e+00 : f32
    %25 = vector.broadcast %cst_12 : f32 to vector<16x64xf32>
    %26 = arith.maximumf %24, %25 : vector<16x64xf32>
    %c0_i32 = arith.constant 0 : i32
    %c8_i32 = arith.constant 8 : i32
    %27 = arith.addi %c0_i32, %c8_i32 : i32
    %c1_i32 = arith.constant 1 : i32
    %28 = scf.for %arg42 = %c0_i32 to %27 step %c1_i32 iter_args(%arg43 = %26) -> (vector<16x64xf32>)  : i32 {
      %142 = arith.index_cast %arg42 : i32 to index
      %c0_80 = arith.constant 0 : index
      %c0_81 = arith.constant 0 : index
      %143 = vector.load %arg4[%142, %c0_80, %c0_81] : memref<8x64x16xf32, #tpu.memory_space<vmem>>, vector<1x64x16xf32>
      %144 = vector.shape_cast %143 : vector<1x64x16xf32> to vector<64x16xf32>
      %cst_82 = arith.constant dense<0.000000e+00> : vector<16x16xf32>
      %145 = tpu.matmul %arg43, %144, %cst_82 {dimension_numbers = #tpu.dot_dimension_numbers<[1], [0], [0], [1], [0, 0, 1, 1], [], []>, precision = #tpu.contract_precision<fp32>} : vector<16x64xf32>, vector<64x16xf32>, vector<16x16xf32> -> vector<16x16xf32>
      %146 = arith.index_cast %arg42 : i32 to index
      %c0_83 = arith.constant 0 : index
      %c0_84 = arith.constant 0 : index
      %147 = vector.load %arg5[%146, %c0_83, %c0_84] : memref<8x1x16xf32, #tpu.memory_space<vmem>>, vector<1x1x16xf32>
      %148 = vector.shape_cast %147 : vector<1x1x16xf32> to vector<1x16xf32>
      %149 = arith.index_cast %arg42 : i32 to index
      %c0_85 = arith.constant 0 : index
      %c0_86 = arith.constant 0 : index
      %150 = vector.load %arg6[%149, %c0_85, %c0_86] : memref<8x1x16xf32, #tpu.memory_space<vmem>>, vector<1x1x16xf32>
      %151 = vector.shape_cast %150 : vector<1x1x16xf32> to vector<1x16xf32>
      %cst_87 = arith.constant dense<0.000000e+00> : vector<16xf32>
      %152 = vector.multi_reduction <add>, %145, %cst_87 [0] : vector<16x16xf32> to vector<16xf32>
      %153 = vector.shape_cast %152 : vector<16xf32> to vector<1x16xf32>
      %cst_88 = arith.constant 6.250000e-02 : f32
      %154 = vector.broadcast %cst_88 : f32 to vector<1x16xf32>
      %155 = arith.mulf %153, %154 : vector<1x16xf32>
      %156 = vector.broadcast %155 : vector<1x16xf32> to vector<16x16xf32>
      %157 = arith.subf %145, %156 : vector<16x16xf32>
      %158 = arith.mulf %157, %157 : vector<16x16xf32>
      %cst_89 = arith.constant dense<0.000000e+00> : vector<16xf32>
      %159 = vector.multi_reduction <add>, %158, %cst_89 [0] : vector<16x16xf32> to vector<16xf32>
      %160 = vector.shape_cast %159 : vector<16xf32> to vector<1x16xf32>
      %cst_90 = arith.constant 6.250000e-02 : f32
      %161 = vector.broadcast %cst_90 : f32 to vector<1x16xf32>
      %162 = arith.mulf %160, %161 : vector<1x16xf32>
      %cst_91 = arith.constant 9.99999974E-6 : f32
      %163 = vector.broadcast %cst_91 : f32 to vector<1x16xf32>
      %164 = arith.addf %162, %163 : vector<1x16xf32>
      %165 = math.rsqrt %164 : vector<1x16xf32>
      %166 = vector.broadcast %165 : vector<1x16xf32> to vector<16x16xf32>
      %167 = arith.mulf %157, %166 : vector<16x16xf32>
      %168 = vector.broadcast %148 : vector<1x16xf32> to vector<16x16xf32>
      %169 = arith.mulf %167, %168 : vector<16x16xf32>
      %170 = vector.broadcast %151 : vector<1x16xf32> to vector<16x16xf32>
      %171 = arith.addf %169, %170 : vector<16x16xf32>
      %cst_92 = arith.constant 0.000000e+00 : f32
      %172 = vector.broadcast %cst_92 : f32 to vector<16x16xf32>
      %173 = arith.maximumf %171, %172 : vector<16x16xf32>
      %174 = arith.index_cast %arg42 : i32 to index
      %c0_93 = arith.constant 0 : index
      %c0_94 = arith.constant 0 : index
      %175 = vector.load %arg7[%174, %c0_93, %c0_94] : memref<8x16x64xf32, #tpu.memory_space<vmem>>, vector<1x16x64xf32>
      %176 = vector.shape_cast %175 : vector<1x16x64xf32> to vector<16x64xf32>
      %cst_95 = arith.constant dense<0.000000e+00> : vector<16x64xf32>
      %177 = tpu.matmul %173, %176, %cst_95 {dimension_numbers = #tpu.dot_dimension_numbers<[1], [0], [0], [1], [0, 0, 1, 1], [], []>, precision = #tpu.contract_precision<fp32>} : vector<16x16xf32>, vector<16x64xf32>, vector<16x64xf32> -> vector<16x64xf32>
      %178 = arith.index_cast %arg42 : i32 to index
      %c0_96 = arith.constant 0 : index
      %c0_97 = arith.constant 0 : index
      %179 = vector.load %arg8[%178, %c0_96, %c0_97] : memref<8x1x64xf32, #tpu.memory_space<vmem>>, vector<1x1x64xf32>
      %180 = vector.shape_cast %179 : vector<1x1x64xf32> to vector<1x64xf32>
      %181 = arith.index_cast %arg42 : i32 to index
      %c0_98 = arith.constant 0 : index
      %c0_99 = arith.constant 0 : index
      %182 = vector.load %arg9[%181, %c0_98, %c0_99] : memref<8x1x64xf32, #tpu.memory_space<vmem>>, vector<1x1x64xf32>
      %183 = vector.shape_cast %182 : vector<1x1x64xf32> to vector<1x64xf32>
      %cst_100 = arith.constant dense<0.000000e+00> : vector<64xf32>
      %184 = vector.multi_reduction <add>, %177, %cst_100 [0] : vector<16x64xf32> to vector<64xf32>
      %185 = vector.shape_cast %184 : vector<64xf32> to vector<1x64xf32>
      %cst_101 = arith.constant 6.250000e-02 : f32
      %186 = vector.broadcast %cst_101 : f32 to vector<1x64xf32>
      %187 = arith.mulf %185, %186 : vector<1x64xf32>
      %188 = vector.broadcast %187 : vector<1x64xf32> to vector<16x64xf32>
      %189 = arith.subf %177, %188 : vector<16x64xf32>
      %190 = arith.mulf %189, %189 : vector<16x64xf32>
      %cst_102 = arith.constant dense<0.000000e+00> : vector<64xf32>
      %191 = vector.multi_reduction <add>, %190, %cst_102 [0] : vector<16x64xf32> to vector<64xf32>
      %192 = vector.shape_cast %191 : vector<64xf32> to vector<1x64xf32>
      %cst_103 = arith.constant 6.250000e-02 : f32
      %193 = vector.broadcast %cst_103 : f32 to vector<1x64xf32>
      %194 = arith.mulf %192, %193 : vector<1x64xf32>
      %cst_104 = arith.constant 9.99999974E-6 : f32
      %195 = vector.broadcast %cst_104 : f32 to vector<1x64xf32>
      %196 = arith.addf %194, %195 : vector<1x64xf32>
      %197 = math.rsqrt %196 : vector<1x64xf32>
      %198 = vector.broadcast %197 : vector<1x64xf32> to vector<16x64xf32>
      %199 = arith.mulf %189, %198 : vector<16x64xf32>
      %200 = vector.broadcast %180 : vector<1x64xf32> to vector<16x64xf32>
      %201 = arith.mulf %199, %200 : vector<16x64xf32>
      %202 = vector.broadcast %183 : vector<1x64xf32> to vector<16x64xf32>
      %203 = arith.addf %201, %202 : vector<16x64xf32>
      %204 = arith.addf %arg43, %203 : vector<16x64xf32>
      %cst_105 = arith.constant 0.000000e+00 : f32
      %205 = vector.broadcast %cst_105 : f32 to vector<16x64xf32>
      %206 = arith.maximumf %204, %205 : vector<16x64xf32>
      scf.yield %206 : vector<16x64xf32>
    }
    %c8_i32_13 = arith.constant 8 : i32
    %c0_14 = arith.constant 0 : index
    %c0_15 = arith.constant 0 : index
    %29 = vector.load %arg10[%c0_14, %c0_15] : memref<64x32xf32, #tpu.memory_space<vmem>>, vector<64x32xf32>
    %cst_16 = arith.constant dense<0.000000e+00> : vector<16x32xf32>
    %30 = tpu.matmul %28, %29, %cst_16 {dimension_numbers = #tpu.dot_dimension_numbers<[1], [0], [0], [1], [0, 0, 1, 1], [], []>, precision = #tpu.contract_precision<fp32>} : vector<16x64xf32>, vector<64x32xf32>, vector<16x32xf32> -> vector<16x32xf32>
    %c0_17 = arith.constant 0 : index
    %c0_18 = arith.constant 0 : index
    %31 = vector.load %arg11[%c0_17, %c0_18] : memref<1x32xf32, #tpu.memory_space<vmem>>, vector<1x32xf32>
    %c0_19 = arith.constant 0 : index
    %c0_20 = arith.constant 0 : index
    %32 = vector.load %arg12[%c0_19, %c0_20] : memref<1x32xf32, #tpu.memory_space<vmem>>, vector<1x32xf32>
    %cst_21 = arith.constant dense<0.000000e+00> : vector<32xf32>
    %33 = vector.multi_reduction <add>, %30, %cst_21 [0] : vector<16x32xf32> to vector<32xf32>
    %34 = vector.shape_cast %33 : vector<32xf32> to vector<1x32xf32>
    %cst_22 = arith.constant 6.250000e-02 : f32
    %35 = vector.broadcast %cst_22 : f32 to vector<1x32xf32>
    %36 = arith.mulf %34, %35 : vector<1x32xf32>
    %37 = vector.broadcast %36 : vector<1x32xf32> to vector<16x32xf32>
    %38 = arith.subf %30, %37 : vector<16x32xf32>
    %39 = arith.mulf %38, %38 : vector<16x32xf32>
    %cst_23 = arith.constant dense<0.000000e+00> : vector<32xf32>
    %40 = vector.multi_reduction <add>, %39, %cst_23 [0] : vector<16x32xf32> to vector<32xf32>
    %41 = vector.shape_cast %40 : vector<32xf32> to vector<1x32xf32>
    %cst_24 = arith.constant 6.250000e-02 : f32
    %42 = vector.broadcast %cst_24 : f32 to vector<1x32xf32>
    %43 = arith.mulf %41, %42 : vector<1x32xf32>
    %cst_25 = arith.constant 9.99999974E-6 : f32
    %44 = vector.broadcast %cst_25 : f32 to vector<1x32xf32>
    %45 = arith.addf %43, %44 : vector<1x32xf32>
    %46 = math.rsqrt %45 : vector<1x32xf32>
    %47 = vector.broadcast %46 : vector<1x32xf32> to vector<16x32xf32>
    %48 = arith.mulf %38, %47 : vector<16x32xf32>
    %49 = vector.broadcast %31 : vector<1x32xf32> to vector<16x32xf32>
    %50 = arith.mulf %48, %49 : vector<16x32xf32>
    %51 = vector.broadcast %32 : vector<1x32xf32> to vector<16x32xf32>
    %52 = arith.addf %50, %51 : vector<16x32xf32>
    %cst_26 = arith.constant 0.000000e+00 : f32
    %53 = vector.broadcast %cst_26 : f32 to vector<16x32xf32>
    %54 = arith.maximumf %52, %53 : vector<16x32xf32>
    %c0_i32_27 = arith.constant 0 : i32
    %c16_i32 = arith.constant 16 : i32
    %55 = arith.addi %c0_i32_27, %c16_i32 : i32
    %c1_i32_28 = arith.constant 1 : i32
    %56 = scf.for %arg42 = %c0_i32_27 to %55 step %c1_i32_28 iter_args(%arg43 = %54) -> (vector<16x32xf32>)  : i32 {
      %142 = arith.index_cast %arg42 : i32 to index
      %c0_80 = arith.constant 0 : index
      %c0_81 = arith.constant 0 : index
      %143 = vector.load %arg13[%142, %c0_80, %c0_81] : memref<16x32x8xf32, #tpu.memory_space<vmem>>, vector<1x32x8xf32>
      %144 = vector.shape_cast %143 : vector<1x32x8xf32> to vector<32x8xf32>
      %cst_82 = arith.constant dense<0.000000e+00> : vector<16x8xf32>
      %145 = tpu.matmul %arg43, %144, %cst_82 {dimension_numbers = #tpu.dot_dimension_numbers<[1], [0], [0], [1], [0, 0, 1, 1], [], []>, precision = #tpu.contract_precision<fp32>} : vector<16x32xf32>, vector<32x8xf32>, vector<16x8xf32> -> vector<16x8xf32>
      %146 = arith.index_cast %arg42 : i32 to index
      %c0_83 = arith.constant 0 : index
      %c0_84 = arith.constant 0 : index
      %147 = vector.load %arg14[%146, %c0_83, %c0_84] : memref<16x1x8xf32, #tpu.memory_space<vmem>>, vector<1x1x8xf32>
      %148 = vector.shape_cast %147 : vector<1x1x8xf32> to vector<1x8xf32>
      %149 = arith.index_cast %arg42 : i32 to index
      %c0_85 = arith.constant 0 : index
      %c0_86 = arith.constant 0 : index
      %150 = vector.load %arg15[%149, %c0_85, %c0_86] : memref<16x1x8xf32, #tpu.memory_space<vmem>>, vector<1x1x8xf32>
      %151 = vector.shape_cast %150 : vector<1x1x8xf32> to vector<1x8xf32>
      %cst_87 = arith.constant dense<0.000000e+00> : vector<8xf32>
      %152 = vector.multi_reduction <add>, %145, %cst_87 [0] : vector<16x8xf32> to vector<8xf32>
      %153 = vector.shape_cast %152 : vector<8xf32> to vector<1x8xf32>
      %cst_88 = arith.constant 6.250000e-02 : f32
      %154 = vector.broadcast %cst_88 : f32 to vector<1x8xf32>
      %155 = arith.mulf %153, %154 : vector<1x8xf32>
      %156 = vector.broadcast %155 : vector<1x8xf32> to vector<16x8xf32>
      %157 = arith.subf %145, %156 : vector<16x8xf32>
      %158 = arith.mulf %157, %157 : vector<16x8xf32>
      %cst_89 = arith.constant dense<0.000000e+00> : vector<8xf32>
      %159 = vector.multi_reduction <add>, %158, %cst_89 [0] : vector<16x8xf32> to vector<8xf32>
      %160 = vector.shape_cast %159 : vector<8xf32> to vector<1x8xf32>
      %cst_90 = arith.constant 6.250000e-02 : f32
      %161 = vector.broadcast %cst_90 : f32 to vector<1x8xf32>
      %162 = arith.mulf %160, %161 : vector<1x8xf32>
      %cst_91 = arith.constant 9.99999974E-6 : f32
      %163 = vector.broadcast %cst_91 : f32 to vector<1x8xf32>
      %164 = arith.addf %162, %163 : vector<1x8xf32>
      %165 = math.rsqrt %164 : vector<1x8xf32>
      %166 = vector.broadcast %165 : vector<1x8xf32> to vector<16x8xf32>
      %167 = arith.mulf %157, %166 : vector<16x8xf32>
      %168 = vector.broadcast %148 : vector<1x8xf32> to vector<16x8xf32>
      %169 = arith.mulf %167, %168 : vector<16x8xf32>
      %170 = vector.broadcast %151 : vector<1x8xf32> to vector<16x8xf32>
      %171 = arith.addf %169, %170 : vector<16x8xf32>
      %cst_92 = arith.constant 0.000000e+00 : f32
      %172 = vector.broadcast %cst_92 : f32 to vector<16x8xf32>
      %173 = arith.maximumf %171, %172 : vector<16x8xf32>
      %174 = arith.index_cast %arg42 : i32 to index
      %c0_93 = arith.constant 0 : index
      %c0_94 = arith.constant 0 : index
      %175 = vector.load %arg16[%174, %c0_93, %c0_94] : memref<16x8x32xf32, #tpu.memory_space<vmem>>, vector<1x8x32xf32>
      %176 = vector.shape_cast %175 : vector<1x8x32xf32> to vector<8x32xf32>
      %cst_95 = arith.constant dense<0.000000e+00> : vector<16x32xf32>
      %177 = tpu.matmul %173, %176, %cst_95 {dimension_numbers = #tpu.dot_dimension_numbers<[1], [0], [0], [1], [0, 0, 1, 1], [], []>, precision = #tpu.contract_precision<fp32>} : vector<16x8xf32>, vector<8x32xf32>, vector<16x32xf32> -> vector<16x32xf32>
      %178 = arith.index_cast %arg42 : i32 to index
      %c0_96 = arith.constant 0 : index
      %c0_97 = arith.constant 0 : index
      %179 = vector.load %arg17[%178, %c0_96, %c0_97] : memref<16x1x32xf32, #tpu.memory_space<vmem>>, vector<1x1x32xf32>
      %180 = vector.shape_cast %179 : vector<1x1x32xf32> to vector<1x32xf32>
      %181 = arith.index_cast %arg42 : i32 to index
      %c0_98 = arith.constant 0 : index
      %c0_99 = arith.constant 0 : index
      %182 = vector.load %arg18[%181, %c0_98, %c0_99] : memref<16x1x32xf32, #tpu.memory_space<vmem>>, vector<1x1x32xf32>
      %183 = vector.shape_cast %182 : vector<1x1x32xf32> to vector<1x32xf32>
      %cst_100 = arith.constant dense<0.000000e+00> : vector<32xf32>
      %184 = vector.multi_reduction <add>, %177, %cst_100 [0] : vector<16x32xf32> to vector<32xf32>
      %185 = vector.shape_cast %184 : vector<32xf32> to vector<1x32xf32>
      %cst_101 = arith.constant 6.250000e-02 : f32
      %186 = vector.broadcast %cst_101 : f32 to vector<1x32xf32>
      %187 = arith.mulf %185, %186 : vector<1x32xf32>
      %188 = vector.broadcast %187 : vector<1x32xf32> to vector<16x32xf32>
      %189 = arith.subf %177, %188 : vector<16x32xf32>
      %190 = arith.mulf %189, %189 : vector<16x32xf32>
      %cst_102 = arith.constant dense<0.000000e+00> : vector<32xf32>
      %191 = vector.multi_reduction <add>, %190, %cst_102 [0] : vector<16x32xf32> to vector<32xf32>
      %192 = vector.shape_cast %191 : vector<32xf32> to vector<1x32xf32>
      %cst_103 = arith.constant 6.250000e-02 : f32
      %193 = vector.broadcast %cst_103 : f32 to vector<1x32xf32>
      %194 = arith.mulf %192, %193 : vector<1x32xf32>
      %cst_104 = arith.constant 9.99999974E-6 : f32
      %195 = vector.broadcast %cst_104 : f32 to vector<1x32xf32>
      %196 = arith.addf %194, %195 : vector<1x32xf32>
      %197 = math.rsqrt %196 : vector<1x32xf32>
      %198 = vector.broadcast %197 : vector<1x32xf32> to vector<16x32xf32>
      %199 = arith.mulf %189, %198 : vector<16x32xf32>
      %200 = vector.broadcast %180 : vector<1x32xf32> to vector<16x32xf32>
      %201 = arith.mulf %199, %200 : vector<16x32xf32>
      %202 = vector.broadcast %183 : vector<1x32xf32> to vector<16x32xf32>
      %203 = arith.addf %201, %202 : vector<16x32xf32>
      %204 = arith.addf %arg43, %203 : vector<16x32xf32>
      %cst_105 = arith.constant 0.000000e+00 : f32
      %205 = vector.broadcast %cst_105 : f32 to vector<16x32xf32>
      %206 = arith.maximumf %204, %205 : vector<16x32xf32>
      scf.yield %206 : vector<16x32xf32>
    }
    %c16_i32_29 = arith.constant 16 : i32
    %c0_30 = arith.constant 0 : index
    %c0_31 = arith.constant 0 : index
    %57 = vector.load %arg19[%c0_30, %c0_31] : memref<32x16xf32, #tpu.memory_space<vmem>>, vector<32x16xf32>
    %cst_32 = arith.constant dense<0.000000e+00> : vector<16x16xf32>
    %58 = tpu.matmul %56, %57, %cst_32 {dimension_numbers = #tpu.dot_dimension_numbers<[1], [0], [0], [1], [0, 0, 1, 1], [], []>, precision = #tpu.contract_precision<fp32>} : vector<16x32xf32>, vector<32x16xf32>, vector<16x16xf32> -> vector<16x16xf32>
    %c0_33 = arith.constant 0 : index
    %c0_34 = arith.constant 0 : index
    %59 = vector.load %arg20[%c0_33, %c0_34] : memref<1x16xf32, #tpu.memory_space<vmem>>, vector<1x16xf32>
    %c0_35 = arith.constant 0 : index
    %c0_36 = arith.constant 0 : index
    %60 = vector.load %arg21[%c0_35, %c0_36] : memref<1x16xf32, #tpu.memory_space<vmem>>, vector<1x16xf32>
    %cst_37 = arith.constant dense<0.000000e+00> : vector<16xf32>
    %61 = vector.multi_reduction <add>, %58, %cst_37 [0] : vector<16x16xf32> to vector<16xf32>
    %62 = vector.shape_cast %61 : vector<16xf32> to vector<1x16xf32>
    %cst_38 = arith.constant 6.250000e-02 : f32
    %63 = vector.broadcast %cst_38 : f32 to vector<1x16xf32>
    %64 = arith.mulf %62, %63 : vector<1x16xf32>
    %65 = vector.broadcast %64 : vector<1x16xf32> to vector<16x16xf32>
    %66 = arith.subf %58, %65 : vector<16x16xf32>
    %67 = arith.mulf %66, %66 : vector<16x16xf32>
    %cst_39 = arith.constant dense<0.000000e+00> : vector<16xf32>
    %68 = vector.multi_reduction <add>, %67, %cst_39 [0] : vector<16x16xf32> to vector<16xf32>
    %69 = vector.shape_cast %68 : vector<16xf32> to vector<1x16xf32>
    %cst_40 = arith.constant 6.250000e-02 : f32
    %70 = vector.broadcast %cst_40 : f32 to vector<1x16xf32>
    %71 = arith.mulf %69, %70 : vector<1x16xf32>
    %cst_41 = arith.constant 9.99999974E-6 : f32
    %72 = vector.broadcast %cst_41 : f32 to vector<1x16xf32>
    %73 = arith.addf %71, %72 : vector<1x16xf32>
    %74 = math.rsqrt %73 : vector<1x16xf32>
    %75 = vector.broadcast %74 : vector<1x16xf32> to vector<16x16xf32>
    %76 = arith.mulf %66, %75 : vector<16x16xf32>
    %77 = vector.broadcast %59 : vector<1x16xf32> to vector<16x16xf32>
    %78 = arith.mulf %76, %77 : vector<16x16xf32>
    %79 = vector.broadcast %60 : vector<1x16xf32> to vector<16x16xf32>
    %80 = arith.addf %78, %79 : vector<16x16xf32>
    %cst_42 = arith.constant 0.000000e+00 : f32
    %81 = vector.broadcast %cst_42 : f32 to vector<16x16xf32>
    %82 = arith.maximumf %80, %81 : vector<16x16xf32>
    %c0_i32_43 = arith.constant 0 : i32
    %c32_i32 = arith.constant 32 : i32
    %83 = arith.addi %c0_i32_43, %c32_i32 : i32
    %c1_i32_44 = arith.constant 1 : i32
    %84 = scf.for %arg42 = %c0_i32_43 to %83 step %c1_i32_44 iter_args(%arg43 = %82) -> (vector<16x16xf32>)  : i32 {
      %142 = arith.index_cast %arg42 : i32 to index
      %c0_80 = arith.constant 0 : index
      %c0_81 = arith.constant 0 : index
      %143 = vector.load %arg22[%142, %c0_80, %c0_81] : memref<32x16x8xf32, #tpu.memory_space<vmem>>, vector<1x16x8xf32>
      %144 = vector.shape_cast %143 : vector<1x16x8xf32> to vector<16x8xf32>
      %cst_82 = arith.constant dense<0.000000e+00> : vector<16x8xf32>
      %145 = tpu.matmul %arg43, %144, %cst_82 {dimension_numbers = #tpu.dot_dimension_numbers<[1], [0], [0], [1], [0, 0, 1, 1], [], []>, precision = #tpu.contract_precision<fp32>} : vector<16x16xf32>, vector<16x8xf32>, vector<16x8xf32> -> vector<16x8xf32>
      %146 = arith.index_cast %arg42 : i32 to index
      %c0_83 = arith.constant 0 : index
      %c0_84 = arith.constant 0 : index
      %147 = vector.load %arg23[%146, %c0_83, %c0_84] : memref<32x1x8xf32, #tpu.memory_space<vmem>>, vector<1x1x8xf32>
      %148 = vector.shape_cast %147 : vector<1x1x8xf32> to vector<1x8xf32>
      %149 = arith.index_cast %arg42 : i32 to index
      %c0_85 = arith.constant 0 : index
      %c0_86 = arith.constant 0 : index
      %150 = vector.load %arg24[%149, %c0_85, %c0_86] : memref<32x1x8xf32, #tpu.memory_space<vmem>>, vector<1x1x8xf32>
      %151 = vector.shape_cast %150 : vector<1x1x8xf32> to vector<1x8xf32>
      %cst_87 = arith.constant dense<0.000000e+00> : vector<8xf32>
      %152 = vector.multi_reduction <add>, %145, %cst_87 [0] : vector<16x8xf32> to vector<8xf32>
      %153 = vector.shape_cast %152 : vector<8xf32> to vector<1x8xf32>
      %cst_88 = arith.constant 6.250000e-02 : f32
      %154 = vector.broadcast %cst_88 : f32 to vector<1x8xf32>
      %155 = arith.mulf %153, %154 : vector<1x8xf32>
      %156 = vector.broadcast %155 : vector<1x8xf32> to vector<16x8xf32>
      %157 = arith.subf %145, %156 : vector<16x8xf32>
      %158 = arith.mulf %157, %157 : vector<16x8xf32>
      %cst_89 = arith.constant dense<0.000000e+00> : vector<8xf32>
      %159 = vector.multi_reduction <add>, %158, %cst_89 [0] : vector<16x8xf32> to vector<8xf32>
      %160 = vector.shape_cast %159 : vector<8xf32> to vector<1x8xf32>
      %cst_90 = arith.constant 6.250000e-02 : f32
      %161 = vector.broadcast %cst_90 : f32 to vector<1x8xf32>
      %162 = arith.mulf %160, %161 : vector<1x8xf32>
      %cst_91 = arith.constant 9.99999974E-6 : f32
      %163 = vector.broadcast %cst_91 : f32 to vector<1x8xf32>
      %164 = arith.addf %162, %163 : vector<1x8xf32>
      %165 = math.rsqrt %164 : vector<1x8xf32>
      %166 = vector.broadcast %165 : vector<1x8xf32> to vector<16x8xf32>
      %167 = arith.mulf %157, %166 : vector<16x8xf32>
      %168 = vector.broadcast %148 : vector<1x8xf32> to vector<16x8xf32>
      %169 = arith.mulf %167, %168 : vector<16x8xf32>
      %170 = vector.broadcast %151 : vector<1x8xf32> to vector<16x8xf32>
      %171 = arith.addf %169, %170 : vector<16x8xf32>
      %cst_92 = arith.constant 0.000000e+00 : f32
      %172 = vector.broadcast %cst_92 : f32 to vector<16x8xf32>
      %173 = arith.maximumf %171, %172 : vector<16x8xf32>
      %174 = arith.index_cast %arg42 : i32 to index
      %c0_93 = arith.constant 0 : index
      %c0_94 = arith.constant 0 : index
      %175 = vector.load %arg25[%174, %c0_93, %c0_94] : memref<32x8x16xf32, #tpu.memory_space<vmem>>, vector<1x8x16xf32>
      %176 = vector.shape_cast %175 : vector<1x8x16xf32> to vector<8x16xf32>
      %cst_95 = arith.constant dense<0.000000e+00> : vector<16x16xf32>
      %177 = tpu.matmul %173, %176, %cst_95 {dimension_numbers = #tpu.dot_dimension_numbers<[1], [0], [0], [1], [0, 0, 1, 1], [], []>, precision = #tpu.contract_precision<fp32>} : vector<16x8xf32>, vector<8x16xf32>, vector<16x16xf32> -> vector<16x16xf32>
      %178 = arith.index_cast %arg42 : i32 to index
      %c0_96 = arith.constant 0 : index
      %c0_97 = arith.constant 0 : index
      %179 = vector.load %arg26[%178, %c0_96, %c0_97] : memref<32x1x16xf32, #tpu.memory_space<vmem>>, vector<1x1x16xf32>
      %180 = vector.shape_cast %179 : vector<1x1x16xf32> to vector<1x16xf32>
      %181 = arith.index_cast %arg42 : i32 to index
      %c0_98 = arith.constant 0 : index
      %c0_99 = arith.constant 0 : index
      %182 = vector.load %arg27[%181, %c0_98, %c0_99] : memref<32x1x16xf32, #tpu.memory_space<vmem>>, vector<1x1x16xf32>
      %183 = vector.shape_cast %182 : vector<1x1x16xf32> to vector<1x16xf32>
      %cst_100 = arith.constant dense<0.000000e+00> : vector<16xf32>
      %184 = vector.multi_reduction <add>, %177, %cst_100 [0] : vector<16x16xf32> to vector<16xf32>
      %185 = vector.shape_cast %184 : vector<16xf32> to vector<1x16xf32>
      %cst_101 = arith.constant 6.250000e-02 : f32
      %186 = vector.broadcast %cst_101 : f32 to vector<1x16xf32>
      %187 = arith.mulf %185, %186 : vector<1x16xf32>
      %188 = vector.broadcast %187 : vector<1x16xf32> to vector<16x16xf32>
      %189 = arith.subf %177, %188 : vector<16x16xf32>
      %190 = arith.mulf %189, %189 : vector<16x16xf32>
      %cst_102 = arith.constant dense<0.000000e+00> : vector<16xf32>
      %191 = vector.multi_reduction <add>, %190, %cst_102 [0] : vector<16x16xf32> to vector<16xf32>
      %192 = vector.shape_cast %191 : vector<16xf32> to vector<1x16xf32>
      %cst_103 = arith.constant 6.250000e-02 : f32
      %193 = vector.broadcast %cst_103 : f32 to vector<1x16xf32>
      %194 = arith.mulf %192, %193 : vector<1x16xf32>
      %cst_104 = arith.constant 9.99999974E-6 : f32
      %195 = vector.broadcast %cst_104 : f32 to vector<1x16xf32>
      %196 = arith.addf %194, %195 : vector<1x16xf32>
      %197 = math.rsqrt %196 : vector<1x16xf32>
      %198 = vector.broadcast %197 : vector<1x16xf32> to vector<16x16xf32>
      %199 = arith.mulf %189, %198 : vector<16x16xf32>
      %200 = vector.broadcast %180 : vector<1x16xf32> to vector<16x16xf32>
      %201 = arith.mulf %199, %200 : vector<16x16xf32>
      %202 = vector.broadcast %183 : vector<1x16xf32> to vector<16x16xf32>
      %203 = arith.addf %201, %202 : vector<16x16xf32>
      %204 = arith.addf %arg43, %203 : vector<16x16xf32>
      %cst_105 = arith.constant 0.000000e+00 : f32
      %205 = vector.broadcast %cst_105 : f32 to vector<16x16xf32>
      %206 = arith.maximumf %204, %205 : vector<16x16xf32>
      scf.yield %206 : vector<16x16xf32>
    }
    %c32_i32_45 = arith.constant 32 : i32
    %c0_46 = arith.constant 0 : index
    %c0_47 = arith.constant 0 : index
    %85 = vector.load %arg28[%c0_46, %c0_47] : memref<16x8xf32, #tpu.memory_space<vmem>>, vector<16x8xf32>
    %cst_48 = arith.constant dense<0.000000e+00> : vector<16x8xf32>
    %86 = tpu.matmul %84, %85, %cst_48 {dimension_numbers = #tpu.dot_dimension_numbers<[1], [0], [0], [1], [0, 0, 1, 1], [], []>, precision = #tpu.contract_precision<fp32>} : vector<16x16xf32>, vector<16x8xf32>, vector<16x8xf32> -> vector<16x8xf32>
    %c0_49 = arith.constant 0 : index
    %c0_50 = arith.constant 0 : index
    %87 = vector.load %arg29[%c0_49, %c0_50] : memref<1x8xf32, #tpu.memory_space<vmem>>, vector<1x8xf32>
    %c0_51 = arith.constant 0 : index
    %c0_52 = arith.constant 0 : index
    %88 = vector.load %arg30[%c0_51, %c0_52] : memref<1x8xf32, #tpu.memory_space<vmem>>, vector<1x8xf32>
    %cst_53 = arith.constant dense<0.000000e+00> : vector<8xf32>
    %89 = vector.multi_reduction <add>, %86, %cst_53 [0] : vector<16x8xf32> to vector<8xf32>
    %90 = vector.shape_cast %89 : vector<8xf32> to vector<1x8xf32>
    %cst_54 = arith.constant 6.250000e-02 : f32
    %91 = vector.broadcast %cst_54 : f32 to vector<1x8xf32>
    %92 = arith.mulf %90, %91 : vector<1x8xf32>
    %93 = vector.broadcast %92 : vector<1x8xf32> to vector<16x8xf32>
    %94 = arith.subf %86, %93 : vector<16x8xf32>
    %95 = arith.mulf %94, %94 : vector<16x8xf32>
    %cst_55 = arith.constant dense<0.000000e+00> : vector<8xf32>
    %96 = vector.multi_reduction <add>, %95, %cst_55 [0] : vector<16x8xf32> to vector<8xf32>
    %97 = vector.shape_cast %96 : vector<8xf32> to vector<1x8xf32>
    %cst_56 = arith.constant 6.250000e-02 : f32
    %98 = vector.broadcast %cst_56 : f32 to vector<1x8xf32>
    %99 = arith.mulf %97, %98 : vector<1x8xf32>
    %cst_57 = arith.constant 9.99999974E-6 : f32
    %100 = vector.broadcast %cst_57 : f32 to vector<1x8xf32>
    %101 = arith.addf %99, %100 : vector<1x8xf32>
    %102 = math.rsqrt %101 : vector<1x8xf32>
    %103 = vector.broadcast %102 : vector<1x8xf32> to vector<16x8xf32>
    %104 = arith.mulf %94, %103 : vector<16x8xf32>
    %105 = vector.broadcast %87 : vector<1x8xf32> to vector<16x8xf32>
    %106 = arith.mulf %104, %105 : vector<16x8xf32>
    %107 = vector.broadcast %88 : vector<1x8xf32> to vector<16x8xf32>
    %108 = arith.addf %106, %107 : vector<16x8xf32>
    %cst_58 = arith.constant 0.000000e+00 : f32
    %109 = vector.broadcast %cst_58 : f32 to vector<16x8xf32>
    %110 = arith.maximumf %108, %109 : vector<16x8xf32>
    %c0_i32_59 = arith.constant 0 : i32
    %c64_i32 = arith.constant 64 : i32
    %111 = arith.addi %c0_i32_59, %c64_i32 : i32
    %c1_i32_60 = arith.constant 1 : i32
    %112 = scf.for %arg42 = %c0_i32_59 to %111 step %c1_i32_60 iter_args(%arg43 = %110) -> (vector<16x8xf32>)  : i32 {
      %142 = arith.index_cast %arg42 : i32 to index
      %c0_80 = arith.constant 0 : index
      %c0_81 = arith.constant 0 : index
      %143 = vector.load %arg31[%142, %c0_80, %c0_81] : memref<64x8x8xf32, #tpu.memory_space<vmem>>, vector<1x8x8xf32>
      %144 = vector.shape_cast %143 : vector<1x8x8xf32> to vector<8x8xf32>
      %cst_82 = arith.constant dense<0.000000e+00> : vector<16x8xf32>
      %145 = tpu.matmul %arg43, %144, %cst_82 {dimension_numbers = #tpu.dot_dimension_numbers<[1], [0], [0], [1], [0, 0, 1, 1], [], []>, precision = #tpu.contract_precision<fp32>} : vector<16x8xf32>, vector<8x8xf32>, vector<16x8xf32> -> vector<16x8xf32>
      %146 = arith.index_cast %arg42 : i32 to index
      %c0_83 = arith.constant 0 : index
      %c0_84 = arith.constant 0 : index
      %147 = vector.load %arg32[%146, %c0_83, %c0_84] : memref<64x1x8xf32, #tpu.memory_space<vmem>>, vector<1x1x8xf32>
      %148 = vector.shape_cast %147 : vector<1x1x8xf32> to vector<1x8xf32>
      %149 = arith.index_cast %arg42 : i32 to index
      %c0_85 = arith.constant 0 : index
      %c0_86 = arith.constant 0 : index
      %150 = vector.load %arg33[%149, %c0_85, %c0_86] : memref<64x1x8xf32, #tpu.memory_space<vmem>>, vector<1x1x8xf32>
      %151 = vector.shape_cast %150 : vector<1x1x8xf32> to vector<1x8xf32>
      %cst_87 = arith.constant dense<0.000000e+00> : vector<8xf32>
      %152 = vector.multi_reduction <add>, %145, %cst_87 [0] : vector<16x8xf32> to vector<8xf32>
      %153 = vector.shape_cast %152 : vector<8xf32> to vector<1x8xf32>
      %cst_88 = arith.constant 6.250000e-02 : f32
      %154 = vector.broadcast %cst_88 : f32 to vector<1x8xf32>
      %155 = arith.mulf %153, %154 : vector<1x8xf32>
      %156 = vector.broadcast %155 : vector<1x8xf32> to vector<16x8xf32>
      %157 = arith.subf %145, %156 : vector<16x8xf32>
      %158 = arith.mulf %157, %157 : vector<16x8xf32>
      %cst_89 = arith.constant dense<0.000000e+00> : vector<8xf32>
      %159 = vector.multi_reduction <add>, %158, %cst_89 [0] : vector<16x8xf32> to vector<8xf32>
      %160 = vector.shape_cast %159 : vector<8xf32> to vector<1x8xf32>
      %cst_90 = arith.constant 6.250000e-02 : f32
      %161 = vector.broadcast %cst_90 : f32 to vector<1x8xf32>
      %162 = arith.mulf %160, %161 : vector<1x8xf32>
      %cst_91 = arith.constant 9.99999974E-6 : f32
      %163 = vector.broadcast %cst_91 : f32 to vector<1x8xf32>
      %164 = arith.addf %162, %163 : vector<1x8xf32>
      %165 = math.rsqrt %164 : vector<1x8xf32>
      %166 = vector.broadcast %165 : vector<1x8xf32> to vector<16x8xf32>
      %167 = arith.mulf %157, %166 : vector<16x8xf32>
      %168 = vector.broadcast %148 : vector<1x8xf32> to vector<16x8xf32>
      %169 = arith.mulf %167, %168 : vector<16x8xf32>
      %170 = vector.broadcast %151 : vector<1x8xf32> to vector<16x8xf32>
      %171 = arith.addf %169, %170 : vector<16x8xf32>
      %cst_92 = arith.constant 0.000000e+00 : f32
      %172 = vector.broadcast %cst_92 : f32 to vector<16x8xf32>
      %173 = arith.maximumf %171, %172 : vector<16x8xf32>
      %174 = arith.index_cast %arg42 : i32 to index
      %c0_93 = arith.constant 0 : index
      %c0_94 = arith.constant 0 : index
      %175 = vector.load %arg34[%174, %c0_93, %c0_94] : memref<64x8x8xf32, #tpu.memory_space<vmem>>, vector<1x8x8xf32>
      %176 = vector.shape_cast %175 : vector<1x8x8xf32> to vector<8x8xf32>
      %cst_95 = arith.constant dense<0.000000e+00> : vector<16x8xf32>
      %177 = tpu.matmul %173, %176, %cst_95 {dimension_numbers = #tpu.dot_dimension_numbers<[1], [0], [0], [1], [0, 0, 1, 1], [], []>, precision = #tpu.contract_precision<fp32>} : vector<16x8xf32>, vector<8x8xf32>, vector<16x8xf32> -> vector<16x8xf32>
      %178 = arith.index_cast %arg42 : i32 to index
      %c0_96 = arith.constant 0 : index
      %c0_97 = arith.constant 0 : index
      %179 = vector.load %arg35[%178, %c0_96, %c0_97] : memref<64x1x8xf32, #tpu.memory_space<vmem>>, vector<1x1x8xf32>
      %180 = vector.shape_cast %179 : vector<1x1x8xf32> to vector<1x8xf32>
      %181 = arith.index_cast %arg42 : i32 to index
      %c0_98 = arith.constant 0 : index
      %c0_99 = arith.constant 0 : index
      %182 = vector.load %arg36[%181, %c0_98, %c0_99] : memref<64x1x8xf32, #tpu.memory_space<vmem>>, vector<1x1x8xf32>
      %183 = vector.shape_cast %182 : vector<1x1x8xf32> to vector<1x8xf32>
      %cst_100 = arith.constant dense<0.000000e+00> : vector<8xf32>
      %184 = vector.multi_reduction <add>, %177, %cst_100 [0] : vector<16x8xf32> to vector<8xf32>
      %185 = vector.shape_cast %184 : vector<8xf32> to vector<1x8xf32>
      %cst_101 = arith.constant 6.250000e-02 : f32
      %186 = vector.broadcast %cst_101 : f32 to vector<1x8xf32>
      %187 = arith.mulf %185, %186 : vector<1x8xf32>
      %188 = vector.broadcast %187 : vector<1x8xf32> to vector<16x8xf32>
      %189 = arith.subf %177, %188 : vector<16x8xf32>
      %190 = arith.mulf %189, %189 : vector<16x8xf32>
      %cst_102 = arith.constant dense<0.000000e+00> : vector<8xf32>
      %191 = vector.multi_reduction <add>, %190, %cst_102 [0] : vector<16x8xf32> to vector<8xf32>
      %192 = vector.shape_cast %191 : vector<8xf32> to vector<1x8xf32>
      %cst_103 = arith.constant 6.250000e-02 : f32
      %193 = vector.broadcast %cst_103 : f32 to vector<1x8xf32>
      %194 = arith.mulf %192, %193 : vector<1x8xf32>
      %cst_104 = arith.constant 9.99999974E-6 : f32
      %195 = vector.broadcast %cst_104 : f32 to vector<1x8xf32>
      %196 = arith.addf %194, %195 : vector<1x8xf32>
      %197 = math.rsqrt %196 : vector<1x8xf32>
      %198 = vector.broadcast %197 : vector<1x8xf32> to vector<16x8xf32>
      %199 = arith.mulf %189, %198 : vector<16x8xf32>
      %200 = vector.broadcast %180 : vector<1x8xf32> to vector<16x8xf32>
      %201 = arith.mulf %199, %200 : vector<16x8xf32>
      %202 = vector.broadcast %183 : vector<1x8xf32> to vector<16x8xf32>
      %203 = arith.addf %201, %202 : vector<16x8xf32>
      %204 = arith.addf %arg43, %203 : vector<16x8xf32>
      %cst_105 = arith.constant 0.000000e+00 : f32
      %205 = vector.broadcast %cst_105 : f32 to vector<16x8xf32>
      %206 = arith.maximumf %204, %205 : vector<16x8xf32>
      scf.yield %206 : vector<16x8xf32>
    }
    %c64_i32_61 = arith.constant 64 : i32
    %c0_62 = arith.constant 0 : index
    %c0_63 = arith.constant 0 : index
    %113 = vector.load %arg37[%c0_62, %c0_63] : memref<8x8xf32, #tpu.memory_space<vmem>>, vector<8x8xf32>
    %cst_64 = arith.constant dense<0.000000e+00> : vector<16x8xf32>
    %114 = tpu.matmul %112, %113, %cst_64 {dimension_numbers = #tpu.dot_dimension_numbers<[1], [0], [0], [1], [0, 0, 1, 1], [], []>, precision = #tpu.contract_precision<fp32>} : vector<16x8xf32>, vector<8x8xf32>, vector<16x8xf32> -> vector<16x8xf32>
    %c0_65 = arith.constant 0 : index
    %c0_66 = arith.constant 0 : index
    %115 = vector.load %arg38[%c0_65, %c0_66] : memref<1x8xf32, #tpu.memory_space<vmem>>, vector<1x8xf32>
    %c0_67 = arith.constant 0 : index
    %c0_68 = arith.constant 0 : index
    %116 = vector.load %arg39[%c0_67, %c0_68] : memref<1x8xf32, #tpu.memory_space<vmem>>, vector<1x8xf32>
    %cst_69 = arith.constant dense<0.000000e+00> : vector<8xf32>
    %117 = vector.multi_reduction <add>, %114, %cst_69 [0] : vector<16x8xf32> to vector<8xf32>
    %118 = vector.shape_cast %117 : vector<8xf32> to vector<1x8xf32>
    %cst_70 = arith.constant 6.250000e-02 : f32
    %119 = vector.broadcast %cst_70 : f32 to vector<1x8xf32>
    %120 = arith.mulf %118, %119 : vector<1x8xf32>
    %121 = vector.broadcast %120 : vector<1x8xf32> to vector<16x8xf32>
    %122 = arith.subf %114, %121 : vector<16x8xf32>
    %123 = arith.mulf %122, %122 : vector<16x8xf32>
    %cst_71 = arith.constant dense<0.000000e+00> : vector<8xf32>
    %124 = vector.multi_reduction <add>, %123, %cst_71 [0] : vector<16x8xf32> to vector<8xf32>
    %125 = vector.shape_cast %124 : vector<8xf32> to vector<1x8xf32>
    %cst_72 = arith.constant 6.250000e-02 : f32
    %126 = vector.broadcast %cst_72 : f32 to vector<1x8xf32>
    %127 = arith.mulf %125, %126 : vector<1x8xf32>
    %cst_73 = arith.constant 9.99999974E-6 : f32
    %128 = vector.broadcast %cst_73 : f32 to vector<1x8xf32>
    %129 = arith.addf %127, %128 : vector<1x8xf32>
    %130 = math.rsqrt %129 : vector<1x8xf32>
    %131 = vector.broadcast %130 : vector<1x8xf32> to vector<16x8xf32>
    %132 = arith.mulf %122, %131 : vector<16x8xf32>
    %133 = vector.broadcast %115 : vector<1x8xf32> to vector<16x8xf32>
    %134 = arith.mulf %132, %133 : vector<16x8xf32>
    %135 = vector.broadcast %116 : vector<1x8xf32> to vector<16x8xf32>
    %136 = arith.addf %134, %135 : vector<16x8xf32>
    %cst_74 = arith.constant 0.000000e+00 : f32
    %137 = vector.broadcast %cst_74 : f32 to vector<16x8xf32>
    %138 = arith.maximumf %136, %137 : vector<16x8xf32>
    %c0_75 = arith.constant 0 : index
    %c0_76 = arith.constant 0 : index
    %139 = vector.load %arg40[%c0_75, %c0_76] : memref<8x8xf32, #tpu.memory_space<vmem>>, vector<8x8xf32>
    %cst_77 = arith.constant dense<0.000000e+00> : vector<16x8xf32>
    %140 = tpu.matmul %138, %139, %cst_77 {dimension_numbers = #tpu.dot_dimension_numbers<[1], [0], [0], [1], [0, 0, 1, 1], [], []>, precision = #tpu.contract_precision<fp32>} : vector<16x8xf32>, vector<8x8xf32>, vector<16x8xf32> -> vector<16x8xf32>
    %c0_78 = arith.constant 0 : index
    %c0_79 = arith.constant 0 : index
    %141 = vector.load %arg41[%c0_78, %c0_79] : memref<16x8xf32, #tpu.memory_space<vmem>>, vector<16x8xf32>
    tpu.vector_store %arg41[%c0_78, %c0_79], %140 {strides = array<i32>} : memref<16x8xf32, #tpu.memory_space<vmem>>, vector<16x8xf32>,
    return
  }
}

</mosaic_0001>

<llo_original>
// kernel: tpu_custom_call.1
$region0: #{tpu_custom_call.1}
  #allocation0 [shape = 'u32[]', space=smem, size = 0x4, offset = 0x4, fixed_abs, tag = 'smem constant byte address 0x4 - core index']
  #allocation1 [shape = 'u32[144,128]{1,0:T(1,128)}', space=vmem, size = 0x12000, scoped, tag = 'internal scratch']
  %s0 = inlined_call_operand.smem [shape: u32[42], index: -1, kind: input, shape index: {}]
  %s1 = sld [smem:[%s0]]
  %s2 = scalar_lea.smem %s0, 1
  %s3 = sld [smem:[%s2]]
  %s4 = scalar_lea.smem %s0, 2
  %s5 = sld [smem:[%s4]]
  %s6 = scalar_lea.smem %s0, 3
  %s7 = sld [smem:[%s6]]
  %s8 = scalar_lea.smem %s0, 4
  %s9 = sld [smem:[%s8]]
  %s10 = scalar_lea.smem %s0, 5
  %s11 = sld [smem:[%s10]]
  %s12 = scalar_lea.smem %s0, 6
  %s13 = sld [smem:[%s12]]
  %s14 = scalar_lea.smem %s0, 7
  %s15 = sld [smem:[%s14]]
  %s16 = scalar_lea.smem %s0, 8
  %s17 = sld [smem:[%s16]]
  %s18 = scalar_lea.smem %s0, 9
  %s19 = sld [smem:[%s18]]
  %s20 = scalar_lea.smem %s0, 10
  %s21 = sld [smem:[%s20]]
  %s22 = scalar_lea.smem %s0, 11
  %s23 = sld [smem:[%s22]]
  %s24 = scalar_lea.smem %s0, 12
  %s25 = sld [smem:[%s24]]
  %s26 = scalar_lea.smem %s0, 13
  %s27 = sld [smem:[%s26]]
  %s28 = scalar_lea.smem %s0, 14
  %s29 = sld [smem:[%s28]]
  %s30 = scalar_lea.smem %s0, 15
  %s31 = sld [smem:[%s30]]
  %s32 = scalar_lea.smem %s0, 16
  %s33 = sld [smem:[%s32]]
  %s34 = scalar_lea.smem %s0, 17
  %s35 = sld [smem:[%s34]]
  %s36 = scalar_lea.smem %s0, 18
  %s37 = sld [smem:[%s36]]
  %s38 = scalar_lea.smem %s0, 19
  %s39 = sld [smem:[%s38]]
  %s40 = scalar_lea.smem %s0, 20
  %s41 = sld [smem:[%s40]]
  %s42 = scalar_lea.smem %s0, 21
  %s43 = sld [smem:[%s42]]
  %s44 = scalar_lea.smem %s0, 22
  %s45 = sld [smem:[%s44]]
  %s46 = scalar_lea.smem %s0, 23
  %s47 = sld [smem:[%s46]]
  %s48 = scalar_lea.smem %s0, 24
  %s49 = sld [smem:[%s48]]
  %s50 = scalar_lea.smem %s0, 25
  %s51 = sld [smem:[%s50]]
  %s52 = scalar_lea.smem %s0, 26
  %s53 = sld [smem:[%s52]]
  %s54 = scalar_lea.smem %s0, 27
  %s55 = sld [smem:[%s54]]
  %s56 = scalar_lea.smem %s0, 28
  %s57 = sld [smem:[%s56]]
  %s58 = scalar_lea.smem %s0, 29
  %s59 = sld [smem:[%s58]]
  %s60 = scalar_lea.smem %s0, 30
  %s61 = sld [smem:[%s60]]
  %s62 = scalar_lea.smem %s0, 31
  %s63 = sld [smem:[%s62]]
  %s64 = scalar_lea.smem %s0, 32
  %s65 = sld [smem:[%s64]]
  %s66 = scalar_lea.smem %s0, 33
  %s67 = sld [smem:[%s66]]
  %s68 = scalar_lea.smem %s0, 34
  %s69 = sld [smem:[%s68]]
  %s70 = scalar_lea.smem %s0, 35
  %s71 = sld [smem:[%s70]]
  %s72 = scalar_lea.smem %s0, 36
  %s73 = sld [smem:[%s72]]
  %s74 = scalar_lea.smem %s0, 37
  %s75 = sld [smem:[%s74]]
  %s76 = scalar_lea.smem %s0, 38
  %s77 = sld [smem:[%s76]]
  %s78 = scalar_lea.smem %s0, 39
  %s79 = sld [smem:[%s78]]
  %s80 = scalar_lea.smem %s0, 40
  %s81 = sld [smem:[%s80]]
  %s82 = scalar_lea.smem %s0, 41
  %s83 = sld [smem:[%s82]]
  %s84 = sld [smem:[#allocation0]]
  $region202: #{tpu_custom_call.1} parent=0
    _
  %s86 = ssub.s32 1, %s84
  %s87 = scalar_select 0, %s86, %s84
  // Predicated region
  $region2: #{tpu_custom_call.1} parent=0 // pred_check
    _
  $region3: #{tpu_custom_call.1} parent=0 // pred_check_branch
    %89 = sbr.rel (0) target = $region5
  $region4: #{tpu_custom_call.1} parent=0 // pred_region
    _
  $region5: #{tpu_custom_call.1} parent=0 // pred_fallthru
    _
  // Predicated region
  $region6: #{tpu_custom_call.1} parent=0 // pred_check
    _
  $region7: #{tpu_custom_call.1} parent=0 // pred_check_branch
    %91 = sbr.rel (0) target = $region9
  $region8: #{tpu_custom_call.1} parent=0 // pred_region
    _
  $region9: #{tpu_custom_call.1} parent=0 // pred_fallthru
    _
  // Predicated region
  $region10: #{tpu_custom_call.1} parent=0 // pred_check
    _
  $region11: #{tpu_custom_call.1} parent=0 // pred_check_branch
    %93 = sbr.rel (0) target = $region13
  $region12: #{tpu_custom_call.1} parent=0 // pred_region
    _
  $region13: #{tpu_custom_call.1} parent=0 // pred_fallthru
    _
  // Predicated region
  $region14: #{tpu_custom_call.1} parent=0 // pred_check
    _
  $region15: #{tpu_custom_call.1} parent=0 // pred_check_branch
    %95 = sbr.rel (0) target = $region17
  $region16: #{tpu_custom_call.1} parent=0 // pred_region
    _
  $region17: #{tpu_custom_call.1} parent=0 // pred_fallthru
    _
  // Predicated region
  $region18: #{tpu_custom_call.1} parent=0 // pred_check
    _
  $region19: #{tpu_custom_call.1} parent=0 // pred_check_branch
    %97 = sbr.rel (0) target = $region21
  $region20: #{tpu_custom_call.1} parent=0 // pred_region
    _
  $region21: #{tpu_custom_call.1} parent=0 // pred_fallthru
    _
  // Predicated region
  $region22: #{tpu_custom_call.1} parent=0 // pred_check
    _
  $region23: #{tpu_custom_call.1} parent=0 // pred_check_branch
    %99 = sbr.rel (0) target = $region25
  $region24: #{tpu_custom_call.1} parent=0 // pred_region
    _
  $region25: #{tpu_custom_call.1} parent=0 // pred_fallthru
    _
  // Predicated region
  $region26: #{tpu_custom_call.1} parent=0 // pred_check
    _
  $region27: #{tpu_custom_call.1} parent=0 // pred_check_branch
    %101 = sbr.rel (0) target = $region29
  $region28: #{tpu_custom_call.1} parent=0 // pred_region
    _
  $region29: #{tpu_custom_call.1} parent=0 // pred_fallthru
    _
  // Predicated region
  $region30: #{tpu_custom_call.1} parent=0 // pred_check
    _
  $region31: #{tpu_custom_call.1} parent=0 // pred_check_branch
    %103 = sbr.rel (0) target = $region33
  $region32: #{tpu_custom_call.1} parent=0 // pred_region
    _
  $region33: #{tpu_custom_call.1} parent=0 // pred_fallthru
    _
  // Predicated region
  $region34: #{tpu_custom_call.1} parent=0 // pred_check
    _
  $region35: #{tpu_custom_call.1} parent=0 // pred_check_branch
    %105 = sbr.rel (0) target = $region37
  $region36: #{tpu_custom_call.1} parent=0 // pred_region
    _
  $region37: #{tpu_custom_call.1} parent=0 // pred_fallthru
    _
  // Predicated region
  $region38: #{tpu_custom_call.1} parent=0 // pred_check
    _
  $region39: #{tpu_custom_call.1} parent=0 // pred_check_branch
    %107 = sbr.rel (0) target = $region41
  $region40: #{tpu_custom_call.1} parent=0 // pred_region
    _
  $region41: #{tpu_custom_call.1} parent=0 // pred_fallthru
    _
  // Predicated region
  $region42: #{tpu_custom_call.1} parent=0 // pred_check
    _
  $region43: #{tpu_custom_call.1} parent=0 // pred_check_branch
    %109 = sbr.rel (0) target = $region45
  $region44: #{tpu_custom_call.1} parent=0 // pred_region
    _
  $region45: #{tpu_custom_call.1} parent=0 // pred_fallthru
    _
  // Predicated region
  $region46: #{tpu_custom_call.1} parent=0 // pred_check
    _
  $region47: #{tpu_custom_call.1} parent=0 // pred_check_branch
    %111 = sbr.rel (0) target = $region49
  $region48: #{tpu_custom_call.1} parent=0 // pred_region
    _
  $region49: #{tpu_custom_call.1} parent=0 // pred_fallthru
    _
  // Predicated region
  $region50: #{tpu_custom_call.1} parent=0 // pred_check
    _
  $region51: #{tpu_custom_call.1} parent=0 // pred_check_branch
    %113 = sbr.rel (0) target = $region53
  $region52: #{tpu_custom_call.1} parent=0 // pred_region
    _
  $region53: #{tpu_custom_call.1} parent=0 // pred_fallthru
    _
  // Predicated region
  $region54: #{tpu_custom_call.1} parent=0 // pred_check
    _
  $region55: #{tpu_custom_call.1} parent=0 // pred_check_branch
    %115 = sbr.rel (0) target = $region57
  $region56: #{tpu_custom_call.1} parent=0 // pred_region
    _
  $region57: #{tpu_custom_call.1} parent=0 // pred_fallthru
    _
  // Predicated region
  $region58: #{tpu_custom_call.1} parent=0 // pred_check
    _
  $region59: #{tpu_custom_call.1} parent=0 // pred_check_branch
    %117 = sbr.rel (0) target = $region61
  $region60: #{tpu_custom_call.1} parent=0 // pred_region
    _
  $region61: #{tpu_custom_call.1} parent=0 // pred_fallthru
    _
  // Predicated region
  $region62: #{tpu_custom_call.1} parent=0 // pred_check
    _
  $region63: #{tpu_custom_call.1} parent=0 // pred_check_branch
    %119 = sbr.rel (0) target = $region65
  $region64: #{tpu_custom_call.1} parent=0 // pred_region
    _
  $region65: #{tpu_custom_call.1} parent=0 // pred_fallthru
    _
  // Predicated region
  $region66: #{tpu_custom_call.1} parent=0 // pred_check
    _
  $region67: #{tpu_custom_call.1} parent=0 // pred_check_branch
    %121 = sbr.rel (0) target = $region69
  $region68: #{tpu_custom_call.1} parent=0 // pred_region
    _
  $region69: #{tpu_custom_call.1} parent=0 // pred_fallthru
    _
  // Predicated region
  $region70: #{tpu_custom_call.1} parent=0 // pred_check
    _
  $region71: #{tpu_custom_call.1} parent=0 // pred_check_branch
    %123 = sbr.rel (0) target = $region73
  $region72: #{tpu_custom_call.1} parent=0 // pred_region
    _
  $region73: #{tpu_custom_call.1} parent=0 // pred_fallthru
    _
  // Predicated region
  $region74: #{tpu_custom_call.1} parent=0 // pred_check
    _
  $region75: #{tpu_custom_call.1} parent=0 // pred_check_branch
    %125 = sbr.rel (0) target = $region77
  $region76: #{tpu_custom_call.1} parent=0 // pred_region
    _
  $region77: #{tpu_custom_call.1} parent=0 // pred_fallthru
    _
  // Predicated region
  $region78: #{tpu_custom_call.1} parent=0 // pred_check
    _
  $region79: #{tpu_custom_call.1} parent=0 // pred_check_branch
    %127 = sbr.rel (0) target = $region81
  $region80: #{tpu_custom_call.1} parent=0 // pred_region
    _
  $region81: #{tpu_custom_call.1} parent=0 // pred_fallthru
    _
  // Predicated region
  $region82: #{tpu_custom_call.1} parent=0 // pred_check
    _
  $region83: #{tpu_custom_call.1} parent=0 // pred_check_branch
    %129 = sbr.rel (0) target = $region85
  $region84: #{tpu_custom_call.1} parent=0 // pred_region
    _
  $region85: #{tpu_custom_call.1} parent=0 // pred_fallthru
    _
  // Predicated region
  $region86: #{tpu_custom_call.1} parent=0 // pred_check
    _
  $region87: #{tpu_custom_call.1} parent=0 // pred_check_branch
    %131 = sbr.rel (0) target = $region89
  $region88: #{tpu_custom_call.1} parent=0 // pred_region
    _
  $region89: #{tpu_custom_call.1} parent=0 // pred_fallthru
    _
  // Predicated region
  $region90: #{tpu_custom_call.1} parent=0 // pred_check
    _
  $region91: #{tpu_custom_call.1} parent=0 // pred_check_branch
    %133 = sbr.rel (0) target = $region93
  $region92: #{tpu_custom_call.1} parent=0 // pred_region
    _
  $region93: #{tpu_custom_call.1} parent=0 // pred_fallthru
    _
  // Predicated region
  $region94: #{tpu_custom_call.1} parent=0 // pred_check
    _
  $region95: #{tpu_custom_call.1} parent=0 // pred_check_branch
    %135 = sbr.rel (0) target = $region97
  $region96: #{tpu_custom_call.1} parent=0 // pred_region
    _
  $region97: #{tpu_custom_call.1} parent=0 // pred_fallthru
    _
  // Predicated region
  $region98: #{tpu_custom_call.1} parent=0 // pred_check
    _
  $region99: #{tpu_custom_call.1} parent=0 // pred_check_branch
    %137 = sbr.rel (0) target = $region101
  $region100: #{tpu_custom_call.1} parent=0 // pred_region
    _
  $region101: #{tpu_custom_call.1} parent=0 // pred_fallthru
    _
  // Predicated region
  $region102: #{tpu_custom_call.1} parent=0 // pred_check
    _
  $region103: #{tpu_custom_call.1} parent=0 // pred_check_branch
    %139 = sbr.rel (0) target = $region105
  $region104: #{tpu_custom_call.1} parent=0 // pred_region
    _
  $region105: #{tpu_custom_call.1} parent=0 // pred_fallthru
    _
  // Predicated region
  $region106: #{tpu_custom_call.1} parent=0 // pred_check
    _
  $region107: #{tpu_custom_call.1} parent=0 // pred_check_branch
    %141 = sbr.rel (0) target = $region109
  $region108: #{tpu_custom_call.1} parent=0 // pred_region
    _
  $region109: #{tpu_custom_call.1} parent=0 // pred_fallthru
    _
  // Predicated region
  $region110: #{tpu_custom_call.1} parent=0 // pred_check
    _
  $region111: #{tpu_custom_call.1} parent=0 // pred_check_branch
    %143 = sbr.rel (0) target = $region113
  $region112: #{tpu_custom_call.1} parent=0 // pred_region
    _
  $region113: #{tpu_custom_call.1} parent=0 // pred_fallthru
    _
  // Predicated region
  $region114: #{tpu_custom_call.1} parent=0 // pred_check
    _
  $region115: #{tpu_custom_call.1} parent=0 // pred_check_branch
    %145 = sbr.rel (0) target = $region117
  $region116: #{tpu_custom_call.1} parent=0 // pred_region
    _
  $region117: #{tpu_custom_call.1} parent=0 // pred_fallthru
    _
  // Predicated region
  $region118: #{tpu_custom_call.1} parent=0 // pred_check
    _
  $region119: #{tpu_custom_call.1} parent=0 // pred_check_branch
    %147 = sbr.rel (0) target = $region121
  $region120: #{tpu_custom_call.1} parent=0 // pred_region
    _
  $region121: #{tpu_custom_call.1} parent=0 // pred_fallthru
    _
  // Predicated region
  $region122: #{tpu_custom_call.1} parent=0 // pred_check
    _
  $region123: #{tpu_custom_call.1} parent=0 // pred_check_branch
    %149 = sbr.rel (0) target = $region125
  $region124: #{tpu_custom_call.1} parent=0 // pred_region
    _
  $region125: #{tpu_custom_call.1} parent=0 // pred_fallthru
    _
  // Predicated region
  $region126: #{tpu_custom_call.1} parent=0 // pred_check
    _
  $region127: #{tpu_custom_call.1} parent=0 // pred_check_branch
    %151 = sbr.rel (0) target = $region129
  $region128: #{tpu_custom_call.1} parent=0 // pred_region
    _
  $region129: #{tpu_custom_call.1} parent=0 // pred_fallthru
    _
  // Predicated region
  $region130: #{tpu_custom_call.1} parent=0 // pred_check
    _
  $region131: #{tpu_custom_call.1} parent=0 // pred_check_branch
    %153 = sbr.rel (0) target = $region133
  $region132: #{tpu_custom_call.1} parent=0 // pred_region
    _
  $region133: #{tpu_custom_call.1} parent=0 // pred_fallthru
    _
  // Predicated region
  $region134: #{tpu_custom_call.1} parent=0 // pred_check
    _
  $region135: #{tpu_custom_call.1} parent=0 // pred_check_branch
    %155 = sbr.rel (0) target = $region137
  $region136: #{tpu_custom_call.1} parent=0 // pred_region
    _
  $region137: #{tpu_custom_call.1} parent=0 // pred_fallthru
    _
  // Predicated region
  $region138: #{tpu_custom_call.1} parent=0 // pred_check
    _
  $region139: #{tpu_custom_call.1} parent=0 // pred_check_branch
    %157 = sbr.rel (0) target = $region141
  $region140: #{tpu_custom_call.1} parent=0 // pred_region
    _
  $region141: #{tpu_custom_call.1} parent=0 // pred_fallthru
    _
  // Predicated region
  $region142: #{tpu_custom_call.1} parent=0 // pred_check
    _
  $region143: #{tpu_custom_call.1} parent=0 // pred_check_branch
    %159 = sbr.rel (0) target = $region145
  $region144: #{tpu_custom_call.1} parent=0 // pred_region
    _
  $region145: #{tpu_custom_call.1} parent=0 // pred_fallthru
    _
  // Predicated region
  $region146: #{tpu_custom_call.1} parent=0 // pred_check
    _
  $region147: #{tpu_custom_call.1} parent=0 // pred_check_branch
    %161 = sbr.rel (0) target = $region149
  $region148: #{tpu_custom_call.1} parent=0 // pred_region
    _
  $region149: #{tpu_custom_call.1} parent=0 // pred_fallthru
    _
  // Predicated region
  $region150: #{tpu_custom_call.1} parent=0 // pred_check
    _
  $region151: #{tpu_custom_call.1} parent=0 // pred_check_branch
    %163 = sbr.rel (0) target = $region153
  $region152: #{tpu_custom_call.1} parent=0 // pred_region
    _
  $region153: #{tpu_custom_call.1} parent=0 // pred_fallthru
    _
  // Predicated region
  $region154: #{tpu_custom_call.1} parent=0 // pred_check
    _
  $region155: #{tpu_custom_call.1} parent=0 // pred_check_branch
    %165 = sbr.rel (0) target = $region157
  $region156: #{tpu_custom_call.1} parent=0 // pred_region
    _
  $region157: #{tpu_custom_call.1} parent=0 // pred_fallthru
    _
  // Predicated region
  $region158: #{tpu_custom_call.1} parent=0 // pred_check
    _
  $region159: #{tpu_custom_call.1} parent=0 // pred_check_branch
    %167 = sbr.rel (0) target = $region161
  $region160: #{tpu_custom_call.1} parent=0 // pred_region
    _
  $region161: #{tpu_custom_call.1} parent=0 // pred_fallthru
    _
  // Predicated region
  $region162: #{tpu_custom_call.1} parent=0 // pred_check
    _
  $region163: #{tpu_custom_call.1} parent=0 // pred_check_branch
    %169 = sbr.rel (0) target = $region165
  $region164: #{tpu_custom_call.1} parent=0 // pred_region
    _
  $region165: #{tpu_custom_call.1} parent=0 // pred_fallthru
    _
  %v170 = vld [vmem:[%s1] sm:$0xff]
  %v171 = vld [vmem:[%s1 + $0x8] sm:$0xff]
  %v172 = vld [vmem:[%s1 + $0x10] sm:$0xff]
  %v173 = vld [vmem:[%s1 + $0x18] sm:$0xff]
  %v174 = vld [vmem:[%s1 + $0x20] sm:$0xff]
  %v175 = vld [vmem:[%s1 + $0x28] sm:$0xff]
  %v176 = vld [vmem:[%s1 + $0x30] sm:$0xff]
  %v177 = vld [vmem:[%s1 + $0x38] sm:$0xff]
  %v178 = vld [vmem:[%s3] sm:$0xff]
  %v179 = vld [vmem:[%s3 + $0x8] sm:$0xff]
  %v180 = vld [vmem:[%s3 + $0x10] sm:$0xff]
  %v181 = vld [vmem:[%s3 + $0x18] sm:$0xff]
  %v182 = vld [vmem:[%s3 + $0x20] sm:$0xff]
  %v183 = vld [vmem:[%s3 + $0x28] sm:$0xff]
  %v184 = vld [vmem:[%s3 + $0x30] sm:$0xff]
  %v185 = vld [vmem:[%s3 + $0x38] sm:$0xff]
  %v186 = vld [vmem:[%s3 + $0x40] sm:$0xff]
  %v187 = vld [vmem:[%s3 + $0x48] sm:$0xff]
  %v188 = vld [vmem:[%s3 + $0x50] sm:$0xff]
  %v189 = vld [vmem:[%s3 + $0x58] sm:$0xff]
  %v190 = vld [vmem:[%s3 + $0x60] sm:$0xff]
  %v191 = vld [vmem:[%s3 + $0x68] sm:$0xff]
  %v192 = vld [vmem:[%s3 + $0x70] sm:$0xff]
  %v193 = vld [vmem:[%s3 + $0x78] sm:$0xff]
  %v194 = vld [vmem:[%s3 + $0x80] sm:$0xff]
  %v195 = vld [vmem:[%s3 + $0x88] sm:$0xff]
  %v196 = vld [vmem:[%s3 + $0x90] sm:$0xff]
  %v197 = vld [vmem:[%s3 + $0x98] sm:$0xff]
  %v198 = vld [vmem:[%s3 + $0xa0] sm:$0xff]
  %v199 = vld [vmem:[%s3 + $0xa8] sm:$0xff]
  %v200 = vld [vmem:[%s3 + $0xb0] sm:$0xff]
  %v201 = vld [vmem:[%s3 + $0xb8] sm:$0xff]
  %v202 = vld [vmem:[%s3 + $0xc0] sm:$0xff]
  %v203 = vld [vmem:[%s3 + $0xc8] sm:$0xff]
  %v204 = vld [vmem:[%s3 + $0xd0] sm:$0xff]
  %v205 = vld [vmem:[%s3 + $0xd8] sm:$0xff]
  %v206 = vld [vmem:[%s3 + $0xe0] sm:$0xff]
  %v207 = vld [vmem:[%s3 + $0xe8] sm:$0xff]
  %v208 = vld [vmem:[%s3 + $0xf0] sm:$0xff]
  %v209 = vld [vmem:[%s3 + $0xf8] sm:$0xff]
  %v210 = vld [vmem:[%s3 + $0x100] sm:$0xff]
  %v211 = vld [vmem:[%s3 + $0x108] sm:$0xff]
  %v212 = vld [vmem:[%s3 + $0x110] sm:$0xff]
  %v213 = vld [vmem:[%s3 + $0x118] sm:$0xff]
  %v214 = vld [vmem:[%s3 + $0x120] sm:$0xff]
  %v215 = vld [vmem:[%s3 + $0x128] sm:$0xff]
  %v216 = vld [vmem:[%s3 + $0x130] sm:$0xff]
  %v217 = vld [vmem:[%s3 + $0x138] sm:$0xff]
  %v218 = vld [vmem:[%s3 + $0x140] sm:$0xff]
  %v219 = vld [vmem:[%s3 + $0x148] sm:$0xff]
  %v220 = vld [vmem:[%s3 + $0x150] sm:$0xff]
  %v221 = vld [vmem:[%s3 + $0x158] sm:$0xff]
  %v222 = vld [vmem:[%s3 + $0x160] sm:$0xff]
  %v223 = vld [vmem:[%s3 + $0x168] sm:$0xff]
  %v224 = vld [vmem:[%s3 + $0x170] sm:$0xff]
  %v225 = vld [vmem:[%s3 + $0x178] sm:$0xff]
  %v226 = vld [vmem:[%s3 + $0x180] sm:$0xff]
  %v227 = vld [vmem:[%s3 + $0x188] sm:$0xff]
  %v228 = vld [vmem:[%s3 + $0x190] sm:$0xff]
  %v229 = vld [vmem:[%s3 + $0x198] sm:$0xff]
  %v230 = vld [vmem:[%s3 + $0x1a0] sm:$0xff]
  %v231 = vld [vmem:[%s3 + $0x1a8] sm:$0xff]
  %v232 = vld [vmem:[%s3 + $0x1b0] sm:$0xff]
  %v233 = vld [vmem:[%s3 + $0x1b8] sm:$0xff]
  %v234 = vld [vmem:[%s3 + $0x1c0] sm:$0xff]
  %v235 = vld [vmem:[%s3 + $0x1c8] sm:$0xff]
  %v236 = vld [vmem:[%s3 + $0x1d0] sm:$0xff]
  %v237 = vld [vmem:[%s3 + $0x1d8] sm:$0xff]
  %v238 = vld [vmem:[%s3 + $0x1e0] sm:$0xff]
  %v239 = vld [vmem:[%s3 + $0x1e8] sm:$0xff]
  %v240 = vld [vmem:[%s3 + $0x1f0] sm:$0xff]
  %v241 = vld [vmem:[%s3 + $0x1f8] sm:$0xff]
  %242 = vmatprep.subr.mxu0 0.0
  %v243 = vand.u32 %v193, 4294901760
  %244 = vmatpush1.msra.mxu0 %v243
  %245 = vmatprep.subr.mxu0 0.0
  %v246 = vand.u32 %v192, 4294901760
  %247 = vmatpush1.msra.mxu0 %v246
  %248 = vmatprep.subr.mxu0 0.0
  %v249 = vand.u32 %v191, 4294901760
  %250 = vmatpush1.msra.mxu0 %v249
  %251 = vmatprep.subr.mxu0 0.0
  %v252 = vand.u32 %v190, 4294901760
  %253 = vmatpush1.msra.mxu0 %v252
  %254 = vmatprep.subr.mxu0 0.0
  %v255 = vand.u32 %v189, 4294901760
  %256 = vmatpush1.msra.mxu0 %v255
  %257 = vmatprep.subr.mxu0 0.0
  %v258 = vand.u32 %v188, 4294901760
  %259 = vmatpush1.msra.mxu0 %v258
  %260 = vmatprep.subr.mxu0 0.0
  %v261 = vand.u32 %v187, 4294901760
  %262 = vmatpush1.msra.mxu0 %v261
  %263 = vmatprep.subr.mxu0 0.0
  %v264 = vand.u32 %v186, 4294901760
  %265 = vmatpush1.msra.mxu0 %v264
  %266 = vmatprep.subr.mxu0 0.0
  %v267 = vand.u32 %v185, 4294901760
  %268 = vmatpush1.msra.mxu0 %v267
  %269 = vmatprep.subr.mxu0 0.0
  %v270 = vand.u32 %v184, 4294901760
  %271 = vmatpush1.msra.mxu0 %v270
  %272 = vmatprep.subr.mxu0 0.0
  %v273 = vand.u32 %v183, 4294901760
  %274 = vmatpush1.msra.mxu0 %v273
  %275 = vmatprep.subr.mxu0 0.0
  %v276 = vand.u32 %v182, 4294901760
  %277 = vmatpush1.msra.mxu0 %v276
  %278 = vmatprep.subr.mxu0 0.0
  %v279 = vand.u32 %v181, 4294901760
  %280 = vmatpush1.msra.mxu0 %v279
  %281 = vmatprep.subr.mxu0 0.0
  %v282 = vand.u32 %v180, 4294901760
  %283 = vmatpush1.msra.mxu0 %v282
  %284 = vmatprep.subr.mxu0 0.0
  %v285 = vand.u32 %v179, 4294901760
  %286 = vmatpush1.msra.mxu0 %v285
  %287 = vmatprep.subr.mxu0 0.0
  %v288 = vand.u32 %v178, 4294901760
  %289 = vmatpush1.msra.mxu0 %v288
  %290 = vmatprep.subr.mxu0 0.0
  %v291 = vand.u32 %v209, 4294901760
  %292 = vmatpush2.msra.mxu0 %v291
  %293 = vmatprep.subr.mxu0 0.0
  %v294 = vand.u32 %v208, 4294901760
  %295 = vmatpush2.msra.mxu0 %v294
  %296 = vmatprep.subr.mxu0 0.0
  %v297 = vand.u32 %v207, 4294901760
  %298 = vmatpush2.msra.mxu0 %v297
  %299 = vmatprep.subr.mxu0 0.0
  %v300 = vand.u32 %v206, 4294901760
  %301 = vmatpush2.msra.mxu0 %v300
  %302 = vmatprep.subr.mxu0 0.0
  %v303 = vand.u32 %v205, 4294901760
  %304 = vmatpush2.msra.mxu0 %v303
  %305 = vmatprep.subr.mxu0 0.0
  %v306 = vand.u32 %v204, 4294901760
  %307 = vmatpush2.msra.mxu0 %v306
  %308 = vmatprep.subr.mxu0 0.0
  %v309 = vand.u32 %v203, 4294901760
  %310 = vmatpush2.msra.mxu0 %v309
  %311 = vmatprep.subr.mxu0 0.0
  %v312 = vand.u32 %v202, 4294901760
  %313 = vmatpush2.msra.mxu0 %v312
  %314 = vmatprep.subr.mxu0 0.0
  %v315 = vand.u32 %v201, 4294901760
  %316 = vmatpush2.msra.mxu0 %v315
  %317 = vmatprep.subr.mxu0 0.0
  %v318 = vand.u32 %v200, 4294901760
  %319 = vmatpush2.msra.mxu0 %v318
  %320 = vmatprep.subr.mxu0 0.0
  %v321 = vand.u32 %v199, 4294901760
  %322 = vmatpush2.msra.mxu0 %v321
  %323 = vmatprep.subr.mxu0 0.0
  %v324 = vand.u32 %v198, 4294901760
  %325 = vmatpush2.msra.mxu0 %v324
  %326 = vmatprep.subr.mxu0 0.0
  %v327 = vand.u32 %v197, 4294901760
  %328 = vmatpush2.msra.mxu0 %v327
  %329 = vmatprep.subr.mxu0 0.0
  %v330 = vand.u32 %v196, 4294901760
  %331 = vmatpush2.msra.mxu0 %v330
  %332 = vmatprep.subr.mxu0 0.0
  %v333 = vand.u32 %v195, 4294901760
  %334 = vmatpush2.msra.mxu0 %v333
  %335 = vmatprep.subr.mxu0 0.0
  %v336 = vand.u32 %v194, 4294901760
  %337 = vmatpush2.msra.mxu0 %v336
  %v338 = vand.u32 %v171, 4294901760
  %v339 = vsub.f32 %v171, %v338
  %v340 = vand.u32 %v339, 4294901760
  %v341 = vsub.f32 %v339, %v340
  %v342 = vand.u32 %v341, 4294901760
  %343 = vmatprep.mubr.f32.mxu0 %v342
  %v344 = vand.u32 %v170, 4294901760
  %v345 = vsub.f32 %v170, %v344
  %v346 = vand.u32 %v345, 4294901760
  %v347 = vsub.f32 %v345, %v346
  %v348 = vand.u32 %v347, 4294901760
  %349 = vmatmul.mubr.f32.gmra.mxu0 %v348
  %v350 = vpop.f32.mrf.mxu0
  %v351 = vadd.f32 0.0, %v350
  %v352 = vpop.f32.mrf.mxu0
  %v353 = vand.u32 %v175, 4294901760
  %v354 = vsub.f32 %v175, %v353
  %v355 = vand.u32 %v354, 4294901760
  %v356 = vsub.f32 %v354, %v355
  %v357 = vand.u32 %v356, 4294901760
  %358 = vmatprep.mubr.f32.mxu0 %v357
  %v359 = vand.u32 %v174, 4294901760
  %v360 = vsub.f32 %v174, %v359
  %v361 = vand.u32 %v360, 4294901760
  %v362 = vsub.f32 %v360, %v361
  %v363 = vand.u32 %v362, 4294901760
  %364 = vmatmul.mubr.f32.gmra.mxu0 %v363
  %v365 = vpop.f32.mrf.mxu0
  %v366 = vadd.f32 0.0, %v365
  %v367 = vpop.f32.mrf.mxu0
  %368 = vdwg.mxu0
  %369 = vmatprep.subr.mxu0 0.0
  %v370 = vand.u32 %v193, 4294901760
  %v371 = vsub.f32 %v193, %v370
  %v372 = vand.u32 %v371, 4294901760
  %v373 = vsub.f32 %v371, %v372
  %v374 = vand.u32 %v373, 4294901760
  %375 = vmatpush1.msra.mxu0 %v374
  %376 = vmatprep.subr.mxu0 0.0
  %v377 = vand.u32 %v192, 4294901760
  %v378 = vsub.f32 %v192, %v377
  %v379 = vand.u32 %v378, 4294901760
  %v380 = vsub.f32 %v378, %v379
  %v381 = vand.u32 %v380, 4294901760
  %382 = vmatpush1.msra.mxu0 %v381
  %383 = vmatprep.subr.mxu0 0.0
  %v384 = vand.u32 %v191, 4294901760
  %v385 = vsub.f32 %v191, %v384
  %v386 = vand.u32 %v385, 4294901760
  %v387 = vsub.f32 %v385, %v386
  %v388 = vand.u32 %v387, 4294901760
  %389 = vmatpush1.msra.mxu0 %v388
  %390 = vmatprep.subr.mxu0 0.0
  %v391 = vand.u32 %v190, 4294901760
  %v392 = vsub.f32 %v190, %v391
  %v393 = vand.u32 %v392, 4294901760
  %v394 = vsub.f32 %v392, %v393
  %v395 = vand.u32 %v394, 4294901760
  %396 = vmatpush1.msra.mxu0 %v395
  %397 = vmatprep.subr.mxu0 0.0
  %v398 = vand.u32 %v189, 4294901760
  %v399 = vsub.f32 %v189, %v398
  %v400 = vand.u32 %v399, 4294901760
  %v401 = vsub.f32 %v399, %v400
  %v402 = vand.u32 %v401, 4294901760
  %403 = vmatpush1.msra.mxu0 %v402
  %404 = vmatprep.subr.mxu0 0.0
  %v405 = vand.u32 %v188, 4294901760
  %v406 = vsub.f32 %v188, %v405
  %v407 = vand.u32 %v406, 4294901760
  %v408 = vsub.f32 %v406, %v407
  %v409 = vand.u32 %v408, 4294901760
  %410 = vmatpush1.msra.mxu0 %v409
  %411 = vmatprep.subr.mxu0 0.0
  %v412 = vand.u32 %v187, 4294901760
  %v413 = vsub.f32 %v187, %v412
  %v414 = vand.u32 %v413, 4294901760
  %v415 = vsub.f32 %v413, %v414
  %v416 = vand.u32 %v415, 4294901760
  %417 = vmatpush1.msra.mxu0 %v416
  %418 = vmatprep.subr.mxu0 0.0
  %v419 = vand.u32 %v186, 4294901760
  %v420 = vsub.f32 %v186, %v419
  %v421 = vand.u32 %v420, 4294901760
  %v422 = vsub.f32 %v420, %v421
  %v423 = vand.u32 %v422, 4294901760
  %424 = vmatpush1.msra.mxu0 %v423
  %425 = vmatprep.subr.mxu0 0.0
  %v426 = vand.u32 %v185, 4294901760
  %v427 = vsub.f32 %v185, %v426
  %v428 = vand.u32 %v427, 4294901760
  %v429 = vsub.f32 %v427, %v428
  %v430 = vand.u32 %v429, 4294901760
  %431 = vmatpush1.msra.mxu0 %v430
  %432 = vmatprep.subr.mxu0 0.0
  %v433 = vand.u32 %v184, 4294901760
  %v434 = vsub.f32 %v184, %v433
  %v435 = vand.u32 %v434, 4294901760
  %v436 = vsub.f32 %v434, %v435
  %v437 = vand.u32 %v436, 4294901760
  %438 = vmatpush1.msra.mxu0 %v437
  %439 = vmatprep.subr.mxu0 0.0
  %v440 = vand.u32 %v183, 4294901760
  %v441 = vsub.f32 %v183, %v440
  %v442 = vand.u32 %v441, 4294901760
  %v443 = vsub.f32 %v441, %v442
  %v444 = vand.u32 %v443, 4294901760
  %445 = vmatpush1.msra.mxu0 %v444
  %446 = vmatprep.subr.mxu0 0.0
  %v447 = vand.u32 %v182, 4294901760
  %v448 = vsub.f32 %v182, %v447
  %v449 = vand.u32 %v448, 4294901760
  %v450 = vsub.f32 %v448, %v449
  %v451 = vand.u32 %v450, 4294901760
  %452 = vmatpush1.msra.mxu0 %v451
  %453 = vmatprep.subr.mxu0 0.0
  %v454 = vand.u32 %v181, 4294901760
  %v455 = vsub.f32 %v181, %v454
  %v456 = vand.u32 %v455, 4294901760
  %v457 = vsub.f32 %v455, %v456
  %v458 = vand.u32 %v457, 4294901760
  %459 = vmatpush1.msra.mxu0 %v458
  %460 = vmatprep.subr.mxu0 0.0
  %v461 = vand.u32 %v180, 4294901760
  %v462 = vsub.f32 %v180, %v461
  %v463 = vand.u32 %v462, 4294901760
  %v464 = vsub.f32 %v462, %v463
  %v465 = vand.u32 %v464, 4294901760
  %466 = vmatpush1.msra.mxu0 %v465
  %467 = vmatprep.subr.mxu0 0.0
  %v468 = vand.u32 %v179, 4294901760
  %v469 = vsub.f32 %v179, %v468
  %v470 = vand.u32 %v469, 4294901760
  %v471 = vsub.f32 %v469, %v470
  %v472 = vand.u32 %v471, 4294901760
  %473 = vmatpush1.msra.mxu0 %v472
  %474 = vmatprep.subr.mxu0 0.0
  %v475 = vand.u32 %v178, 4294901760
  %v476 = vsub.f32 %v178, %v475
  %v477 = vand.u32 %v476, 4294901760
  %v478 = vsub.f32 %v476, %v477
  %v479 = vand.u32 %v478, 4294901760
  %480 = vmatpush1.msra.mxu0 %v479
  %481 = vmatprep.subr.mxu0 0.0
  %v482 = vand.u32 %v209, 4294901760
  %v483 = vsub.f32 %v209, %v482
  %v484 = vand.u32 %v483, 4294901760
  %v485 = vsub.f32 %v483, %v484
  %v486 = vand.u32 %v485, 4294901760
  %487 = vmatpush2.msra.mxu0 %v486
  %488 = vmatprep.subr.mxu0 0.0
  %v489 = vand.u32 %v208, 4294901760
  %v490 = vsub.f32 %v208, %v489
  %v491 = vand.u32 %v490, 4294901760
  %v492 = vsub.f32 %v490, %v491
  %v493 = vand.u32 %v492, 4294901760
  %494 = vmatpush2.msra.mxu0 %v493
  %495 = vmatprep.subr.mxu0 0.0
  %v496 = vand.u32 %v207, 4294901760
  %v497 = vsub.f32 %v207, %v496
  %v498 = vand.u32 %v497, 4294901760
  %v499 = vsub.f32 %v497, %v498
  %v500 = vand.u32 %v499, 4294901760
  %501 = vmatpush2.msra.mxu0 %v500
  %502 = vmatprep.subr.mxu0 0.0
  %v503 = vand.u32 %v206, 4294901760
  %v504 = vsub.f32 %v206, %v503
  %v505 = vand.u32 %v504, 4294901760
  %v506 = vsub.f32 %v504, %v505
  %v507 = vand.u32 %v506, 4294901760
  %508 = vmatpush2.msra.mxu0 %v507
  %509 = vmatprep.subr.mxu0 0.0
  %v510 = vand.u32 %v205, 4294901760
  %v511 = vsub.f32 %v205, %v510
  %v512 = vand.u32 %v511, 4294901760
  %v513 = vsub.f32 %v511, %v512
  %v514 = vand.u32 %v513, 4294901760
  %515 = vmatpush2.msra.mxu0 %v514
  %516 = vmatprep.subr.mxu0 0.0
  %v517 = vand.u32 %v204, 4294901760
  %v518 = vsub.f32 %v204, %v517
  %v519 = vand.u32 %v518, 4294901760
  %v520 = vsub.f32 %v518, %v519
  %v521 = vand.u32 %v520, 4294901760
  %522 = vmatpush2.msra.mxu0 %v521
  %523 = vmatprep.subr.mxu0 0.0
  %v524 = vand.u32 %v203, 4294901760
  %v525 = vsub.f32 %v203, %v524
  %v526 = vand.u32 %v525, 4294901760
  %v527 = vsub.f32 %v525, %v526
  %v528 = vand.u32 %v527, 4294901760
  %529 = vmatpush2.msra.mxu0 %v528
  %530 = vmatprep.subr.mxu0 0.0
  %v531 = vand.u32 %v202, 4294901760
  %v532 = vsub.f32 %v202, %v531
  %v533 = vand.u32 %v532, 4294901760
  %v534 = vsub.f32 %v532, %v533
  %v535 = vand.u32 %v534, 4294901760
  %536 = vmatpush2.msra.mxu0 %v535
  %537 = vmatprep.subr.mxu0 0.0
  %v538 = vand.u32 %v201, 4294901760
  %v539 = vsub.f32 %v201, %v538
  %v540 = vand.u32 %v539, 4294901760
  %v541 = vsub.f32 %v539, %v540
  %v542 = vand.u32 %v541, 4294901760
  %543 = vmatpush2.msra.mxu0 %v542
  %544 = vmatprep.subr.mxu0 0.0
  %v545 = vand.u32 %v200, 4294901760
  %v546 = vsub.f32 %v200, %v545
  %v547 = vand.u32 %v546, 4294901760
  %v548 = vsub.f32 %v546, %v547
  %v549 = vand.u32 %v548, 4294901760
  %550 = vmatpush2.msra.mxu0 %v549
  %551 = vmatprep.subr.mxu0 0.0
  %v552 = vand.u32 %v199, 4294901760
  %v553 = vsub.f32 %v199, %v552
  %v554 = vand.u32 %v553, 4294901760
  %v555 = vsub.f32 %v553, %v554
  %v556 = vand.u32 %v555, 4294901760
  %557 = vmatpush2.msra.mxu0 %v556
  %558 = vmatprep.subr.mxu0 0.0
  %v559 = vand.u32 %v198, 4294901760
  %v560 = vsub.f32 %v198, %v559
  %v561 = vand.u32 %v560, 4294901760
  %v562 = vsub.f32 %v560, %v561
  %v563 = vand.u32 %v562, 4294901760
  %564 = vmatpush2.msra.mxu0 %v563
  %565 = vmatprep.subr.mxu0 0.0
  %v566 = vand.u32 %v197, 4294901760
  %v567 = vsub.f32 %v197, %v566
  %v568 = vand.u32 %v567, 4294901760
  %v569 = vsub.f32 %v567, %v568
  %v570 = vand.u32 %v569, 4294901760
  %571 = vmatpush2.msra.mxu0 %v570
  %572 = vmatprep.subr.mxu0 0.0
  %v573 = vand.u32 %v196, 4294901760
  %v574 = vsub.f32 %v196, %v573
  %v575 = vand.u32 %v574, 4294901760
  %v576 = vsub.f32 %v574, %v575
  %v577 = vand.u32 %v576, 4294901760
  %578 = vmatpush2.msra.mxu0 %v577
  %579 = vmatprep.subr.mxu0 0.0
  %v580 = vand.u32 %v195, 4294901760
  %v581 = vsub.f32 %v195, %v580
  %v582 = vand.u32 %v581, 4294901760
  %v583 = vsub.f32 %v581, %v582
  %v584 = vand.u32 %v583, 4294901760
  %585 = vmatpush2.msra.mxu0 %v584
  %586 = vmatprep.subr.mxu0 0.0
  %v587 = vand.u32 %v194, 4294901760
  %v588 = vsub.f32 %v194, %v587
  %v589 = vand.u32 %v588, 4294901760
  %v590 = vsub.f32 %v588, %v589
  %v591 = vand.u32 %v590, 4294901760
  %592 = vmatpush2.msra.mxu0 %v591
  %v593 = vand.u32 %v171, 4294901760
  %594 = vmatprep.mubr.f32.mxu0 %v593
  %v595 = vand.u32 %v170, 4294901760
  %596 = vmatmul.mubr.f32.gmra.mxu0 %v595
  %v597 = vpop.f32.mrf.mxu0
  %v598 = vadd.f32 %v351, %v597
  %v599 = vpop.f32.mrf.mxu0
  %v600 = vand.u32 %v175, 4294901760
  %601 = vmatprep.mubr.f32.mxu0 %v600
  %v602 = vand.u32 %v174, 4294901760
  %603 = vmatmul.mubr.f32.gmra.mxu0 %v602
  %v604 = vpop.f32.mrf.mxu0
  %v605 = vadd.f32 %v366, %v604
  %v606 = vpop.f32.mrf.mxu0
  %607 = vdwg.mxu0
  %608 = vmatprep.subr.mxu0 0.0
  %v609 = vand.u32 %v193, 4294901760
  %v610 = vsub.f32 %v193, %v609
  %611 = vmatpush1.msra.mxu0 %v610
  %612 = vmatprep.subr.mxu0 0.0
  %v613 = vand.u32 %v192, 4294901760
  %v614 = vsub.f32 %v192, %v613
  %615 = vmatpush1.msra.mxu0 %v614
  %616 = vmatprep.subr.mxu0 0.0
  %v617 = vand.u32 %v191, 4294901760
  %v618 = vsub.f32 %v191, %v617
  %619 = vmatpush1.msra.mxu0 %v618
  %620 = vmatprep.subr.mxu0 0.0
  %v621 = vand.u32 %v190, 4294901760
  %v622 = vsub.f32 %v190, %v621
  %623 = vmatpush1.msra.mxu0 %v622
  %624 = vmatprep.subr.mxu0 0.0
  %v625 = vand.u32 %v189, 4294901760
  %v626 = vsub.f32 %v189, %v625
  %627 = vmatpush1.msra.mxu0 %v626
  %628 = vmatprep.subr.mxu0 0.0
  %v629 = vand.u32 %v188, 4294901760
  %v630 = vsub.f32 %v188, %v629
  %631 = vmatpush1.msra.mxu0 %v630
  %632 = vmatprep.subr.mxu0 0.0
  %v633 = vand.u32 %v187, 4294901760
  %v634 = vsub.f32 %v187, %v633
  %635 = vmatpush1.msra.mxu0 %v634
  %636 = vmatprep.subr.mxu0 0.0
  %v637 = vand.u32 %v186, 4294901760
  %v638 = vsub.f32 %v186, %v637
  %639 = vmatpush1.msra.mxu0 %v638
  %640 = vmatprep.subr.mxu0 0.0
  %v641 = vand.u32 %v185, 4294901760
  %v642 = vsub.f32 %v185, %v641
  %643 = vmatpush1.msra.mxu0 %v642
  %644 = vmatprep.subr.mxu0 0.0
  %v645 = vand.u32 %v184, 4294901760
  %v646 = vsub.f32 %v184, %v645
  %647 = vmatpush1.msra.mxu0 %v646
  %648 = vmatprep.subr.mxu0 0.0
  %v649 = vand.u32 %v183, 4294901760
  %v650 = vsub.f32 %v183, %v649
  %651 = vmatpush1.msra.mxu0 %v650
  %652 = vmatprep.subr.mxu0 0.0
  %v653 = vand.u32 %v182, 4294901760
  %v654 = vsub.f32 %v182, %v653
  %655 = vmatpush1.msra.mxu0 %v654
  %656 = vmatprep.subr.mxu0 0.0
  %v657 = vand.u32 %v181, 4294901760
  %v658 = vsub.f32 %v181, %v657
  %659 = vmatpush1.msra.mxu0 %v658
  %660 = vmatprep.subr.mxu0 0.0
  %v661 = vand.u32 %v180, 4294901760
  %v662 = vsub.f32 %v180, %v661
  %663 = vmatpush1.msra.mxu0 %v662
  %664 = vmatprep.subr.mxu0 0.0
  %v665 = vand.u32 %v179, 4294901760
  %v666 = vsub.f32 %v179, %v665
  %667 = vmatpush1.msra.mxu0 %v666
  %668 = vmatprep.subr.mxu0 0.0
  %v669 = vand.u32 %v178, 4294901760
  %v670 = vsub.f32 %v178, %v669
  %671 = vmatpush1.msra.mxu0 %v670
  %672 = vmatprep.subr.mxu0 0.0
  %v673 = vand.u32 %v209, 4294901760
  %v674 = vsub.f32 %v209, %v673
  %675 = vmatpush2.msra.mxu0 %v674
  %676 = vmatprep.subr.mxu0 0.0
  %v677 = vand.u32 %v208, 4294901760
  %v678 = vsub.f32 %v208, %v677
  %679 = vmatpush2.msra.mxu0 %v678
  %680 = vmatprep.subr.mxu0 0.0
  %v681 = vand.u32 %v207, 4294901760
  %v682 = vsub.f32 %v207, %v681
  %683 = vmatpush2.msra.mxu0 %v682
  %684 = vmatprep.subr.mxu0 0.0
  %v685 = vand.u32 %v206, 4294901760
  %v686 = vsub.f32 %v206, %v685
  %687 = vmatpush2.msra.mxu0 %v686
  %688 = vmatprep.subr.mxu0 0.0
  %v689 = vand.u32 %v205, 4294901760
  %v690 = vsub.f32 %v205, %v689
  %691 = vmatpush2.msra.mxu0 %v690
  %692 = vmatprep.subr.mxu0 0.0
  %v693 = vand.u32 %v204, 4294901760
  %v694 = vsub.f32 %v204, %v693
  %695 = vmatpush2.msra.mxu0 %v694
  %696 = vmatprep.subr.mxu0 0.0
  %v697 = vand.u32 %v203, 4294901760
  %v698 = vsub.f32 %v203, %v697
  %699 = vmatpush2.msra.mxu0 %v698
  %700 = vmatprep.subr.mxu0 0.0
  %v701 = vand.u32 %v202, 4294901760
  %v702 = vsub.f32 %v202, %v701
  %703 = vmatpush2.msra.mxu0 %v702
  %704 = vmatprep.subr.mxu0 0.0
  %v705 = vand.u32 %v201, 4294901760
  %v706 = vsub.f32 %v201, %v705
  %707 = vmatpush2.msra.mxu0 %v706
  %708 = vmatprep.subr.mxu0 0.0
  %v709 = vand.u32 %v200, 4294901760
  %v710 = vsub.f32 %v200, %v709
  %711 = vmatpush2.msra.mxu0 %v710
  %712 = vmatprep.subr.mxu0 0.0
  %v713 = vand.u32 %v199, 4294901760
  %v714 = vsub.f32 %v199, %v713
  %715 = vmatpush2.msra.mxu0 %v714
  %716 = vmatprep.subr.mxu0 0.0
  %v717 = vand.u32 %v198, 4294901760
  %v718 = vsub.f32 %v198, %v717
  %719 = vmatpush2.msra.mxu0 %v718
  %720 = vmatprep.subr.mxu0 0.0
  %v721 = vand.u32 %v197, 4294901760
  %v722 = vsub.f32 %v197, %v721
  %723 = vmatpush2.msra.mxu0 %v722
  %724 = vmatprep.subr.mxu0 0.0
  %v725 = vand.u32 %v196, 4294901760
  %v726 = vsub.f32 %v196, %v725
  %727 = vmatpush2.msra.mxu0 %v726
  %728 = vmatprep.subr.mxu0 0.0
  %v729 = vand.u32 %v195, 4294901760
  %v730 = vsub.f32 %v195, %v729
  %731 = vmatpush2.msra.mxu0 %v730
  %732 = vmatprep.subr.mxu0 0.0
  %v733 = vand.u32 %v194, 4294901760
  %v734 = vsub.f32 %v194, %v733
  %735 = vmatpush2.msra.mxu0 %v734
  %v736 = vand.u32 %v171, 4294901760
  %v737 = vsub.f32 %v171, %v736
  %738 = vmatprep.mubr.f32.mxu0 %v737
  %v739 = vand.u32 %v170, 4294901760
  %v740 = vsub.f32 %v170, %v739
  %741 = vmatmul.mubr.f32.gmra.mxu0 %v740
  %v742 = vpop.f32.mrf.mxu0
  %v743 = vadd.f32 %v598, %v742
  %v744 = vpop.f32.mrf.mxu0
  %v745 = vand.u32 %v175, 4294901760
  %v746 = vsub.f32 %v175, %v745
  %747 = vmatprep.mubr.f32.mxu0 %v746
  %v748 = vand.u32 %v174, 4294901760
  %v749 = vsub.f32 %v174, %v748
  %750 = vmatmul.mubr.f32.gmra.mxu0 %v749
  %v751 = vpop.f32.mrf.mxu0
  %v752 = vadd.f32 %v605, %v751
  %v753 = vpop.f32.mrf.mxu0
  %754 = vdwg.mxu0
  %755 = vmatprep.subr.mxu0 0.0
  %v756 = vand.u32 %v193, 4294901760
  %757 = vmatpush1.msra.mxu0 %v756
  %758 = vmatprep.subr.mxu0 0.0
  %v759 = vand.u32 %v192, 4294901760
  %760 = vmatpush1.msra.mxu0 %v759
  %761 = vmatprep.subr.mxu0 0.0
  %v762 = vand.u32 %v191, 4294901760
  %763 = vmatpush1.msra.mxu0 %v762
  %764 = vmatprep.subr.mxu0 0.0
  %v765 = vand.u32 %v190, 4294901760
  %766 = vmatpush1.msra.mxu0 %v765
  %767 = vmatprep.subr.mxu0 0.0
  %v768 = vand.u32 %v189, 4294901760
  %769 = vmatpush1.msra.mxu0 %v768
  %770 = vmatprep.subr.mxu0 0.0
  %v771 = vand.u32 %v188, 4294901760
  %772 = vmatpush1.msra.mxu0 %v771
  %773 = vmatprep.subr.mxu0 0.0
  %v774 = vand.u32 %v187, 4294901760
  %775 = vmatpush1.msra.mxu0 %v774
  %776 = vmatprep.subr.mxu0 0.0
  %v777 = vand.u32 %v186, 4294901760
  %778 = vmatpush1.msra.mxu0 %v777
  %779 = vmatprep.subr.mxu0 0.0
  %v780 = vand.u32 %v185, 4294901760
  %781 = vmatpush1.msra.mxu0 %v780
  %782 = vmatprep.subr.mxu0 0.0
  %v783 = vand.u32 %v184, 4294901760
  %784 = vmatpush1.msra.mxu0 %v783
  %785 = vmatprep.subr.mxu0 0.0
  %v786 = vand.u32 %v183, 4294901760
  %787 = vmatpush1.msra.mxu0 %v786
  %788 = vmatprep.subr.mxu0 0.0
  %v789 = vand.u32 %v182, 4294901760
  %790 = vmatpush1.msra.mxu0 %v789
  %791 = vmatprep.subr.mxu0 0.0
  %v792 = vand.u32 %v181, 4294901760
  %793 = vmatpush1.msra.mxu0 %v792
  %794 = vmatprep.subr.mxu0 0.0
  %v795 = vand.u32 %v180, 4294901760
  %796 = vmatpush1.msra.mxu0 %v795
  %797 = vmatprep.subr.mxu0 0.0
  %v798 = vand.u32 %v179, 4294901760
  %799 = vmatpush1.msra.mxu0 %v798
  %800 = vmatprep.subr.mxu0 0.0
  %v801 = vand.u32 %v178, 4294901760
  %802 = vmatpush1.msra.mxu0 %v801
  %803 = vmatprep.subr.mxu0 0.0
  %v804 = vand.u32 %v209, 4294901760
  %805 = vmatpush2.msra.mxu0 %v804
  %806 = vmatprep.subr.mxu0 0.0
  %v807 = vand.u32 %v208, 4294901760
  %808 = vmatpush2.msra.mxu0 %v807
  %809 = vmatprep.subr.mxu0 0.0
  %v810 = vand.u32 %v207, 4294901760
  %811 = vmatpush2.msra.mxu0 %v810
  %812 = vmatprep.subr.mxu0 0.0
  %v813 = vand.u32 %v206, 4294901760
  %814 = vmatpush2.msra.mxu0 %v813
  %815 = vmatprep.subr.mxu0 0.0
  %v816 = vand.u32 %v205, 4294901760
  %817 = vmatpush2.msra.mxu0 %v816
  %818 = vmatprep.subr.mxu0 0.0
  %v819 = vand.u32 %v204, 4294901760
  %820 = vmatpush2.msra.mxu0 %v819
  %821 = vmatprep.subr.mxu0 0.0
  %v822 = vand.u32 %v203, 4294901760
  %823 = vmatpush2.msra.mxu0 %v822
  %824 = vmatprep.subr.mxu0 0.0
  %v825 = vand.u32 %v202, 4294901760
  %826 = vmatpush2.msra.mxu0 %v825
  %827 = vmatprep.subr.mxu0 0.0
  %v828 = vand.u32 %v201, 4294901760
  %829 = vmatpush2.msra.mxu0 %v828
  %830 = vmatprep.subr.mxu0 0.0
  %v831 = vand.u32 %v200, 4294901760
  %832 = vmatpush2.msra.mxu0 %v831
  %833 = vmatprep.subr.mxu0 0.0
  %v834 = vand.u32 %v199, 4294901760
  %835 = vmatpush2.msra.mxu0 %v834
  %836 = vmatprep.subr.mxu0 0.0
  %v837 = vand.u32 %v198, 4294901760
  %838 = vmatpush2.msra.mxu0 %v837
  %839 = vmatprep.subr.mxu0 0.0
  %v840 = vand.u32 %v197, 4294901760
  %841 = vmatpush2.msra.mxu0 %v840
  %842 = vmatprep.subr.mxu0 0.0
  %v843 = vand.u32 %v196, 4294901760
  %844 = vmatpush2.msra.mxu0 %v843
  %845 = vmatprep.subr.mxu0 0.0
  %v846 = vand.u32 %v195, 4294901760
  %847 = vmatpush2.msra.mxu0 %v846
  %848 = vmatprep.subr.mxu0 0.0
  %v849 = vand.u32 %v194, 4294901760
  %850 = vmatpush2.msra.mxu0 %v849
  %v851 = vand.u32 %v171, 4294901760
  %v852 = vsub.f32 %v171, %v851
  %v853 = vand.u32 %v852, 4294901760
  %854 = vmatprep.mubr.f32.mxu0 %v853
  %v855 = vand.u32 %v170, 4294901760
  %v856 = vsub.f32 %v170, %v855
  %v857 = vand.u32 %v856, 4294901760
  %858 = vmatmul.mubr.f32.gmra.mxu0 %v857
  %v859 = vpop.f32.mrf.mxu0
  %v860 = vadd.f32 %v743, %v859
  %v861 = vpop.f32.mrf.mxu0
  %v862 = vand.u32 %v175, 4294901760
  %v863 = vsub.f32 %v175, %v862
  %v864 = vand.u32 %v863, 4294901760
  %865 = vmatprep.mubr.f32.mxu0 %v864
  %v866 = vand.u32 %v174, 4294901760
  %v867 = vsub.f32 %v174, %v866
  %v868 = vand.u32 %v867, 4294901760
  %869 = vmatmul.mubr.f32.gmra.mxu0 %v868
  %v870 = vpop.f32.mrf.mxu0
  %v871 = vadd.f32 %v752, %v870
  %v872 = vpop.f32.mrf.mxu0
  %873 = vdwg.mxu0
  %874 = vmatprep.subr.mxu0 0.0
  %v875 = vand.u32 %v193, 4294901760
  %v876 = vsub.f32 %v193, %v875
  %v877 = vand.u32 %v876, 4294901760
  %878 = vmatpush1.msra.mxu0 %v877
  %879 = vmatprep.subr.mxu0 0.0
  %v880 = vand.u32 %v192, 4294901760
  %v881 = vsub.f32 %v192, %v880
  %v882 = vand.u32 %v881, 4294901760
  %883 = vmatpush1.msra.mxu0 %v882
  %884 = vmatprep.subr.mxu0 0.0
  %v885 = vand.u32 %v191, 4294901760
  %v886 = vsub.f32 %v191, %v885
  %v887 = vand.u32 %v886, 4294901760
  %888 = vmatpush1.msra.mxu0 %v887
  %889 = vmatprep.subr.mxu0 0.0
  %v890 = vand.u32 %v190, 4294901760
  %v891 = vsub.f32 %v190, %v890
  %v892 = vand.u32 %v891, 4294901760
  %893 = vmatpush1.msra.mxu0 %v892
  %894 = vmatprep.subr.mxu0 0.0
  %v895 = vand.u32 %v189, 4294901760
  %v896 = vsub.f32 %v189, %v895
  %v897 = vand.u32 %v896, 4294901760
  %898 = vmatpush1.msra.mxu0 %v897
  %899 = vmatprep.subr.mxu0 0.0
  %v900 = vand.u32 %v188, 4294901760
  %v901 = vsub.f32 %v188, %v900
  %v902 = vand.u32 %v901, 4294901760
  %903 = vmatpush1.msra.mxu0 %v902
  %904 = vmatprep.subr.mxu0 0.0
  %v905 = vand.u32 %v187, 4294901760
  %v906 = vsub.f32 %v187, %v905
  %v907 = vand.u32 %v906, 4294901760
  %908 = vmatpush1.msra.mxu0 %v907
  %909 = vmatprep.subr.mxu0 0.0
  %v910 = vand.u32 %v186, 4294901760
  %v911 = vsub.f32 %v186, %v910
  %v912 = vand.u32 %v911, 4294901760
  %913 = vmatpush1.msra.mxu0 %v912
  %914 = vmatprep.subr.mxu0 0.0
  %v915 = vand.u32 %v185, 4294901760
  %v916 = vsub.f32 %v185, %v915
  %v917 = vand.u32 %v916, 4294901760
  %918 = vmatpush1.msra.mxu0 %v917
  %919 = vmatprep.subr.mxu0 0.0
  %v920 = vand.u32 %v184, 4294901760
  %v921 = vsub.f32 %v184, %v920
  %v922 = vand.u32 %v921, 4294901760
  %923 = vmatpush1.msra.mxu0 %v922
  %924 = vmatprep.subr.mxu0 0.0
  %v925 = vand.u32 %v183, 4294901760
  %v926 = vsub.f32 %v183, %v925
  %v927 = vand.u32 %v926, 4294901760
  %928 = vmatpush1.msra.mxu0 %v927
  %929 = vmatprep.subr.mxu0 0.0
  %v930 = vand.u32 %v182, 4294901760
  %v931 = vsub.f32 %v182, %v930
  %v932 = vand.u32 %v931, 4294901760
  %933 = vmatpush1.msra.mxu0 %v932
  %934 = vmatprep.subr.mxu0 0.0
  %v935 = vand.u32 %v181, 4294901760
  %v936 = vsub.f32 %v181, %v935
  %v937 = vand.u32 %v936, 4294901760
  %938 = vmatpush1.msra.mxu0 %v937
  %939 = vmatprep.subr.mxu0 0.0
  %v940 = vand.u32 %v180, 4294901760
  %v941 = vsub.f32 %v180, %v940
  %v942 = vand.u32 %v941, 4294901760
  %943 = vmatpush1.msra.mxu0 %v942
  %944 = vmatprep.subr.mxu0 0.0
  %v945 = vand.u32 %v179, 4294901760
  %v946 = vsub.f32 %v179, %v945
  %v947 = vand.u32 %v946, 4294901760
  %948 = vmatpush1.msra.mxu0 %v947
  %949 = vmatprep.subr.mxu0 0.0
  %v950 = vand.u32 %v178, 4294901760
  %v951 = vsub.f32 %v178, %v950
  %v952 = vand.u32 %v951, 4294901760
  %953 = vmatpush1.msra.mxu0 %v952
  %954 = vmatprep.subr.mxu0 0.0
  %v955 = vand.u32 %v209, 4294901760
  %v956 = vsub.f32 %v209, %v955
  %v957 = vand.u32 %v956, 4294901760
  %958 = vmatpush2.msra.mxu0 %v957
  %959 = vmatprep.subr.mxu0 0.0
  %v960 = vand.u32 %v208, 4294901760
  %v961 = vsub.f32 %v208, %v960
  %v962 = vand.u32 %v961, 4294901760
  %963 = vmatpush2.msra.mxu0 %v962
  %964 = vmatprep.subr.mxu0 0.0
  %v965 = vand.u32 %v207, 4294901760
  %v966 = vsub.f32 %v207, %v965
  %v967 = vand.u32 %v966, 4294901760
  %968 = vmatpush2.msra.mxu0 %v967
  %969 = vmatprep.subr.mxu0 0.0
  %v970 = vand.u32 %v206, 4294901760
  %v971 = vsub.f32 %v206, %v970
  %v972 = vand.u32 %v971, 4294901760
  %973 = vmatpush2.msra.mxu0 %v972
  %974 = vmatprep.subr.mxu0 0.0
  %v975 = vand.u32 %v205, 4294901760
  %v976 = vsub.f32 %v205, %v975
  %v977 = vand.u32 %v976, 4294901760
  %978 = vmatpush2.msra.mxu0 %v977
  %979 = vmatprep.subr.mxu0 0.0
  %v980 = vand.u32 %v204, 4294901760
  %v981 = vsub.f32 %v204, %v980
  %v982 = vand.u32 %v981, 4294901760
  %983 = vmatpush2.msra.mxu0 %v982
  %984 = vmatprep.subr.mxu0 0.0
  %v985 = vand.u32 %v203, 4294901760
  %v986 = vsub.f32 %v203, %v985
  %v987 = vand.u32 %v986, 4294901760
  %988 = vmatpush2.msra.mxu0 %v987
  %989 = vmatprep.subr.mxu0 0.0
  %v990 = vand.u32 %v202, 4294901760
  %v991 = vsub.f32 %v202, %v990
  %v992 = vand.u32 %v991, 4294901760
  %993 = vmatpush2.msra.mxu0 %v992
  %994 = vmatprep.subr.mxu0 0.0
  %v995 = vand.u32 %v201, 4294901760
  %v996 = vsub.f32 %v201, %v995
  %v997 = vand.u32 %v996, 4294901760
  %998 = vmatpush2.msra.mxu0 %v997
  %999 = vmatprep.subr.mxu0 0.0
  %v1000 = vand.u32 %v200, 4294901760
  %v1001 = vsub.f32 %v200, %v1000
  %v1002 = vand.u32 %v1001, 4294901760
  %1003 = vmatpush2.msra.mxu0 %v1002
  %1004 = vmatprep.subr.mxu0 0.0
  %v1005 = vand.u32 %v199, 4294901760
  %v1006 = vsub.f32 %v199, %v1005
  %v1007 = vand.u32 %v1006, 4294901760
  %1008 = vmatpush2.msra.mxu0 %v1007
  %1009 = vmatprep.subr.mxu0 0.0
  %v1010 = vand.u32 %v198, 4294901760
  %v1011 = vsub.f32 %v198, %v1010
  %v1012 = vand.u32 %v1011, 4294901760
  %1013 = vmatpush2.msra.mxu0 %v1012
  %1014 = vmatprep.subr.mxu0 0.0
  %v1015 = vand.u32 %v197, 4294901760
  %v1016 = vsub.f32 %v197, %v1015
  %v1017 = vand.u32 %v1016, 4294901760
  %1018 = vmatpush2.msra.mxu0 %v1017
  %1019 = vmatprep.subr.mxu0 0.0
  %v1020 = vand.u32 %v196, 4294901760
  %v1021 = vsub.f32 %v196, %v1020
  %v1022 = vand.u32 %v1021, 4294901760
  %1023 = vmatpush2.msra.mxu0 %v1022
  %1024 = vmatprep.subr.mxu0 0.0
  %v1025 = vand.u32 %v195, 4294901760
  %v1026 = vsub.f32 %v195, %v1025
  %v1027 = vand.u32 %v1026, 4294901760
  %1028 = vmatpush2.msra.mxu0 %v1027
  %1029 = vmatprep.subr.mxu0 0.0
  %v1030 = vand.u32 %v194, 4294901760
  %v1031 = vsub.f32 %v194, %v1030
  %v1032 = vand.u32 %v1031, 4294901760
  %1033 = vmatpush2.msra.mxu0 %v1032
  %v1034 = vand.u32 %v171, 4294901760
  %1035 = vmatprep.mubr.f32.mxu0 %v1034
  %v1036 = vand.u32 %v170, 4294901760
  %1037 = vmatmul.mubr.f32.gmra.mxu0 %v1036
  %v1038 = vpop.f32.mrf.mxu0
  %v1039 = vadd.f32 %v860, %v1038
  %v1040 = vpop.f32.mrf.mxu0
  %v1041 = vand.u32 %v175, 4294901760
  %1042 = vmatprep.mubr.f32.mxu0 %v1041
  %v1043 = vand.u32 %v174, 4294901760
  %1044 = vmatmul.mubr.f32.gmra.mxu0 %v1043
  %v1045 = vpop.f32.mrf.mxu0
  %v1046 = vadd.f32 %v871, %v1045
  %v1047 = vpop.f32.mrf.mxu0
  %1048 = vdwg.mxu0
  %1049 = vmatprep.subr.mxu0 0.0
  %v1050 = vand.u32 %v193, 4294901760
  %1051 = vmatpush1.msra.mxu0 %v1050
  %1052 = vmatprep.subr.mxu0 0.0
  %v1053 = vand.u32 %v192, 4294901760
  %1054 = vmatpush1.msra.mxu0 %v1053
  %1055 = vmatprep.subr.mxu0 0.0
  %v1056 = vand.u32 %v191, 4294901760
  %1057 = vmatpush1.msra.mxu0 %v1056
  %1058 = vmatprep.subr.mxu0 0.0
  %v1059 = vand.u32 %v190, 4294901760
  %1060 = vmatpush1.msra.mxu0 %v1059
  %1061 = vmatprep.subr.mxu0 0.0
  %v1062 = vand.u32 %v189, 4294901760
  %1063 = vmatpush1.msra.mxu0 %v1062
  %1064 = vmatprep.subr.mxu0 0.0
  %v1065 = vand.u32 %v188, 4294901760
  %1066 = vmatpush1.msra.mxu0 %v1065
  %1067 = vmatprep.subr.mxu0 0.0
  %v1068 = vand.u32 %v187, 4294901760
  %1069 = vmatpush1.msra.mxu0 %v1068
  %1070 = vmatprep.subr.mxu0 0.0
  %v1071 = vand.u32 %v186, 4294901760
  %1072 = vmatpush1.msra.mxu0 %v1071
  %1073 = vmatprep.subr.mxu0 0.0
  %v1074 = vand.u32 %v185, 4294901760
  %1075 = vmatpush1.msra.mxu0 %v1074
  %1076 = vmatprep.subr.mxu0 0.0
  %v1077 = vand.u32 %v184, 4294901760
  %1078 = vmatpush1.msra.mxu0 %v1077
  %1079 = vmatprep.subr.mxu0 0.0
  %v1080 = vand.u32 %v183, 4294901760
  %1081 = vmatpush1.msra.mxu0 %v1080
  %1082 = vmatprep.subr.mxu0 0.0
  %v1083 = vand.u32 %v182, 4294901760
  %1084 = vmatpush1.msra.mxu0 %v1083
  %1085 = vmatprep.subr.mxu0 0.0
  %v1086 = vand.u32 %v181, 4294901760
  %1087 = vmatpush1.msra.mxu0 %v1086
  %1088 = vmatprep.subr.mxu0 0.0
  %v1089 = vand.u32 %v180, 4294901760
  %1090 = vmatpush1.msra.mxu0 %v1089
  %1091 = vmatprep.subr.mxu0 0.0
  %v1092 = vand.u32 %v179, 4294901760
  %1093 = vmatpush1.msra.mxu0 %v1092
  %1094 = vmatprep.subr.mxu0 0.0
  %v1095 = vand.u32 %v178, 4294901760
  %1096 = vmatpush1.msra.mxu0 %v1095
  %1097 = vmatprep.subr.mxu0 0.0
  %v1098 = vand.u32 %v209, 4294901760
  %1099 = vmatpush2.msra.mxu0 %v1098
  %1100 = vmatprep.subr.mxu0 0.0
  %v1101 = vand.u32 %v208, 4294901760
  %1102 = vmatpush2.msra.mxu0 %v1101
  %1103 = vmatprep.subr.mxu0 0.0
  %v1104 = vand.u32 %v207, 4294901760
  %1105 = vmatpush2.msra.mxu0 %v1104
  %1106 = vmatprep.subr.mxu0 0.0
  %v1107 = vand.u32 %v206, 4294901760
  %1108 = vmatpush2.msra.mxu0 %v1107
  %1109 = vmatprep.subr.mxu0 0.0
  %v1110 = vand.u32 %v205, 4294901760
  %1111 = vmatpush2.msra.mxu0 %v1110
  %1112 = vmatprep.subr.mxu0 0.0
  %v1113 = vand.u32 %v204, 4294901760
  %1114 = vmatpush2.msra.mxu0 %v1113
  %1115 = vmatprep.subr.mxu0 0.0
  %v1116 = vand.u32 %v203, 4294901760
  %1117 = vmatpush2.msra.mxu0 %v1116
  %1118 = vmatprep.subr.mxu0 0.0
  %v1119 = vand.u32 %v202, 4294901760
  %1120 = vmatpush2.msra.mxu0 %v1119
  %1121 = vmatprep.subr.mxu0 0.0
  %v1122 = vand.u32 %v201, 4294901760
  %1123 = vmatpush2.msra.mxu0 %v1122
  %1124 = vmatprep.subr.mxu0 0.0
  %v1125 = vand.u32 %v200, 4294901760
  %1126 = vmatpush2.msra.mxu0 %v1125
  %1127 = vmatprep.subr.mxu0 0.0
  %v1128 = vand.u32 %v199, 4294901760
  %1129 = vmatpush2.msra.mxu0 %v1128
  %1130 = vmatprep.subr.mxu0 0.0
  %v1131 = vand.u32 %v198, 4294901760
  %1132 = vmatpush2.msra.mxu0 %v1131
  %1133 = vmatprep.subr.mxu0 0.0
  %v1134 = vand.u32 %v197, 4294901760
  %1135 = vmatpush2.msra.mxu0 %v1134
  %1136 = vmatprep.subr.mxu0 0.0
  %v1137 = vand.u32 %v196, 4294901760
  %1138 = vmatpush2.msra.mxu0 %v1137
  %1139 = vmatprep.subr.mxu0 0.0
  %v1140 = vand.u32 %v195, 4294901760
  %1141 = vmatpush2.msra.mxu0 %v1140
  %1142 = vmatprep.subr.mxu0 0.0
  %v1143 = vand.u32 %v194, 4294901760
  %1144 = vmatpush2.msra.mxu0 %v1143
  %v1145 = vand.u32 %v171, 4294901760
  %1146 = vmatprep.mubr.f32.mxu0 %v1145
  %v1147 = vand.u32 %v170, 4294901760
  %1148 = vmatmul.mubr.f32.gmra.mxu0 %v1147
  %v1149 = vpop.f32.mrf.mxu0
  %v1150 = vadd.f32 %v1039, %v1149
  %v1151 = vpop.f32.mrf.mxu0
  %v1152 = vand.u32 %v175, 4294901760
  %1153 = vmatprep.mubr.f32.mxu0 %v1152
  %v1154 = vand.u32 %v174, 4294901760
  %1155 = vmatmul.mubr.f32.gmra.mxu0 %v1154
  %v1156 = vpop.f32.mrf.mxu0
  %v1157 = vadd.f32 %v1046, %v1156
  %v1158 = vpop.f32.mrf.mxu0
  %1159 = vdwg.mxu0
  %1160 = vmatprep.subr.mxu0 0.0
  %v1161 = vand.u32 %v225, 4294901760
  %1162 = vmatpush1.msra.mxu0 %v1161
  %1163 = vmatprep.subr.mxu0 0.0
  %v1164 = vand.u32 %v224, 4294901760
  %1165 = vmatpush1.msra.mxu0 %v1164
  %1166 = vmatprep.subr.mxu0 0.0
  %v1167 = vand.u32 %v223, 4294901760
  %1168 = vmatpush1.msra.mxu0 %v1167
  %1169 = vmatprep.subr.mxu0 0.0
  %v1170 = vand.u32 %v222, 4294901760
  %1171 = vmatpush1.msra.mxu0 %v1170
  %1172 = vmatprep.subr.mxu0 0.0
  %v1173 = vand.u32 %v221, 4294901760
  %1174 = vmatpush1.msra.mxu0 %v1173
  %1175 = vmatprep.subr.mxu0 0.0
  %v1176 = vand.u32 %v220, 4294901760
  %1177 = vmatpush1.msra.mxu0 %v1176
  %1178 = vmatprep.subr.mxu0 0.0
  %v1179 = vand.u32 %v219, 4294901760
  %1180 = vmatpush1.msra.mxu0 %v1179
  %1181 = vmatprep.subr.mxu0 0.0
  %v1182 = vand.u32 %v218, 4294901760
  %1183 = vmatpush1.msra.mxu0 %v1182
  %1184 = vmatprep.subr.mxu0 0.0
  %v1185 = vand.u32 %v217, 4294901760
  %1186 = vmatpush1.msra.mxu0 %v1185
  %1187 = vmatprep.subr.mxu0 0.0
  %v1188 = vand.u32 %v216, 4294901760
  %1189 = vmatpush1.msra.mxu0 %v1188
  %1190 = vmatprep.subr.mxu0 0.0
  %v1191 = vand.u32 %v215, 4294901760
  %1192 = vmatpush1.msra.mxu0 %v1191
  %1193 = vmatprep.subr.mxu0 0.0
  %v1194 = vand.u32 %v214, 4294901760
  %1195 = vmatpush1.msra.mxu0 %v1194
  %1196 = vmatprep.subr.mxu0 0.0
  %v1197 = vand.u32 %v213, 4294901760
  %1198 = vmatpush1.msra.mxu0 %v1197
  %1199 = vmatprep.subr.mxu0 0.0
  %v1200 = vand.u32 %v212, 4294901760
  %1201 = vmatpush1.msra.mxu0 %v1200
  %1202 = vmatprep.subr.mxu0 0.0
  %v1203 = vand.u32 %v211, 4294901760
  %1204 = vmatpush1.msra.mxu0 %v1203
  %1205 = vmatprep.subr.mxu0 0.0
  %v1206 = vand.u32 %v210, 4294901760
  %1207 = vmatpush1.msra.mxu0 %v1206
  %1208 = vmatprep.subr.mxu0 0.0
  %v1209 = vand.u32 %v241, 4294901760
  %1210 = vmatpush2.msra.mxu0 %v1209
  %1211 = vmatprep.subr.mxu0 0.0
  %v1212 = vand.u32 %v240, 4294901760
  %1213 = vmatpush2.msra.mxu0 %v1212
  %1214 = vmatprep.subr.mxu0 0.0
  %v1215 = vand.u32 %v239, 4294901760
  %1216 = vmatpush2.msra.mxu0 %v1215
  %1217 = vmatprep.subr.mxu0 0.0
  %v1218 = vand.u32 %v238, 4294901760
  %1219 = vmatpush2.msra.mxu0 %v1218
  %1220 = vmatprep.subr.mxu0 0.0
  %v1221 = vand.u32 %v237, 4294901760
  %1222 = vmatpush2.msra.mxu0 %v1221
  %1223 = vmatprep.subr.mxu0 0.0
  %v1224 = vand.u32 %v236, 4294901760
  %1225 = vmatpush2.msra.mxu0 %v1224
  %1226 = vmatprep.subr.mxu0 0.0
  %v1227 = vand.u32 %v235, 4294901760
  %1228 = vmatpush2.msra.mxu0 %v1227
  %1229 = vmatprep.subr.mxu0 0.0
  %v1230 = vand.u32 %v234, 4294901760
  %1231 = vmatpush2.msra.mxu0 %v1230
  %1232 = vmatprep.subr.mxu0 0.0
  %v1233 = vand.u32 %v233, 4294901760
  %1234 = vmatpush2.msra.mxu0 %v1233
  %1235 = vmatprep.subr.mxu0 0.0
  %v1236 = vand.u32 %v232, 4294901760
  %1237 = vmatpush2.msra.mxu0 %v1236
  %1238 = vmatprep.subr.mxu0 0.0
  %v1239 = vand.u32 %v231, 4294901760
  %1240 = vmatpush2.msra.mxu0 %v1239
  %1241 = vmatprep.subr.mxu0 0.0
  %v1242 = vand.u32 %v230, 4294901760
  %1243 = vmatpush2.msra.mxu0 %v1242
  %1244 = vmatprep.subr.mxu0 0.0
  %v1245 = vand.u32 %v229, 4294901760
  %1246 = vmatpush2.msra.mxu0 %v1245
  %1247 = vmatprep.subr.mxu0 0.0
  %v1248 = vand.u32 %v228, 4294901760
  %1249 = vmatpush2.msra.mxu0 %v1248
  %1250 = vmatprep.subr.mxu0 0.0
  %v1251 = vand.u32 %v227, 4294901760
  %1252 = vmatpush2.msra.mxu0 %v1251
  %1253 = vmatprep.subr.mxu0 0.0
  %v1254 = vand.u32 %v226, 4294901760
  %1255 = vmatpush2.msra.mxu0 %v1254
  %v1256 = vand.u32 %v173, 4294901760
  %v1257 = vsub.f32 %v173, %v1256
  %v1258 = vand.u32 %v1257, 4294901760
  %v1259 = vsub.f32 %v1257, %v1258
  %v1260 = vand.u32 %v1259, 4294901760
  %1261 = vmatprep.mubr.f32.mxu0 %v1260
  %v1262 = vand.u32 %v172, 4294901760
  %v1263 = vsub.f32 %v172, %v1262
  %v1264 = vand.u32 %v1263, 4294901760
  %v1265 = vsub.f32 %v1263, %v1264
  %v1266 = vand.u32 %v1265, 4294901760
  %1267 = vmatmul.mubr.f32.gmra.mxu0 %v1266
  %v1268 = vpop.f32.mrf.mxu0
  %v1269 = vadd.f32 %v1150, %v1268
  %v1270 = vpop.f32.mrf.mxu0
  %v1271 = vand.u32 %v177, 4294901760
  %v1272 = vsub.f32 %v177, %v1271
  %v1273 = vand.u32 %v1272, 4294901760
  %v1274 = vsub.f32 %v1272, %v1273
  %v1275 = vand.u32 %v1274, 4294901760
  %1276 = vmatprep.mubr.f32.mxu0 %v1275
  %v1277 = vand.u32 %v176, 4294901760
  %v1278 = vsub.f32 %v176, %v1277
  %v1279 = vand.u32 %v1278, 4294901760
  %v1280 = vsub.f32 %v1278, %v1279
  %v1281 = vand.u32 %v1280, 4294901760
  %1282 = vmatmul.mubr.f32.gmra.mxu0 %v1281
  %v1283 = vpop.f32.mrf.mxu0
  %v1284 = vadd.f32 %v1157, %v1283
  %v1285 = vpop.f32.mrf.mxu0
  %1286 = vdwg.mxu0
  %1287 = vmatprep.subr.mxu0 0.0
  %v1288 = vand.u32 %v225, 4294901760
  %v1289 = vsub.f32 %v225, %v1288
  %v1290 = vand.u32 %v1289, 4294901760
  %v1291 = vsub.f32 %v1289, %v1290
  %v1292 = vand.u32 %v1291, 4294901760
  %1293 = vmatpush1.msra.mxu0 %v1292
  %1294 = vmatprep.subr.mxu0 0.0
  %v1295 = vand.u32 %v224, 4294901760
  %v1296 = vsub.f32 %v224, %v1295
  %v1297 = vand.u32 %v1296, 4294901760
  %v1298 = vsub.f32 %v1296, %v1297
  %v1299 = vand.u32 %v1298, 4294901760
  %1300 = vmatpush1.msra.mxu0 %v1299
  %1301 = vmatprep.subr.mxu0 0.0
  %v1302 = vand.u32 %v223, 4294901760
  %v1303 = vsub.f32 %v223, %v1302
  %v1304 = vand.u32 %v1303, 4294901760
  %v1305 = vsub.f32 %v1303, %v1304
  %v1306 = vand.u32 %v1305, 4294901760
  %1307 = vmatpush1.msra.mxu0 %v1306
  %1308 = vmatprep.subr.mxu0 0.0
  %v1309 = vand.u32 %v222, 4294901760
  %v1310 = vsub.f32 %v222, %v1309
  %v1311 = vand.u32 %v1310, 4294901760
  %v1312 = vsub.f32 %v1310, %v1311
  %v1313 = vand.u32 %v1312, 4294901760
  %1314 = vmatpush1.msra.mxu0 %v1313
  %1315 = vmatprep.subr.mxu0 0.0
  %v1316 = vand.u32 %v221, 4294901760
  %v1317 = vsub.f32 %v221, %v1316
  %v1318 = vand.u32 %v1317, 4294901760
  %v1319 = vsub.f32 %v1317, %v1318
  %v1320 = vand.u32 %v1319, 4294901760
  %1321 = vmatpush1.msra.mxu0 %v1320
  %1322 = vmatprep.subr.mxu0 0.0
  %v1323 = vand.u32 %v220, 4294901760
  %v1324 = vsub.f32 %v220, %v1323
  %v1325 = vand.u32 %v1324, 4294901760
  %v1326 = vsub.f32 %v1324, %v1325
  %v1327 = vand.u32 %v1326, 4294901760
  %1328 = vmatpush1.msra.mxu0 %v1327
  %1329 = vmatprep.subr.mxu0 0.0
  %v1330 = vand.u32 %v219, 4294901760
  %v1331 = vsub.f32 %v219, %v1330
  %v1332 = vand.u32 %v1331, 4294901760
  %v1333 = vsub.f32 %v1331, %v1332
  %v1334 = vand.u32 %v1333, 4294901760
  %1335 = vmatpush1.msra.mxu0 %v1334
  %1336 = vmatprep.subr.mxu0 0.0
  %v1337 = vand.u32 %v218, 4294901760
  %v1338 = vsub.f32 %v218, %v1337
  %v1339 = vand.u32 %v1338, 4294901760
  %v1340 = vsub.f32 %v1338, %v1339
  %v1341 = vand.u32 %v1340, 4294901760
  %1342 = vmatpush1.msra.mxu0 %v1341
  %1343 = vmatprep.subr.mxu0 0.0
  %v1344 = vand.u32 %v217, 4294901760
  %v1345 = vsub.f32 %v217, %v1344
  %v1346 = vand.u32 %v1345, 4294901760
  %v1347 = vsub.f32 %v1345, %v1346
  %v1348 = vand.u32 %v1347, 4294901760
  %1349 = vmatpush1.msra.mxu0 %v1348
  %1350 = vmatprep.subr.mxu0 0.0
  %v1351 = vand.u32 %v216, 4294901760
  %v1352 = vsub.f32 %v216, %v1351
  %v1353 = vand.u32 %v1352, 4294901760
  %v1354 = vsub.f32 %v1352, %v1353
  %v1355 = vand.u32 %v1354, 4294901760
  %1356 = vmatpush1.msra.mxu0 %v1355
  %1357 = vmatprep.subr.mxu0 0.0
  %v1358 = vand.u32 %v215, 4294901760
  %v1359 = vsub.f32 %v215, %v1358
  %v1360 = vand.u32 %v1359, 4294901760
  %v1361 = vsub.f32 %v1359, %v1360
  %v1362 = vand.u32 %v1361, 4294901760
  %1363 = vmatpush1.msra.mxu0 %v1362
  %1364 = vmatprep.subr.mxu0 0.0
  %v1365 = vand.u32 %v214, 4294901760
  %v1366 = vsub.f32 %v214, %v1365
  %v1367 = vand.u32 %v1366, 4294901760
  %v1368 = vsub.f32 %v1366, %v1367
  %v1369 = vand.u32 %v1368, 4294901760
  %1370 = vmatpush1.msra.mxu0 %v1369
  %1371 = vmatprep.subr.mxu0 0.0
  %v1372 = vand.u32 %v213, 4294901760
  %v1373 = vsub.f32 %v213, %v1372
  %v1374 = vand.u32 %v1373, 4294901760
  %v1375 = vsub.f32 %v1373, %v1374
  %v1376 = vand.u32 %v1375, 4294901760
  %1377 = vmatpush1.msra.mxu0 %v1376
  %1378 = vmatprep.subr.mxu0 0.0
  %v1379 = vand.u32 %v212, 4294901760
  %v1380 = vsub.f32 %v212, %v1379
  %v1381 = vand.u32 %v1380, 4294901760
  %v1382 = vsub.f32 %v1380, %v1381
  %v1383 = vand.u32 %v1382, 4294901760
  %1384 = vmatpush1.msra.mxu0 %v1383
  %1385 = vmatprep.subr.mxu0 0.0
  %v1386 = vand.u32 %v211, 4294901760
  %v1387 = vsub.f32 %v211, %v1386
  %v1388 = vand.u32 %v1387, 4294901760
  %v1389 = vsub.f32 %v1387, %v1388
  %v1390 = vand.u32 %v1389, 4294901760
  %1391 = vmatpush1.msra.mxu0 %v1390
  %1392 = vmatprep.subr.mxu0 0.0
  %v1393 = vand.u32 %v210, 4294901760
  %v1394 = vsub.f32 %v210, %v1393
  %v1395 = vand.u32 %v1394, 4294901760
  %v1396 = vsub.f32 %v1394, %v1395
  %v1397 = vand.u32 %v1396, 4294901760
  %1398 = vmatpush1.msra.mxu0 %v1397
  %1399 = vmatprep.subr.mxu0 0.0
  %v1400 = vand.u32 %v241, 4294901760
  %v1401 = vsub.f32 %v241, %v1400
  %v1402 = vand.u32 %v1401, 4294901760
  %v1403 = vsub.f32 %v1401, %v1402
  %v1404 = vand.u32 %v1403, 4294901760
  %1405 = vmatpush2.msra.mxu0 %v1404
  %1406 = vmatprep.subr.mxu0 0.0
  %v1407 = vand.u32 %v240, 4294901760
  %v1408 = vsub.f32 %v240, %v1407
  %v1409 = vand.u32 %v1408, 4294901760
  %v1410 = vsub.f32 %v1408, %v1409
  %v1411 = vand.u32 %v1410, 4294901760
  %1412 = vmatpush2.msra.mxu0 %v1411
  %1413 = vmatprep.subr.mxu0 0.0
  %v1414 = vand.u32 %v239, 4294901760
  %v1415 = vsub.f32 %v239, %v1414
  %v1416 = vand.u32 %v1415, 4294901760
  %v1417 = vsub.f32 %v1415, %v1416
  %v1418 = vand.u32 %v1417, 4294901760
  %1419 = vmatpush2.msra.mxu0 %v1418
  %1420 = vmatprep.subr.mxu0 0.0
  %v1421 = vand.u32 %v238, 4294901760
  %v1422 = vsub.f32 %v238, %v1421
  %v1423 = vand.u32 %v1422, 4294901760
  %v1424 = vsub.f32 %v1422, %v1423
  %v1425 = vand.u32 %v1424, 4294901760
  %1426 = vmatpush2.msra.mxu0 %v1425
  %1427 = vmatprep.subr.mxu0 0.0
  %v1428 = vand.u32 %v237, 4294901760
  %v1429 = vsub.f32 %v237, %v1428
  %v1430 = vand.u32 %v1429, 4294901760
  %v1431 = vsub.f32 %v1429, %v1430
  %v1432 = vand.u32 %v1431, 4294901760
  %1433 = vmatpush2.msra.mxu0 %v1432
  %1434 = vmatprep.subr.mxu0 0.0
  %v1435 = vand.u32 %v236, 4294901760
  %v1436 = vsub.f32 %v236, %v1435
  %v1437 = vand.u32 %v1436, 4294901760
  %v1438 = vsub.f32 %v1436, %v1437
  %v1439 = vand.u32 %v1438, 4294901760
  %1440 = vmatpush2.msra.mxu0 %v1439
  %1441 = vmatprep.subr.mxu0 0.0
  %v1442 = vand.u32 %v235, 4294901760
  %v1443 = vsub.f32 %v235, %v1442
  %v1444 = vand.u32 %v1443, 4294901760
  %v1445 = vsub.f32 %v1443, %v1444
  %v1446 = vand.u32 %v1445, 4294901760
  %1447 = vmatpush2.msra.mxu0 %v1446
  %1448 = vmatprep.subr.mxu0 0.0
  %v1449 = vand.u32 %v234, 4294901760
  %v1450 = vsub.f32 %v234, %v1449
  %v1451 = vand.u32 %v1450, 4294901760
  %v1452 = vsub.f32 %v1450, %v1451
  %v1453 = vand.u32 %v1452, 4294901760
  %1454 = vmatpush2.msra.mxu0 %v1453
  %1455 = vmatprep.subr.mxu0 0.0
  %v1456 = vand.u32 %v233, 4294901760
  %v1457 = vsub.f32 %v233, %v1456
  %v1458 = vand.u32 %v1457, 4294901760
  %v1459 = vsub.f32 %v1457, %v1458
  %v1460 = vand.u32 %v1459, 4294901760
  %1461 = vmatpush2.msra.mxu0 %v1460
  %1462 = vmatprep.subr.mxu0 0.0
  %v1463 = vand.u32 %v232, 4294901760
  %v1464 = vsub.f32 %v232, %v1463
  %v1465 = vand.u32 %v1464, 4294901760
  %v1466 = vsub.f32 %v1464, %v1465
  %v1467 = vand.u32 %v1466, 4294901760
  %1468 = vmatpush2.msra.mxu0 %v1467
  %1469 = vmatprep.subr.mxu0 0.0
  %v1470 = vand.u32 %v231, 4294901760
  %v1471 = vsub.f32 %v231, %v1470
  %v1472 = vand.u32 %v1471, 4294901760
  %v1473 = vsub.f32 %v1471, %v1472
  %v1474 = vand.u32 %v1473, 4294901760
  %1475 = vmatpush2.msra.mxu0 %v1474
  %1476 = vmatprep.subr.mxu0 0.0
  %v1477 = vand.u32 %v230, 4294901760
  %v1478 = vsub.f32 %v230, %v1477
  %v1479 = vand.u32 %v1478, 4294901760
  %v1480 = vsub.f32 %v1478, %v1479
  %v1481 = vand.u32 %v1480, 4294901760
  %1482 = vmatpush2.msra.mxu0 %v1481
  %1483 = vmatprep.subr.mxu0 0.0
  %v1484 = vand.u32 %v229, 4294901760
  %v1485 = vsub.f32 %v229, %v1484
  %v1486 = vand.u32 %v1485, 4294901760
  %v1487 = vsub.f32 %v1485, %v1486
  %v1488 = vand.u32 %v1487, 4294901760
  %1489 = vmatpush2.msra.mxu0 %v1488
  %1490 = vmatprep.subr.mxu0 0.0
  %v1491 = vand.u32 %v228, 4294901760
  %v1492 = vsub.f32 %v228, %v1491
  %v1493 = vand.u32 %v1492, 4294901760
  %v1494 = vsub.f32 %v1492, %v1493
  %v1495 = vand.u32 %v1494, 4294901760
  %1496 = vmatpush2.msra.mxu0 %v1495
  %1497 = vmatprep.subr.mxu0 0.0
  %v1498 = vand.u32 %v227, 4294901760
  %v1499 = vsub.f32 %v227, %v1498
  %v1500 = vand.u32 %v1499, 4294901760
  %v1501 = vsub.f32 %v1499, %v1500
  %v1502 = vand.u32 %v1501, 4294901760
  %1503 = vmatpush2.msra.mxu0 %v1502
  %1504 = vmatprep.subr.mxu0 0.0
  %v1505 = vand.u32 %v226, 4294901760
  %v1506 = vsub.f32 %v226, %v1505
  %v1507 = vand.u32 %v1506, 4294901760
  %v1508 = vsub.f32 %v1506, %v1507
  %v1509 = vand.u32 %v1508, 4294901760
  %1510 = vmatpush2.msra.mxu0 %v1509
  %v1511 = vand.u32 %v173, 4294901760
  %1512 = vmatprep.mubr.f32.mxu0 %v1511
  %v1513 = vand.u32 %v172, 4294901760
  %1514 = vmatmul.mubr.f32.gmra.mxu0 %v1513
  %v1515 = vpop.f32.mrf.mxu0
  %v1516 = vadd.f32 %v1269, %v1515
  %v1517 = vpop.f32.mrf.mxu0
  %v1518 = vand.u32 %v177, 4294901760
  %1519 = vmatprep.mubr.f32.mxu0 %v1518
  %v1520 = vand.u32 %v176, 4294901760
  %1521 = vmatmul.mubr.f32.gmra.mxu0 %v1520
  %v1522 = vpop.f32.mrf.mxu0
  %v1523 = vadd.f32 %v1284, %v1522
  %v1524 = vpop.f32.mrf.mxu0
  %1525 = vdwg.mxu0
  %1526 = vmatprep.subr.mxu0 0.0
  %v1527 = vand.u32 %v225, 4294901760
  %v1528 = vsub.f32 %v225, %v1527
  %1529 = vmatpush1.msra.mxu0 %v1528
  %1530 = vmatprep.subr.mxu0 0.0
  %v1531 = vand.u32 %v224, 4294901760
  %v1532 = vsub.f32 %v224, %v1531
  %1533 = vmatpush1.msra.mxu0 %v1532
  %1534 = vmatprep.subr.mxu0 0.0
  %v1535 = vand.u32 %v223, 4294901760
  %v1536 = vsub.f32 %v223, %v1535
  %1537 = vmatpush1.msra.mxu0 %v1536
  %1538 = vmatprep.subr.mxu0 0.0
  %v1539 = vand.u32 %v222, 4294901760
  %v1540 = vsub.f32 %v222, %v1539
  %1541 = vmatpush1.msra.mxu0 %v1540
  %1542 = vmatprep.subr.mxu0 0.0
  %v1543 = vand.u32 %v221, 4294901760
  %v1544 = vsub.f32 %v221, %v1543
  %1545 = vmatpush1.msra.mxu0 %v1544
  %1546 = vmatprep.subr.mxu0 0.0
  %v1547 = vand.u32 %v220, 4294901760
  %v1548 = vsub.f32 %v220, %v1547
  %1549 = vmatpush1.msra.mxu0 %v1548
  %1550 = vmatprep.subr.mxu0 0.0
  %v1551 = vand.u32 %v219, 4294901760
  %v1552 = vsub.f32 %v219, %v1551
  %1553 = vmatpush1.msra.mxu0 %v1552
  %1554 = vmatprep.subr.mxu0 0.0
  %v1555 = vand.u32 %v218, 4294901760
  %v1556 = vsub.f32 %v218, %v1555
  %1557 = vmatpush1.msra.mxu0 %v1556
  %1558 = vmatprep.subr.mxu0 0.0
  %v1559 = vand.u32 %v217, 4294901760
  %v1560 = vsub.f32 %v217, %v1559
  %1561 = vmatpush1.msra.mxu0 %v1560
  %1562 = vmatprep.subr.mxu0 0.0
  %v1563 = vand.u32 %v216, 4294901760
  %v1564 = vsub.f32 %v216, %v1563
  %1565 = vmatpush1.msra.mxu0 %v1564
  %1566 = vmatprep.subr.mxu0 0.0
  %v1567 = vand.u32 %v215, 4294901760
  %v1568 = vsub.f32 %v215, %v1567
  %1569 = vmatpush1.msra.mxu0 %v1568
  %1570 = vmatprep.subr.mxu0 0.0
  %v1571 = vand.u32 %v214, 4294901760
  %v1572 = vsub.f32 %v214, %v1571
  %1573 = vmatpush1.msra.mxu0 %v1572
  %1574 = vmatprep.subr.mxu0 0.0
  %v1575 = vand.u32 %v213, 4294901760
  %v1576 = vsub.f32 %v213, %v1575
  %1577 = vmatpush1.msra.mxu0 %v1576
  %1578 = vmatprep.subr.mxu0 0.0
  %v1579 = vand.u32 %v212, 4294901760
  %v1580 = vsub.f32 %v212, %v1579
  %1581 = vmatpush1.msra.mxu0 %v1580
  %1582 = vmatprep.subr.mxu0 0.0
  %v1583 = vand.u32 %v211, 4294901760
  %v1584 = vsub.f32 %v211, %v1583
  %1585 = vmatpush1.msra.mxu0 %v1584
  %1586 = vmatprep.subr.mxu0 0.0
  %v1587 = vand.u32 %v210, 4294901760
  %v1588 = vsub.f32 %v210, %v1587
  %1589 = vmatpush1.msra.mxu0 %v1588
  %1590 = vmatprep.subr.mxu0 0.0
  %v1591 = vand.u32 %v241, 4294901760
  %v1592 = vsub.f32 %v241, %v1591
  %1593 = vmatpush2.msra.mxu0 %v1592
  %1594 = vmatprep.subr.mxu0 0.0
  %v1595 = vand.u32 %v240, 4294901760
  %v1596 = vsub.f32 %v240, %v1595
  %1597 = vmatpush2.msra.mxu0 %v1596
  %1598 = vmatprep.subr.mxu0 0.0
  %v1599 = vand.u32 %v239, 4294901760
  %v1600 = vsub.f32 %v239, %v1599
  %1601 = vmatpush2.msra.mxu0 %v1600
  %1602 = vmatprep.subr.mxu0 0.0
  %v1603 = vand.u32 %v238, 4294901760
  %v1604 = vsub.f32 %v238, %v1603
  %1605 = vmatpush2.msra.mxu0 %v1604
  %1606 = vmatprep.subr.mxu0 0.0
  %v1607 = vand.u32 %v237, 4294901760
  %v1608 = vsub.f32 %v237, %v1607
  %1609 = vmatpush2.msra.mxu0 %v1608
  %1610 = vmatprep.subr.mxu0 0.0
  %v1611 = vand.u32 %v236, 4294901760
  %v1612 = vsub.f32 %v236, %v1611
  %1613 = vmatpush2.msra.mxu0 %v1612
  %1614 = vmatprep.subr.mxu0 0.0
  %v1615 = vand.u32 %v235, 4294901760
  %v1616 = vsub.f32 %v235, %v1615
  %1617 = vmatpush2.msra.mxu0 %v1616
  %1618 = vmatprep.subr.mxu0 0.0
  %v1619 = vand.u32 %v234, 4294901760
  %v1620 = vsub.f32 %v234, %v1619
  %1621 = vmatpush2.msra.mxu0 %v1620
  %1622 = vmatprep.subr.mxu0 0.0
  %v1623 = vand.u32 %v233, 4294901760
  %v1624 = vsub.f32 %v233, %v1623
  %1625 = vmatpush2.msra.mxu0 %v1624
  %1626 = vmatprep.subr.mxu0 0.0
  %v1627 = vand.u32 %v232, 4294901760
  %v1628 = vsub.f32 %v232, %v1627
  %1629 = vmatpush2.msra.mxu0 %v1628
  %1630 = vmatprep.subr.mxu0 0.0
  %v1631 = vand.u32 %v231, 4294901760
  %v1632 = vsub.f32 %v231, %v1631
  %1633 = vmatpush2.msra.mxu0 %v1632
  %1634 = vmatprep.subr.mxu0 0.0
  %v1635 = vand.u32 %v230, 4294901760
  %v1636 = vsub.f32 %v230, %v1635
  %1637 = vmatpush2.msra.mxu0 %v1636
  %1638 = vmatprep.subr.mxu0 0.0
  %v1639 = vand.u32 %v229, 4294901760
  %v1640 = vsub.f32 %v229, %v1639
  %1641 = vmatpush2.msra.mxu0 %v1640
  %1642 = vmatprep.subr.mxu0 0.0
  %v1643 = vand.u32 %v228, 4294901760
  %v1644 = vsub.f32 %v228, %v1643
  %1645 = vmatpush2.msra.mxu0 %v1644
  %1646 = vmatprep.subr.mxu0 0.0
  %v1647 = vand.u32 %v227, 4294901760
  %v1648 = vsub.f32 %v227, %v1647
  %1649 = vmatpush2.msra.mxu0 %v1648
  %1650 = vmatprep.subr.mxu0 0.0
  %v1651 = vand.u32 %v226, 4294901760
  %v1652 = vsub.f32 %v226, %v1651
  %1653 = vmatpush2.msra.mxu0 %v1652
  %v1654 = vand.u32 %v173, 4294901760
  %v1655 = vsub.f32 %v173, %v1654
  %1656 = vmatprep.mubr.f32.mxu0 %v1655
  %v1657 = vand.u32 %v172, 4294901760
  %v1658 = vsub.f32 %v172, %v1657
  %1659 = vmatmul.mubr.f32.gmra.mxu0 %v1658
  %v1660 = vpop.f32.mrf.mxu0
  %v1661 = vadd.f32 %v1516, %v1660
  %v1662 = vpop.f32.mrf.mxu0
  %v1663 = vand.u32 %v177, 4294901760
  %v1664 = vsub.f32 %v177, %v1663
  %1665 = vmatprep.mubr.f32.mxu0 %v1664
  %v1666 = vand.u32 %v176, 4294901760
  %v1667 = vsub.f32 %v176, %v1666
  %1668 = vmatmul.mubr.f32.gmra.mxu0 %v1667
  %v1669 = vpop.f32.mrf.mxu0
  %v1670 = vadd.f32 %v1523, %v1669
  %v1671 = vpop.f32.mrf.mxu0
  %1672 = vdwg.mxu0
  %1673 = vmatprep.subr.mxu0 0.0
  %v1674 = vand.u32 %v225, 4294901760
  %1675 = vmatpush1.msra.mxu0 %v1674
  %1676 = vmatprep.subr.mxu0 0.0
  %v1677 = vand.u32 %v224, 4294901760
  %1678 = vmatpush1.msra.mxu0 %v1677
  %1679 = vmatprep.subr.mxu0 0.0
  %v1680 = vand.u32 %v223, 4294901760
  %1681 = vmatpush1.msra.mxu0 %v1680
  %1682 = vmatprep.subr.mxu0 0.0
  %v1683 = vand.u32 %v222, 4294901760
  %1684 = vmatpush1.msra.mxu0 %v1683
  %1685 = vmatprep.subr.mxu0 0.0
  %v1686 = vand.u32 %v221, 4294901760
  %1687 = vmatpush1.msra.mxu0 %v1686
  %1688 = vmatprep.subr.mxu0 0.0
  %v1689 = vand.u32 %v220, 4294901760
  %1690 = vmatpush1.msra.mxu0 %v1689
  %1691 = vmatprep.subr.mxu0 0.0
  %v1692 = vand.u32 %v219, 4294901760
  %1693 = vmatpush1.msra.mxu0 %v1692
  %1694 = vmatprep.subr.mxu0 0.0
  %v1695 = vand.u32 %v218, 4294901760
  %1696 = vmatpush1.msra.mxu0 %v1695
  %1697 = vmatprep.subr.mxu0 0.0
  %v1698 = vand.u32 %v217, 4294901760
  %1699 = vmatpush1.msra.mxu0 %v1698
  %1700 = vmatprep.subr.mxu0 0.0
  %v1701 = vand.u32 %v216, 4294901760
  %1702 = vmatpush1.msra.mxu0 %v1701
  %1703 = vmatprep.subr.mxu0 0.0
  %v1704 = vand.u32 %v215, 4294901760
  %1705 = vmatpush1.msra.mxu0 %v1704
  %1706 = vmatprep.subr.mxu0 0.0
  %v1707 = vand.u32 %v214, 4294901760
  %1708 = vmatpush1.msra.mxu0 %v1707
  %1709 = vmatprep.subr.mxu0 0.0
  %v1710 = vand.u32 %v213, 4294901760
  %1711 = vmatpush1.msra.mxu0 %v1710
  %1712 = vmatprep.subr.mxu0 0.0
  %v1713 = vand.u32 %v212, 4294901760
  %1714 = vmatpush1.msra.mxu0 %v1713
  %1715 = vmatprep.subr.mxu0 0.0
  %v1716 = vand.u32 %v211, 4294901760
  %1717 = vmatpush1.msra.mxu0 %v1716
  %1718 = vmatprep.subr.mxu0 0.0
  %v1719 = vand.u32 %v210, 4294901760
  %1720 = vmatpush1.msra.mxu0 %v1719
  %1721 = vmatprep.subr.mxu0 0.0
  %v1722 = vand.u32 %v241, 4294901760
  %1723 = vmatpush2.msra.mxu0 %v1722
  %1724 = vmatprep.subr.mxu0 0.0
  %v1725 = vand.u32 %v240, 4294901760
  %1726 = vmatpush2.msra.mxu0 %v1725
  %1727 = vmatprep.subr.mxu0 0.0
  %v1728 = vand.u32 %v239, 4294901760
  %1729 = vmatpush2.msra.mxu0 %v1728
  %1730 = vmatprep.subr.mxu0 0.0
  %v1731 = vand.u32 %v238, 4294901760
  %1732 = vmatpush2.msra.mxu0 %v1731
  %1733 = vmatprep.subr.mxu0 0.0
  %v1734 = vand.u32 %v237, 4294901760
  %1735 = vmatpush2.msra.mxu0 %v1734
  %1736 = vmatprep.subr.mxu0 0.0
  %v1737 = vand.u32 %v236, 4294901760
  %1738 = vmatpush2.msra.mxu0 %v1737
  %1739 = vmatprep.subr.mxu0 0.0
  %v1740 = vand.u32 %v235, 4294901760
  %1741 = vmatpush2.msra.mxu0 %v1740
  %1742 = vmatprep.subr.mxu0 0.0
  %v1743 = vand.u32 %v234, 4294901760
  %1744 = vmatpush2.msra.mxu0 %v1743
  %1745 = vmatprep.subr.mxu0 0.0
  %v1746 = vand.u32 %v233, 4294901760
  %1747 = vmatpush2.msra.mxu0 %v1746
  %1748 = vmatprep.subr.mxu0 0.0
  %v1749 = vand.u32 %v232, 4294901760
  %1750 = vmatpush2.msra.mxu0 %v1749
  %1751 = vmatprep.subr.mxu0 0.0
  %v1752 = vand.u32 %v231, 4294901760
  %1753 = vmatpush2.msra.mxu0 %v1752
  %1754 = vmatprep.subr.mxu0 0.0
  %v1755 = vand.u32 %v230, 4294901760
  %1756 = vmatpush2.msra.mxu0 %v1755
  %1757 = vmatprep.subr.mxu0 0.0
  %v1758 = vand.u32 %v229, 4294901760
  %1759 = vmatpush2.msra.mxu0 %v1758
  %1760 = vmatprep.subr.mxu0 0.0
  %v1761 = vand.u32 %v228, 4294901760
  %1762 = vmatpush2.msra.mxu0 %v1761
  %1763 = vmatprep.subr.mxu0 0.0
  %v1764 = vand.u32 %v227, 4294901760
  %1765 = vmatpush2.msra.mxu0 %v1764
  %1766 = vmatprep.subr.mxu0 0.0
  %v1767 = vand.u32 %v226, 4294901760
  %1768 = vmatpush2.msra.mxu0 %v1767
  %v1769 = vand.u32 %v173, 4294901760
  %v1770 = vsub.f32 %v173, %v1769
  %v1771 = vand.u32 %v1770, 4294901760
  %1772 = vmatprep.mubr.f32.mxu0 %v1771
  %v1773 = vand.u32 %v172, 4294901760
  %v1774 = vsub.f32 %v172, %v1773
  %v1775 = vand.u32 %v1774, 4294901760
  %1776 = vmatmul.mubr.f32.gmra.mxu0 %v1775
  %v1777 = vpop.f32.mrf.mxu0
  %v1778 = vadd.f32 %v1661, %v1777
  %v1779 = vpop.f32.mrf.mxu0
  %v1780 = vand.u32 %v177, 4294901760
  %v1781 = vsub.f32 %v177, %v1780
  %v1782 = vand.u32 %v1781, 4294901760
  %1783 = vmatprep.mubr.f32.mxu0 %v1782
  %v1784 = vand.u32 %v176, 4294901760
  %v1785 = vsub.f32 %v176, %v1784
  %v1786 = vand.u32 %v1785, 4294901760
  %1787 = vmatmul.mubr.f32.gmra.mxu0 %v1786
  %v1788 = vpop.f32.mrf.mxu0
  %v1789 = vadd.f32 %v1670, %v1788
  %v1790 = vpop.f32.mrf.mxu0
  %1791 = vdwg.mxu0
  %1792 = vmatprep.subr.mxu0 0.0
  %v1793 = vand.u32 %v225, 4294901760
  %v1794 = vsub.f32 %v225, %v1793
  %v1795 = vand.u32 %v1794, 4294901760
  %1796 = vmatpush1.msra.mxu0 %v1795
  %1797 = vmatprep.subr.mxu0 0.0
  %v1798 = vand.u32 %v224, 4294901760
  %v1799 = vsub.f32 %v224, %v1798
  %v1800 = vand.u32 %v1799, 4294901760
  %1801 = vmatpush1.msra.mxu0 %v1800
  %1802 = vmatprep.subr.mxu0 0.0
  %v1803 = vand.u32 %v223, 4294901760
  %v1804 = vsub.f32 %v223, %v1803
  %v1805 = vand.u32 %v1804, 4294901760
  %1806 = vmatpush1.msra.mxu0 %v1805
  %1807 = vmatprep.subr.mxu0 0.0
  %v1808 = vand.u32 %v222, 4294901760
  %v1809 = vsub.f32 %v222, %v1808
  %v1810 = vand.u32 %v1809, 4294901760
  %1811 = vmatpush1.msra.mxu0 %v1810
  %1812 = vmatprep.subr.mxu0 0.0
  %v1813 = vand.u32 %v221, 4294901760
  %v1814 = vsub.f32 %v221, %v1813
  %v1815 = vand.u32 %v1814, 4294901760
  %1816 = vmatpush1.msra.mxu0 %v1815
  %1817 = vmatprep.subr.mxu0 0.0
  %v1818 = vand.u32 %v220, 4294901760
  %v1819 = vsub.f32 %v220, %v1818
  %v1820 = vand.u32 %v1819, 4294901760
  %1821 = vmatpush1.msra.mxu0 %v1820
  %1822 = vmatprep.subr.mxu0 0.0
  %v1823 = vand.u32 %v219, 4294901760
  %v1824 = vsub.f32 %v219, %v1823
  %v1825 = vand.u32 %v1824, 4294901760
  %1826 = vmatpush1.msra.mxu0 %v1825
  %1827 = vmatprep.subr.mxu0 0.0
  %v1828 = vand.u32 %v218, 4294901760
  %v1829 = vsub.f32 %v218, %v1828
  %v1830 = vand.u32 %v1829, 4294901760
  %1831 = vmatpush1.msra.mxu0 %v1830
  %1832 = vmatprep.subr.mxu0 0.0
  %v1833 = vand.u32 %v217, 4294901760
  %v1834 = vsub.f32 %v217, %v1833
  %v1835 = vand.u32 %v1834, 4294901760
  %1836 = vmatpush1.msra.mxu0 %v1835
  %1837 = vmatprep.subr.mxu0 0.0
  %v1838 = vand.u32 %v216, 4294901760
  %v1839 = vsub.f32 %v216, %v1838
  %v1840 = vand.u32 %v1839, 4294901760
  %1841 = vmatpush1.msra.mxu0 %v1840
  %1842 = vmatprep.subr.mxu0 0.0
  %v1843 = vand.u32 %v215, 4294901760
  %v1844 = vsub.f32 %v215, %v1843
  %v1845 = vand.u32 %v1844, 4294901760
  %1846 = vmatpush1.msra.mxu0 %v1845
  %1847 = vmatprep.subr.mxu0 0.0
  %v1848 = vand.u32 %v214, 4294901760
  %v1849 = vsub.f32 %v214, %v1848
  %v1850 = vand.u32 %v1849, 4294901760
  %1851 = vmatpush1.msra.mxu0 %v1850
  %1852 = vmatprep.subr.mxu0 0.0
  %v1853 = vand.u32 %v213, 4294901760
  %v1854 = vsub.f32 %v213, %v1853
  %v1855 = vand.u32 %v1854, 4294901760
  %1856 = vmatpush1.msra.mxu0 %v1855
  %1857 = vmatprep.subr.mxu0 0.0
  %v1858 = vand.u32 %v212, 4294901760
  %v1859 = vsub.f32 %v212, %v1858
  %v1860 = vand.u32 %v1859, 4294901760
  %1861 = vmatpush1.msra.mxu0 %v1860
  %1862 = vmatprep.subr.mxu0 0.0
  %v1863 = vand.u32 %v211, 4294901760
  %v1864 = vsub.f32 %v211, %v1863
  %v1865 = vand.u32 %v1864, 4294901760
  %1866 = vmatpush1.msra.mxu0 %v1865
  %1867 = vmatprep.subr.mxu0 0.0
  %v1868 = vand.u32 %v210, 4294901760
  %v1869 = vsub.f32 %v210, %v1868
  %v1870 = vand.u32 %v1869, 4294901760
  %1871 = vmatpush1.msra.mxu0 %v1870
  %1872 = vmatprep.subr.mxu0 0.0
  %v1873 = vand.u32 %v241, 4294901760
  %v1874 = vsub.f32 %v241, %v1873
  %v1875 = vand.u32 %v1874, 4294901760
  %1876 = vmatpush2.msra.mxu0 %v1875
  %1877 = vmatprep.subr.mxu0 0.0
  %v1878 = vand.u32 %v240, 4294901760
  %v1879 = vsub.f32 %v240, %v1878
  %v1880 = vand.u32 %v1879, 4294901760
  %1881 = vmatpush2.msra.mxu0 %v1880
  %1882 = vmatprep.subr.mxu0 0.0
  %v1883 = vand.u32 %v239, 4294901760
  %v1884 = vsub.f32 %v239, %v1883
  %v1885 = vand.u32 %v1884, 4294901760
  %1886 = vmatpush2.msra.mxu0 %v1885
  %1887 = vmatprep.subr.mxu0 0.0
  %v1888 = vand.u32 %v238, 4294901760
  %v1889 = vsub.f32 %v238, %v1888
  %v1890 = vand.u32 %v1889, 4294901760
  %1891 = vmatpush2.msra.mxu0 %v1890
  %1892 = vmatprep.subr.mxu0 0.0
  %v1893 = vand.u32 %v237, 4294901760
  %v1894 = vsub.f32 %v237, %v1893
  %v1895 = vand.u32 %v1894, 4294901760
  %1896 = vmatpush2.msra.mxu0 %v1895
  %1897 = vmatprep.subr.mxu0 0.0
  %v1898 = vand.u32 %v236, 4294901760
  %v1899 = vsub.f32 %v236, %v1898
  %v1900 = vand.u32 %v1899, 4294901760
  %1901 = vmatpush2.msra.mxu0 %v1900
  %1902 = vmatprep.subr.mxu0 0.0
  %v1903 = vand.u32 %v235, 4294901760
  %v1904 = vsub.f32 %v235, %v1903
  %v1905 = vand.u32 %v1904, 4294901760
  %1906 = vmatpush2.msra.mxu0 %v1905
  %1907 = vmatprep.subr.mxu0 0.0
  %v1908 = vand.u32 %v234, 4294901760
  %v1909 = vsub.f32 %v234, %v1908
  %v1910 = vand.u32 %v1909, 4294901760
  %1911 = vmatpush2.msra.mxu0 %v1910
  %1912 = vmatprep.subr.mxu0 0.0
  %v1913 = vand.u32 %v233, 4294901760
  %v1914 = vsub.f32 %v233, %v1913
  %v1915 = vand.u32 %v1914, 4294901760
  %1916 = vmatpush2.msra.mxu0 %v1915
  %1917 = vmatprep.subr.mxu0 0.0
  %v1918 = vand.u32 %v232, 4294901760
  %v1919 = vsub.f32 %v232, %v1918
  %v1920 = vand.u32 %v1919, 4294901760
  %1921 = vmatpush2.msra.mxu0 %v1920
  %1922 = vmatprep.subr.mxu0 0.0
  %v1923 = vand.u32 %v231, 4294901760
  %v1924 = vsub.f32 %v231, %v1923
  %v1925 = vand.u32 %v1924, 4294901760
  %1926 = vmatpush2.msra.mxu0 %v1925
  %1927 = vmatprep.subr.mxu0 0.0
  %v1928 = vand.u32 %v230, 4294901760
  %v1929 = vsub.f32 %v230, %v1928
  %v1930 = vand.u32 %v1929, 4294901760
  %1931 = vmatpush2.msra.mxu0 %v1930
  %1932 = vmatprep.subr.mxu0 0.0
  %v1933 = vand.u32 %v229, 4294901760
  %v1934 = vsub.f32 %v229, %v1933
  %v1935 = vand.u32 %v1934, 4294901760
  %1936 = vmatpush2.msra.mxu0 %v1935
  %1937 = vmatprep.subr.mxu0 0.0
  %v1938 = vand.u32 %v228, 4294901760
  %v1939 = vsub.f32 %v228, %v1938
  %v1940 = vand.u32 %v1939, 4294901760
  %1941 = vmatpush2.msra.mxu0 %v1940
  %1942 = vmatprep.subr.mxu0 0.0
  %v1943 = vand.u32 %v227, 4294901760
  %v1944 = vsub.f32 %v227, %v1943
  %v1945 = vand.u32 %v1944, 4294901760
  %1946 = vmatpush2.msra.mxu0 %v1945
  %1947 = vmatprep.subr.mxu0 0.0
  %v1948 = vand.u32 %v226, 4294901760
  %v1949 = vsub.f32 %v226, %v1948
  %v1950 = vand.u32 %v1949, 4294901760
  %1951 = vmatpush2.msra.mxu0 %v1950
  %v1952 = vand.u32 %v173, 4294901760
  %1953 = vmatprep.mubr.f32.mxu0 %v1952
  %v1954 = vand.u32 %v172, 4294901760
  %1955 = vmatmul.mubr.f32.gmra.mxu0 %v1954
  %v1956 = vpop.f32.mrf.mxu0
  %v1957 = vadd.f32 %v1778, %v1956
  %v1958 = vpop.f32.mrf.mxu0
  %v1959 = vand.u32 %v177, 4294901760
  %1960 = vmatprep.mubr.f32.mxu0 %v1959
  %v1961 = vand.u32 %v176, 4294901760
  %1962 = vmatmul.mubr.f32.gmra.mxu0 %v1961
  %v1963 = vpop.f32.mrf.mxu0
  %v1964 = vadd.f32 %v1789, %v1963
  %v1965 = vpop.f32.mrf.mxu0
  %1966 = vdwg.mxu0
  %1967 = vmatprep.subr.mxu0 0.0
  %v1968 = vand.u32 %v225, 4294901760
  %1969 = vmatpush1.msra.mxu0 %v1968
  %1970 = vmatprep.subr.mxu0 0.0
  %v1971 = vand.u32 %v224, 4294901760
  %1972 = vmatpush1.msra.mxu0 %v1971
  %1973 = vmatprep.subr.mxu0 0.0
  %v1974 = vand.u32 %v223, 4294901760
  %1975 = vmatpush1.msra.mxu0 %v1974
  %1976 = vmatprep.subr.mxu0 0.0
  %v1977 = vand.u32 %v222, 4294901760
  %1978 = vmatpush1.msra.mxu0 %v1977
  %1979 = vmatprep.subr.mxu0 0.0
  %v1980 = vand.u32 %v221, 4294901760
  %1981 = vmatpush1.msra.mxu0 %v1980
  %1982 = vmatprep.subr.mxu0 0.0
  %v1983 = vand.u32 %v220, 4294901760
  %1984 = vmatpush1.msra.mxu0 %v1983
  %1985 = vmatprep.subr.mxu0 0.0
  %v1986 = vand.u32 %v219, 4294901760
  %1987 = vmatpush1.msra.mxu0 %v1986
  %1988 = vmatprep.subr.mxu0 0.0
  %v1989 = vand.u32 %v218, 4294901760
  %1990 = vmatpush1.msra.mxu0 %v1989
  %1991 = vmatprep.subr.mxu0 0.0
  %v1992 = vand.u32 %v217, 4294901760
  %1993 = vmatpush1.msra.mxu0 %v1992
  %1994 = vmatprep.subr.mxu0 0.0
  %v1995 = vand.u32 %v216, 4294901760
  %1996 = vmatpush1.msra.mxu0 %v1995
  %1997 = vmatprep.subr.mxu0 0.0
  %v1998 = vand.u32 %v215, 4294901760
  %1999 = vmatpush1.msra.mxu0 %v1998
  %2000 = vmatprep.subr.mxu0 0.0
  %v2001 = vand.u32 %v214, 4294901760
  %2002 = vmatpush1.msra.mxu0 %v2001
  %2003 = vmatprep.subr.mxu0 0.0
  %v2004 = vand.u32 %v213, 4294901760
  %2005 = vmatpush1.msra.mxu0 %v2004
  %2006 = vmatprep.subr.mxu0 0.0
  %v2007 = vand.u32 %v212, 4294901760
  %2008 = vmatpush1.msra.mxu0 %v2007
  %2009 = vmatprep.subr.mxu0 0.0
  %v2010 = vand.u32 %v211, 4294901760
  %2011 = vmatpush1.msra.mxu0 %v2010
  %2012 = vmatprep.subr.mxu0 0.0
  %v2013 = vand.u32 %v210, 4294901760
  %2014 = vmatpush1.msra.mxu0 %v2013
  %2015 = vmatprep.subr.mxu0 0.0
  %v2016 = vand.u32 %v241, 4294901760
  %2017 = vmatpush2.msra.mxu0 %v2016
  %2018 = vmatprep.subr.mxu0 0.0
  %v2019 = vand.u32 %v240, 4294901760
  %2020 = vmatpush2.msra.mxu0 %v2019
  %2021 = vmatprep.subr.mxu0 0.0
  %v2022 = vand.u32 %v239, 4294901760
  %2023 = vmatpush2.msra.mxu0 %v2022
  %2024 = vmatprep.subr.mxu0 0.0
  %v2025 = vand.u32 %v238, 4294901760
  %2026 = vmatpush2.msra.mxu0 %v2025
  %2027 = vmatprep.subr.mxu0 0.0
  %v2028 = vand.u32 %v237, 4294901760
  %2029 = vmatpush2.msra.mxu0 %v2028
  %2030 = vmatprep.subr.mxu0 0.0
  %v2031 = vand.u32 %v236, 4294901760
  %2032 = vmatpush2.msra.mxu0 %v2031
  %2033 = vmatprep.subr.mxu0 0.0
  %v2034 = vand.u32 %v235, 4294901760
  %2035 = vmatpush2.msra.mxu0 %v2034
  %2036 = vmatprep.subr.mxu0 0.0
  %v2037 = vand.u32 %v234, 4294901760
  %2038 = vmatpush2.msra.mxu0 %v2037
  %2039 = vmatprep.subr.mxu0 0.0
  %v2040 = vand.u32 %v233, 4294901760
  %2041 = vmatpush2.msra.mxu0 %v2040
  %2042 = vmatprep.subr.mxu0 0.0
  %v2043 = vand.u32 %v232, 4294901760
  %2044 = vmatpush2.msra.mxu0 %v2043
  %2045 = vmatprep.subr.mxu0 0.0
  %v2046 = vand.u32 %v231, 4294901760
  %2047 = vmatpush2.msra.mxu0 %v2046
  %2048 = vmatprep.subr.mxu0 0.0
  %v2049 = vand.u32 %v230, 4294901760
  %2050 = vmatpush2.msra.mxu0 %v2049
  %2051 = vmatprep.subr.mxu0 0.0
  %v2052 = vand.u32 %v229, 4294901760
  %2053 = vmatpush2.msra.mxu0 %v2052
  %2054 = vmatprep.subr.mxu0 0.0
  %v2055 = vand.u32 %v228, 4294901760
  %2056 = vmatpush2.msra.mxu0 %v2055
  %2057 = vmatprep.subr.mxu0 0.0
  %v2058 = vand.u32 %v227, 4294901760
  %2059 = vmatpush2.msra.mxu0 %v2058
  %2060 = vmatprep.subr.mxu0 0.0
  %v2061 = vand.u32 %v226, 4294901760
  %2062 = vmatpush2.msra.mxu0 %v2061
  %v2063 = vand.u32 %v173, 4294901760
  %2064 = vmatprep.mubr.f32.mxu0 %v2063
  %v2065 = vand.u32 %v172, 4294901760
  %2066 = vmatmul.mubr.f32.gmra.mxu0 %v2065
  %v2067 = vpop.f32.mrf.mxu0
  %v2068 = vadd.f32 %v1957, %v2067
  %v2069 = vpop.f32.mrf.mxu0
  %v2070 = vand.u32 %v177, 4294901760
  %2071 = vmatprep.mubr.f32.mxu0 %v2070
  %v2072 = vand.u32 %v176, 4294901760
  %2073 = vmatmul.mubr.f32.gmra.mxu0 %v2072
  %v2074 = vpop.f32.mrf.mxu0
  %v2075 = vadd.f32 %v1964, %v2074
  %v2076 = vpop.f32.mrf.mxu0
  %2077 = vdwg.mxu0
  %v2078 = vld [vmem:[%s5] sm:$0x1]
  %v2079 = vld [vmem:[%s7] sm:$0x1]
  %vm2080 = vcmask 523264
  %v2081 = vsel %vm2080, %v2068, 0.0
  %v2082 = vsel %vm2080, %v2075, 0.0
  %v2083 = vadd.f32 %v2081, %v2082
  %v2084 = vrot.slane %v2083, 4
  %v2085 = vadd.f32 %v2083, %v2084
  %v2086 = vrot.slane %v2085, 2
  %v2087 = vadd.f32 %v2085, %v2086
  %v2088 = vrot.slane %v2087, 1
  %v2089 = vadd.f32 %v2087, %v2088
  %v2090 = vmul.f32 %v2089, 0.0625
  %v2091 = vsub.f32 %v2068, %v2090
  %v2092 = vsub.f32 %v2075, %v2090
  %v2093 = vmul.f32 %v2091, %v2091
  %v2094 = vmul.f32 %v2092, %v2092
  %v2095 = vsel %vm2080, %v2093, 0.0
  %v2096 = vsel %vm2080, %v2094, 0.0
  %v2097 = vadd.f32 %v2095, %v2096
  %v2098 = vrot.slane %v2097, 4
  %v2099 = vadd.f32 %v2097, %v2098
  %v2100 = vrot.slane %v2099, 2
  %v2101 = vadd.f32 %v2099, %v2100
  %v2102 = vrot.slane %v2101, 1
  %v2103 = vadd.f32 %v2101, %v2102
  %v2104 = vmul.f32 %v2103, 0.0625
  %v2105 = vadd.f32 %v2104, 1e-05
  %v2106 = vrsqrt.pop %v2105
  %v2107 = vmul.f32 %v2091, %v2106
  %v2108 = vmul.f32 %v2092, %v2106
  %v2110 = vlaneseq
  %v2111 = vshrl.u32 %v2110, 7
  %v2112 = vsub.s32 0, %v2111
  %v2113 = vrot.slane %v2078, %v2112
  %v2115 = vmul.f32 %v2107, %v2113
  %v2116 = vmul.f32 %v2108, %v2113
  %v2118 = vlaneseq
  %v2119 = vshrl.u32 %v2118, 7
  %v2120 = vsub.s32 0, %v2119
  %v2121 = vrot.slane %v2079, %v2120
  %v2123 = vadd.f32 %v2115, %v2121
  %v2124 = vadd.f32 %v2116, %v2121
  %v2125 = vmax.f32 %v2123, 0.0
  %v2126 = vmax.f32 %v2124, 0.0
  loop: start=0, step=1, limit=8
  $region166: #{tpu_custom_call.1} parent=0 // loop_pre_header
    _
  $region167: #{tpu_custom_call.1} parent=0 // loop_header
    %s2128 = sphi 0, %s2132
    %p2129 = scmp.ge.s32.totalorder %s2128, 8
    %v2133 = vphi %v2125, %v3344
    %v2134 = vphi %v2126, %v3345
  $region168: #{tpu_custom_call.1} parent=0 // loop_header_branch
    %2131 = sbr.rel (%p2129) target = $region172
  $region169: #{tpu_custom_call.1} parent=0 // loop_body
    %s2135 = smul.u32 %s2128, 64
    %s2136 = scalar_lea.vmem %s9, %s2135
    %v2137 = vld [vmem:[%s2136] sm:$0xff]
    %v2138 = vld [vmem:[%s2136 + $0x8] sm:$0xff]
    %v2139 = vld [vmem:[%s2136 + $0x10] sm:$0xff]
    %v2140 = vld [vmem:[%s2136 + $0x18] sm:$0xff]
    %v2141 = vld [vmem:[%s2136 + $0x20] sm:$0xff]
    %v2142 = vld [vmem:[%s2136 + $0x28] sm:$0xff]
    %v2143 = vld [vmem:[%s2136 + $0x30] sm:$0xff]
    %v2144 = vld [vmem:[%s2136 + $0x38] sm:$0xff]
    %v2146 = vsel %vm2080, %v2133, 0
    %v2149 = vsel %vm2080, %v2134, 0
    %2151 = vmatprep.subr.mxu0 0.0
    %2152 = vmatpush1.msra.mxu0 0.0
    %2153 = vmatprep.subr.mxu0 0.0
    %2154 = vmatpush1.msra.mxu0 0.0
    %2155 = vmatprep.subr.mxu0 0.0
    %2156 = vmatpush1.msra.mxu0 0.0
    %2157 = vmatprep.subr.mxu0 0.0
    %2158 = vmatpush1.msra.mxu0 0.0
    %2159 = vmatprep.subr.mxu0 0.0
    %2160 = vmatpush1.msra.mxu0 0.0
    %2161 = vmatprep.subr.mxu0 0.0
    %2162 = vmatpush1.msra.mxu0 0.0
    %2163 = vmatprep.subr.mxu0 0.0
    %2164 = vmatpush1.msra.mxu0 0.0
    %2165 = vmatprep.subr.mxu0 0.0
    %2166 = vmatpush1.msra.mxu0 0.0
    %2167 = vmatprep.subr.mxu0 0.0
    %v2168 = vand.u32 %v2144, 4294901760
    %2169 = vmatpush1.msra.mxu0 %v2168
    %2170 = vmatprep.subr.mxu0 0.0
    %v2171 = vand.u32 %v2143, 4294901760
    %2172 = vmatpush1.msra.mxu0 %v2171
    %2173 = vmatprep.subr.mxu0 0.0
    %v2174 = vand.u32 %v2142, 4294901760
    %2175 = vmatpush1.msra.mxu0 %v2174
    %2176 = vmatprep.subr.mxu0 0.0
    %v2177 = vand.u32 %v2141, 4294901760
    %2178 = vmatpush1.msra.mxu0 %v2177
    %2179 = vmatprep.subr.mxu0 0.0
    %v2180 = vand.u32 %v2140, 4294901760
    %2181 = vmatpush1.msra.mxu0 %v2180
    %2182 = vmatprep.subr.mxu0 0.0
    %v2183 = vand.u32 %v2139, 4294901760
    %2184 = vmatpush1.msra.mxu0 %v2183
    %2185 = vmatprep.subr.mxu0 0.0
    %v2186 = vand.u32 %v2138, 4294901760
    %2187 = vmatpush1.msra.mxu0 %v2186
    %2188 = vmatprep.subr.mxu0 0.0
    %v2189 = vand.u32 %v2137, 4294901760
    %2190 = vmatpush1.msra.mxu0 %v2189
    %2191 = vmatprep.subr.mxu0 0.0
    %2192 = vmatpush2.msra.mxu0 0.0
    %2193 = vmatprep.subr.mxu0 0.0
    %2194 = vmatpush2.msra.mxu0 0.0
    %2195 = vmatprep.subr.mxu0 0.0
    %2196 = vmatpush2.msra.mxu0 0.0
    %2197 = vmatprep.subr.mxu0 0.0
    %2198 = vmatpush2.msra.mxu0 0.0
    %2199 = vmatprep.subr.mxu0 0.0
    %2200 = vmatpush2.msra.mxu0 0.0
    %2201 = vmatprep.subr.mxu0 0.0
    %2202 = vmatpush2.msra.mxu0 0.0
    %2203 = vmatprep.subr.mxu0 0.0
    %2204 = vmatpush2.msra.mxu0 0.0
    %2205 = vmatprep.subr.mxu0 0.0
    %2206 = vmatpush2.msra.mxu0 0.0
    %2207 = vmatprep.subr.mxu0 0.0
    %2208 = vmatpush2.msra.mxu0 0.0
    %2209 = vmatprep.subr.mxu0 0.0
    %2210 = vmatpush2.msra.mxu0 0.0
    %2211 = vmatprep.subr.mxu0 0.0
    %2212 = vmatpush2.msra.mxu0 0.0
    %2213 = vmatprep.subr.mxu0 0.0
    %2214 = vmatpush2.msra.mxu0 0.0
    %2215 = vmatprep.subr.mxu0 0.0
    %2216 = vmatpush2.msra.mxu0 0.0
    %2217 = vmatprep.subr.mxu0 0.0
    %2218 = vmatpush2.msra.mxu0 0.0
    %2219 = vmatprep.subr.mxu0 0.0
    %2220 = vmatpush2.msra.mxu0 0.0
    %2221 = vmatprep.subr.mxu0 0.0
    %2222 = vmatpush2.msra.mxu0 0.0
    %2223 = vmatprep.mubr.f32.mxu0 0.0
    %v2224 = vand.u32 %v2146, 4294901760
    %v2225 = vsub.f32 %v2146, %v2224
    %v2226 = vand.u32 %v2225, 4294901760
    %v2227 = vsub.f32 %v2225, %v2226
    %v2228 = vand.u32 %v2227, 4294901760
    %2229 = vmatmul.mubr.f32.gmra.mxu0 %v2228
    %v2230 = vpop.f32.mrf.mxu0
    %v2231 = vadd.f32 0.0, %v2230
    %v2232 = vpop.f32.mrf.mxu0
    %2233 = vmatprep.mubr.f32.mxu0 0.0
    %v2234 = vand.u32 %v2149, 4294901760
    %v2235 = vsub.f32 %v2149, %v2234
    %v2236 = vand.u32 %v2235, 4294901760
    %v2237 = vsub.f32 %v2235, %v2236
    %v2238 = vand.u32 %v2237, 4294901760
    %2239 = vmatmul.mubr.f32.gmra.mxu0 %v2238
    %v2240 = vpop.f32.mrf.mxu0
    %v2241 = vadd.f32 0.0, %v2240
    %v2242 = vpop.f32.mrf.mxu0
    %2243 = vdwg.mxu0
    %2244 = vmatprep.subr.mxu0 0.0
    %2245 = vmatpush1.msra.mxu0 0.0
    %2246 = vmatprep.subr.mxu0 0.0
    %2247 = vmatpush1.msra.mxu0 0.0
    %2248 = vmatprep.subr.mxu0 0.0
    %2249 = vmatpush1.msra.mxu0 0.0
    %2250 = vmatprep.subr.mxu0 0.0
    %2251 = vmatpush1.msra.mxu0 0.0
    %2252 = vmatprep.subr.mxu0 0.0
    %2253 = vmatpush1.msra.mxu0 0.0
    %2254 = vmatprep.subr.mxu0 0.0
    %2255 = vmatpush1.msra.mxu0 0.0
    %2256 = vmatprep.subr.mxu0 0.0
    %2257 = vmatpush1.msra.mxu0 0.0
    %2258 = vmatprep.subr.mxu0 0.0
    %2259 = vmatpush1.msra.mxu0 0.0
    %2260 = vmatprep.subr.mxu0 0.0
    %v2261 = vand.u32 %v2144, 4294901760
    %v2262 = vsub.f32 %v2144, %v2261
    %v2263 = vand.u32 %v2262, 4294901760
    %v2264 = vsub.f32 %v2262, %v2263
    %v2265 = vand.u32 %v2264, 4294901760
    %2266 = vmatpush1.msra.mxu0 %v2265
    %2267 = vmatprep.subr.mxu0 0.0
    %v2268 = vand.u32 %v2143, 4294901760
    %v2269 = vsub.f32 %v2143, %v2268
    %v2270 = vand.u32 %v2269, 4294901760
    %v2271 = vsub.f32 %v2269, %v2270
    %v2272 = vand.u32 %v2271, 4294901760
    %2273 = vmatpush1.msra.mxu0 %v2272
    %2274 = vmatprep.subr.mxu0 0.0
    %v2275 = vand.u32 %v2142, 4294901760
    %v2276 = vsub.f32 %v2142, %v2275
    %v2277 = vand.u32 %v2276, 4294901760
    %v2278 = vsub.f32 %v2276, %v2277
    %v2279 = vand.u32 %v2278, 4294901760
    %2280 = vmatpush1.msra.mxu0 %v2279
    %2281 = vmatprep.subr.mxu0 0.0
    %v2282 = vand.u32 %v2141, 4294901760
    %v2283 = vsub.f32 %v2141, %v2282
    %v2284 = vand.u32 %v2283, 4294901760
    %v2285 = vsub.f32 %v2283, %v2284
    %v2286 = vand.u32 %v2285, 4294901760
    %2287 = vmatpush1.msra.mxu0 %v2286
    %2288 = vmatprep.subr.mxu0 0.0
    %v2289 = vand.u32 %v2140, 4294901760
    %v2290 = vsub.f32 %v2140, %v2289
    %v2291 = vand.u32 %v2290, 4294901760
    %v2292 = vsub.f32 %v2290, %v2291
    %v2293 = vand.u32 %v2292, 4294901760
    %2294 = vmatpush1.msra.mxu0 %v2293
    %2295 = vmatprep.subr.mxu0 0.0
    %v2296 = vand.u32 %v2139, 4294901760
    %v2297 = vsub.f32 %v2139, %v2296
    %v2298 = vand.u32 %v2297, 4294901760
    %v2299 = vsub.f32 %v2297, %v2298
    %v2300 = vand.u32 %v2299, 4294901760
    %2301 = vmatpush1.msra.mxu0 %v2300
    %2302 = vmatprep.subr.mxu0 0.0
    %v2303 = vand.u32 %v2138, 4294901760
    %v2304 = vsub.f32 %v2138, %v2303
    %v2305 = vand.u32 %v2304, 4294901760
    %v2306 = vsub.f32 %v2304, %v2305
    %v2307 = vand.u32 %v2306, 4294901760
    %2308 = vmatpush1.msra.mxu0 %v2307
    %2309 = vmatprep.subr.mxu0 0.0
    %v2310 = vand.u32 %v2137, 4294901760
    %v2311 = vsub.f32 %v2137, %v2310
    %v2312 = vand.u32 %v2311, 4294901760
    %v2313 = vsub.f32 %v2311, %v2312
    %v2314 = vand.u32 %v2313, 4294901760
    %2315 = vmatpush1.msra.mxu0 %v2314
    %2316 = vmatprep.subr.mxu0 0.0
    %2317 = vmatpush2.msra.mxu0 0.0
    %2318 = vmatprep.subr.mxu0 0.0
    %2319 = vmatpush2.msra.mxu0 0.0
    %2320 = vmatprep.subr.mxu0 0.0
    %2321 = vmatpush2.msra.mxu0 0.0
    %2322 = vmatprep.subr.mxu0 0.0
    %2323 = vmatpush2.msra.mxu0 0.0
    %2324 = vmatprep.subr.mxu0 0.0
    %2325 = vmatpush2.msra.mxu0 0.0
    %2326 = vmatprep.subr.mxu0 0.0
    %2327 = vmatpush2.msra.mxu0 0.0
    %2328 = vmatprep.subr.mxu0 0.0
    %2329 = vmatpush2.msra.mxu0 0.0
    %2330 = vmatprep.subr.mxu0 0.0
    %2331 = vmatpush2.msra.mxu0 0.0
    %2332 = vmatprep.subr.mxu0 0.0
    %2333 = vmatpush2.msra.mxu0 0.0
    %2334 = vmatprep.subr.mxu0 0.0
    %2335 = vmatpush2.msra.mxu0 0.0
    %2336 = vmatprep.subr.mxu0 0.0
    %2337 = vmatpush2.msra.mxu0 0.0
    %2338 = vmatprep.subr.mxu0 0.0
    %2339 = vmatpush2.msra.mxu0 0.0
    %2340 = vmatprep.subr.mxu0 0.0
    %2341 = vmatpush2.msra.mxu0 0.0
    %2342 = vmatprep.subr.mxu0 0.0
    %2343 = vmatpush2.msra.mxu0 0.0
    %2344 = vmatprep.subr.mxu0 0.0
    %2345 = vmatpush2.msra.mxu0 0.0
    %2346 = vmatprep.subr.mxu0 0.0
    %2347 = vmatpush2.msra.mxu0 0.0
    %2348 = vmatprep.mubr.f32.mxu0 0.0
    %v2349 = vand.u32 %v2146, 4294901760
    %2350 = vmatmul.mubr.f32.gmra.mxu0 %v2349
    %v2351 = vpop.f32.mrf.mxu0
    %v2352 = vadd.f32 %v2231, %v2351
    %v2353 = vpop.f32.mrf.mxu0
    %2354 = vmatprep.mubr.f32.mxu0 0.0
    %v2355 = vand.u32 %v2149, 4294901760
    %2356 = vmatmul.mubr.f32.gmra.mxu0 %v2355
    %v2357 = vpop.f32.mrf.mxu0
    %v2358 = vadd.f32 %v2241, %v2357
    %v2359 = vpop.f32.mrf.mxu0
    %2360 = vdwg.mxu0
    %2361 = vmatprep.subr.mxu0 0.0
    %2362 = vmatpush1.msra.mxu0 0.0
    %2363 = vmatprep.subr.mxu0 0.0
    %2364 = vmatpush1.msra.mxu0 0.0
    %2365 = vmatprep.subr.mxu0 0.0
    %2366 = vmatpush1.msra.mxu0 0.0
    %2367 = vmatprep.subr.mxu0 0.0
    %2368 = vmatpush1.msra.mxu0 0.0
    %2369 = vmatprep.subr.mxu0 0.0
    %2370 = vmatpush1.msra.mxu0 0.0
    %2371 = vmatprep.subr.mxu0 0.0
    %2372 = vmatpush1.msra.mxu0 0.0
    %2373 = vmatprep.subr.mxu0 0.0
    %2374 = vmatpush1.msra.mxu0 0.0
    %2375 = vmatprep.subr.mxu0 0.0
    %2376 = vmatpush1.msra.mxu0 0.0
    %2377 = vmatprep.subr.mxu0 0.0
    %v2378 = vand.u32 %v2144, 4294901760
    %v2379 = vsub.f32 %v2144, %v2378
    %2380 = vmatpush1.msra.mxu0 %v2379
    %2381 = vmatprep.subr.mxu0 0.0
    %v2382 = vand.u32 %v2143, 4294901760
    %v2383 = vsub.f32 %v2143, %v2382
    %2384 = vmatpush1.msra.mxu0 %v2383
    %2385 = vmatprep.subr.mxu0 0.0
    %v2386 = vand.u32 %v2142, 4294901760
    %v2387 = vsub.f32 %v2142, %v2386
    %2388 = vmatpush1.msra.mxu0 %v2387
    %2389 = vmatprep.subr.mxu0 0.0
    %v2390 = vand.u32 %v2141, 4294901760
    %v2391 = vsub.f32 %v2141, %v2390
    %2392 = vmatpush1.msra.mxu0 %v2391
    %2393 = vmatprep.subr.mxu0 0.0
    %v2394 = vand.u32 %v2140, 4294901760
    %v2395 = vsub.f32 %v2140, %v2394
    %2396 = vmatpush1.msra.mxu0 %v2395
    %2397 = vmatprep.subr.mxu0 0.0
    %v2398 = vand.u32 %v2139, 4294901760
    %v2399 = vsub.f32 %v2139, %v2398
    %2400 = vmatpush1.msra.mxu0 %v2399
    %2401 = vmatprep.subr.mxu0 0.0
    %v2402 = vand.u32 %v2138, 4294901760
    %v2403 = vsub.f32 %v2138, %v2402
    %2404 = vmatpush1.msra.mxu0 %v2403
    %2405 = vmatprep.subr.mxu0 0.0
    %v2406 = vand.u32 %v2137, 4294901760
    %v2407 = vsub.f32 %v2137, %v2406
    %2408 = vmatpush1.msra.mxu0 %v2407
    %2409 = vmatprep.subr.mxu0 0.0
    %2410 = vmatpush2.msra.mxu0 0.0
    %2411 = vmatprep.subr.mxu0 0.0
    %2412 = vmatpush2.msra.mxu0 0.0
    %2413 = vmatprep.subr.mxu0 0.0
    %2414 = vmatpush2.msra.mxu0 0.0
    %2415 = vmatprep.subr.mxu0 0.0
    %2416 = vmatpush2.msra.mxu0 0.0
    %2417 = vmatprep.subr.mxu0 0.0
    %2418 = vmatpush2.msra.mxu0 0.0
    %2419 = vmatprep.subr.mxu0 0.0
    %2420 = vmatpush2.msra.mxu0 0.0
    %2421 = vmatprep.subr.mxu0 0.0
    %2422 = vmatpush2.msra.mxu0 0.0
    %2423 = vmatprep.subr.mxu0 0.0
    %2424 = vmatpush2.msra.mxu0 0.0
    %2425 = vmatprep.subr.mxu0 0.0
    %2426 = vmatpush2.msra.mxu0 0.0
    %2427 = vmatprep.subr.mxu0 0.0
    %2428 = vmatpush2.msra.mxu0 0.0
    %2429 = vmatprep.subr.mxu0 0.0
    %2430 = vmatpush2.msra.mxu0 0.0
    %2431 = vmatprep.subr.mxu0 0.0
    %2432 = vmatpush2.msra.mxu0 0.0
    %2433 = vmatprep.subr.mxu0 0.0
    %2434 = vmatpush2.msra.mxu0 0.0
    %2435 = vmatprep.subr.mxu0 0.0
    %2436 = vmatpush2.msra.mxu0 0.0
    %2437 = vmatprep.subr.mxu0 0.0
    %2438 = vmatpush2.msra.mxu0 0.0
    %2439 = vmatprep.subr.mxu0 0.0
    %2440 = vmatpush2.msra.mxu0 0.0
    %2441 = vmatprep.mubr.f32.mxu0 0.0
    %v2442 = vand.u32 %v2146, 4294901760
    %v2443 = vsub.f32 %v2146, %v2442
    %2444 = vmatmul.mubr.f32.gmra.mxu0 %v2443
    %v2445 = vpop.f32.mrf.mxu0
    %v2446 = vadd.f32 %v2352, %v2445
    %v2447 = vpop.f32.mrf.mxu0
    %2448 = vmatprep.mubr.f32.mxu0 0.0
    %v2449 = vand.u32 %v2149, 4294901760
    %v2450 = vsub.f32 %v2149, %v2449
    %2451 = vmatmul.mubr.f32.gmra.mxu0 %v2450
    %v2452 = vpop.f32.mrf.mxu0
    %v2453 = vadd.f32 %v2358, %v2452
    %v2454 = vpop.f32.mrf.mxu0
    %2455 = vdwg.mxu0
    %2456 = vmatprep.subr.mxu0 0.0
    %2457 = vmatpush1.msra.mxu0 0.0
    %2458 = vmatprep.subr.mxu0 0.0
    %2459 = vmatpush1.msra.mxu0 0.0
    %2460 = vmatprep.subr.mxu0 0.0
    %2461 = vmatpush1.msra.mxu0 0.0
    %2462 = vmatprep.subr.mxu0 0.0
    %2463 = vmatpush1.msra.mxu0 0.0
    %2464 = vmatprep.subr.mxu0 0.0
    %2465 = vmatpush1.msra.mxu0 0.0
    %2466 = vmatprep.subr.mxu0 0.0
    %2467 = vmatpush1.msra.mxu0 0.0
    %2468 = vmatprep.subr.mxu0 0.0
    %2469 = vmatpush1.msra.mxu0 0.0
    %2470 = vmatprep.subr.mxu0 0.0
    %2471 = vmatpush1.msra.mxu0 0.0
    %2472 = vmatprep.subr.mxu0 0.0
    %v2473 = vand.u32 %v2144, 4294901760
    %2474 = vmatpush1.msra.mxu0 %v2473
    %2475 = vmatprep.subr.mxu0 0.0
    %v2476 = vand.u32 %v2143, 4294901760
    %2477 = vmatpush1.msra.mxu0 %v2476
    %2478 = vmatprep.subr.mxu0 0.0
    %v2479 = vand.u32 %v2142, 4294901760
    %2480 = vmatpush1.msra.mxu0 %v2479
    %2481 = vmatprep.subr.mxu0 0.0
    %v2482 = vand.u32 %v2141, 4294901760
    %2483 = vmatpush1.msra.mxu0 %v2482
    %2484 = vmatprep.subr.mxu0 0.0
    %v2485 = vand.u32 %v2140, 4294901760
    %2486 = vmatpush1.msra.mxu0 %v2485
    %2487 = vmatprep.subr.mxu0 0.0
    %v2488 = vand.u32 %v2139, 4294901760
    %2489 = vmatpush1.msra.mxu0 %v2488
    %2490 = vmatprep.subr.mxu0 0.0
    %v2491 = vand.u32 %v2138, 4294901760
    %2492 = vmatpush1.msra.mxu0 %v2491
    %2493 = vmatprep.subr.mxu0 0.0
    %v2494 = vand.u32 %v2137, 4294901760
    %2495 = vmatpush1.msra.mxu0 %v2494
    %2496 = vmatprep.subr.mxu0 0.0
    %2497 = vmatpush2.msra.mxu0 0.0
    %2498 = vmatprep.subr.mxu0 0.0
    %2499 = vmatpush2.msra.mxu0 0.0
    %2500 = vmatprep.subr.mxu0 0.0
    %2501 = vmatpush2.msra.mxu0 0.0
    %2502 = vmatprep.subr.mxu0 0.0
    %2503 = vmatpush2.msra.mxu0 0.0
    %2504 = vmatprep.subr.mxu0 0.0
    %2505 = vmatpush2.msra.mxu0 0.0
    %2506 = vmatprep.subr.mxu0 0.0
    %2507 = vmatpush2.msra.mxu0 0.0
    %2508 = vmatprep.subr.mxu0 0.0
    %2509 = vmatpush2.msra.mxu0 0.0
    %2510 = vmatprep.subr.mxu0 0.0
    %2511 = vmatpush2.msra.mxu0 0.0
    %2512 = vmatprep.subr.mxu0 0.0
    %2513 = vmatpush2.msra.mxu0 0.0
    %2514 = vmatprep.subr.mxu0 0.0
    %2515 = vmatpush2.msra.mxu0 0.0
    %2516 = vmatprep.subr.mxu0 0.0
    %2517 = vmatpush2.msra.mxu0 0.0
    %2518 = vmatprep.subr.mxu0 0.0
    %2519 = vmatpush2.msra.mxu0 0.0
    %2520 = vmatprep.subr.mxu0 0.0
    %2521 = vmatpush2.msra.mxu0 0.0
    %2522 = vmatprep.subr.mxu0 0.0
    %2523 = vmatpush2.msra.mxu0 0.0
    %2524 = vmatprep.subr.mxu0 0.0
    %2525 = vmatpush2.msra.mxu0 0.0
    %2526 = vmatprep.subr.mxu0 0.0
    %2527 = vmatpush2.msra.mxu0 0.0
    %2528 = vmatprep.mubr.f32.mxu0 0.0
    %v2529 = vand.u32 %v2146, 4294901760
    %v2530 = vsub.f32 %v2146, %v2529
    %v2531 = vand.u32 %v2530, 4294901760
    %2532 = vmatmul.mubr.f32.gmra.mxu0 %v2531
    %v2533 = vpop.f32.mrf.mxu0
    %v2534 = vadd.f32 %v2446, %v2533
    %v2535 = vpop.f32.mrf.mxu0
    %2536 = vmatprep.mubr.f32.mxu0 0.0
    %v2537 = vand.u32 %v2149, 4294901760
    %v2538 = vsub.f32 %v2149, %v2537
    %v2539 = vand.u32 %v2538, 4294901760
    %2540 = vmatmul.mubr.f32.gmra.mxu0 %v2539
    %v2541 = vpop.f32.mrf.mxu0
    %v2542 = vadd.f32 %v2453, %v2541
    %v2543 = vpop.f32.mrf.mxu0
    %2544 = vdwg.mxu0
    %2545 = vmatprep.subr.mxu0 0.0
    %2546 = vmatpush1.msra.mxu0 0.0
    %2547 = vmatprep.subr.mxu0 0.0
    %2548 = vmatpush1.msra.mxu0 0.0
    %2549 = vmatprep.subr.mxu0 0.0
    %2550 = vmatpush1.msra.mxu0 0.0
    %2551 = vmatprep.subr.mxu0 0.0
    %2552 = vmatpush1.msra.mxu0 0.0
    %2553 = vmatprep.subr.mxu0 0.0
    %2554 = vmatpush1.msra.mxu0 0.0
    %2555 = vmatprep.subr.mxu0 0.0
    %2556 = vmatpush1.msra.mxu0 0.0
    %2557 = vmatprep.subr.mxu0 0.0
    %2558 = vmatpush1.msra.mxu0 0.0
    %2559 = vmatprep.subr.mxu0 0.0
    %2560 = vmatpush1.msra.mxu0 0.0
    %2561 = vmatprep.subr.mxu0 0.0
    %v2562 = vand.u32 %v2144, 4294901760
    %v2563 = vsub.f32 %v2144, %v2562
    %v2564 = vand.u32 %v2563, 4294901760
    %2565 = vmatpush1.msra.mxu0 %v2564
    %2566 = vmatprep.subr.mxu0 0.0
    %v2567 = vand.u32 %v2143, 4294901760
    %v2568 = vsub.f32 %v2143, %v2567
    %v2569 = vand.u32 %v2568, 4294901760
    %2570 = vmatpush1.msra.mxu0 %v2569
    %2571 = vmatprep.subr.mxu0 0.0
    %v2572 = vand.u32 %v2142, 4294901760
    %v2573 = vsub.f32 %v2142, %v2572
    %v2574 = vand.u32 %v2573, 4294901760
    %2575 = vmatpush1.msra.mxu0 %v2574
    %2576 = vmatprep.subr.mxu0 0.0
    %v2577 = vand.u32 %v2141, 4294901760
    %v2578 = vsub.f32 %v2141, %v2577
    %v2579 = vand.u32 %v2578, 4294901760
    %2580 = vmatpush1.msra.mxu0 %v2579
    %2581 = vmatprep.subr.mxu0 0.0
    %v2582 = vand.u32 %v2140, 4294901760
    %v2583 = vsub.f32 %v2140, %v2582
    %v2584 = vand.u32 %v2583, 4294901760
    %2585 = vmatpush1.msra.mxu0 %v2584
    %2586 = vmatprep.subr.mxu0 0.0
    %v2587 = vand.u32 %v2139, 4294901760
    %v2588 = vsub.f32 %v2139, %v2587
    %v2589 = vand.u32 %v2588, 4294901760
    %2590 = vmatpush1.msra.mxu0 %v2589
    %2591 = vmatprep.subr.mxu0 0.0
    %v2592 = vand.u32 %v2138, 4294901760
    %v2593 = vsub.f32 %v2138, %v2592
    %v2594 = vand.u32 %v2593, 4294901760
    %2595 = vmatpush1.msra.mxu0 %v2594
    %2596 = vmatprep.subr.mxu0 0.0
    %v2597 = vand.u32 %v2137, 4294901760
    %v2598 = vsub.f32 %v2137, %v2597
    %v2599 = vand.u32 %v2598, 4294901760
    %2600 = vmatpush1.msra.mxu0 %v2599
    %2601 = vmatprep.subr.mxu0 0.0
    %2602 = vmatpush2.msra.mxu0 0.0
    %2603 = vmatprep.subr.mxu0 0.0
    %2604 = vmatpush2.msra.mxu0 0.0
    %2605 = vmatprep.subr.mxu0 0.0
    %2606 = vmatpush2.msra.mxu0 0.0
    %2607 = vmatprep.subr.mxu0 0.0
    %2608 = vmatpush2.msra.mxu0 0.0
    %2609 = vmatprep.subr.mxu0 0.0
    %2610 = vmatpush2.msra.mxu0 0.0
    %2611 = vmatprep.subr.mxu0 0.0
    %2612 = vmatpush2.msra.mxu0 0.0
    %2613 = vmatprep.subr.mxu0 0.0
    %2614 = vmatpush2.msra.mxu0 0.0
    %2615 = vmatprep.subr.mxu0 0.0
    %2616 = vmatpush2.msra.mxu0 0.0
    %2617 = vmatprep.subr.mxu0 0.0
    %2618 = vmatpush2.msra.mxu0 0.0
    %2619 = vmatprep.subr.mxu0 0.0
    %2620 = vmatpush2.msra.mxu0 0.0
    %2621 = vmatprep.subr.mxu0 0.0
    %2622 = vmatpush2.msra.mxu0 0.0
    %2623 = vmatprep.subr.mxu0 0.0
    %2624 = vmatpush2.msra.mxu0 0.0
    %2625 = vmatprep.subr.mxu0 0.0
    %2626 = vmatpush2.msra.mxu0 0.0
    %2627 = vmatprep.subr.mxu0 0.0
    %2628 = vmatpush2.msra.mxu0 0.0
    %2629 = vmatprep.subr.mxu0 0.0
    %2630 = vmatpush2.msra.mxu0 0.0
    %2631 = vmatprep.subr.mxu0 0.0
    %2632 = vmatpush2.msra.mxu0 0.0
    %2633 = vmatprep.mubr.f32.mxu0 0.0
    %v2634 = vand.u32 %v2146, 4294901760
    %2635 = vmatmul.mubr.f32.gmra.mxu0 %v2634
    %v2636 = vpop.f32.mrf.mxu0
    %v2637 = vadd.f32 %v2534, %v2636
    %v2638 = vpop.f32.mrf.mxu0
    %2639 = vmatprep.mubr.f32.mxu0 0.0
    %v2640 = vand.u32 %v2149, 4294901760
    %2641 = vmatmul.mubr.f32.gmra.mxu0 %v2640
    %v2642 = vpop.f32.mrf.mxu0
    %v2643 = vadd.f32 %v2542, %v2642
    %v2644 = vpop.f32.mrf.mxu0
    %2645 = vdwg.mxu0
    %2646 = vmatprep.subr.mxu0 0.0
    %2647 = vmatpush1.msra.mxu0 0.0
    %2648 = vmatprep.subr.mxu0 0.0
    %2649 = vmatpush1.msra.mxu0 0.0
    %2650 = vmatprep.subr.mxu0 0.0
    %2651 = vmatpush1.msra.mxu0 0.0
    %2652 = vmatprep.subr.mxu0 0.0
    %2653 = vmatpush1.msra.mxu0 0.0
    %2654 = vmatprep.subr.mxu0 0.0
    %2655 = vmatpush1.msra.mxu0 0.0
    %2656 = vmatprep.subr.mxu0 0.0
    %2657 = vmatpush1.msra.mxu0 0.0
    %2658 = vmatprep.subr.mxu0 0.0
    %2659 = vmatpush1.msra.mxu0 0.0
    %2660 = vmatprep.subr.mxu0 0.0
    %2661 = vmatpush1.msra.mxu0 0.0
    %2662 = vmatprep.subr.mxu0 0.0
    %v2663 = vand.u32 %v2144, 4294901760
    %2664 = vmatpush1.msra.mxu0 %v2663
    %2665 = vmatprep.subr.mxu0 0.0
    %v2666 = vand.u32 %v2143, 4294901760
    %2667 = vmatpush1.msra.mxu0 %v2666
    %2668 = vmatprep.subr.mxu0 0.0
    %v2669 = vand.u32 %v2142, 4294901760
    %2670 = vmatpush1.msra.mxu0 %v2669
    %2671 = vmatprep.subr.mxu0 0.0
    %v2672 = vand.u32 %v2141, 4294901760
    %2673 = vmatpush1.msra.mxu0 %v2672
    %2674 = vmatprep.subr.mxu0 0.0
    %v2675 = vand.u32 %v2140, 4294901760
    %2676 = vmatpush1.msra.mxu0 %v2675
    %2677 = vmatprep.subr.mxu0 0.0
    %v2678 = vand.u32 %v2139, 4294901760
    %2679 = vmatpush1.msra.mxu0 %v2678
    %2680 = vmatprep.subr.mxu0 0.0
    %v2681 = vand.u32 %v2138, 4294901760
    %2682 = vmatpush1.msra.mxu0 %v2681
    %2683 = vmatprep.subr.mxu0 0.0
    %v2684 = vand.u32 %v2137, 4294901760
    %2685 = vmatpush1.msra.mxu0 %v2684
    %2686 = vmatprep.subr.mxu0 0.0
    %2687 = vmatpush2.msra.mxu0 0.0
    %2688 = vmatprep.subr.mxu0 0.0
    %2689 = vmatpush2.msra.mxu0 0.0
    %2690 = vmatprep.subr.mxu0 0.0
    %2691 = vmatpush2.msra.mxu0 0.0
    %2692 = vmatprep.subr.mxu0 0.0
    %2693 = vmatpush2.msra.mxu0 0.0
    %2694 = vmatprep.subr.mxu0 0.0
    %2695 = vmatpush2.msra.mxu0 0.0
    %2696 = vmatprep.subr.mxu0 0.0
    %2697 = vmatpush2.msra.mxu0 0.0
    %2698 = vmatprep.subr.mxu0 0.0
    %2699 = vmatpush2.msra.mxu0 0.0
    %2700 = vmatprep.subr.mxu0 0.0
    %2701 = vmatpush2.msra.mxu0 0.0
    %2702 = vmatprep.subr.mxu0 0.0
    %2703 = vmatpush2.msra.mxu0 0.0
    %2704 = vmatprep.subr.mxu0 0.0
    %2705 = vmatpush2.msra.mxu0 0.0
    %2706 = vmatprep.subr.mxu0 0.0
    %2707 = vmatpush2.msra.mxu0 0.0
    %2708 = vmatprep.subr.mxu0 0.0
    %2709 = vmatpush2.msra.mxu0 0.0
    %2710 = vmatprep.subr.mxu0 0.0
    %2711 = vmatpush2.msra.mxu0 0.0
    %2712 = vmatprep.subr.mxu0 0.0
    %2713 = vmatpush2.msra.mxu0 0.0
    %2714 = vmatprep.subr.mxu0 0.0
    %2715 = vmatpush2.msra.mxu0 0.0
    %2716 = vmatprep.subr.mxu0 0.0
    %2717 = vmatpush2.msra.mxu0 0.0
    %2718 = vmatprep.mubr.f32.mxu0 0.0
    %v2719 = vand.u32 %v2146, 4294901760
    %2720 = vmatmul.mubr.f32.gmra.mxu0 %v2719
    %v2721 = vpop.f32.mrf.mxu0
    %v2722 = vadd.f32 %v2637, %v2721
    %v2723 = vpop.f32.mrf.mxu0
    %2724 = vmatprep.mubr.f32.mxu0 0.0
    %v2725 = vand.u32 %v2149, 4294901760
    %2726 = vmatmul.mubr.f32.gmra.mxu0 %v2725
    %v2727 = vpop.f32.mrf.mxu0
    %v2728 = vadd.f32 %v2643, %v2727
    %v2729 = vpop.f32.mrf.mxu0
    %2730 = vdwg.mxu0
    %s2731 = scalar_lea.vmem %s11, %s2128
    %v2732 = vld [vmem:[%s2731] sm:$0x1]
    %s2733 = scalar_lea.vmem %s13, %s2128
    %v2734 = vld [vmem:[%s2733] sm:$0x1]
    %vm2735 = vcmask 130048
    %v2736 = vsel %vm2735, %v2722, 0.0
    %v2737 = vsel %vm2735, %v2728, 0.0
    %v2738 = vadd.f32 %v2736, %v2737
    %v2739 = vrot.slane %v2738, 4
    %v2740 = vadd.f32 %v2738, %v2739
    %v2741 = vrot.slane %v2740, 2
    %v2742 = vadd.f32 %v2740, %v2741
    %v2743 = vrot.slane %v2742, 1
    %v2744 = vadd.f32 %v2742, %v2743
    %v2745 = vmul.f32 %v2744, 0.0625
    %v2746 = vsub.f32 %v2722, %v2745
    %v2747 = vsub.f32 %v2728, %v2745
    %v2748 = vmul.f32 %v2746, %v2746
    %v2749 = vmul.f32 %v2747, %v2747
    %v2750 = vsel %vm2735, %v2748, 0.0
    %v2751 = vsel %vm2735, %v2749, 0.0
    %v2752 = vadd.f32 %v2750, %v2751
    %v2753 = vrot.slane %v2752, 4
    %v2754 = vadd.f32 %v2752, %v2753
    %v2755 = vrot.slane %v2754, 2
    %v2756 = vadd.f32 %v2754, %v2755
    %v2757 = vrot.slane %v2756, 1
    %v2758 = vadd.f32 %v2756, %v2757
    %v2759 = vmul.f32 %v2758, 0.0625
    %v2760 = vadd.f32 %v2759, 1e-05
    %v2761 = vrsqrt.pop %v2760
    %v2762 = vmul.f32 %v2746, %v2761
    %v2763 = vmul.f32 %v2747, %v2761
    %v2765 = vlaneseq
    %v2766 = vshrl.u32 %v2765, 7
    %v2767 = vsub.s32 0, %v2766
    %v2768 = vrot.slane %v2732, %v2767
    %v2770 = vmul.f32 %v2762, %v2768
    %v2771 = vmul.f32 %v2763, %v2768
    %v2773 = vlaneseq
    %v2774 = vshrl.u32 %v2773, 7
    %v2775 = vsub.s32 0, %v2774
    %v2776 = vrot.slane %v2734, %v2775
    %v2778 = vadd.f32 %v2770, %v2776
    %v2779 = vadd.f32 %v2771, %v2776
    %v2780 = vmax.f32 %v2778, 0.0
    %v2781 = vmax.f32 %v2779, 0.0
    %s2782 = smul.u32 %s2128, 16
    %s2783 = scalar_lea.vmem %s15, %s2782
    %v2784 = vld [vmem:[%s2783] sm:$0xff]
    %v2785 = vld [vmem:[%s2783 + $0x8] sm:$0xff]
    %v2787 = vsel %vm2735, %v2780, 0
    %v2790 = vsel %vm2735, %v2781, 0
    %2792 = vmatprep.subr.mxu0 0.0
    %2793 = vmatpush1.msra.mxu0 0.0
    %2794 = vmatprep.subr.mxu0 0.0
    %2795 = vmatpush1.msra.mxu0 0.0
    %2796 = vmatprep.subr.mxu0 0.0
    %2797 = vmatpush1.msra.mxu0 0.0
    %2798 = vmatprep.subr.mxu0 0.0
    %2799 = vmatpush1.msra.mxu0 0.0
    %2800 = vmatprep.subr.mxu0 0.0
    %2801 = vmatpush1.msra.mxu0 0.0
    %2802 = vmatprep.subr.mxu0 0.0
    %2803 = vmatpush1.msra.mxu0 0.0
    %2804 = vmatprep.subr.mxu0 0.0
    %2805 = vmatpush1.msra.mxu0 0.0
    %2806 = vmatprep.subr.mxu0 0.0
    %2807 = vmatpush1.msra.mxu0 0.0
    %2808 = vmatprep.subr.mxu0 0.0
    %2809 = vmatpush1.msra.mxu0 0.0
    %2810 = vmatprep.subr.mxu0 0.0
    %2811 = vmatpush1.msra.mxu0 0.0
    %2812 = vmatprep.subr.mxu0 0.0
    %2813 = vmatpush1.msra.mxu0 0.0
    %2814 = vmatprep.subr.mxu0 0.0
    %2815 = vmatpush1.msra.mxu0 0.0
    %2816 = vmatprep.subr.mxu0 0.0
    %2817 = vmatpush1.msra.mxu0 0.0
    %2818 = vmatprep.subr.mxu0 0.0
    %2819 = vmatpush1.msra.mxu0 0.0
    %2820 = vmatprep.subr.mxu0 0.0
    %v2821 = vand.u32 %v2785, 4294901760
    %2822 = vmatpush1.msra.mxu0 %v2821
    %2823 = vmatprep.subr.mxu0 0.0
    %v2824 = vand.u32 %v2784, 4294901760
    %2825 = vmatpush1.msra.mxu0 %v2824
    %2826 = vmatprep.subr.mxu0 0.0
    %2827 = vmatpush2.msra.mxu0 0.0
    %2828 = vmatprep.subr.mxu0 0.0
    %2829 = vmatpush2.msra.mxu0 0.0
    %2830 = vmatprep.subr.mxu0 0.0
    %2831 = vmatpush2.msra.mxu0 0.0
    %2832 = vmatprep.subr.mxu0 0.0
    %2833 = vmatpush2.msra.mxu0 0.0
    %2834 = vmatprep.subr.mxu0 0.0
    %2835 = vmatpush2.msra.mxu0 0.0
    %2836 = vmatprep.subr.mxu0 0.0
    %2837 = vmatpush2.msra.mxu0 0.0
    %2838 = vmatprep.subr.mxu0 0.0
    %2839 = vmatpush2.msra.mxu0 0.0
    %2840 = vmatprep.subr.mxu0 0.0
    %2841 = vmatpush2.msra.mxu0 0.0
    %2842 = vmatprep.subr.mxu0 0.0
    %2843 = vmatpush2.msra.mxu0 0.0
    %2844 = vmatprep.subr.mxu0 0.0
    %2845 = vmatpush2.msra.mxu0 0.0
    %2846 = vmatprep.subr.mxu0 0.0
    %2847 = vmatpush2.msra.mxu0 0.0
    %2848 = vmatprep.subr.mxu0 0.0
    %2849 = vmatpush2.msra.mxu0 0.0
    %2850 = vmatprep.subr.mxu0 0.0
    %2851 = vmatpush2.msra.mxu0 0.0
    %2852 = vmatprep.subr.mxu0 0.0
    %2853 = vmatpush2.msra.mxu0 0.0
    %2854 = vmatprep.subr.mxu0 0.0
    %2855 = vmatpush2.msra.mxu0 0.0
    %2856 = vmatprep.subr.mxu0 0.0
    %2857 = vmatpush2.msra.mxu0 0.0
    %2858 = vmatprep.mubr.f32.mxu0 0.0
    %v2859 = vand.u32 %v2787, 4294901760
    %v2860 = vsub.f32 %v2787, %v2859
    %v2861 = vand.u32 %v2860, 4294901760
    %v2862 = vsub.f32 %v2860, %v2861
    %v2863 = vand.u32 %v2862, 4294901760
    %2864 = vmatmul.mubr.f32.gmra.mxu0 %v2863
    %v2865 = vpop.f32.mrf.mxu0
    %v2866 = vadd.f32 0.0, %v2865
    %v2867 = vpop.f32.mrf.mxu0
    %2868 = vmatprep.mubr.f32.mxu0 0.0
    %v2869 = vand.u32 %v2790, 4294901760
    %v2870 = vsub.f32 %v2790, %v2869
    %v2871 = vand.u32 %v2870, 4294901760
    %v2872 = vsub.f32 %v2870, %v2871
    %v2873 = vand.u32 %v2872, 4294901760
    %2874 = vmatmul.mubr.f32.gmra.mxu0 %v2873
    %v2875 = vpop.f32.mrf.mxu0
    %v2876 = vadd.f32 0.0, %v2875
    %v2877 = vpop.f32.mrf.mxu0
    %2878 = vdwg.mxu0
    %2879 = vmatprep.subr.mxu0 0.0
    %2880 = vmatpush1.msra.mxu0 0.0
    %2881 = vmatprep.subr.mxu0 0.0
    %2882 = vmatpush1.msra.mxu0 0.0
    %2883 = vmatprep.subr.mxu0 0.0
    %2884 = vmatpush1.msra.mxu0 0.0
    %2885 = vmatprep.subr.mxu0 0.0
    %2886 = vmatpush1.msra.mxu0 0.0
    %2887 = vmatprep.subr.mxu0 0.0
    %2888 = vmatpush1.msra.mxu0 0.0
    %2889 = vmatprep.subr.mxu0 0.0
    %2890 = vmatpush1.msra.mxu0 0.0
    %2891 = vmatprep.subr.mxu0 0.0
    %2892 = vmatpush1.msra.mxu0 0.0
    %2893 = vmatprep.subr.mxu0 0.0
    %2894 = vmatpush1.msra.mxu0 0.0
    %2895 = vmatprep.subr.mxu0 0.0
    %2896 = vmatpush1.msra.mxu0 0.0
    %2897 = vmatprep.subr.mxu0 0.0
    %2898 = vmatpush1.msra.mxu0 0.0
    %2899 = vmatprep.subr.mxu0 0.0
    %2900 = vmatpush1.msra.mxu0 0.0
    %2901 = vmatprep.subr.mxu0 0.0
    %2902 = vmatpush1.msra.mxu0 0.0
    %2903 = vmatprep.subr.mxu0 0.0
    %2904 = vmatpush1.msra.mxu0 0.0
    %2905 = vmatprep.subr.mxu0 0.0
    %2906 = vmatpush1.msra.mxu0 0.0
    %2907 = vmatprep.subr.mxu0 0.0
    %v2908 = vand.u32 %v2785, 4294901760
    %v2909 = vsub.f32 %v2785, %v2908
    %v2910 = vand.u32 %v2909, 4294901760
    %v2911 = vsub.f32 %v2909, %v2910
    %v2912 = vand.u32 %v2911, 4294901760
    %2913 = vmatpush1.msra.mxu0 %v2912
    %2914 = vmatprep.subr.mxu0 0.0
    %v2915 = vand.u32 %v2784, 4294901760
    %v2916 = vsub.f32 %v2784, %v2915
    %v2917 = vand.u32 %v2916, 4294901760
    %v2918 = vsub.f32 %v2916, %v2917
    %v2919 = vand.u32 %v2918, 4294901760
    %2920 = vmatpush1.msra.mxu0 %v2919
    %2921 = vmatprep.subr.mxu0 0.0
    %2922 = vmatpush2.msra.mxu0 0.0
    %2923 = vmatprep.subr.mxu0 0.0
    %2924 = vmatpush2.msra.mxu0 0.0
    %2925 = vmatprep.subr.mxu0 0.0
    %2926 = vmatpush2.msra.mxu0 0.0
    %2927 = vmatprep.subr.mxu0 0.0
    %2928 = vmatpush2.msra.mxu0 0.0
    %2929 = vmatprep.subr.mxu0 0.0
    %2930 = vmatpush2.msra.mxu0 0.0
    %2931 = vmatprep.subr.mxu0 0.0
    %2932 = vmatpush2.msra.mxu0 0.0
    %2933 = vmatprep.subr.mxu0 0.0
    %2934 = vmatpush2.msra.mxu0 0.0
    %2935 = vmatprep.subr.mxu0 0.0
    %2936 = vmatpush2.msra.mxu0 0.0
    %2937 = vmatprep.subr.mxu0 0.0
    %2938 = vmatpush2.msra.mxu0 0.0
    %2939 = vmatprep.subr.mxu0 0.0
    %2940 = vmatpush2.msra.mxu0 0.0
    %2941 = vmatprep.subr.mxu0 0.0
    %2942 = vmatpush2.msra.mxu0 0.0
    %2943 = vmatprep.subr.mxu0 0.0
    %2944 = vmatpush2.msra.mxu0 0.0
    %2945 = vmatprep.subr.mxu0 0.0
    %2946 = vmatpush2.msra.mxu0 0.0
    %2947 = vmatprep.subr.mxu0 0.0
    %2948 = vmatpush2.msra.mxu0 0.0
    %2949 = vmatprep.subr.mxu0 0.0
    %2950 = vmatpush2.msra.mxu0 0.0
    %2951 = vmatprep.subr.mxu0 0.0
    %2952 = vmatpush2.msra.mxu0 0.0
    %2953 = vmatprep.mubr.f32.mxu0 0.0
    %v2954 = vand.u32 %v2787, 4294901760
    %2955 = vmatmul.mubr.f32.gmra.mxu0 %v2954
    %v2956 = vpop.f32.mrf.mxu0
    %v2957 = vadd.f32 %v2866, %v2956
    %v2958 = vpop.f32.mrf.mxu0
    %2959 = vmatprep.mubr.f32.mxu0 0.0
    %v2960 = vand.u32 %v2790, 4294901760
    %2961 = vmatmul.mubr.f32.gmra.mxu0 %v2960
    %v2962 = vpop.f32.mrf.mxu0
    %v2963 = vadd.f32 %v2876, %v2962
    %v2964 = vpop.f32.mrf.mxu0
    %2965 = vdwg.mxu0
    %2966 = vmatprep.subr.mxu0 0.0
    %2967 = vmatpush1.msra.mxu0 0.0
    %2968 = vmatprep.subr.mxu0 0.0
    %2969 = vmatpush1.msra.mxu0 0.0
    %2970 = vmatprep.subr.mxu0 0.0
    %2971 = vmatpush1.msra.mxu0 0.0
    %2972 = vmatprep.subr.mxu0 0.0
    %2973 = vmatpush1.msra.mxu0 0.0
    %2974 = vmatprep.subr.mxu0 0.0
    %2975 = vmatpush1.msra.mxu0 0.0
    %2976 = vmatprep.subr.mxu0 0.0
    %2977 = vmatpush1.msra.mxu0 0.0
    %2978 = vmatprep.subr.mxu0 0.0
    %2979 = vmatpush1.msra.mxu0 0.0
    %2980 = vmatprep.subr.mxu0 0.0
    %2981 = vmatpush1.msra.mxu0 0.0
    %2982 = vmatprep.subr.mxu0 0.0
    %2983 = vmatpush1.msra.mxu0 0.0
    %2984 = vmatprep.subr.mxu0 0.0
    %2985 = vmatpush1.msra.mxu0 0.0
    %2986 = vmatprep.subr.mxu0 0.0
    %2987 = vmatpush1.msra.mxu0 0.0
    %2988 = vmatprep.subr.mxu0 0.0
    %2989 = vmatpush1.msra.mxu0 0.0
    %2990 = vmatprep.subr.mxu0 0.0
    %2991 = vmatpush1.msra.mxu0 0.0
    %2992 = vmatprep.subr.mxu0 0.0
    %2993 = vmatpush1.msra.mxu0 0.0
    %2994 = vmatprep.subr.mxu0 0.0
    %v2995 = vand.u32 %v2785, 4294901760
    %v2996 = vsub.f32 %v2785, %v2995
    %2997 = vmatpush1.msra.mxu0 %v2996
    %2998 = vmatprep.subr.mxu0 0.0
    %v2999 = vand.u32 %v2784, 4294901760
    %v3000 = vsub.f32 %v2784, %v2999
    %3001 = vmatpush1.msra.mxu0 %v3000
    %3002 = vmatprep.subr.mxu0 0.0
    %3003 = vmatpush2.msra.mxu0 0.0
    %3004 = vmatprep.subr.mxu0 0.0
    %3005 = vmatpush2.msra.mxu0 0.0
    %3006 = vmatprep.subr.mxu0 0.0
    %3007 = vmatpush2.msra.mxu0 0.0
    %3008 = vmatprep.subr.mxu0 0.0
    %3009 = vmatpush2.msra.mxu0 0.0
    %3010 = vmatprep.subr.mxu0 0.0
    %3011 = vmatpush2.msra.mxu0 0.0
    %3012 = vmatprep.subr.mxu0 0.0
    %3013 = vmatpush2.msra.mxu0 0.0
    %3014 = vmatprep.subr.mxu0 0.0
    %3015 = vmatpush2.msra.mxu0 0.0
    %3016 = vmatprep.subr.mxu0 0.0
    %3017 = vmatpush2.msra.mxu0 0.0
    %3018 = vmatprep.subr.mxu0 0.0
    %3019 = vmatpush2.msra.mxu0 0.0
    %3020 = vmatprep.subr.mxu0 0.0
    %3021 = vmatpush2.msra.mxu0 0.0
    %3022 = vmatprep.subr.mxu0 0.0
    %3023 = vmatpush2.msra.mxu0 0.0
    %3024 = vmatprep.subr.mxu0 0.0
    %3025 = vmatpush2.msra.mxu0 0.0
    %3026 = vmatprep.subr.mxu0 0.0
    %3027 = vmatpush2.msra.mxu0 0.0
    %3028 = vmatprep.subr.mxu0 0.0
    %3029 = vmatpush2.msra.mxu0 0.0
    %3030 = vmatprep.subr.mxu0 0.0
    %3031 = vmatpush2.msra.mxu0 0.0
    %3032 = vmatprep.subr.mxu0 0.0
    %3033 = vmatpush2.msra.mxu0 0.0
    %3034 = vmatprep.mubr.f32.mxu0 0.0
    %v3035 = vand.u32 %v2787, 4294901760
    %v3036 = vsub.f32 %v2787, %v3035
    %3037 = vmatmul.mubr.f32.gmra.mxu0 %v3036
    %v3038 = vpop.f32.mrf.mxu0
    %v3039 = vadd.f32 %v2957, %v3038
    %v3040 = vpop.f32.mrf.mxu0
    %3041 = vmatprep.mubr.f32.mxu0 0.0
    %v3042 = vand.u32 %v2790, 4294901760
    %v3043 = vsub.f32 %v2790, %v3042
    %3044 = vmatmul.mubr.f32.gmra.mxu0 %v3043
    %v3045 = vpop.f32.mrf.mxu0
    %v3046 = vadd.f32 %v2963, %v3045
    %v3047 = vpop.f32.mrf.mxu0
    %3048 = vdwg.mxu0
    %3049 = vmatprep.subr.mxu0 0.0
    %3050 = vmatpush1.msra.mxu0 0.0
    %3051 = vmatprep.subr.mxu0 0.0
    %3052 = vmatpush1.msra.mxu0 0.0
    %3053 = vmatprep.subr.mxu0 0.0
    %3054 = vmatpush1.msra.mxu0 0.0
    %3055 = vmatprep.subr.mxu0 0.0
    %3056 = vmatpush1.msra.mxu0 0.0
    %3057 = vmatprep.subr.mxu0 0.0
    %3058 = vmatpush1.msra.mxu0 0.0
    %3059 = vmatprep.subr.mxu0 0.0
    %3060 = vmatpush1.msra.mxu0 0.0
    %3061 = vmatprep.subr.mxu0 0.0
    %3062 = vmatpush1.msra.mxu0 0.0
    %3063 = vmatprep.subr.mxu0 0.0
    %3064 = vmatpush1.msra.mxu0 0.0
    %3065 = vmatprep.subr.mxu0 0.0
    %3066 = vmatpush1.msra.mxu0 0.0
    %3067 = vmatprep.subr.mxu0 0.0
    %3068 = vmatpush1.msra.mxu0 0.0
    %3069 = vmatprep.subr.mxu0 0.0
    %3070 = vmatpush1.msra.mxu0 0.0
    %3071 = vmatprep.subr.mxu0 0.0
    %3072 = vmatpush1.msra.mxu0 0.0
    %3073 = vmatprep.subr.mxu0 0.0
    %3074 = vmatpush1.msra.mxu0 0.0
    %3075 = vmatprep.subr.mxu0 0.0
    %3076 = vmatpush1.msra.mxu0 0.0
    %3077 = vmatprep.subr.mxu0 0.0
    %v3078 = vand.u32 %v2785, 4294901760
    %3079 = vmatpush1.msra.mxu0 %v3078
    %3080 = vmatprep.subr.mxu0 0.0
    %v3081 = vand.u32 %v2784, 4294901760
    %3082 = vmatpush1.msra.mxu0 %v3081
    %3083 = vmatprep.subr.mxu0 0.0
    %3084 = vmatpush2.msra.mxu0 0.0
    %3085 = vmatprep.subr.mxu0 0.0
    %3086 = vmatpush2.msra.mxu0 0.0
    %3087 = vmatprep.subr.mxu0 0.0
    %3088 = vmatpush2.msra.mxu0 0.0
    %3089 = vmatprep.subr.mxu0 0.0
    %3090 = vmatpush2.msra.mxu0 0.0
    %3091 = vmatprep.subr.mxu0 0.0
    %3092 = vmatpush2.msra.mxu0 0.0
    %3093 = vmatprep.subr.mxu0 0.0
    %3094 = vmatpush2.msra.mxu0 0.0
    %3095 = vmatprep.subr.mxu0 0.0
    %3096 = vmatpush2.msra.mxu0 0.0
    %3097 = vmatprep.subr.mxu0 0.0
    %3098 = vmatpush2.msra.mxu0 0.0
    %3099 = vmatprep.subr.mxu0 0.0
    %3100 = vmatpush2.msra.mxu0 0.0
    %3101 = vmatprep.subr.mxu0 0.0
    %3102 = vmatpush2.msra.mxu0 0.0
    %3103 = vmatprep.subr.mxu0 0.0
    %3104 = vmatpush2.msra.mxu0 0.0
    %3105 = vmatprep.subr.mxu0 0.0
    %3106 = vmatpush2.msra.mxu0 0.0
    %3107 = vmatprep.subr.mxu0 0.0
    %3108 = vmatpush2.msra.mxu0 0.0
    %3109 = vmatprep.subr.mxu0 0.0
    %3110 = vmatpush2.msra.mxu0 0.0
    %3111 = vmatprep.subr.mxu0 0.0
    %3112 = vmatpush2.msra.mxu0 0.0
    %3113 = vmatprep.subr.mxu0 0.0
    %3114 = vmatpush2.msra.mxu0 0.0
    %3115 = vmatprep.mubr.f32.mxu0 0.0
    %v3116 = vand.u32 %v2787, 4294901760
    %v3117 = vsub.f32 %v2787, %v3116
    %v3118 = vand.u32 %v3117, 4294901760
    %3119 = vmatmul.mubr.f32.gmra.mxu0 %v3118
    %v3120 = vpop.f32.mrf.mxu0
    %v3121 = vadd.f32 %v3039, %v3120
    %v3122 = vpop.f32.mrf.mxu0
    %3123 = vmatprep.mubr.f32.mxu0 0.0
    %v3124 = vand.u32 %v2790, 4294901760
    %v3125 = vsub.f32 %v2790, %v3124
    %v3126 = vand.u32 %v3125, 4294901760
    %3127 = vmatmul.mubr.f32.gmra.mxu0 %v3126
    %v3128 = vpop.f32.mrf.mxu0
    %v3129 = vadd.f32 %v3046, %v3128
    %v3130 = vpop.f32.mrf.mxu0
    %3131 = vdwg.mxu0
    %3132 = vmatprep.subr.mxu0 0.0
    %3133 = vmatpush1.msra.mxu0 0.0
    %3134 = vmatprep.subr.mxu0 0.0
    %3135 = vmatpush1.msra.mxu0 0.0
    %3136 = vmatprep.subr.mxu0 0.0
    %3137 = vmatpush1.msra.mxu0 0.0
    %3138 = vmatprep.subr.mxu0 0.0
    %3139 = vmatpush1.msra.mxu0 0.0
    %3140 = vmatprep.subr.mxu0 0.0
    %3141 = vmatpush1.msra.mxu0 0.0
    %3142 = vmatprep.subr.mxu0 0.0
    %3143 = vmatpush1.msra.mxu0 0.0
    %3144 = vmatprep.subr.mxu0 0.0
    %3145 = vmatpush1.msra.mxu0 0.0
    %3146 = vmatprep.subr.mxu0 0.0
    %3147 = vmatpush1.msra.mxu0 0.0
    %3148 = vmatprep.subr.mxu0 0.0
    %3149 = vmatpush1.msra.mxu0 0.0
    %3150 = vmatprep.subr.mxu0 0.0
    %3151 = vmatpush1.msra.mxu0 0.0
    %3152 = vmatprep.subr.mxu0 0.0
    %3153 = vmatpush1.msra.mxu0 0.0
    %3154 = vmatprep.subr.mxu0 0.0
    %3155 = vmatpush1.msra.mxu0 0.0
    %3156 = vmatprep.subr.mxu0 0.0
    %3157 = vmatpush1.msra.mxu0 0.0
    %3158 = vmatprep.subr.mxu0 0.0
    %3159 = vmatpush1.msra.mxu0 0.0
    %3160 = vmatprep.subr.mxu0 0.0
    %v3161 = vand.u32 %v2785, 4294901760
    %v3162 = vsub.f32 %v2785, %v3161
    %v3163 = vand.u32 %v3162, 4294901760
    %3164 = vmatpush1.msra.mxu0 %v3163
    %3165 = vmatprep.subr.mxu0 0.0
    %v3166 = vand.u32 %v2784, 4294901760
    %v3167 = vsub.f32 %v2784, %v3166
    %v3168 = vand.u32 %v3167, 4294901760
    %3169 = vmatpush1.msra.mxu0 %v3168
    %3170 = vmatprep.subr.mxu0 0.0
    %3171 = vmatpush2.msra.mxu0 0.0
    %3172 = vmatprep.subr.mxu0 0.0
    %3173 = vmatpush2.msra.mxu0 0.0
    %3174 = vmatprep.subr.mxu0 0.0
    %3175 = vmatpush2.msra.mxu0 0.0
    %3176 = vmatprep.subr.mxu0 0.0
    %3177 = vmatpush2.msra.mxu0 0.0
    %3178 = vmatprep.subr.mxu0 0.0
    %3179 = vmatpush2.msra.mxu0 0.0
    %3180 = vmatprep.subr.mxu0 0.0
    %3181 = vmatpush2.msra.mxu0 0.0
    %3182 = vmatprep.subr.mxu0 0.0
    %3183 = vmatpush2.msra.mxu0 0.0
    %3184 = vmatprep.subr.mxu0 0.0
    %3185 = vmatpush2.msra.mxu0 0.0
    %3186 = vmatprep.subr.mxu0 0.0
    %3187 = vmatpush2.msra.mxu0 0.0
    %3188 = vmatprep.subr.mxu0 0.0
    %3189 = vmatpush2.msra.mxu0 0.0
    %3190 = vmatprep.subr.mxu0 0.0
    %3191 = vmatpush2.msra.mxu0 0.0
    %3192 = vmatprep.subr.mxu0 0.0
    %3193 = vmatpush2.msra.mxu0 0.0
    %3194 = vmatprep.subr.mxu0 0.0
    %3195 = vmatpush2.msra.mxu0 0.0
    %3196 = vmatprep.subr.mxu0 0.0
    %3197 = vmatpush2.msra.mxu0 0.0
    %3198 = vmatprep.subr.mxu0 0.0
    %3199 = vmatpush2.msra.mxu0 0.0
    %3200 = vmatprep.subr.mxu0 0.0
    %3201 = vmatpush2.msra.mxu0 0.0
    %3202 = vmatprep.mubr.f32.mxu0 0.0
    %v3203 = vand.u32 %v2787, 4294901760
    %3204 = vmatmul.mubr.f32.gmra.mxu0 %v3203
    %v3205 = vpop.f32.mrf.mxu0
    %v3206 = vadd.f32 %v3121, %v3205
    %v3207 = vpop.f32.mrf.mxu0
    %3208 = vmatprep.mubr.f32.mxu0 0.0
    %v3209 = vand.u32 %v2790, 4294901760
    %3210 = vmatmul.mubr.f32.gmra.mxu0 %v3209
    %v3211 = vpop.f32.mrf.mxu0
    %v3212 = vadd.f32 %v3129, %v3211
    %v3213 = vpop.f32.mrf.mxu0
    %3214 = vdwg.mxu0
    %3215 = vmatprep.subr.mxu0 0.0
    %3216 = vmatpush1.msra.mxu0 0.0
    %3217 = vmatprep.subr.mxu0 0.0
    %3218 = vmatpush1.msra.mxu0 0.0
    %3219 = vmatprep.subr.mxu0 0.0
    %3220 = vmatpush1.msra.mxu0 0.0
    %3221 = vmatprep.subr.mxu0 0.0
    %3222 = vmatpush1.msra.mxu0 0.0
    %3223 = vmatprep.subr.mxu0 0.0
    %3224 = vmatpush1.msra.mxu0 0.0
    %3225 = vmatprep.subr.mxu0 0.0
    %3226 = vmatpush1.msra.mxu0 0.0
    %3227 = vmatprep.subr.mxu0 0.0
    %3228 = vmatpush1.msra.mxu0 0.0
    %3229 = vmatprep.subr.mxu0 0.0
    %3230 = vmatpush1.msra.mxu0 0.0
    %3231 = vmatprep.subr.mxu0 0.0
    %3232 = vmatpush1.msra.mxu0 0.0
    %3233 = vmatprep.subr.mxu0 0.0
    %3234 = vmatpush1.msra.mxu0 0.0
    %3235 = vmatprep.subr.mxu0 0.0
    %3236 = vmatpush1.msra.mxu0 0.0
    %3237 = vmatprep.subr.mxu0 0.0
    %3238 = vmatpush1.msra.mxu0 0.0
    %3239 = vmatprep.subr.mxu0 0.0
    %3240 = vmatpush1.msra.mxu0 0.0
    %3241 = vmatprep.subr.mxu0 0.0
    %3242 = vmatpush1.msra.mxu0 0.0
    %3243 = vmatprep.subr.mxu0 0.0
    %v3244 = vand.u32 %v2785, 4294901760
    %3245 = vmatpush1.msra.mxu0 %v3244
    %3246 = vmatprep.subr.mxu0 0.0
    %v3247 = vand.u32 %v2784, 4294901760
    %3248 = vmatpush1.msra.mxu0 %v3247
    %3249 = vmatprep.subr.mxu0 0.0
    %3250 = vmatpush2.msra.mxu0 0.0
    %3251 = vmatprep.subr.mxu0 0.0
    %3252 = vmatpush2.msra.mxu0 0.0
    %3253 = vmatprep.subr.mxu0 0.0
    %3254 = vmatpush2.msra.mxu0 0.0
    %3255 = vmatprep.subr.mxu0 0.0
    %3256 = vmatpush2.msra.mxu0 0.0
    %3257 = vmatprep.subr.mxu0 0.0
    %3258 = vmatpush2.msra.mxu0 0.0
    %3259 = vmatprep.subr.mxu0 0.0
    %3260 = vmatpush2.msra.mxu0 0.0
    %3261 = vmatprep.subr.mxu0 0.0
    %3262 = vmatpush2.msra.mxu0 0.0
    %3263 = vmatprep.subr.mxu0 0.0
    %3264 = vmatpush2.msra.mxu0 0.0
    %3265 = vmatprep.subr.mxu0 0.0
    %3266 = vmatpush2.msra.mxu0 0.0
    %3267 = vmatprep.subr.mxu0 0.0
    %3268 = vmatpush2.msra.mxu0 0.0
    %3269 = vmatprep.subr.mxu0 0.0
    %3270 = vmatpush2.msra.mxu0 0.0
    %3271 = vmatprep.subr.mxu0 0.0
    %3272 = vmatpush2.msra.mxu0 0.0
    %3273 = vmatprep.subr.mxu0 0.0
    %3274 = vmatpush2.msra.mxu0 0.0
    %3275 = vmatprep.subr.mxu0 0.0
    %3276 = vmatpush2.msra.mxu0 0.0
    %3277 = vmatprep.subr.mxu0 0.0
    %3278 = vmatpush2.msra.mxu0 0.0
    %3279 = vmatprep.subr.mxu0 0.0
    %3280 = vmatpush2.msra.mxu0 0.0
    %3281 = vmatprep.mubr.f32.mxu0 0.0
    %v3282 = vand.u32 %v2787, 4294901760
    %3283 = vmatmul.mubr.f32.gmra.mxu0 %v3282
    %v3284 = vpop.f32.mrf.mxu0
    %v3285 = vadd.f32 %v3206, %v3284
    %v3286 = vpop.f32.mrf.mxu0
    %3287 = vmatprep.mubr.f32.mxu0 0.0
    %v3288 = vand.u32 %v2790, 4294901760
    %3289 = vmatmul.mubr.f32.gmra.mxu0 %v3288
    %v3290 = vpop.f32.mrf.mxu0
    %v3291 = vadd.f32 %v3212, %v3290
    %v3292 = vpop.f32.mrf.mxu0
    %3293 = vdwg.mxu0
    %s3294 = scalar_lea.vmem %s17, %s2128
    %v3295 = vld [vmem:[%s3294] sm:$0x1]
    %s3296 = scalar_lea.vmem %s19, %s2128
    %v3297 = vld [vmem:[%s3296] sm:$0x1]
    %v3298 = vsel %vm2080, %v3285, 0.0
    %v3299 = vsel %vm2080, %v3291, 0.0
    %v3300 = vadd.f32 %v3298, %v3299
    %v3301 = vrot.slane %v3300, 4
    %v3302 = vadd.f32 %v3300, %v3301
    %v3303 = vrot.slane %v3302, 2
    %v3304 = vadd.f32 %v3302, %v3303
    %v3305 = vrot.slane %v3304, 1
    %v3306 = vadd.f32 %v3304, %v3305
    %v3307 = vmul.f32 %v3306, 0.0625
    %v3308 = vsub.f32 %v3285, %v3307
    %v3309 = vsub.f32 %v3291, %v3307
    %v3310 = vmul.f32 %v3308, %v3308
    %v3311 = vmul.f32 %v3309, %v3309
    %v3312 = vsel %vm2080, %v3310, 0.0
    %v3313 = vsel %vm2080, %v3311, 0.0
    %v3314 = vadd.f32 %v3312, %v3313
    %v3315 = vrot.slane %v3314, 4
    %v3316 = vadd.f32 %v3314, %v3315
    %v3317 = vrot.slane %v3316, 2
    %v3318 = vadd.f32 %v3316, %v3317
    %v3319 = vrot.slane %v3318, 1
    %v3320 = vadd.f32 %v3318, %v3319
    %v3321 = vmul.f32 %v3320, 0.0625
    %v3322 = vadd.f32 %v3321, 1e-05
    %v3323 = vrsqrt.pop %v3322
    %v3324 = vmul.f32 %v3308, %v3323
    %v3325 = vmul.f32 %v3309, %v3323
    %v3327 = vlaneseq
    %v3328 = vshrl.u32 %v3327, 7
    %v3329 = vsub.s32 0, %v3328
    %v3330 = vrot.slane %v3295, %v3329
    %v3332 = vmul.f32 %v3324, %v3330
    %v3333 = vmul.f32 %v3325, %v3330
    %v3335 = vlaneseq
    %v3336 = vshrl.u32 %v3335, 7
    %v3337 = vsub.s32 0, %v3336
    %v3338 = vrot.slane %v3297, %v3337
    %v3340 = vadd.f32 %v3332, %v3338
    %v3341 = vadd.f32 %v3333, %v3338
    %v3342 = vadd.f32 %v2133, %v3340
    %v3343 = vadd.f32 %v2134, %v3341
    %v3344 = vmax.f32 %v3342, 0.0
    %v3345 = vmax.f32 %v3343, 0.0
  $region170: #{tpu_custom_call.1} parent=0 // loop_footer
    %s2132 = sadd.s32 1, %s2128
  $region171: #{tpu_custom_call.1} parent=0 // loop_footer_branch
    %2127 = sbr.rel target = $region167
  $region172: #{tpu_custom_call.1} parent=0 // loop_exit
    _
  %v3346 = vld [vmem:[%s21] sm:$0xff]
  %v3347 = vld [vmem:[%s21 + $0x8] sm:$0xff]
  %v3348 = vld [vmem:[%s21 + $0x10] sm:$0xff]
  %v3349 = vld [vmem:[%s21 + $0x18] sm:$0xff]
  %v3350 = vld [vmem:[%s21 + $0x20] sm:$0xff]
  %v3351 = vld [vmem:[%s21 + $0x28] sm:$0xff]
  %v3352 = vld [vmem:[%s21 + $0x30] sm:$0xff]
  %v3353 = vld [vmem:[%s21 + $0x38] sm:$0xff]
  %v3355 = vsel %vm2080, %v2133, 0
  %v3358 = vsel %vm2080, %v2134, 0
  %3360 = vmatprep.subr.mxu0 0.0
  %3361 = vmatpush1.msra.mxu0 0.0
  %3362 = vmatprep.subr.mxu0 0.0
  %3363 = vmatpush1.msra.mxu0 0.0
  %3364 = vmatprep.subr.mxu0 0.0
  %3365 = vmatpush1.msra.mxu0 0.0
  %3366 = vmatprep.subr.mxu0 0.0
  %3367 = vmatpush1.msra.mxu0 0.0
  %3368 = vmatprep.subr.mxu0 0.0
  %3369 = vmatpush1.msra.mxu0 0.0
  %3370 = vmatprep.subr.mxu0 0.0
  %3371 = vmatpush1.msra.mxu0 0.0
  %3372 = vmatprep.subr.mxu0 0.0
  %3373 = vmatpush1.msra.mxu0 0.0
  %3374 = vmatprep.subr.mxu0 0.0
  %3375 = vmatpush1.msra.mxu0 0.0
  %3376 = vmatprep.subr.mxu0 0.0
  %v3377 = vand.u32 %v3353, 4294901760
  %3378 = vmatpush1.msra.mxu0 %v3377
  %3379 = vmatprep.subr.mxu0 0.0
  %v3380 = vand.u32 %v3352, 4294901760
  %3381 = vmatpush1.msra.mxu0 %v3380
  %3382 = vmatprep.subr.mxu0 0.0
  %v3383 = vand.u32 %v3351, 4294901760
  %3384 = vmatpush1.msra.mxu0 %v3383
  %3385 = vmatprep.subr.mxu0 0.0
  %v3386 = vand.u32 %v3350, 4294901760
  %3387 = vmatpush1.msra.mxu0 %v3386
  %3388 = vmatprep.subr.mxu0 0.0
  %v3389 = vand.u32 %v3349, 4294901760
  %3390 = vmatpush1.msra.mxu0 %v3389
  %3391 = vmatprep.subr.mxu0 0.0
  %v3392 = vand.u32 %v3348, 4294901760
  %3393 = vmatpush1.msra.mxu0 %v3392
  %3394 = vmatprep.subr.mxu0 0.0
  %v3395 = vand.u32 %v3347, 4294901760
  %3396 = vmatpush1.msra.mxu0 %v3395
  %3397 = vmatprep.subr.mxu0 0.0
  %v3398 = vand.u32 %v3346, 4294901760
  %3399 = vmatpush1.msra.mxu0 %v3398
  %3400 = vmatprep.subr.mxu0 0.0
  %3401 = vmatpush2.msra.mxu0 0.0
  %3402 = vmatprep.subr.mxu0 0.0
  %3403 = vmatpush2.msra.mxu0 0.0
  %3404 = vmatprep.subr.mxu0 0.0
  %3405 = vmatpush2.msra.mxu0 0.0
  %3406 = vmatprep.subr.mxu0 0.0
  %3407 = vmatpush2.msra.mxu0 0.0
  %3408 = vmatprep.subr.mxu0 0.0
  %3409 = vmatpush2.msra.mxu0 0.0
  %3410 = vmatprep.subr.mxu0 0.0
  %3411 = vmatpush2.msra.mxu0 0.0
  %3412 = vmatprep.subr.mxu0 0.0
  %3413 = vmatpush2.msra.mxu0 0.0
  %3414 = vmatprep.subr.mxu0 0.0
  %3415 = vmatpush2.msra.mxu0 0.0
  %3416 = vmatprep.subr.mxu0 0.0
  %3417 = vmatpush2.msra.mxu0 0.0
  %3418 = vmatprep.subr.mxu0 0.0
  %3419 = vmatpush2.msra.mxu0 0.0
  %3420 = vmatprep.subr.mxu0 0.0
  %3421 = vmatpush2.msra.mxu0 0.0
  %3422 = vmatprep.subr.mxu0 0.0
  %3423 = vmatpush2.msra.mxu0 0.0
  %3424 = vmatprep.subr.mxu0 0.0
  %3425 = vmatpush2.msra.mxu0 0.0
  %3426 = vmatprep.subr.mxu0 0.0
  %3427 = vmatpush2.msra.mxu0 0.0
  %3428 = vmatprep.subr.mxu0 0.0
  %3429 = vmatpush2.msra.mxu0 0.0
  %3430 = vmatprep.subr.mxu0 0.0
  %3431 = vmatpush2.msra.mxu0 0.0
  %3432 = vmatprep.mubr.f32.mxu0 0.0
  %v3433 = vand.u32 %v3355, 4294901760
  %v3434 = vsub.f32 %v3355, %v3433
  %v3435 = vand.u32 %v3434, 4294901760
  %v3436 = vsub.f32 %v3434, %v3435
  %v3437 = vand.u32 %v3436, 4294901760
  %3438 = vmatmul.mubr.f32.gmra.mxu0 %v3437
  %v3439 = vpop.f32.mrf.mxu0
  %v3440 = vadd.f32 0.0, %v3439
  %v3441 = vpop.f32.mrf.mxu0
  %3442 = vmatprep.mubr.f32.mxu0 0.0
  %v3443 = vand.u32 %v3358, 4294901760
  %v3444 = vsub.f32 %v3358, %v3443
  %v3445 = vand.u32 %v3444, 4294901760
  %v3446 = vsub.f32 %v3444, %v3445
  %v3447 = vand.u32 %v3446, 4294901760
  %3448 = vmatmul.mubr.f32.gmra.mxu0 %v3447
  %v3449 = vpop.f32.mrf.mxu0
  %v3450 = vadd.f32 0.0, %v3449
  %v3451 = vpop.f32.mrf.mxu0
  %3452 = vdwg.mxu0
  %3453 = vmatprep.subr.mxu0 0.0
  %3454 = vmatpush1.msra.mxu0 0.0
  %3455 = vmatprep.subr.mxu0 0.0
  %3456 = vmatpush1.msra.mxu0 0.0
  %3457 = vmatprep.subr.mxu0 0.0
  %3458 = vmatpush1.msra.mxu0 0.0
  %3459 = vmatprep.subr.mxu0 0.0
  %3460 = vmatpush1.msra.mxu0 0.0
  %3461 = vmatprep.subr.mxu0 0.0
  %3462 = vmatpush1.msra.mxu0 0.0
  %3463 = vmatprep.subr.mxu0 0.0
  %3464 = vmatpush1.msra.mxu0 0.0
  %3465 = vmatprep.subr.mxu0 0.0
  %3466 = vmatpush1.msra.mxu0 0.0
  %3467 = vmatprep.subr.mxu0 0.0
  %3468 = vmatpush1.msra.mxu0 0.0
  %3469 = vmatprep.subr.mxu0 0.0
  %v3470 = vand.u32 %v3353, 4294901760
  %v3471 = vsub.f32 %v3353, %v3470
  %v3472 = vand.u32 %v3471, 4294901760
  %v3473 = vsub.f32 %v3471, %v3472
  %v3474 = vand.u32 %v3473, 4294901760
  %3475 = vmatpush1.msra.mxu0 %v3474
  %3476 = vmatprep.subr.mxu0 0.0
  %v3477 = vand.u32 %v3352, 4294901760
  %v3478 = vsub.f32 %v3352, %v3477
  %v3479 = vand.u32 %v3478, 4294901760
  %v3480 = vsub.f32 %v3478, %v3479
  %v3481 = vand.u32 %v3480, 4294901760
  %3482 = vmatpush1.msra.mxu0 %v3481
  %3483 = vmatprep.subr.mxu0 0.0
  %v3484 = vand.u32 %v3351, 4294901760
  %v3485 = vsub.f32 %v3351, %v3484
  %v3486 = vand.u32 %v3485, 4294901760
  %v3487 = vsub.f32 %v3485, %v3486
  %v3488 = vand.u32 %v3487, 4294901760
  %3489 = vmatpush1.msra.mxu0 %v3488
  %3490 = vmatprep.subr.mxu0 0.0
  %v3491 = vand.u32 %v3350, 4294901760
  %v3492 = vsub.f32 %v3350, %v3491
  %v3493 = vand.u32 %v3492, 4294901760
  %v3494 = vsub.f32 %v3492, %v3493
  %v3495 = vand.u32 %v3494, 4294901760
  %3496 = vmatpush1.msra.mxu0 %v3495
  %3497 = vmatprep.subr.mxu0 0.0
  %v3498 = vand.u32 %v3349, 4294901760
  %v3499 = vsub.f32 %v3349, %v3498
  %v3500 = vand.u32 %v3499, 4294901760
  %v3501 = vsub.f32 %v3499, %v3500
  %v3502 = vand.u32 %v3501, 4294901760
  %3503 = vmatpush1.msra.mxu0 %v3502
  %3504 = vmatprep.subr.mxu0 0.0
  %v3505 = vand.u32 %v3348, 4294901760
  %v3506 = vsub.f32 %v3348, %v3505
  %v3507 = vand.u32 %v3506, 4294901760
  %v3508 = vsub.f32 %v3506, %v3507
  %v3509 = vand.u32 %v3508, 4294901760
  %3510 = vmatpush1.msra.mxu0 %v3509
  %3511 = vmatprep.subr.mxu0 0.0
  %v3512 = vand.u32 %v3347, 4294901760
  %v3513 = vsub.f32 %v3347, %v3512
  %v3514 = vand.u32 %v3513, 4294901760
  %v3515 = vsub.f32 %v3513, %v3514
  %v3516 = vand.u32 %v3515, 4294901760
  %3517 = vmatpush1.msra.mxu0 %v3516
  %3518 = vmatprep.subr.mxu0 0.0
  %v3519 = vand.u32 %v3346, 4294901760
  %v3520 = vsub.f32 %v3346, %v3519
  %v3521 = vand.u32 %v3520, 4294901760
  %v3522 = vsub.f32 %v3520, %v3521
  %v3523 = vand.u32 %v3522, 4294901760
  %3524 = vmatpush1.msra.mxu0 %v3523
  %3525 = vmatprep.subr.mxu0 0.0
  %3526 = vmatpush2.msra.mxu0 0.0
  %3527 = vmatprep.subr.mxu0 0.0
  %3528 = vmatpush2.msra.mxu0 0.0
  %3529 = vmatprep.subr.mxu0 0.0
  %3530 = vmatpush2.msra.mxu0 0.0
  %3531 = vmatprep.subr.mxu0 0.0
  %3532 = vmatpush2.msra.mxu0 0.0
  %3533 = vmatprep.subr.mxu0 0.0
  %3534 = vmatpush2.msra.mxu0 0.0
  %3535 = vmatprep.subr.mxu0 0.0
  %3536 = vmatpush2.msra.mxu0 0.0
  %3537 = vmatprep.subr.mxu0 0.0
  %3538 = vmatpush2.msra.mxu0 0.0
  %3539 = vmatprep.subr.mxu0 0.0
  %3540 = vmatpush2.msra.mxu0 0.0
  %3541 = vmatprep.subr.mxu0 0.0
  %3542 = vmatpush2.msra.mxu0 0.0
  %3543 = vmatprep.subr.mxu0 0.0
  %3544 = vmatpush2.msra.mxu0 0.0
  %3545 = vmatprep.subr.mxu0 0.0
  %3546 = vmatpush2.msra.mxu0 0.0
  %3547 = vmatprep.subr.mxu0 0.0
  %3548 = vmatpush2.msra.mxu0 0.0
  %3549 = vmatprep.subr.mxu0 0.0
  %3550 = vmatpush2.msra.mxu0 0.0
  %3551 = vmatprep.subr.mxu0 0.0
  %3552 = vmatpush2.msra.mxu0 0.0
  %3553 = vmatprep.subr.mxu0 0.0
  %3554 = vmatpush2.msra.mxu0 0.0
  %3555 = vmatprep.subr.mxu0 0.0
  %3556 = vmatpush2.msra.mxu0 0.0
  %3557 = vmatprep.mubr.f32.mxu0 0.0
  %v3558 = vand.u32 %v3355, 4294901760
  %3559 = vmatmul.mubr.f32.gmra.mxu0 %v3558
  %v3560 = vpop.f32.mrf.mxu0
  %v3561 = vadd.f32 %v3440, %v3560
  %v3562 = vpop.f32.mrf.mxu0
  %3563 = vmatprep.mubr.f32.mxu0 0.0
  %v3564 = vand.u32 %v3358, 4294901760
  %3565 = vmatmul.mubr.f32.gmra.mxu0 %v3564
  %v3566 = vpop.f32.mrf.mxu0
  %v3567 = vadd.f32 %v3450, %v3566
  %v3568 = vpop.f32.mrf.mxu0
  %3569 = vdwg.mxu0
  %3570 = vmatprep.subr.mxu0 0.0
  %3571 = vmatpush1.msra.mxu0 0.0
  %3572 = vmatprep.subr.mxu0 0.0
  %3573 = vmatpush1.msra.mxu0 0.0
  %3574 = vmatprep.subr.mxu0 0.0
  %3575 = vmatpush1.msra.mxu0 0.0
  %3576 = vmatprep.subr.mxu0 0.0
  %3577 = vmatpush1.msra.mxu0 0.0
  %3578 = vmatprep.subr.mxu0 0.0
  %3579 = vmatpush1.msra.mxu0 0.0
  %3580 = vmatprep.subr.mxu0 0.0
  %3581 = vmatpush1.msra.mxu0 0.0
  %3582 = vmatprep.subr.mxu0 0.0
  %3583 = vmatpush1.msra.mxu0 0.0
  %3584 = vmatprep.subr.mxu0 0.0
  %3585 = vmatpush1.msra.mxu0 0.0
  %3586 = vmatprep.subr.mxu0 0.0
  %v3587 = vand.u32 %v3353, 4294901760
  %v3588 = vsub.f32 %v3353, %v3587
  %3589 = vmatpush1.msra.mxu0 %v3588
  %3590 = vmatprep.subr.mxu0 0.0
  %v3591 = vand.u32 %v3352, 4294901760
  %v3592 = vsub.f32 %v3352, %v3591
  %3593 = vmatpush1.msra.mxu0 %v3592
  %3594 = vmatprep.subr.mxu0 0.0
  %v3595 = vand.u32 %v3351, 4294901760
  %v3596 = vsub.f32 %v3351, %v3595
  %3597 = vmatpush1.msra.mxu0 %v3596
  %3598 = vmatprep.subr.mxu0 0.0
  %v3599 = vand.u32 %v3350, 4294901760
  %v3600 = vsub.f32 %v3350, %v3599
  %3601 = vmatpush1.msra.mxu0 %v3600
  %3602 = vmatprep.subr.mxu0 0.0
  %v3603 = vand.u32 %v3349, 4294901760
  %v3604 = vsub.f32 %v3349, %v3603
  %3605 = vmatpush1.msra.mxu0 %v3604
  %3606 = vmatprep.subr.mxu0 0.0
  %v3607 = vand.u32 %v3348, 4294901760
  %v3608 = vsub.f32 %v3348, %v3607
  %3609 = vmatpush1.msra.mxu0 %v3608
  %3610 = vmatprep.subr.mxu0 0.0
  %v3611 = vand.u32 %v3347, 4294901760
  %v3612 = vsub.f32 %v3347, %v3611
  %3613 = vmatpush1.msra.mxu0 %v3612
  %3614 = vmatprep.subr.mxu0 0.0
  %v3615 = vand.u32 %v3346, 4294901760
  %v3616 = vsub.f32 %v3346, %v3615
  %3617 = vmatpush1.msra.mxu0 %v3616
  %3618 = vmatprep.subr.mxu0 0.0
  %3619 = vmatpush2.msra.mxu0 0.0
  %3620 = vmatprep.subr.mxu0 0.0
  %3621 = vmatpush2.msra.mxu0 0.0
  %3622 = vmatprep.subr.mxu0 0.0
  %3623 = vmatpush2.msra.mxu0 0.0
  %3624 = vmatprep.subr.mxu0 0.0
  %3625 = vmatpush2.msra.mxu0 0.0
  %3626 = vmatprep.subr.mxu0 0.0
  %3627 = vmatpush2.msra.mxu0 0.0
  %3628 = vmatprep.subr.mxu0 0.0
  %3629 = vmatpush2.msra.mxu0 0.0
  %3630 = vmatprep.subr.mxu0 0.0
  %3631 = vmatpush2.msra.mxu0 0.0
  %3632 = vmatprep.subr.mxu0 0.0
  %3633 = vmatpush2.msra.mxu0 0.0
  %3634 = vmatprep.subr.mxu0 0.0
  %3635 = vmatpush2.msra.mxu0 0.0
  %3636 = vmatprep.subr.mxu0 0.0
  %3637 = vmatpush2.msra.mxu0 0.0
  %3638 = vmatprep.subr.mxu0 0.0
  %3639 = vmatpush2.msra.mxu0 0.0
  %3640 = vmatprep.subr.mxu0 0.0
  %3641 = vmatpush2.msra.mxu0 0.0
  %3642 = vmatprep.subr.mxu0 0.0
  %3643 = vmatpush2.msra.mxu0 0.0
  %3644 = vmatprep.subr.mxu0 0.0
  %3645 = vmatpush2.msra.mxu0 0.0
  %3646 = vmatprep.subr.mxu0 0.0
  %3647 = vmatpush2.msra.mxu0 0.0
  %3648 = vmatprep.subr.mxu0 0.0
  %3649 = vmatpush2.msra.mxu0 0.0
  %3650 = vmatprep.mubr.f32.mxu0 0.0
  %v3651 = vand.u32 %v3355, 4294901760
  %v3652 = vsub.f32 %v3355, %v3651
  %3653 = vmatmul.mubr.f32.gmra.mxu0 %v3652
  %v3654 = vpop.f32.mrf.mxu0
  %v3655 = vadd.f32 %v3561, %v3654
  %v3656 = vpop.f32.mrf.mxu0
  %3657 = vmatprep.mubr.f32.mxu0 0.0
  %v3658 = vand.u32 %v3358, 4294901760
  %v3659 = vsub.f32 %v3358, %v3658
  %3660 = vmatmul.mubr.f32.gmra.mxu0 %v3659
  %v3661 = vpop.f32.mrf.mxu0
  %v3662 = vadd.f32 %v3567, %v3661
  %v3663 = vpop.f32.mrf.mxu0
  %3664 = vdwg.mxu0
  %3665 = vmatprep.subr.mxu0 0.0
  %3666 = vmatpush1.msra.mxu0 0.0
  %3667 = vmatprep.subr.mxu0 0.0
  %3668 = vmatpush1.msra.mxu0 0.0
  %3669 = vmatprep.subr.mxu0 0.0
  %3670 = vmatpush1.msra.mxu0 0.0
  %3671 = vmatprep.subr.mxu0 0.0
  %3672 = vmatpush1.msra.mxu0 0.0
  %3673 = vmatprep.subr.mxu0 0.0
  %3674 = vmatpush1.msra.mxu0 0.0
  %3675 = vmatprep.subr.mxu0 0.0
  %3676 = vmatpush1.msra.mxu0 0.0
  %3677 = vmatprep.subr.mxu0 0.0
  %3678 = vmatpush1.msra.mxu0 0.0
  %3679 = vmatprep.subr.mxu0 0.0
  %3680 = vmatpush1.msra.mxu0 0.0
  %3681 = vmatprep.subr.mxu0 0.0
  %v3682 = vand.u32 %v3353, 4294901760
  %3683 = vmatpush1.msra.mxu0 %v3682
  %3684 = vmatprep.subr.mxu0 0.0
  %v3685 = vand.u32 %v3352, 4294901760
  %3686 = vmatpush1.msra.mxu0 %v3685
  %3687 = vmatprep.subr.mxu0 0.0
  %v3688 = vand.u32 %v3351, 4294901760
  %3689 = vmatpush1.msra.mxu0 %v3688
  %3690 = vmatprep.subr.mxu0 0.0
  %v3691 = vand.u32 %v3350, 4294901760
  %3692 = vmatpush1.msra.mxu0 %v3691
  %3693 = vmatprep.subr.mxu0 0.0
  %v3694 = vand.u32 %v3349, 4294901760
  %3695 = vmatpush1.msra.mxu0 %v3694
  %3696 = vmatprep.subr.mxu0 0.0
  %v3697 = vand.u32 %v3348, 4294901760
  %3698 = vmatpush1.msra.mxu0 %v3697
  %3699 = vmatprep.subr.mxu0 0.0
  %v3700 = vand.u32 %v3347, 4294901760
  %3701 = vmatpush1.msra.mxu0 %v3700
  %3702 = vmatprep.subr.mxu0 0.0
  %v3703 = vand.u32 %v3346, 4294901760
  %3704 = vmatpush1.msra.mxu0 %v3703
  %3705 = vmatprep.subr.mxu0 0.0
  %3706 = vmatpush2.msra.mxu0 0.0
  %3707 = vmatprep.subr.mxu0 0.0
  %3708 = vmatpush2.msra.mxu0 0.0
  %3709 = vmatprep.subr.mxu0 0.0
  %3710 = vmatpush2.msra.mxu0 0.0
  %3711 = vmatprep.subr.mxu0 0.0
  %3712 = vmatpush2.msra.mxu0 0.0
  %3713 = vmatprep.subr.mxu0 0.0
  %3714 = vmatpush2.msra.mxu0 0.0
  %3715 = vmatprep.subr.mxu0 0.0
  %3716 = vmatpush2.msra.mxu0 0.0
  %3717 = vmatprep.subr.mxu0 0.0
  %3718 = vmatpush2.msra.mxu0 0.0
  %3719 = vmatprep.subr.mxu0 0.0
  %3720 = vmatpush2.msra.mxu0 0.0
  %3721 = vmatprep.subr.mxu0 0.0
  %3722 = vmatpush2.msra.mxu0 0.0
  %3723 = vmatprep.subr.mxu0 0.0
  %3724 = vmatpush2.msra.mxu0 0.0
  %3725 = vmatprep.subr.mxu0 0.0
  %3726 = vmatpush2.msra.mxu0 0.0
  %3727 = vmatprep.subr.mxu0 0.0
  %3728 = vmatpush2.msra.mxu0 0.0
  %3729 = vmatprep.subr.mxu0 0.0
  %3730 = vmatpush2.msra.mxu0 0.0
  %3731 = vmatprep.subr.mxu0 0.0
  %3732 = vmatpush2.msra.mxu0 0.0
  %3733 = vmatprep.subr.mxu0 0.0
  %3734 = vmatpush2.msra.mxu0 0.0
  %3735 = vmatprep.subr.mxu0 0.0
  %3736 = vmatpush2.msra.mxu0 0.0
  %3737 = vmatprep.mubr.f32.mxu0 0.0
  %v3738 = vand.u32 %v3355, 4294901760
  %v3739 = vsub.f32 %v3355, %v3738
  %v3740 = vand.u32 %v3739, 4294901760
  %3741 = vmatmul.mubr.f32.gmra.mxu0 %v3740
  %v3742 = vpop.f32.mrf.mxu0
  %v3743 = vadd.f32 %v3655, %v3742
  %v3744 = vpop.f32.mrf.mxu0
  %3745 = vmatprep.mubr.f32.mxu0 0.0
  %v3746 = vand.u32 %v3358, 4294901760
  %v3747 = vsub.f32 %v3358, %v3746
  %v3748 = vand.u32 %v3747, 4294901760
  %3749 = vmatmul.mubr.f32.gmra.mxu0 %v3748
  %v3750 = vpop.f32.mrf.mxu0
  %v3751 = vadd.f32 %v3662, %v3750
  %v3752 = vpop.f32.mrf.mxu0
  %3753 = vdwg.mxu0
  %3754 = vmatprep.subr.mxu0 0.0
  %3755 = vmatpush1.msra.mxu0 0.0
  %3756 = vmatprep.subr.mxu0 0.0
  %3757 = vmatpush1.msra.mxu0 0.0
  %3758 = vmatprep.subr.mxu0 0.0
  %3759 = vmatpush1.msra.mxu0 0.0
  %3760 = vmatprep.subr.mxu0 0.0
  %3761 = vmatpush1.msra.mxu0 0.0
  %3762 = vmatprep.subr.mxu0 0.0
  %3763 = vmatpush1.msra.mxu0 0.0
  %3764 = vmatprep.subr.mxu0 0.0
  %3765 = vmatpush1.msra.mxu0 0.0
  %3766 = vmatprep.subr.mxu0 0.0
  %3767 = vmatpush1.msra.mxu0 0.0
  %3768 = vmatprep.subr.mxu0 0.0
  %3769 = vmatpush1.msra.mxu0 0.0
  %3770 = vmatprep.subr.mxu0 0.0
  %v3771 = vand.u32 %v3353, 4294901760
  %v3772 = vsub.f32 %v3353, %v3771
  %v3773 = vand.u32 %v3772, 4294901760
  %3774 = vmatpush1.msra.mxu0 %v3773
  %3775 = vmatprep.subr.mxu0 0.0
  %v3776 = vand.u32 %v3352, 4294901760
  %v3777 = vsub.f32 %v3352, %v3776
  %v3778 = vand.u32 %v3777, 4294901760
  %3779 = vmatpush1.msra.mxu0 %v3778
  %3780 = vmatprep.subr.mxu0 0.0
  %v3781 = vand.u32 %v3351, 4294901760
  %v3782 = vsub.f32 %v3351, %v3781
  %v3783 = vand.u32 %v3782, 4294901760
  %3784 = vmatpush1.msra.mxu0 %v3783
  %3785 = vmatprep.subr.mxu0 0.0
  %v3786 = vand.u32 %v3350, 4294901760
  %v3787 = vsub.f32 %v3350, %v3786
  %v3788 = vand.u32 %v3787, 4294901760
  %3789 = vmatpush1.msra.mxu0 %v3788
  %3790 = vmatprep.subr.mxu0 0.0
  %v3791 = vand.u32 %v3349, 4294901760
  %v3792 = vsub.f32 %v3349, %v3791
  %v3793 = vand.u32 %v3792, 4294901760
  %3794 = vmatpush1.msra.mxu0 %v3793
  %3795 = vmatprep.subr.mxu0 0.0
  %v3796 = vand.u32 %v3348, 4294901760
  %v3797 = vsub.f32 %v3348, %v3796
  %v3798 = vand.u32 %v3797, 4294901760
  %3799 = vmatpush1.msra.mxu0 %v3798
  %3800 = vmatprep.subr.mxu0 0.0
  %v3801 = vand.u32 %v3347, 4294901760
  %v3802 = vsub.f32 %v3347, %v3801
  %v3803 = vand.u32 %v3802, 4294901760
  %3804 = vmatpush1.msra.mxu0 %v3803
  %3805 = vmatprep.subr.mxu0 0.0
  %v3806 = vand.u32 %v3346, 4294901760
  %v3807 = vsub.f32 %v3346, %v3806
  %v3808 = vand.u32 %v3807, 4294901760
  %3809 = vmatpush1.msra.mxu0 %v3808
  %3810 = vmatprep.subr.mxu0 0.0
  %3811 = vmatpush2.msra.mxu0 0.0
  %3812 = vmatprep.subr.mxu0 0.0
  %3813 = vmatpush2.msra.mxu0 0.0
  %3814 = vmatprep.subr.mxu0 0.0
  %3815 = vmatpush2.msra.mxu0 0.0
  %3816 = vmatprep.subr.mxu0 0.0
  %3817 = vmatpush2.msra.mxu0 0.0
  %3818 = vmatprep.subr.mxu0 0.0
  %3819 = vmatpush2.msra.mxu0 0.0
  %3820 = vmatprep.subr.mxu0 0.0
  %3821 = vmatpush2.msra.mxu0 0.0
  %3822 = vmatprep.subr.mxu0 0.0
  %3823 = vmatpush2.msra.mxu0 0.0
  %3824 = vmatprep.subr.mxu0 0.0
  %3825 = vmatpush2.msra.mxu0 0.0
  %3826 = vmatprep.subr.mxu0 0.0
  %3827 = vmatpush2.msra.mxu0 0.0
  %3828 = vmatprep.subr.mxu0 0.0
  %3829 = vmatpush2.msra.mxu0 0.0
  %3830 = vmatprep.subr.mxu0 0.0
  %3831 = vmatpush2.msra.mxu0 0.0
  %3832 = vmatprep.subr.mxu0 0.0
  %3833 = vmatpush2.msra.mxu0 0.0
  %3834 = vmatprep.subr.mxu0 0.0
  %3835 = vmatpush2.msra.mxu0 0.0
  %3836 = vmatprep.subr.mxu0 0.0
  %3837 = vmatpush2.msra.mxu0 0.0
  %3838 = vmatprep.subr.mxu0 0.0
  %3839 = vmatpush2.msra.mxu0 0.0
  %3840 = vmatprep.subr.mxu0 0.0
  %3841 = vmatpush2.msra.mxu0 0.0
  %3842 = vmatprep.mubr.f32.mxu0 0.0
  %v3843 = vand.u32 %v3355, 4294901760
  %3844 = vmatmul.mubr.f32.gmra.mxu0 %v3843
  %v3845 = vpop.f32.mrf.mxu0
  %v3846 = vadd.f32 %v3743, %v3845
  %v3847 = vpop.f32.mrf.mxu0
  %3848 = vmatprep.mubr.f32.mxu0 0.0
  %v3849 = vand.u32 %v3358, 4294901760
  %3850 = vmatmul.mubr.f32.gmra.mxu0 %v3849
  %v3851 = vpop.f32.mrf.mxu0
  %v3852 = vadd.f32 %v3751, %v3851
  %v3853 = vpop.f32.mrf.mxu0
  %3854 = vdwg.mxu0
  %3855 = vmatprep.subr.mxu0 0.0
  %3856 = vmatpush1.msra.mxu0 0.0
  %3857 = vmatprep.subr.mxu0 0.0
  %3858 = vmatpush1.msra.mxu0 0.0
  %3859 = vmatprep.subr.mxu0 0.0
  %3860 = vmatpush1.msra.mxu0 0.0
  %3861 = vmatprep.subr.mxu0 0.0
  %3862 = vmatpush1.msra.mxu0 0.0
  %3863 = vmatprep.subr.mxu0 0.0
  %3864 = vmatpush1.msra.mxu0 0.0
  %3865 = vmatprep.subr.mxu0 0.0
  %3866 = vmatpush1.msra.mxu0 0.0
  %3867 = vmatprep.subr.mxu0 0.0
  %3868 = vmatpush1.msra.mxu0 0.0
  %3869 = vmatprep.subr.mxu0 0.0
  %3870 = vmatpush1.msra.mxu0 0.0
  %3871 = vmatprep.subr.mxu0 0.0
  %v3872 = vand.u32 %v3353, 4294901760
  %3873 = vmatpush1.msra.mxu0 %v3872
  %3874 = vmatprep.subr.mxu0 0.0
  %v3875 = vand.u32 %v3352, 4294901760
  %3876 = vmatpush1.msra.mxu0 %v3875
  %3877 = vmatprep.subr.mxu0 0.0
  %v3878 = vand.u32 %v3351, 4294901760
  %3879 = vmatpush1.msra.mxu0 %v3878
  %3880 = vmatprep.subr.mxu0 0.0
  %v3881 = vand.u32 %v3350, 4294901760
  %3882 = vmatpush1.msra.mxu0 %v3881
  %3883 = vmatprep.subr.mxu0 0.0
  %v3884 = vand.u32 %v3349, 4294901760
  %3885 = vmatpush1.msra.mxu0 %v3884
  %3886 = vmatprep.subr.mxu0 0.0
  %v3887 = vand.u32 %v3348, 4294901760
  %3888 = vmatpush1.msra.mxu0 %v3887
  %3889 = vmatprep.subr.mxu0 0.0
  %v3890 = vand.u32 %v3347, 4294901760
  %3891 = vmatpush1.msra.mxu0 %v3890
  %3892 = vmatprep.subr.mxu0 0.0
  %v3893 = vand.u32 %v3346, 4294901760
  %3894 = vmatpush1.msra.mxu0 %v3893
  %3895 = vmatprep.subr.mxu0 0.0
  %3896 = vmatpush2.msra.mxu0 0.0
  %3897 = vmatprep.subr.mxu0 0.0
  %3898 = vmatpush2.msra.mxu0 0.0
  %3899 = vmatprep.subr.mxu0 0.0
  %3900 = vmatpush2.msra.mxu0 0.0
  %3901 = vmatprep.subr.mxu0 0.0
  %3902 = vmatpush2.msra.mxu0 0.0
  %3903 = vmatprep.subr.mxu0 0.0
  %3904 = vmatpush2.msra.mxu0 0.0
  %3905 = vmatprep.subr.mxu0 0.0
  %3906 = vmatpush2.msra.mxu0 0.0
  %3907 = vmatprep.subr.mxu0 0.0
  %3908 = vmatpush2.msra.mxu0 0.0
  %3909 = vmatprep.subr.mxu0 0.0
  %3910 = vmatpush2.msra.mxu0 0.0
  %3911 = vmatprep.subr.mxu0 0.0
  %3912 = vmatpush2.msra.mxu0 0.0
  %3913 = vmatprep.subr.mxu0 0.0
  %3914 = vmatpush2.msra.mxu0 0.0
  %3915 = vmatprep.subr.mxu0 0.0
  %3916 = vmatpush2.msra.mxu0 0.0
  %3917 = vmatprep.subr.mxu0 0.0
  %3918 = vmatpush2.msra.mxu0 0.0
  %3919 = vmatprep.subr.mxu0 0.0
  %3920 = vmatpush2.msra.mxu0 0.0
  %3921 = vmatprep.subr.mxu0 0.0
  %3922 = vmatpush2.msra.mxu0 0.0
  %3923 = vmatprep.subr.mxu0 0.0
  %3924 = vmatpush2.msra.mxu0 0.0
  %3925 = vmatprep.subr.mxu0 0.0
  %3926 = vmatpush2.msra.mxu0 0.0
  %3927 = vmatprep.mubr.f32.mxu0 0.0
  %v3928 = vand.u32 %v3355, 4294901760
  %3929 = vmatmul.mubr.f32.gmra.mxu0 %v3928
  %v3930 = vpop.f32.mrf.mxu0
  %v3931 = vadd.f32 %v3846, %v3930
  %v3932 = vpop.f32.mrf.mxu0
  %3933 = vmatprep.mubr.f32.mxu0 0.0
  %v3934 = vand.u32 %v3358, 4294901760
  %3935 = vmatmul.mubr.f32.gmra.mxu0 %v3934
  %v3936 = vpop.f32.mrf.mxu0
  %v3937 = vadd.f32 %v3852, %v3936
  %v3938 = vpop.f32.mrf.mxu0
  %3939 = vdwg.mxu0
  %v3940 = vld [vmem:[%s23] sm:$0x1]
  %v3941 = vld [vmem:[%s25] sm:$0x1]
  %vm3942 = vcmask 261120
  %v3943 = vsel %vm3942, %v3931, 0.0
  %v3944 = vsel %vm3942, %v3937, 0.0
  %v3945 = vadd.f32 %v3943, %v3944
  %v3946 = vrot.slane %v3945, 4
  %v3947 = vadd.f32 %v3945, %v3946
  %v3948 = vrot.slane %v3947, 2
  %v3949 = vadd.f32 %v3947, %v3948
  %v3950 = vrot.slane %v3949, 1
  %v3951 = vadd.f32 %v3949, %v3950
  %v3952 = vmul.f32 %v3951, 0.0625
  %v3953 = vsub.f32 %v3931, %v3952
  %v3954 = vsub.f32 %v3937, %v3952
  %v3955 = vmul.f32 %v3953, %v3953
  %v3956 = vmul.f32 %v3954, %v3954
  %v3957 = vsel %vm3942, %v3955, 0.0
  %v3958 = vsel %vm3942, %v3956, 0.0
  %v3959 = vadd.f32 %v3957, %v3958
  %v3960 = vrot.slane %v3959, 4
  %v3961 = vadd.f32 %v3959, %v3960
  %v3962 = vrot.slane %v3961, 2
  %v3963 = vadd.f32 %v3961, %v3962
  %v3964 = vrot.slane %v3963, 1
  %v3965 = vadd.f32 %v3963, %v3964
  %v3966 = vmul.f32 %v3965, 0.0625
  %v3967 = vadd.f32 %v3966, 1e-05
  %v3968 = vrsqrt.pop %v3967
  %v3969 = vmul.f32 %v3953, %v3968
  %v3970 = vmul.f32 %v3954, %v3968
  %v3972 = vlaneseq
  %v3973 = vshrl.u32 %v3972, 7
  %v3974 = vsub.s32 0, %v3973
  %v3975 = vrot.slane %v3940, %v3974
  %v3977 = vmul.f32 %v3969, %v3975
  %v3978 = vmul.f32 %v3970, %v3975
  %v3980 = vlaneseq
  %v3981 = vshrl.u32 %v3980, 7
  %v3982 = vsub.s32 0, %v3981
  %v3983 = vrot.slane %v3941, %v3982
  %v3985 = vadd.f32 %v3977, %v3983
  %v3986 = vadd.f32 %v3978, %v3983
  %v3987 = vmax.f32 %v3985, 0.0
  %v3988 = vmax.f32 %v3986, 0.0
  loop: start=0, step=1, limit=16
  $region173: #{tpu_custom_call.1} parent=0 // loop_pre_header
    _
  $region174: #{tpu_custom_call.1} parent=0 // loop_header
    %s3990 = sphi 0, %s3994
    %p3991 = scmp.ge.s32.totalorder %s3990, 16
    %v3995 = vphi %v3987, %v5136
    %v3996 = vphi %v3988, %v5137
  $region175: #{tpu_custom_call.1} parent=0 // loop_header_branch
    %3993 = sbr.rel (%p3991) target = $region179
  $region176: #{tpu_custom_call.1} parent=0 // loop_body
    %s3997 = smul.u32 %s3990, 32
    %s3998 = scalar_lea.vmem %s27, %s3997
    %v3999 = vld [vmem:[%s3998] sm:$0xff]
    %v4000 = vld [vmem:[%s3998 + $0x8] sm:$0xff]
    %v4001 = vld [vmem:[%s3998 + $0x10] sm:$0xff]
    %v4002 = vld [vmem:[%s3998 + $0x18] sm:$0xff]
    %v4004 = vsel %vm3942, %v3995, 0
    %v4007 = vsel %vm3942, %v3996, 0
    %4009 = vmatprep.subr.mxu0 0.0
    %4010 = vmatpush1.msra.mxu0 0.0
    %4011 = vmatprep.subr.mxu0 0.0
    %4012 = vmatpush1.msra.mxu0 0.0
    %4013 = vmatprep.subr.mxu0 0.0
    %4014 = vmatpush1.msra.mxu0 0.0
    %4015 = vmatprep.subr.mxu0 0.0
    %4016 = vmatpush1.msra.mxu0 0.0
    %4017 = vmatprep.subr.mxu0 0.0
    %4018 = vmatpush1.msra.mxu0 0.0
    %4019 = vmatprep.subr.mxu0 0.0
    %4020 = vmatpush1.msra.mxu0 0.0
    %4021 = vmatprep.subr.mxu0 0.0
    %4022 = vmatpush1.msra.mxu0 0.0
    %4023 = vmatprep.subr.mxu0 0.0
    %4024 = vmatpush1.msra.mxu0 0.0
    %4025 = vmatprep.subr.mxu0 0.0
    %4026 = vmatpush1.msra.mxu0 0.0
    %4027 = vmatprep.subr.mxu0 0.0
    %4028 = vmatpush1.msra.mxu0 0.0
    %4029 = vmatprep.subr.mxu0 0.0
    %4030 = vmatpush1.msra.mxu0 0.0
    %4031 = vmatprep.subr.mxu0 0.0
    %4032 = vmatpush1.msra.mxu0 0.0
    %4033 = vmatprep.subr.mxu0 0.0
    %v4034 = vand.u32 %v4002, 4294901760
    %4035 = vmatpush1.msra.mxu0 %v4034
    %4036 = vmatprep.subr.mxu0 0.0
    %v4037 = vand.u32 %v4001, 4294901760
    %4038 = vmatpush1.msra.mxu0 %v4037
    %4039 = vmatprep.subr.mxu0 0.0
    %v4040 = vand.u32 %v4000, 4294901760
    %4041 = vmatpush1.msra.mxu0 %v4040
    %4042 = vmatprep.subr.mxu0 0.0
    %v4043 = vand.u32 %v3999, 4294901760
    %4044 = vmatpush1.msra.mxu0 %v4043
    %4045 = vmatprep.subr.mxu0 0.0
    %4046 = vmatpush2.msra.mxu0 0.0
    %4047 = vmatprep.subr.mxu0 0.0
    %4048 = vmatpush2.msra.mxu0 0.0
    %4049 = vmatprep.subr.mxu0 0.0
    %4050 = vmatpush2.msra.mxu0 0.0
    %4051 = vmatprep.subr.mxu0 0.0
    %4052 = vmatpush2.msra.mxu0 0.0
    %4053 = vmatprep.subr.mxu0 0.0
    %4054 = vmatpush2.msra.mxu0 0.0
    %4055 = vmatprep.subr.mxu0 0.0
    %4056 = vmatpush2.msra.mxu0 0.0
    %4057 = vmatprep.subr.mxu0 0.0
    %4058 = vmatpush2.msra.mxu0 0.0
    %4059 = vmatprep.subr.mxu0 0.0
    %4060 = vmatpush2.msra.mxu0 0.0
    %4061 = vmatprep.subr.mxu0 0.0
    %4062 = vmatpush2.msra.mxu0 0.0
    %4063 = vmatprep.subr.mxu0 0.0
    %4064 = vmatpush2.msra.mxu0 0.0
    %4065 = vmatprep.subr.mxu0 0.0
    %4066 = vmatpush2.msra.mxu0 0.0
    %4067 = vmatprep.subr.mxu0 0.0
    %4068 = vmatpush2.msra.mxu0 0.0
    %4069 = vmatprep.subr.mxu0 0.0
    %4070 = vmatpush2.msra.mxu0 0.0
    %4071 = vmatprep.subr.mxu0 0.0
    %4072 = vmatpush2.msra.mxu0 0.0
    %4073 = vmatprep.subr.mxu0 0.0
    %4074 = vmatpush2.msra.mxu0 0.0
    %4075 = vmatprep.subr.mxu0 0.0
    %4076 = vmatpush2.msra.mxu0 0.0
    %4077 = vmatprep.mubr.f32.mxu0 0.0
    %v4078 = vand.u32 %v4004, 4294901760
    %v4079 = vsub.f32 %v4004, %v4078
    %v4080 = vand.u32 %v4079, 4294901760
    %v4081 = vsub.f32 %v4079, %v4080
    %v4082 = vand.u32 %v4081, 4294901760
    %4083 = vmatmul.mubr.f32.gmra.mxu0 %v4082
    %v4084 = vpop.f32.mrf.mxu0
    %v4085 = vadd.f32 0.0, %v4084
    %v4086 = vpop.f32.mrf.mxu0
    %4087 = vmatprep.mubr.f32.mxu0 0.0
    %v4088 = vand.u32 %v4007, 4294901760
    %v4089 = vsub.f32 %v4007, %v4088
    %v4090 = vand.u32 %v4089, 4294901760
    %v4091 = vsub.f32 %v4089, %v4090
    %v4092 = vand.u32 %v4091, 4294901760
    %4093 = vmatmul.mubr.f32.gmra.mxu0 %v4092
    %v4094 = vpop.f32.mrf.mxu0
    %v4095 = vadd.f32 0.0, %v4094
    %v4096 = vpop.f32.mrf.mxu0
    %4097 = vdwg.mxu0
    %4098 = vmatprep.subr.mxu0 0.0
    %4099 = vmatpush1.msra.mxu0 0.0
    %4100 = vmatprep.subr.mxu0 0.0
    %4101 = vmatpush1.msra.mxu0 0.0
    %4102 = vmatprep.subr.mxu0 0.0
    %4103 = vmatpush1.msra.mxu0 0.0
    %4104 = vmatprep.subr.mxu0 0.0
    %4105 = vmatpush1.msra.mxu0 0.0
    %4106 = vmatprep.subr.mxu0 0.0
    %4107 = vmatpush1.msra.mxu0 0.0
    %4108 = vmatprep.subr.mxu0 0.0
    %4109 = vmatpush1.msra.mxu0 0.0
    %4110 = vmatprep.subr.mxu0 0.0
    %4111 = vmatpush1.msra.mxu0 0.0
    %4112 = vmatprep.subr.mxu0 0.0
    %4113 = vmatpush1.msra.mxu0 0.0
    %4114 = vmatprep.subr.mxu0 0.0
    %4115 = vmatpush1.msra.mxu0 0.0
    %4116 = vmatprep.subr.mxu0 0.0
    %4117 = vmatpush1.msra.mxu0 0.0
    %4118 = vmatprep.subr.mxu0 0.0
    %4119 = vmatpush1.msra.mxu0 0.0
    %4120 = vmatprep.subr.mxu0 0.0
    %4121 = vmatpush1.msra.mxu0 0.0
    %4122 = vmatprep.subr.mxu0 0.0
    %v4123 = vand.u32 %v4002, 4294901760
    %v4124 = vsub.f32 %v4002, %v4123
    %v4125 = vand.u32 %v4124, 4294901760
    %v4126 = vsub.f32 %v4124, %v4125
    %v4127 = vand.u32 %v4126, 4294901760
    %4128 = vmatpush1.msra.mxu0 %v4127
    %4129 = vmatprep.subr.mxu0 0.0
    %v4130 = vand.u32 %v4001, 4294901760
    %v4131 = vsub.f32 %v4001, %v4130
    %v4132 = vand.u32 %v4131, 4294901760
    %v4133 = vsub.f32 %v4131, %v4132
    %v4134 = vand.u32 %v4133, 4294901760
    %4135 = vmatpush1.msra.mxu0 %v4134
    %4136 = vmatprep.subr.mxu0 0.0
    %v4137 = vand.u32 %v4000, 4294901760
    %v4138 = vsub.f32 %v4000, %v4137
    %v4139 = vand.u32 %v4138, 4294901760
    %v4140 = vsub.f32 %v4138, %v4139
    %v4141 = vand.u32 %v4140, 4294901760
    %4142 = vmatpush1.msra.mxu0 %v4141
    %4143 = vmatprep.subr.mxu0 0.0
    %v4144 = vand.u32 %v3999, 4294901760
    %v4145 = vsub.f32 %v3999, %v4144
    %v4146 = vand.u32 %v4145, 4294901760
    %v4147 = vsub.f32 %v4145, %v4146
    %v4148 = vand.u32 %v4147, 4294901760
    %4149 = vmatpush1.msra.mxu0 %v4148
    %4150 = vmatprep.subr.mxu0 0.0
    %4151 = vmatpush2.msra.mxu0 0.0
    %4152 = vmatprep.subr.mxu0 0.0
    %4153 = vmatpush2.msra.mxu0 0.0
    %4154 = vmatprep.subr.mxu0 0.0
    %4155 = vmatpush2.msra.mxu0 0.0
    %4156 = vmatprep.subr.mxu0 0.0
    %4157 = vmatpush2.msra.mxu0 0.0
    %4158 = vmatprep.subr.mxu0 0.0
    %4159 = vmatpush2.msra.mxu0 0.0
    %4160 = vmatprep.subr.mxu0 0.0
    %4161 = vmatpush2.msra.mxu0 0.0
    %4162 = vmatprep.subr.mxu0 0.0
    %4163 = vmatpush2.msra.mxu0 0.0
    %4164 = vmatprep.subr.mxu0 0.0
    %4165 = vmatpush2.msra.mxu0 0.0
    %4166 = vmatprep.subr.mxu0 0.0
    %4167 = vmatpush2.msra.mxu0 0.0
    %4168 = vmatprep.subr.mxu0 0.0
    %4169 = vmatpush2.msra.mxu0 0.0
    %4170 = vmatprep.subr.mxu0 0.0
    %4171 = vmatpush2.msra.mxu0 0.0
    %4172 = vmatprep.subr.mxu0 0.0
    %4173 = vmatpush2.msra.mxu0 0.0
    %4174 = vmatprep.subr.mxu0 0.0
    %4175 = vmatpush2.msra.mxu0 0.0
    %4176 = vmatprep.subr.mxu0 0.0
    %4177 = vmatpush2.msra.mxu0 0.0
    %4178 = vmatprep.subr.mxu0 0.0
    %4179 = vmatpush2.msra.mxu0 0.0
    %4180 = vmatprep.subr.mxu0 0.0
    %4181 = vmatpush2.msra.mxu0 0.0
    %4182 = vmatprep.mubr.f32.mxu0 0.0
    %v4183 = vand.u32 %v4004, 4294901760
    %4184 = vmatmul.mubr.f32.gmra.mxu0 %v4183
    %v4185 = vpop.f32.mrf.mxu0
    %v4186 = vadd.f32 %v4085, %v4185
    %v4187 = vpop.f32.mrf.mxu0
    %4188 = vmatprep.mubr.f32.mxu0 0.0
    %v4189 = vand.u32 %v4007, 4294901760
    %4190 = vmatmul.mubr.f32.gmra.mxu0 %v4189
    %v4191 = vpop.f32.mrf.mxu0
    %v4192 = vadd.f32 %v4095, %v4191
    %v4193 = vpop.f32.mrf.mxu0
    %4194 = vdwg.mxu0
    %4195 = vmatprep.subr.mxu0 0.0
    %4196 = vmatpush1.msra.mxu0 0.0
    %4197 = vmatprep.subr.mxu0 0.0
    %4198 = vmatpush1.msra.mxu0 0.0
    %4199 = vmatprep.subr.mxu0 0.0
    %4200 = vmatpush1.msra.mxu0 0.0
    %4201 = vmatprep.subr.mxu0 0.0
    %4202 = vmatpush1.msra.mxu0 0.0
    %4203 = vmatprep.subr.mxu0 0.0
    %4204 = vmatpush1.msra.mxu0 0.0
    %4205 = vmatprep.subr.mxu0 0.0
    %4206 = vmatpush1.msra.mxu0 0.0
    %4207 = vmatprep.subr.mxu0 0.0
    %4208 = vmatpush1.msra.mxu0 0.0
    %4209 = vmatprep.subr.mxu0 0.0
    %4210 = vmatpush1.msra.mxu0 0.0
    %4211 = vmatprep.subr.mxu0 0.0
    %4212 = vmatpush1.msra.mxu0 0.0
    %4213 = vmatprep.subr.mxu0 0.0
    %4214 = vmatpush1.msra.mxu0 0.0
    %4215 = vmatprep.subr.mxu0 0.0
    %4216 = vmatpush1.msra.mxu0 0.0
    %4217 = vmatprep.subr.mxu0 0.0
    %4218 = vmatpush1.msra.mxu0 0.0
    %4219 = vmatprep.subr.mxu0 0.0
    %v4220 = vand.u32 %v4002, 4294901760
    %v4221 = vsub.f32 %v4002, %v4220
    %4222 = vmatpush1.msra.mxu0 %v4221
    %4223 = vmatprep.subr.mxu0 0.0
    %v4224 = vand.u32 %v4001, 4294901760
    %v4225 = vsub.f32 %v4001, %v4224
    %4226 = vmatpush1.msra.mxu0 %v4225
    %4227 = vmatprep.subr.mxu0 0.0
    %v4228 = vand.u32 %v4000, 4294901760
    %v4229 = vsub.f32 %v4000, %v4228
    %4230 = vmatpush1.msra.mxu0 %v4229
    %4231 = vmatprep.subr.mxu0 0.0
    %v4232 = vand.u32 %v3999, 4294901760
    %v4233 = vsub.f32 %v3999, %v4232
    %4234 = vmatpush1.msra.mxu0 %v4233
    %4235 = vmatprep.subr.mxu0 0.0
    %4236 = vmatpush2.msra.mxu0 0.0
    %4237 = vmatprep.subr.mxu0 0.0
    %4238 = vmatpush2.msra.mxu0 0.0
    %4239 = vmatprep.subr.mxu0 0.0
    %4240 = vmatpush2.msra.mxu0 0.0
    %4241 = vmatprep.subr.mxu0 0.0
    %4242 = vmatpush2.msra.mxu0 0.0
    %4243 = vmatprep.subr.mxu0 0.0
    %4244 = vmatpush2.msra.mxu0 0.0
    %4245 = vmatprep.subr.mxu0 0.0
    %4246 = vmatpush2.msra.mxu0 0.0
    %4247 = vmatprep.subr.mxu0 0.0
    %4248 = vmatpush2.msra.mxu0 0.0
    %4249 = vmatprep.subr.mxu0 0.0
    %4250 = vmatpush2.msra.mxu0 0.0
    %4251 = vmatprep.subr.mxu0 0.0
    %4252 = vmatpush2.msra.mxu0 0.0
    %4253 = vmatprep.subr.mxu0 0.0
    %4254 = vmatpush2.msra.mxu0 0.0
    %4255 = vmatprep.subr.mxu0 0.0
    %4256 = vmatpush2.msra.mxu0 0.0
    %4257 = vmatprep.subr.mxu0 0.0
    %4258 = vmatpush2.msra.mxu0 0.0
    %4259 = vmatprep.subr.mxu0 0.0
    %4260 = vmatpush2.msra.mxu0 0.0
    %4261 = vmatprep.subr.mxu0 0.0
    %4262 = vmatpush2.msra.mxu0 0.0
    %4263 = vmatprep.subr.mxu0 0.0
    %4264 = vmatpush2.msra.mxu0 0.0
    %4265 = vmatprep.subr.mxu0 0.0
    %4266 = vmatpush2.msra.mxu0 0.0
    %4267 = vmatprep.mubr.f32.mxu0 0.0
    %v4268 = vand.u32 %v4004, 4294901760
    %v4269 = vsub.f32 %v4004, %v4268
    %4270 = vmatmul.mubr.f32.gmra.mxu0 %v4269
    %v4271 = vpop.f32.mrf.mxu0
    %v4272 = vadd.f32 %v4186, %v4271
    %v4273 = vpop.f32.mrf.mxu0
    %4274 = vmatprep.mubr.f32.mxu0 0.0
    %v4275 = vand.u32 %v4007, 4294901760
    %v4276 = vsub.f32 %v4007, %v4275
    %4277 = vmatmul.mubr.f32.gmra.mxu0 %v4276
    %v4278 = vpop.f32.mrf.mxu0
    %v4279 = vadd.f32 %v4192, %v4278
    %v4280 = vpop.f32.mrf.mxu0
    %4281 = vdwg.mxu0
    %4282 = vmatprep.subr.mxu0 0.0
    %4283 = vmatpush1.msra.mxu0 0.0
    %4284 = vmatprep.subr.mxu0 0.0
    %4285 = vmatpush1.msra.mxu0 0.0
    %4286 = vmatprep.subr.mxu0 0.0
    %4287 = vmatpush1.msra.mxu0 0.0
    %4288 = vmatprep.subr.mxu0 0.0
    %4289 = vmatpush1.msra.mxu0 0.0
    %4290 = vmatprep.subr.mxu0 0.0
    %4291 = vmatpush1.msra.mxu0 0.0
    %4292 = vmatprep.subr.mxu0 0.0
    %4293 = vmatpush1.msra.mxu0 0.0
    %4294 = vmatprep.subr.mxu0 0.0
    %4295 = vmatpush1.msra.mxu0 0.0
    %4296 = vmatprep.subr.mxu0 0.0
    %4297 = vmatpush1.msra.mxu0 0.0
    %4298 = vmatprep.subr.mxu0 0.0
    %4299 = vmatpush1.msra.mxu0 0.0
    %4300 = vmatprep.subr.mxu0 0.0
    %4301 = vmatpush1.msra.mxu0 0.0
    %4302 = vmatprep.subr.mxu0 0.0
    %4303 = vmatpush1.msra.mxu0 0.0
    %4304 = vmatprep.subr.mxu0 0.0
    %4305 = vmatpush1.msra.mxu0 0.0
    %4306 = vmatprep.subr.mxu0 0.0
    %v4307 = vand.u32 %v4002, 4294901760
    %4308 = vmatpush1.msra.mxu0 %v4307
    %4309 = vmatprep.subr.mxu0 0.0
    %v4310 = vand.u32 %v4001, 4294901760
    %4311 = vmatpush1.msra.mxu0 %v4310
    %4312 = vmatprep.subr.mxu0 0.0
    %v4313 = vand.u32 %v4000, 4294901760
    %4314 = vmatpush1.msra.mxu0 %v4313
    %4315 = vmatprep.subr.mxu0 0.0
    %v4316 = vand.u32 %v3999, 4294901760
    %4317 = vmatpush1.msra.mxu0 %v4316
    %4318 = vmatprep.subr.mxu0 0.0
    %4319 = vmatpush2.msra.mxu0 0.0
    %4320 = vmatprep.subr.mxu0 0.0
    %4321 = vmatpush2.msra.mxu0 0.0
    %4322 = vmatprep.subr.mxu0 0.0
    %4323 = vmatpush2.msra.mxu0 0.0
    %4324 = vmatprep.subr.mxu0 0.0
    %4325 = vmatpush2.msra.mxu0 0.0
    %4326 = vmatprep.subr.mxu0 0.0
    %4327 = vmatpush2.msra.mxu0 0.0
    %4328 = vmatprep.subr.mxu0 0.0
    %4329 = vmatpush2.msra.mxu0 0.0
    %4330 = vmatprep.subr.mxu0 0.0
    %4331 = vmatpush2.msra.mxu0 0.0
    %4332 = vmatprep.subr.mxu0 0.0
    %4333 = vmatpush2.msra.mxu0 0.0
    %4334 = vmatprep.subr.mxu0 0.0
    %4335 = vmatpush2.msra.mxu0 0.0
    %4336 = vmatprep.subr.mxu0 0.0
    %4337 = vmatpush2.msra.mxu0 0.0
    %4338 = vmatprep.subr.mxu0 0.0
    %4339 = vmatpush2.msra.mxu0 0.0
    %4340 = vmatprep.subr.mxu0 0.0
    %4341 = vmatpush2.msra.mxu0 0.0
    %4342 = vmatprep.subr.mxu0 0.0
    %4343 = vmatpush2.msra.mxu0 0.0
    %4344 = vmatprep.subr.mxu0 0.0
    %4345 = vmatpush2.msra.mxu0 0.0
    %4346 = vmatprep.subr.mxu0 0.0
    %4347 = vmatpush2.msra.mxu0 0.0
    %4348 = vmatprep.subr.mxu0 0.0
    %4349 = vmatpush2.msra.mxu0 0.0
    %4350 = vmatprep.mubr.f32.mxu0 0.0
    %v4351 = vand.u32 %v4004, 4294901760
    %v4352 = vsub.f32 %v4004, %v4351
    %v4353 = vand.u32 %v4352, 4294901760
    %4354 = vmatmul.mubr.f32.gmra.mxu0 %v4353
    %v4355 = vpop.f32.mrf.mxu0
    %v4356 = vadd.f32 %v4272, %v4355
    %v4357 = vpop.f32.mrf.mxu0
    %4358 = vmatprep.mubr.f32.mxu0 0.0
    %v4359 = vand.u32 %v4007, 4294901760
    %v4360 = vsub.f32 %v4007, %v4359
    %v4361 = vand.u32 %v4360, 4294901760
    %4362 = vmatmul.mubr.f32.gmra.mxu0 %v4361
    %v4363 = vpop.f32.mrf.mxu0
    %v4364 = vadd.f32 %v4279, %v4363
    %v4365 = vpop.f32.mrf.mxu0
    %4366 = vdwg.mxu0
    %4367 = vmatprep.subr.mxu0 0.0
    %4368 = vmatpush1.msra.mxu0 0.0
    %4369 = vmatprep.subr.mxu0 0.0
    %4370 = vmatpush1.msra.mxu0 0.0
    %4371 = vmatprep.subr.mxu0 0.0
    %4372 = vmatpush1.msra.mxu0 0.0
    %4373 = vmatprep.subr.mxu0 0.0
    %4374 = vmatpush1.msra.mxu0 0.0
    %4375 = vmatprep.subr.mxu0 0.0
    %4376 = vmatpush1.msra.mxu0 0.0
    %4377 = vmatprep.subr.mxu0 0.0
    %4378 = vmatpush1.msra.mxu0 0.0
    %4379 = vmatprep.subr.mxu0 0.0
    %4380 = vmatpush1.msra.mxu0 0.0
    %4381 = vmatprep.subr.mxu0 0.0
    %4382 = vmatpush1.msra.mxu0 0.0
    %4383 = vmatprep.subr.mxu0 0.0
    %4384 = vmatpush1.msra.mxu0 0.0
    %4385 = vmatprep.subr.mxu0 0.0
    %4386 = vmatpush1.msra.mxu0 0.0
    %4387 = vmatprep.subr.mxu0 0.0
    %4388 = vmatpush1.msra.mxu0 0.0
    %4389 = vmatprep.subr.mxu0 0.0
    %4390 = vmatpush1.msra.mxu0 0.0
    %4391 = vmatprep.subr.mxu0 0.0
    %v4392 = vand.u32 %v4002, 4294901760
    %v4393 = vsub.f32 %v4002, %v4392
    %v4394 = vand.u32 %v4393, 4294901760
    %4395 = vmatpush1.msra.mxu0 %v4394
    %4396 = vmatprep.subr.mxu0 0.0
    %v4397 = vand.u32 %v4001, 4294901760
    %v4398 = vsub.f32 %v4001, %v4397
    %v4399 = vand.u32 %v4398, 4294901760
    %4400 = vmatpush1.msra.mxu0 %v4399
    %4401 = vmatprep.subr.mxu0 0.0
    %v4402 = vand.u32 %v4000, 4294901760
    %v4403 = vsub.f32 %v4000, %v4402
    %v4404 = vand.u32 %v4403, 4294901760
    %4405 = vmatpush1.msra.mxu0 %v4404
    %4406 = vmatprep.subr.mxu0 0.0
    %v4407 = vand.u32 %v3999, 4294901760
    %v4408 = vsub.f32 %v3999, %v4407
    %v4409 = vand.u32 %v4408, 4294901760
    %4410 = vmatpush1.msra.mxu0 %v4409
    %4411 = vmatprep.subr.mxu0 0.0
    %4412 = vmatpush2.msra.mxu0 0.0
    %4413 = vmatprep.subr.mxu0 0.0
    %4414 = vmatpush2.msra.mxu0 0.0
    %4415 = vmatprep.subr.mxu0 0.0
    %4416 = vmatpush2.msra.mxu0 0.0
    %4417 = vmatprep.subr.mxu0 0.0
    %4418 = vmatpush2.msra.mxu0 0.0
    %4419 = vmatprep.subr.mxu0 0.0
    %4420 = vmatpush2.msra.mxu0 0.0
    %4421 = vmatprep.subr.mxu0 0.0
    %4422 = vmatpush2.msra.mxu0 0.0
    %4423 = vmatprep.subr.mxu0 0.0
    %4424 = vmatpush2.msra.mxu0 0.0
    %4425 = vmatprep.subr.mxu0 0.0
    %4426 = vmatpush2.msra.mxu0 0.0
    %4427 = vmatprep.subr.mxu0 0.0
    %4428 = vmatpush2.msra.mxu0 0.0
    %4429 = vmatprep.subr.mxu0 0.0
    %4430 = vmatpush2.msra.mxu0 0.0
    %4431 = vmatprep.subr.mxu0 0.0
    %4432 = vmatpush2.msra.mxu0 0.0
    %4433 = vmatprep.subr.mxu0 0.0
    %4434 = vmatpush2.msra.mxu0 0.0
    %4435 = vmatprep.subr.mxu0 0.0
    %4436 = vmatpush2.msra.mxu0 0.0
    %4437 = vmatprep.subr.mxu0 0.0
    %4438 = vmatpush2.msra.mxu0 0.0
    %4439 = vmatprep.subr.mxu0 0.0
    %4440 = vmatpush2.msra.mxu0 0.0
    %4441 = vmatprep.subr.mxu0 0.0
    %4442 = vmatpush2.msra.mxu0 0.0
    %4443 = vmatprep.mubr.f32.mxu0 0.0
    %v4444 = vand.u32 %v4004, 4294901760
    %4445 = vmatmul.mubr.f32.gmra.mxu0 %v4444
    %v4446 = vpop.f32.mrf.mxu0
    %v4447 = vadd.f32 %v4356, %v4446
    %v4448 = vpop.f32.mrf.mxu0
    %4449 = vmatprep.mubr.f32.mxu0 0.0
    %v4450 = vand.u32 %v4007, 4294901760
    %4451 = vmatmul.mubr.f32.gmra.mxu0 %v4450
    %v4452 = vpop.f32.mrf.mxu0
    %v4453 = vadd.f32 %v4364, %v4452
    %v4454 = vpop.f32.mrf.mxu0
    %4455 = vdwg.mxu0
    %4456 = vmatprep.subr.mxu0 0.0
    %4457 = vmatpush1.msra.mxu0 0.0
    %4458 = vmatprep.subr.mxu0 0.0
    %4459 = vmatpush1.msra.mxu0 0.0
    %4460 = vmatprep.subr.mxu0 0.0
    %4461 = vmatpush1.msra.mxu0 0.0
    %4462 = vmatprep.subr.mxu0 0.0
    %4463 = vmatpush1.msra.mxu0 0.0
    %4464 = vmatprep.subr.mxu0 0.0
    %4465 = vmatpush1.msra.mxu0 0.0
    %4466 = vmatprep.subr.mxu0 0.0
    %4467 = vmatpush1.msra.mxu0 0.0
    %4468 = vmatprep.subr.mxu0 0.0
    %4469 = vmatpush1.msra.mxu0 0.0
    %4470 = vmatprep.subr.mxu0 0.0
    %4471 = vmatpush1.msra.mxu0 0.0
    %4472 = vmatprep.subr.mxu0 0.0
    %4473 = vmatpush1.msra.mxu0 0.0
    %4474 = vmatprep.subr.mxu0 0.0
    %4475 = vmatpush1.msra.mxu0 0.0
    %4476 = vmatprep.subr.mxu0 0.0
    %4477 = vmatpush1.msra.mxu0 0.0
    %4478 = vmatprep.subr.mxu0 0.0
    %4479 = vmatpush1.msra.mxu0 0.0
    %4480 = vmatprep.subr.mxu0 0.0
    %v4481 = vand.u32 %v4002, 4294901760
    %4482 = vmatpush1.msra.mxu0 %v4481
    %4483 = vmatprep.subr.mxu0 0.0
    %v4484 = vand.u32 %v4001, 4294901760
    %4485 = vmatpush1.msra.mxu0 %v4484
    %4486 = vmatprep.subr.mxu0 0.0
    %v4487 = vand.u32 %v4000, 4294901760
    %4488 = vmatpush1.msra.mxu0 %v4487
    %4489 = vmatprep.subr.mxu0 0.0
    %v4490 = vand.u32 %v3999, 4294901760
    %4491 = vmatpush1.msra.mxu0 %v4490
    %4492 = vmatprep.subr.mxu0 0.0
    %4493 = vmatpush2.msra.mxu0 0.0
    %4494 = vmatprep.subr.mxu0 0.0
    %4495 = vmatpush2.msra.mxu0 0.0
    %4496 = vmatprep.subr.mxu0 0.0
    %4497 = vmatpush2.msra.mxu0 0.0
    %4498 = vmatprep.subr.mxu0 0.0
    %4499 = vmatpush2.msra.mxu0 0.0
    %4500 = vmatprep.subr.mxu0 0.0
    %4501 = vmatpush2.msra.mxu0 0.0
    %4502 = vmatprep.subr.mxu0 0.0
    %4503 = vmatpush2.msra.mxu0 0.0
    %4504 = vmatprep.subr.mxu0 0.0
    %4505 = vmatpush2.msra.mxu0 0.0
    %4506 = vmatprep.subr.mxu0 0.0
    %4507 = vmatpush2.msra.mxu0 0.0
    %4508 = vmatprep.subr.mxu0 0.0
    %4509 = vmatpush2.msra.mxu0 0.0
    %4510 = vmatprep.subr.mxu0 0.0
    %4511 = vmatpush2.msra.mxu0 0.0
    %4512 = vmatprep.subr.mxu0 0.0
    %4513 = vmatpush2.msra.mxu0 0.0
    %4514 = vmatprep.subr.mxu0 0.0
    %4515 = vmatpush2.msra.mxu0 0.0
    %4516 = vmatprep.subr.mxu0 0.0
    %4517 = vmatpush2.msra.mxu0 0.0
    %4518 = vmatprep.subr.mxu0 0.0
    %4519 = vmatpush2.msra.mxu0 0.0
    %4520 = vmatprep.subr.mxu0 0.0
    %4521 = vmatpush2.msra.mxu0 0.0
    %4522 = vmatprep.subr.mxu0 0.0
    %4523 = vmatpush2.msra.mxu0 0.0
    %4524 = vmatprep.mubr.f32.mxu0 0.0
    %v4525 = vand.u32 %v4004, 4294901760
    %4526 = vmatmul.mubr.f32.gmra.mxu0 %v4525
    %v4527 = vpop.f32.mrf.mxu0
    %v4528 = vadd.f32 %v4447, %v4527
    %v4529 = vpop.f32.mrf.mxu0
    %4530 = vmatprep.mubr.f32.mxu0 0.0
    %v4531 = vand.u32 %v4007, 4294901760
    %4532 = vmatmul.mubr.f32.gmra.mxu0 %v4531
    %v4533 = vpop.f32.mrf.mxu0
    %v4534 = vadd.f32 %v4453, %v4533
    %v4535 = vpop.f32.mrf.mxu0
    %4536 = vdwg.mxu0
    %s4537 = scalar_lea.vmem %s29, %s3990
    %v4538 = vld [vmem:[%s4537] sm:$0x1]
    %s4539 = scalar_lea.vmem %s31, %s3990
    %v4540 = vld [vmem:[%s4539] sm:$0x1]
    %vm4541 = vcmask 64512
    %v4542 = vsel %vm4541, %v4528, 0.0
    %v4543 = vsel %vm4541, %v4534, 0.0
    %v4544 = vadd.f32 %v4542, %v4543
    %v4545 = vrot.slane %v4544, 4
    %v4546 = vadd.f32 %v4544, %v4545
    %v4547 = vrot.slane %v4546, 2
    %v4548 = vadd.f32 %v4546, %v4547
    %v4549 = vrot.slane %v4548, 1
    %v4550 = vadd.f32 %v4548, %v4549
    %v4551 = vmul.f32 %v4550, 0.0625
    %v4552 = vsub.f32 %v4528, %v4551
    %v4553 = vsub.f32 %v4534, %v4551
    %v4554 = vmul.f32 %v4552, %v4552
    %v4555 = vmul.f32 %v4553, %v4553
    %v4556 = vsel %vm4541, %v4554, 0.0
    %v4557 = vsel %vm4541, %v4555, 0.0
    %v4558 = vadd.f32 %v4556, %v4557
    %v4559 = vrot.slane %v4558, 4
    %v4560 = vadd.f32 %v4558, %v4559
    %v4561 = vrot.slane %v4560, 2
    %v4562 = vadd.f32 %v4560, %v4561
    %v4563 = vrot.slane %v4562, 1
    %v4564 = vadd.f32 %v4562, %v4563
    %v4565 = vmul.f32 %v4564, 0.0625
    %v4566 = vadd.f32 %v4565, 1e-05
    %v4567 = vrsqrt.pop %v4566
    %v4568 = vmul.f32 %v4552, %v4567
    %v4569 = vmul.f32 %v4553, %v4567
    %v4571 = vlaneseq
    %v4572 = vshrl.u32 %v4571, 7
    %v4573 = vsub.s32 0, %v4572
    %v4574 = vrot.slane %v4538, %v4573
    %v4576 = vmul.f32 %v4568, %v4574
    %v4577 = vmul.f32 %v4569, %v4574
    %v4579 = vlaneseq
    %v4580 = vshrl.u32 %v4579, 7
    %v4581 = vsub.s32 0, %v4580
    %v4582 = vrot.slane %v4540, %v4581
    %v4584 = vadd.f32 %v4576, %v4582
    %v4585 = vadd.f32 %v4577, %v4582
    %v4586 = vmax.f32 %v4584, 0.0
    %v4587 = vmax.f32 %v4585, 0.0
    %s4588 = smul.u32 %s3990, 8
    %s4589 = scalar_lea.vmem %s33, %s4588
    %v4590 = vld [vmem:[%s4589] sm:$0xff]
    %v4592 = vsel %vm4541, %v4586, 0
    %v4595 = vsel %vm4541, %v4587, 0
    %4597 = vmatprep.subr.mxu0 0.0
    %4598 = vmatpush1.msra.mxu0 0.0
    %4599 = vmatprep.subr.mxu0 0.0
    %4600 = vmatpush1.msra.mxu0 0.0
    %4601 = vmatprep.subr.mxu0 0.0
    %4602 = vmatpush1.msra.mxu0 0.0
    %4603 = vmatprep.subr.mxu0 0.0
    %4604 = vmatpush1.msra.mxu0 0.0
    %4605 = vmatprep.subr.mxu0 0.0
    %4606 = vmatpush1.msra.mxu0 0.0
    %4607 = vmatprep.subr.mxu0 0.0
    %4608 = vmatpush1.msra.mxu0 0.0
    %4609 = vmatprep.subr.mxu0 0.0
    %4610 = vmatpush1.msra.mxu0 0.0
    %4611 = vmatprep.subr.mxu0 0.0
    %4612 = vmatpush1.msra.mxu0 0.0
    %4613 = vmatprep.subr.mxu0 0.0
    %4614 = vmatpush1.msra.mxu0 0.0
    %4615 = vmatprep.subr.mxu0 0.0
    %4616 = vmatpush1.msra.mxu0 0.0
    %4617 = vmatprep.subr.mxu0 0.0
    %4618 = vmatpush1.msra.mxu0 0.0
    %4619 = vmatprep.subr.mxu0 0.0
    %4620 = vmatpush1.msra.mxu0 0.0
    %4621 = vmatprep.subr.mxu0 0.0
    %4622 = vmatpush1.msra.mxu0 0.0
    %4623 = vmatprep.subr.mxu0 0.0
    %4624 = vmatpush1.msra.mxu0 0.0
    %4625 = vmatprep.subr.mxu0 0.0
    %4626 = vmatpush1.msra.mxu0 0.0
    %4627 = vmatprep.subr.mxu0 0.0
    %v4628 = vand.u32 %v4590, 4294901760
    %4629 = vmatpush1.msra.mxu0 %v4628
    %4630 = vmatprep.subr.mxu0 0.0
    %4631 = vmatpush2.msra.mxu0 0.0
    %4632 = vmatprep.subr.mxu0 0.0
    %4633 = vmatpush2.msra.mxu0 0.0
    %4634 = vmatprep.subr.mxu0 0.0
    %4635 = vmatpush2.msra.mxu0 0.0
    %4636 = vmatprep.subr.mxu0 0.0
    %4637 = vmatpush2.msra.mxu0 0.0
    %4638 = vmatprep.subr.mxu0 0.0
    %4639 = vmatpush2.msra.mxu0 0.0
    %4640 = vmatprep.subr.mxu0 0.0
    %4641 = vmatpush2.msra.mxu0 0.0
    %4642 = vmatprep.subr.mxu0 0.0
    %4643 = vmatpush2.msra.mxu0 0.0
    %4644 = vmatprep.subr.mxu0 0.0
    %4645 = vmatpush2.msra.mxu0 0.0
    %4646 = vmatprep.subr.mxu0 0.0
    %4647 = vmatpush2.msra.mxu0 0.0
    %4648 = vmatprep.subr.mxu0 0.0
    %4649 = vmatpush2.msra.mxu0 0.0
    %4650 = vmatprep.subr.mxu0 0.0
    %4651 = vmatpush2.msra.mxu0 0.0
    %4652 = vmatprep.subr.mxu0 0.0
    %4653 = vmatpush2.msra.mxu0 0.0
    %4654 = vmatprep.subr.mxu0 0.0
    %4655 = vmatpush2.msra.mxu0 0.0
    %4656 = vmatprep.subr.mxu0 0.0
    %4657 = vmatpush2.msra.mxu0 0.0
    %4658 = vmatprep.subr.mxu0 0.0
    %4659 = vmatpush2.msra.mxu0 0.0
    %4660 = vmatprep.subr.mxu0 0.0
    %4661 = vmatpush2.msra.mxu0 0.0
    %4662 = vmatprep.mubr.f32.mxu0 0.0
    %v4663 = vand.u32 %v4592, 4294901760
    %v4664 = vsub.f32 %v4592, %v4663
    %v4665 = vand.u32 %v4664, 4294901760
    %v4666 = vsub.f32 %v4664, %v4665
    %v4667 = vand.u32 %v4666, 4294901760
    %4668 = vmatmul.mubr.f32.gmra.mxu0 %v4667
    %v4669 = vpop.f32.mrf.mxu0
    %v4670 = vadd.f32 0.0, %v4669
    %v4671 = vpop.f32.mrf.mxu0
    %4672 = vmatprep.mubr.f32.mxu0 0.0
    %v4673 = vand.u32 %v4595, 4294901760
    %v4674 = vsub.f32 %v4595, %v4673
    %v4675 = vand.u32 %v4674, 4294901760
    %v4676 = vsub.f32 %v4674, %v4675
    %v4677 = vand.u32 %v4676, 4294901760
    %4678 = vmatmul.mubr.f32.gmra.mxu0 %v4677
    %v4679 = vpop.f32.mrf.mxu0
    %v4680 = vadd.f32 0.0, %v4679
    %v4681 = vpop.f32.mrf.mxu0
    %4682 = vdwg.mxu0
    %4683 = vmatprep.subr.mxu0 0.0
    %4684 = vmatpush1.msra.mxu0 0.0
    %4685 = vmatprep.subr.mxu0 0.0
    %4686 = vmatpush1.msra.mxu0 0.0
    %4687 = vmatprep.subr.mxu0 0.0
    %4688 = vmatpush1.msra.mxu0 0.0
    %4689 = vmatprep.subr.mxu0 0.0
    %4690 = vmatpush1.msra.mxu0 0.0
    %4691 = vmatprep.subr.mxu0 0.0
    %4692 = vmatpush1.msra.mxu0 0.0
    %4693 = vmatprep.subr.mxu0 0.0
    %4694 = vmatpush1.msra.mxu0 0.0
    %4695 = vmatprep.subr.mxu0 0.0
    %4696 = vmatpush1.msra.mxu0 0.0
    %4697 = vmatprep.subr.mxu0 0.0
    %4698 = vmatpush1.msra.mxu0 0.0
    %4699 = vmatprep.subr.mxu0 0.0
    %4700 = vmatpush1.msra.mxu0 0.0
    %4701 = vmatprep.subr.mxu0 0.0
    %4702 = vmatpush1.msra.mxu0 0.0
    %4703 = vmatprep.subr.mxu0 0.0
    %4704 = vmatpush1.msra.mxu0 0.0
    %4705 = vmatprep.subr.mxu0 0.0
    %4706 = vmatpush1.msra.mxu0 0.0
    %4707 = vmatprep.subr.mxu0 0.0
    %4708 = vmatpush1.msra.mxu0 0.0
    %4709 = vmatprep.subr.mxu0 0.0
    %4710 = vmatpush1.msra.mxu0 0.0
    %4711 = vmatprep.subr.mxu0 0.0
    %4712 = vmatpush1.msra.mxu0 0.0
    %4713 = vmatprep.subr.mxu0 0.0
    %v4714 = vand.u32 %v4590, 4294901760
    %v4715 = vsub.f32 %v4590, %v4714
    %v4716 = vand.u32 %v4715, 4294901760
    %v4717 = vsub.f32 %v4715, %v4716
    %v4718 = vand.u32 %v4717, 4294901760
    %4719 = vmatpush1.msra.mxu0 %v4718
    %4720 = vmatprep.subr.mxu0 0.0
    %4721 = vmatpush2.msra.mxu0 0.0
    %4722 = vmatprep.subr.mxu0 0.0
    %4723 = vmatpush2.msra.mxu0 0.0
    %4724 = vmatprep.subr.mxu0 0.0
    %4725 = vmatpush2.msra.mxu0 0.0
    %4726 = vmatprep.subr.mxu0 0.0
    %4727 = vmatpush2.msra.mxu0 0.0
    %4728 = vmatprep.subr.mxu0 0.0
    %4729 = vmatpush2.msra.mxu0 0.0
    %4730 = vmatprep.subr.mxu0 0.0
    %4731 = vmatpush2.msra.mxu0 0.0
    %4732 = vmatprep.subr.mxu0 0.0
    %4733 = vmatpush2.msra.mxu0 0.0
    %4734 = vmatprep.subr.mxu0 0.0
    %4735 = vmatpush2.msra.mxu0 0.0
    %4736 = vmatprep.subr.mxu0 0.0
    %4737 = vmatpush2.msra.mxu0 0.0
    %4738 = vmatprep.subr.mxu0 0.0
    %4739 = vmatpush2.msra.mxu0 0.0
    %4740 = vmatprep.subr.mxu0 0.0
    %4741 = vmatpush2.msra.mxu0 0.0
    %4742 = vmatprep.subr.mxu0 0.0
    %4743 = vmatpush2.msra.mxu0 0.0
    %4744 = vmatprep.subr.mxu0 0.0
    %4745 = vmatpush2.msra.mxu0 0.0
    %4746 = vmatprep.subr.mxu0 0.0
    %4747 = vmatpush2.msra.mxu0 0.0
    %4748 = vmatprep.subr.mxu0 0.0
    %4749 = vmatpush2.msra.mxu0 0.0
    %4750 = vmatprep.subr.mxu0 0.0
    %4751 = vmatpush2.msra.mxu0 0.0
    %4752 = vmatprep.mubr.f32.mxu0 0.0
    %v4753 = vand.u32 %v4592, 4294901760
    %4754 = vmatmul.mubr.f32.gmra.mxu0 %v4753
    %v4755 = vpop.f32.mrf.mxu0
    %v4756 = vadd.f32 %v4670, %v4755
    %v4757 = vpop.f32.mrf.mxu0
    %4758 = vmatprep.mubr.f32.mxu0 0.0
    %v4759 = vand.u32 %v4595, 4294901760
    %4760 = vmatmul.mubr.f32.gmra.mxu0 %v4759
    %v4761 = vpop.f32.mrf.mxu0
    %v4762 = vadd.f32 %v4680, %v4761
    %v4763 = vpop.f32.mrf.mxu0
    %4764 = vdwg.mxu0
    %4765 = vmatprep.subr.mxu0 0.0
    %4766 = vmatpush1.msra.mxu0 0.0
    %4767 = vmatprep.subr.mxu0 0.0
    %4768 = vmatpush1.msra.mxu0 0.0
    %4769 = vmatprep.subr.mxu0 0.0
    %4770 = vmatpush1.msra.mxu0 0.0
    %4771 = vmatprep.subr.mxu0 0.0
    %4772 = vmatpush1.msra.mxu0 0.0
    %4773 = vmatprep.subr.mxu0 0.0
    %4774 = vmatpush1.msra.mxu0 0.0
    %4775 = vmatprep.subr.mxu0 0.0
    %4776 = vmatpush1.msra.mxu0 0.0
    %4777 = vmatprep.subr.mxu0 0.0
    %4778 = vmatpush1.msra.mxu0 0.0
    %4779 = vmatprep.subr.mxu0 0.0
    %4780 = vmatpush1.msra.mxu0 0.0
    %4781 = vmatprep.subr.mxu0 0.0
    %4782 = vmatpush1.msra.mxu0 0.0
    %4783 = vmatprep.subr.mxu0 0.0
    %4784 = vmatpush1.msra.mxu0 0.0
    %4785 = vmatprep.subr.mxu0 0.0
    %4786 = vmatpush1.msra.mxu0 0.0
    %4787 = vmatprep.subr.mxu0 0.0
    %4788 = vmatpush1.msra.mxu0 0.0
    %4789 = vmatprep.subr.mxu0 0.0
    %4790 = vmatpush1.msra.mxu0 0.0
    %4791 = vmatprep.subr.mxu0 0.0
    %4792 = vmatpush1.msra.mxu0 0.0
    %4793 = vmatprep.subr.mxu0 0.0
    %4794 = vmatpush1.msra.mxu0 0.0
    %4795 = vmatprep.subr.mxu0 0.0
    %v4796 = vand.u32 %v4590, 4294901760
    %v4797 = vsub.f32 %v4590, %v4796
    %4798 = vmatpush1.msra.mxu0 %v4797
    %4799 = vmatprep.subr.mxu0 0.0
    %4800 = vmatpush2.msra.mxu0 0.0
    %4801 = vmatprep.subr.mxu0 0.0
    %4802 = vmatpush2.msra.mxu0 0.0
    %4803 = vmatprep.subr.mxu0 0.0
    %4804 = vmatpush2.msra.mxu0 0.0
    %4805 = vmatprep.subr.mxu0 0.0
    %4806 = vmatpush2.msra.mxu0 0.0
    %4807 = vmatprep.subr.mxu0 0.0
    %4808 = vmatpush2.msra.mxu0 0.0
    %4809 = vmatprep.subr.mxu0 0.0
    %4810 = vmatpush2.msra.mxu0 0.0
    %4811 = vmatprep.subr.mxu0 0.0
    %4812 = vmatpush2.msra.mxu0 0.0
    %4813 = vmatprep.subr.mxu0 0.0
    %4814 = vmatpush2.msra.mxu0 0.0
    %4815 = vmatprep.subr.mxu0 0.0
    %4816 = vmatpush2.msra.mxu0 0.0
    %4817 = vmatprep.subr.mxu0 0.0
    %4818 = vmatpush2.msra.mxu0 0.0
    %4819 = vmatprep.subr.mxu0 0.0
    %4820 = vmatpush2.msra.mxu0 0.0
    %4821 = vmatprep.subr.mxu0 0.0
    %4822 = vmatpush2.msra.mxu0 0.0
    %4823 = vmatprep.subr.mxu0 0.0
    %4824 = vmatpush2.msra.mxu0 0.0
    %4825 = vmatprep.subr.mxu0 0.0
    %4826 = vmatpush2.msra.mxu0 0.0
    %4827 = vmatprep.subr.mxu0 0.0
    %4828 = vmatpush2.msra.mxu0 0.0
    %4829 = vmatprep.subr.mxu0 0.0
    %4830 = vmatpush2.msra.mxu0 0.0
    %4831 = vmatprep.mubr.f32.mxu0 0.0
    %v4832 = vand.u32 %v4592, 4294901760
    %v4833 = vsub.f32 %v4592, %v4832
    %4834 = vmatmul.mubr.f32.gmra.mxu0 %v4833
    %v4835 = vpop.f32.mrf.mxu0
    %v4836 = vadd.f32 %v4756, %v4835
    %v4837 = vpop.f32.mrf.mxu0
    %4838 = vmatprep.mubr.f32.mxu0 0.0
    %v4839 = vand.u32 %v4595, 4294901760
    %v4840 = vsub.f32 %v4595, %v4839
    %4841 = vmatmul.mubr.f32.gmra.mxu0 %v4840
    %v4842 = vpop.f32.mrf.mxu0
    %v4843 = vadd.f32 %v4762, %v4842
    %v4844 = vpop.f32.mrf.mxu0
    %4845 = vdwg.mxu0
    %4846 = vmatprep.subr.mxu0 0.0
    %4847 = vmatpush1.msra.mxu0 0.0
    %4848 = vmatprep.subr.mxu0 0.0
    %4849 = vmatpush1.msra.mxu0 0.0
    %4850 = vmatprep.subr.mxu0 0.0
    %4851 = vmatpush1.msra.mxu0 0.0
    %4852 = vmatprep.subr.mxu0 0.0
    %4853 = vmatpush1.msra.mxu0 0.0
    %4854 = vmatprep.subr.mxu0 0.0
    %4855 = vmatpush1.msra.mxu0 0.0
    %4856 = vmatprep.subr.mxu0 0.0
    %4857 = vmatpush1.msra.mxu0 0.0
    %4858 = vmatprep.subr.mxu0 0.0
    %4859 = vmatpush1.msra.mxu0 0.0
    %4860 = vmatprep.subr.mxu0 0.0
    %4861 = vmatpush1.msra.mxu0 0.0
    %4862 = vmatprep.subr.mxu0 0.0
    %4863 = vmatpush1.msra.mxu0 0.0
    %4864 = vmatprep.subr.mxu0 0.0
    %4865 = vmatpush1.msra.mxu0 0.0
    %4866 = vmatprep.subr.mxu0 0.0
    %4867 = vmatpush1.msra.mxu0 0.0
    %4868 = vmatprep.subr.mxu0 0.0
    %4869 = vmatpush1.msra.mxu0 0.0
    %4870 = vmatprep.subr.mxu0 0.0
    %4871 = vmatpush1.msra.mxu0 0.0
    %4872 = vmatprep.subr.mxu0 0.0
    %4873 = vmatpush1.msra.mxu0 0.0
    %4874 = vmatprep.subr.mxu0 0.0
    %4875 = vmatpush1.msra.mxu0 0.0
    %4876 = vmatprep.subr.mxu0 0.0
    %v4877 = vand.u32 %v4590, 4294901760
    %4878 = vmatpush1.msra.mxu0 %v4877
    %4879 = vmatprep.subr.mxu0 0.0
    %4880 = vmatpush2.msra.mxu0 0.0
    %4881 = vmatprep.subr.mxu0 0.0
    %4882 = vmatpush2.msra.mxu0 0.0
    %4883 = vmatprep.subr.mxu0 0.0
    %4884 = vmatpush2.msra.mxu0 0.0
    %4885 = vmatprep.subr.mxu0 0.0
    %4886 = vmatpush2.msra.mxu0 0.0
    %4887 = vmatprep.subr.mxu0 0.0
    %4888 = vmatpush2.msra.mxu0 0.0
    %4889 = vmatprep.subr.mxu0 0.0
    %4890 = vmatpush2.msra.mxu0 0.0
    %4891 = vmatprep.subr.mxu0 0.0
    %4892 = vmatpush2.msra.mxu0 0.0
    %4893 = vmatprep.subr.mxu0 0.0
    %4894 = vmatpush2.msra.mxu0 0.0
    %4895 = vmatprep.subr.mxu0 0.0
    %4896 = vmatpush2.msra.mxu0 0.0
    %4897 = vmatprep.subr.mxu0 0.0
    %4898 = vmatpush2.msra.mxu0 0.0
    %4899 = vmatprep.subr.mxu0 0.0
    %4900 = vmatpush2.msra.mxu0 0.0
    %4901 = vmatprep.subr.mxu0 0.0
    %4902 = vmatpush2.msra.mxu0 0.0
    %4903 = vmatprep.subr.mxu0 0.0
    %4904 = vmatpush2.msra.mxu0 0.0
    %4905 = vmatprep.subr.mxu0 0.0
    %4906 = vmatpush2.msra.mxu0 0.0
    %4907 = vmatprep.subr.mxu0 0.0
    %4908 = vmatpush2.msra.mxu0 0.0
    %4909 = vmatprep.subr.mxu0 0.0
    %4910 = vmatpush2.msra.mxu0 0.0
    %4911 = vmatprep.mubr.f32.mxu0 0.0
    %v4912 = vand.u32 %v4592, 4294901760
    %v4913 = vsub.f32 %v4592, %v4912
    %v4914 = vand.u32 %v4913, 4294901760
    %4915 = vmatmul.mubr.f32.gmra.mxu0 %v4914
    %v4916 = vpop.f32.mrf.mxu0
    %v4917 = vadd.f32 %v4836, %v4916
    %v4918 = vpop.f32.mrf.mxu0
    %4919 = vmatprep.mubr.f32.mxu0 0.0
    %v4920 = vand.u32 %v4595, 4294901760
    %v4921 = vsub.f32 %v4595, %v4920
    %v4922 = vand.u32 %v4921, 4294901760
    %4923 = vmatmul.mubr.f32.gmra.mxu0 %v4922
    %v4924 = vpop.f32.mrf.mxu0
    %v4925 = vadd.f32 %v4843, %v4924
    %v4926 = vpop.f32.mrf.mxu0
    %4927 = vdwg.mxu0
    %4928 = vmatprep.subr.mxu0 0.0
    %4929 = vmatpush1.msra.mxu0 0.0
    %4930 = vmatprep.subr.mxu0 0.0
    %4931 = vmatpush1.msra.mxu0 0.0
    %4932 = vmatprep.subr.mxu0 0.0
    %4933 = vmatpush1.msra.mxu0 0.0
    %4934 = vmatprep.subr.mxu0 0.0
    %4935 = vmatpush1.msra.mxu0 0.0
    %4936 = vmatprep.subr.mxu0 0.0
    %4937 = vmatpush1.msra.mxu0 0.0
    %4938 = vmatprep.subr.mxu0 0.0
    %4939 = vmatpush1.msra.mxu0 0.0
    %4940 = vmatprep.subr.mxu0 0.0
    %4941 = vmatpush1.msra.mxu0 0.0
    %4942 = vmatprep.subr.mxu0 0.0
    %4943 = vmatpush1.msra.mxu0 0.0
    %4944 = vmatprep.subr.mxu0 0.0
    %4945 = vmatpush1.msra.mxu0 0.0
    %4946 = vmatprep.subr.mxu0 0.0
    %4947 = vmatpush1.msra.mxu0 0.0
    %4948 = vmatprep.subr.mxu0 0.0
    %4949 = vmatpush1.msra.mxu0 0.0
    %4950 = vmatprep.subr.mxu0 0.0
    %4951 = vmatpush1.msra.mxu0 0.0
    %4952 = vmatprep.subr.mxu0 0.0
    %4953 = vmatpush1.msra.mxu0 0.0
    %4954 = vmatprep.subr.mxu0 0.0
    %4955 = vmatpush1.msra.mxu0 0.0
    %4956 = vmatprep.subr.mxu0 0.0
    %4957 = vmatpush1.msra.mxu0 0.0
    %4958 = vmatprep.subr.mxu0 0.0
    %v4959 = vand.u32 %v4590, 4294901760
    %v4960 = vsub.f32 %v4590, %v4959
    %v4961 = vand.u32 %v4960, 4294901760
    %4962 = vmatpush1.msra.mxu0 %v4961
    %4963 = vmatprep.subr.mxu0 0.0
    %4964 = vmatpush2.msra.mxu0 0.0
    %4965 = vmatprep.subr.mxu0 0.0
    %4966 = vmatpush2.msra.mxu0 0.0
    %4967 = vmatprep.subr.mxu0 0.0
    %4968 = vmatpush2.msra.mxu0 0.0
    %4969 = vmatprep.subr.mxu0 0.0
    %4970 = vmatpush2.msra.mxu0 0.0
    %4971 = vmatprep.subr.mxu0 0.0
    %4972 = vmatpush2.msra.mxu0 0.0
    %4973 = vmatprep.subr.mxu0 0.0
    %4974 = vmatpush2.msra.mxu0 0.0
    %4975 = vmatprep.subr.mxu0 0.0
    %4976 = vmatpush2.msra.mxu0 0.0
    %4977 = vmatprep.subr.mxu0 0.0
    %4978 = vmatpush2.msra.mxu0 0.0
    %4979 = vmatprep.subr.mxu0 0.0
    %4980 = vmatpush2.msra.mxu0 0.0
    %4981 = vmatprep.subr.mxu0 0.0
    %4982 = vmatpush2.msra.mxu0 0.0
    %4983 = vmatprep.subr.mxu0 0.0
    %4984 = vmatpush2.msra.mxu0 0.0
    %4985 = vmatprep.subr.mxu0 0.0
    %4986 = vmatpush2.msra.mxu0 0.0
    %4987 = vmatprep.subr.mxu0 0.0
    %4988 = vmatpush2.msra.mxu0 0.0
    %4989 = vmatprep.subr.mxu0 0.0
    %4990 = vmatpush2.msra.mxu0 0.0
    %4991 = vmatprep.subr.mxu0 0.0
    %4992 = vmatpush2.msra.mxu0 0.0
    %4993 = vmatprep.subr.mxu0 0.0
    %4994 = vmatpush2.msra.mxu0 0.0
    %4995 = vmatprep.mubr.f32.mxu0 0.0
    %v4996 = vand.u32 %v4592, 4294901760
    %4997 = vmatmul.mubr.f32.gmra.mxu0 %v4996
    %v4998 = vpop.f32.mrf.mxu0
    %v4999 = vadd.f32 %v4917, %v4998
    %v5000 = vpop.f32.mrf.mxu0
    %5001 = vmatprep.mubr.f32.mxu0 0.0
    %v5002 = vand.u32 %v4595, 4294901760
    %5003 = vmatmul.mubr.f32.gmra.mxu0 %v5002
    %v5004 = vpop.f32.mrf.mxu0
    %v5005 = vadd.f32 %v4925, %v5004
    %v5006 = vpop.f32.mrf.mxu0
    %5007 = vdwg.mxu0
    %5008 = vmatprep.subr.mxu0 0.0
    %5009 = vmatpush1.msra.mxu0 0.0
    %5010 = vmatprep.subr.mxu0 0.0
    %5011 = vmatpush1.msra.mxu0 0.0
    %5012 = vmatprep.subr.mxu0 0.0
    %5013 = vmatpush1.msra.mxu0 0.0
    %5014 = vmatprep.subr.mxu0 0.0
    %5015 = vmatpush1.msra.mxu0 0.0
    %5016 = vmatprep.subr.mxu0 0.0
    %5017 = vmatpush1.msra.mxu0 0.0
    %5018 = vmatprep.subr.mxu0 0.0
    %5019 = vmatpush1.msra.mxu0 0.0
    %5020 = vmatprep.subr.mxu0 0.0
    %5021 = vmatpush1.msra.mxu0 0.0
    %5022 = vmatprep.subr.mxu0 0.0
    %5023 = vmatpush1.msra.mxu0 0.0
    %5024 = vmatprep.subr.mxu0 0.0
    %5025 = vmatpush1.msra.mxu0 0.0
    %5026 = vmatprep.subr.mxu0 0.0
    %5027 = vmatpush1.msra.mxu0 0.0
    %5028 = vmatprep.subr.mxu0 0.0
    %5029 = vmatpush1.msra.mxu0 0.0
    %5030 = vmatprep.subr.mxu0 0.0
    %5031 = vmatpush1.msra.mxu0 0.0
    %5032 = vmatprep.subr.mxu0 0.0
    %5033 = vmatpush1.msra.mxu0 0.0
    %5034 = vmatprep.subr.mxu0 0.0
    %5035 = vmatpush1.msra.mxu0 0.0
    %5036 = vmatprep.subr.mxu0 0.0
    %5037 = vmatpush1.msra.mxu0 0.0
    %5038 = vmatprep.subr.mxu0 0.0
    %v5039 = vand.u32 %v4590, 4294901760
    %5040 = vmatpush1.msra.mxu0 %v5039
    %5041 = vmatprep.subr.mxu0 0.0
    %5042 = vmatpush2.msra.mxu0 0.0
    %5043 = vmatprep.subr.mxu0 0.0
    %5044 = vmatpush2.msra.mxu0 0.0
    %5045 = vmatprep.subr.mxu0 0.0
    %5046 = vmatpush2.msra.mxu0 0.0
    %5047 = vmatprep.subr.mxu0 0.0
    %5048 = vmatpush2.msra.mxu0 0.0
    %5049 = vmatprep.subr.mxu0 0.0
    %5050 = vmatpush2.msra.mxu0 0.0
    %5051 = vmatprep.subr.mxu0 0.0
    %5052 = vmatpush2.msra.mxu0 0.0
    %5053 = vmatprep.subr.mxu0 0.0
    %5054 = vmatpush2.msra.mxu0 0.0
    %5055 = vmatprep.subr.mxu0 0.0
    %5056 = vmatpush2.msra.mxu0 0.0
    %5057 = vmatprep.subr.mxu0 0.0
    %5058 = vmatpush2.msra.mxu0 0.0
    %5059 = vmatprep.subr.mxu0 0.0
    %5060 = vmatpush2.msra.mxu0 0.0
    %5061 = vmatprep.subr.mxu0 0.0
    %5062 = vmatpush2.msra.mxu0 0.0
    %5063 = vmatprep.subr.mxu0 0.0
    %5064 = vmatpush2.msra.mxu0 0.0
    %5065 = vmatprep.subr.mxu0 0.0
    %5066 = vmatpush2.msra.mxu0 0.0
    %5067 = vmatprep.subr.mxu0 0.0
    %5068 = vmatpush2.msra.mxu0 0.0
    %5069 = vmatprep.subr.mxu0 0.0
    %5070 = vmatpush2.msra.mxu0 0.0
    %5071 = vmatprep.subr.mxu0 0.0
    %5072 = vmatpush2.msra.mxu0 0.0
    %5073 = vmatprep.mubr.f32.mxu0 0.0
    %v5074 = vand.u32 %v4592, 4294901760
    %5075 = vmatmul.mubr.f32.gmra.mxu0 %v5074
    %v5076 = vpop.f32.mrf.mxu0
    %v5077 = vadd.f32 %v4999, %v5076
    %v5078 = vpop.f32.mrf.mxu0
    %5079 = vmatprep.mubr.f32.mxu0 0.0
    %v5080 = vand.u32 %v4595, 4294901760
    %5081 = vmatmul.mubr.f32.gmra.mxu0 %v5080
    %v5082 = vpop.f32.mrf.mxu0
    %v5083 = vadd.f32 %v5005, %v5082
    %v5084 = vpop.f32.mrf.mxu0
    %5085 = vdwg.mxu0
    %s5086 = scalar_lea.vmem %s35, %s3990
    %v5087 = vld [vmem:[%s5086] sm:$0x1]
    %s5088 = scalar_lea.vmem %s37, %s3990
    %v5089 = vld [vmem:[%s5088] sm:$0x1]
    %v5090 = vsel %vm3942, %v5077, 0.0
    %v5091 = vsel %vm3942, %v5083, 0.0
    %v5092 = vadd.f32 %v5090, %v5091
    %v5093 = vrot.slane %v5092, 4
    %v5094 = vadd.f32 %v5092, %v5093
    %v5095 = vrot.slane %v5094, 2
    %v5096 = vadd.f32 %v5094, %v5095
    %v5097 = vrot.slane %v5096, 1
    %v5098 = vadd.f32 %v5096, %v5097
    %v5099 = vmul.f32 %v5098, 0.0625
    %v5100 = vsub.f32 %v5077, %v5099
    %v5101 = vsub.f32 %v5083, %v5099
    %v5102 = vmul.f32 %v5100, %v5100
    %v5103 = vmul.f32 %v5101, %v5101
    %v5104 = vsel %vm3942, %v5102, 0.0
    %v5105 = vsel %vm3942, %v5103, 0.0
    %v5106 = vadd.f32 %v5104, %v5105
    %v5107 = vrot.slane %v5106, 4
    %v5108 = vadd.f32 %v5106, %v5107
    %v5109 = vrot.slane %v5108, 2
    %v5110 = vadd.f32 %v5108, %v5109
    %v5111 = vrot.slane %v5110, 1
    %v5112 = vadd.f32 %v5110, %v5111
    %v5113 = vmul.f32 %v5112, 0.0625
    %v5114 = vadd.f32 %v5113, 1e-05
    %v5115 = vrsqrt.pop %v5114
    %v5116 = vmul.f32 %v5100, %v5115
    %v5117 = vmul.f32 %v5101, %v5115
    %v5119 = vlaneseq
    %v5120 = vshrl.u32 %v5119, 7
    %v5121 = vsub.s32 0, %v5120
    %v5122 = vrot.slane %v5087, %v5121
    %v5124 = vmul.f32 %v5116, %v5122
    %v5125 = vmul.f32 %v5117, %v5122
    %v5127 = vlaneseq
    %v5128 = vshrl.u32 %v5127, 7
    %v5129 = vsub.s32 0, %v5128
    %v5130 = vrot.slane %v5089, %v5129
    %v5132 = vadd.f32 %v5124, %v5130
    %v5133 = vadd.f32 %v5125, %v5130
    %v5134 = vadd.f32 %v3995, %v5132
    %v5135 = vadd.f32 %v3996, %v5133
    %v5136 = vmax.f32 %v5134, 0.0
    %v5137 = vmax.f32 %v5135, 0.0
  $region177: #{tpu_custom_call.1} parent=0 // loop_footer
    %s3994 = sadd.s32 1, %s3990
  $region178: #{tpu_custom_call.1} parent=0 // loop_footer_branch
    %3989 = sbr.rel target = $region174
  $region179: #{tpu_custom_call.1} parent=0 // loop_exit
    _
  %v5138 = vld [vmem:[%s39] sm:$0xff]
  %v5139 = vld [vmem:[%s39 + $0x8] sm:$0xff]
  %v5140 = vld [vmem:[%s39 + $0x10] sm:$0xff]
  %v5141 = vld [vmem:[%s39 + $0x18] sm:$0xff]
  %v5143 = vsel %vm3942, %v3995, 0
  %v5146 = vsel %vm3942, %v3996, 0
  %5148 = vmatprep.subr.mxu0 0.0
  %5149 = vmatpush1.msra.mxu0 0.0
  %5150 = vmatprep.subr.mxu0 0.0
  %5151 = vmatpush1.msra.mxu0 0.0
  %5152 = vmatprep.subr.mxu0 0.0
  %5153 = vmatpush1.msra.mxu0 0.0
  %5154 = vmatprep.subr.mxu0 0.0
  %5155 = vmatpush1.msra.mxu0 0.0
  %5156 = vmatprep.subr.mxu0 0.0
  %5157 = vmatpush1.msra.mxu0 0.0
  %5158 = vmatprep.subr.mxu0 0.0
  %5159 = vmatpush1.msra.mxu0 0.0
  %5160 = vmatprep.subr.mxu0 0.0
  %5161 = vmatpush1.msra.mxu0 0.0
  %5162 = vmatprep.subr.mxu0 0.0
  %5163 = vmatpush1.msra.mxu0 0.0
  %5164 = vmatprep.subr.mxu0 0.0
  %5165 = vmatpush1.msra.mxu0 0.0
  %5166 = vmatprep.subr.mxu0 0.0
  %5167 = vmatpush1.msra.mxu0 0.0
  %5168 = vmatprep.subr.mxu0 0.0
  %5169 = vmatpush1.msra.mxu0 0.0
  %5170 = vmatprep.subr.mxu0 0.0
  %5171 = vmatpush1.msra.mxu0 0.0
  %5172 = vmatprep.subr.mxu0 0.0
  %v5173 = vand.u32 %v5141, 4294901760
  %5174 = vmatpush1.msra.mxu0 %v5173
  %5175 = vmatprep.subr.mxu0 0.0
  %v5176 = vand.u32 %v5140, 4294901760
  %5177 = vmatpush1.msra.mxu0 %v5176
  %5178 = vmatprep.subr.mxu0 0.0
  %v5179 = vand.u32 %v5139, 4294901760
  %5180 = vmatpush1.msra.mxu0 %v5179
  %5181 = vmatprep.subr.mxu0 0.0
  %v5182 = vand.u32 %v5138, 4294901760
  %5183 = vmatpush1.msra.mxu0 %v5182
  %5184 = vmatprep.subr.mxu0 0.0
  %5185 = vmatpush2.msra.mxu0 0.0
  %5186 = vmatprep.subr.mxu0 0.0
  %5187 = vmatpush2.msra.mxu0 0.0
  %5188 = vmatprep.subr.mxu0 0.0
  %5189 = vmatpush2.msra.mxu0 0.0
  %5190 = vmatprep.subr.mxu0 0.0
  %5191 = vmatpush2.msra.mxu0 0.0
  %5192 = vmatprep.subr.mxu0 0.0
  %5193 = vmatpush2.msra.mxu0 0.0
  %5194 = vmatprep.subr.mxu0 0.0
  %5195 = vmatpush2.msra.mxu0 0.0
  %5196 = vmatprep.subr.mxu0 0.0
  %5197 = vmatpush2.msra.mxu0 0.0
  %5198 = vmatprep.subr.mxu0 0.0
  %5199 = vmatpush2.msra.mxu0 0.0
  %5200 = vmatprep.subr.mxu0 0.0
  %5201 = vmatpush2.msra.mxu0 0.0
  %5202 = vmatprep.subr.mxu0 0.0
  %5203 = vmatpush2.msra.mxu0 0.0
  %5204 = vmatprep.subr.mxu0 0.0
  %5205 = vmatpush2.msra.mxu0 0.0
  %5206 = vmatprep.subr.mxu0 0.0
  %5207 = vmatpush2.msra.mxu0 0.0
  %5208 = vmatprep.subr.mxu0 0.0
  %5209 = vmatpush2.msra.mxu0 0.0
  %5210 = vmatprep.subr.mxu0 0.0
  %5211 = vmatpush2.msra.mxu0 0.0
  %5212 = vmatprep.subr.mxu0 0.0
  %5213 = vmatpush2.msra.mxu0 0.0
  %5214 = vmatprep.subr.mxu0 0.0
  %5215 = vmatpush2.msra.mxu0 0.0
  %5216 = vmatprep.mubr.f32.mxu0 0.0
  %v5217 = vand.u32 %v5143, 4294901760
  %v5218 = vsub.f32 %v5143, %v5217
  %v5219 = vand.u32 %v5218, 4294901760
  %v5220 = vsub.f32 %v5218, %v5219
  %v5221 = vand.u32 %v5220, 4294901760
  %5222 = vmatmul.mubr.f32.gmra.mxu0 %v5221
  %v5223 = vpop.f32.mrf.mxu0
  %v5224 = vadd.f32 0.0, %v5223
  %v5225 = vpop.f32.mrf.mxu0
  %5226 = vmatprep.mubr.f32.mxu0 0.0
  %v5227 = vand.u32 %v5146, 4294901760
  %v5228 = vsub.f32 %v5146, %v5227
  %v5229 = vand.u32 %v5228, 4294901760
  %v5230 = vsub.f32 %v5228, %v5229
  %v5231 = vand.u32 %v5230, 4294901760
  %5232 = vmatmul.mubr.f32.gmra.mxu0 %v5231
  %v5233 = vpop.f32.mrf.mxu0
  %v5234 = vadd.f32 0.0, %v5233
  %v5235 = vpop.f32.mrf.mxu0
  %5236 = vdwg.mxu0
  %5237 = vmatprep.subr.mxu0 0.0
  %5238 = vmatpush1.msra.mxu0 0.0
  %5239 = vmatprep.subr.mxu0 0.0
  %5240 = vmatpush1.msra.mxu0 0.0
  %5241 = vmatprep.subr.mxu0 0.0
  %5242 = vmatpush1.msra.mxu0 0.0
  %5243 = vmatprep.subr.mxu0 0.0
  %5244 = vmatpush1.msra.mxu0 0.0
  %5245 = vmatprep.subr.mxu0 0.0
  %5246 = vmatpush1.msra.mxu0 0.0
  %5247 = vmatprep.subr.mxu0 0.0
  %5248 = vmatpush1.msra.mxu0 0.0
  %5249 = vmatprep.subr.mxu0 0.0
  %5250 = vmatpush1.msra.mxu0 0.0
  %5251 = vmatprep.subr.mxu0 0.0
  %5252 = vmatpush1.msra.mxu0 0.0
  %5253 = vmatprep.subr.mxu0 0.0
  %5254 = vmatpush1.msra.mxu0 0.0
  %5255 = vmatprep.subr.mxu0 0.0
  %5256 = vmatpush1.msra.mxu0 0.0
  %5257 = vmatprep.subr.mxu0 0.0
  %5258 = vmatpush1.msra.mxu0 0.0
  %5259 = vmatprep.subr.mxu0 0.0
  %5260 = vmatpush1.msra.mxu0 0.0
  %5261 = vmatprep.subr.mxu0 0.0
  %v5262 = vand.u32 %v5141, 4294901760
  %v5263 = vsub.f32 %v5141, %v5262
  %v5264 = vand.u32 %v5263, 4294901760
  %v5265 = vsub.f32 %v5263, %v5264
  %v5266 = vand.u32 %v5265, 4294901760
  %5267 = vmatpush1.msra.mxu0 %v5266
  %5268 = vmatprep.subr.mxu0 0.0
  %v5269 = vand.u32 %v5140, 4294901760
  %v5270 = vsub.f32 %v5140, %v5269
  %v5271 = vand.u32 %v5270, 4294901760
  %v5272 = vsub.f32 %v5270, %v5271
  %v5273 = vand.u32 %v5272, 4294901760
  %5274 = vmatpush1.msra.mxu0 %v5273
  %5275 = vmatprep.subr.mxu0 0.0
  %v5276 = vand.u32 %v5139, 4294901760
  %v5277 = vsub.f32 %v5139, %v5276
  %v5278 = vand.u32 %v5277, 4294901760
  %v5279 = vsub.f32 %v5277, %v5278
  %v5280 = vand.u32 %v5279, 4294901760
  %5281 = vmatpush1.msra.mxu0 %v5280
  %5282 = vmatprep.subr.mxu0 0.0
  %v5283 = vand.u32 %v5138, 4294901760
  %v5284 = vsub.f32 %v5138, %v5283
  %v5285 = vand.u32 %v5284, 4294901760
  %v5286 = vsub.f32 %v5284, %v5285
  %v5287 = vand.u32 %v5286, 4294901760
  %5288 = vmatpush1.msra.mxu0 %v5287
  %5289 = vmatprep.subr.mxu0 0.0
  %5290 = vmatpush2.msra.mxu0 0.0
  %5291 = vmatprep.subr.mxu0 0.0
  %5292 = vmatpush2.msra.mxu0 0.0
  %5293 = vmatprep.subr.mxu0 0.0
  %5294 = vmatpush2.msra.mxu0 0.0
  %5295 = vmatprep.subr.mxu0 0.0
  %5296 = vmatpush2.msra.mxu0 0.0
  %5297 = vmatprep.subr.mxu0 0.0
  %5298 = vmatpush2.msra.mxu0 0.0
  %5299 = vmatprep.subr.mxu0 0.0
  %5300 = vmatpush2.msra.mxu0 0.0
  %5301 = vmatprep.subr.mxu0 0.0
  %5302 = vmatpush2.msra.mxu0 0.0
  %5303 = vmatprep.subr.mxu0 0.0
  %5304 = vmatpush2.msra.mxu0 0.0
  %5305 = vmatprep.subr.mxu0 0.0
  %5306 = vmatpush2.msra.mxu0 0.0
  %5307 = vmatprep.subr.mxu0 0.0
  %5308 = vmatpush2.msra.mxu0 0.0
  %5309 = vmatprep.subr.mxu0 0.0
  %5310 = vmatpush2.msra.mxu0 0.0
  %5311 = vmatprep.subr.mxu0 0.0
  %5312 = vmatpush2.msra.mxu0 0.0
  %5313 = vmatprep.subr.mxu0 0.0
  %5314 = vmatpush2.msra.mxu0 0.0
  %5315 = vmatprep.subr.mxu0 0.0
  %5316 = vmatpush2.msra.mxu0 0.0
  %5317 = vmatprep.subr.mxu0 0.0
  %5318 = vmatpush2.msra.mxu0 0.0
  %5319 = vmatprep.subr.mxu0 0.0
  %5320 = vmatpush2.msra.mxu0 0.0
  %5321 = vmatprep.mubr.f32.mxu0 0.0
  %v5322 = vand.u32 %v5143, 4294901760
  %5323 = vmatmul.mubr.f32.gmra.mxu0 %v5322
  %v5324 = vpop.f32.mrf.mxu0
  %v5325 = vadd.f32 %v5224, %v5324
  %v5326 = vpop.f32.mrf.mxu0
  %5327 = vmatprep.mubr.f32.mxu0 0.0
  %v5328 = vand.u32 %v5146, 4294901760
  %5329 = vmatmul.mubr.f32.gmra.mxu0 %v5328
  %v5330 = vpop.f32.mrf.mxu0
  %v5331 = vadd.f32 %v5234, %v5330
  %v5332 = vpop.f32.mrf.mxu0
  %5333 = vdwg.mxu0
  %5334 = vmatprep.subr.mxu0 0.0
  %5335 = vmatpush1.msra.mxu0 0.0
  %5336 = vmatprep.subr.mxu0 0.0
  %5337 = vmatpush1.msra.mxu0 0.0
  %5338 = vmatprep.subr.mxu0 0.0
  %5339 = vmatpush1.msra.mxu0 0.0
  %5340 = vmatprep.subr.mxu0 0.0
  %5341 = vmatpush1.msra.mxu0 0.0
  %5342 = vmatprep.subr.mxu0 0.0
  %5343 = vmatpush1.msra.mxu0 0.0
  %5344 = vmatprep.subr.mxu0 0.0
  %5345 = vmatpush1.msra.mxu0 0.0
  %5346 = vmatprep.subr.mxu0 0.0
  %5347 = vmatpush1.msra.mxu0 0.0
  %5348 = vmatprep.subr.mxu0 0.0
  %5349 = vmatpush1.msra.mxu0 0.0
  %5350 = vmatprep.subr.mxu0 0.0
  %5351 = vmatpush1.msra.mxu0 0.0
  %5352 = vmatprep.subr.mxu0 0.0
  %5353 = vmatpush1.msra.mxu0 0.0
  %5354 = vmatprep.subr.mxu0 0.0
  %5355 = vmatpush1.msra.mxu0 0.0
  %5356 = vmatprep.subr.mxu0 0.0
  %5357 = vmatpush1.msra.mxu0 0.0
  %5358 = vmatprep.subr.mxu0 0.0
  %v5359 = vand.u32 %v5141, 4294901760
  %v5360 = vsub.f32 %v5141, %v5359
  %5361 = vmatpush1.msra.mxu0 %v5360
  %5362 = vmatprep.subr.mxu0 0.0
  %v5363 = vand.u32 %v5140, 4294901760
  %v5364 = vsub.f32 %v5140, %v5363
  %5365 = vmatpush1.msra.mxu0 %v5364
  %5366 = vmatprep.subr.mxu0 0.0
  %v5367 = vand.u32 %v5139, 4294901760
  %v5368 = vsub.f32 %v5139, %v5367
  %5369 = vmatpush1.msra.mxu0 %v5368
  %5370 = vmatprep.subr.mxu0 0.0
  %v5371 = vand.u32 %v5138, 4294901760
  %v5372 = vsub.f32 %v5138, %v5371
  %5373 = vmatpush1.msra.mxu0 %v5372
  %5374 = vmatprep.subr.mxu0 0.0
  %5375 = vmatpush2.msra.mxu0 0.0
  %5376 = vmatprep.subr.mxu0 0.0
  %5377 = vmatpush2.msra.mxu0 0.0
  %5378 = vmatprep.subr.mxu0 0.0
  %5379 = vmatpush2.msra.mxu0 0.0
  %5380 = vmatprep.subr.mxu0 0.0
  %5381 = vmatpush2.msra.mxu0 0.0
  %5382 = vmatprep.subr.mxu0 0.0
  %5383 = vmatpush2.msra.mxu0 0.0
  %5384 = vmatprep.subr.mxu0 0.0
  %5385 = vmatpush2.msra.mxu0 0.0
  %5386 = vmatprep.subr.mxu0 0.0
  %5387 = vmatpush2.msra.mxu0 0.0
  %5388 = vmatprep.subr.mxu0 0.0
  %5389 = vmatpush2.msra.mxu0 0.0
  %5390 = vmatprep.subr.mxu0 0.0
  %5391 = vmatpush2.msra.mxu0 0.0
  %5392 = vmatprep.subr.mxu0 0.0
  %5393 = vmatpush2.msra.mxu0 0.0
  %5394 = vmatprep.subr.mxu0 0.0
  %5395 = vmatpush2.msra.mxu0 0.0
  %5396 = vmatprep.subr.mxu0 0.0
  %5397 = vmatpush2.msra.mxu0 0.0
  %5398 = vmatprep.subr.mxu0 0.0
  %5399 = vmatpush2.msra.mxu0 0.0
  %5400 = vmatprep.subr.mxu0 0.0
  %5401 = vmatpush2.msra.mxu0 0.0
  %5402 = vmatprep.subr.mxu0 0.0
  %5403 = vmatpush2.msra.mxu0 0.0
  %5404 = vmatprep.subr.mxu0 0.0
  %5405 = vmatpush2.msra.mxu0 0.0
  %5406 = vmatprep.mubr.f32.mxu0 0.0
  %v5407 = vand.u32 %v5143, 4294901760
  %v5408 = vsub.f32 %v5143, %v5407
  %5409 = vmatmul.mubr.f32.gmra.mxu0 %v5408
  %v5410 = vpop.f32.mrf.mxu0
  %v5411 = vadd.f32 %v5325, %v5410
  %v5412 = vpop.f32.mrf.mxu0
  %5413 = vmatprep.mubr.f32.mxu0 0.0
  %v5414 = vand.u32 %v5146, 4294901760
  %v5415 = vsub.f32 %v5146, %v5414
  %5416 = vmatmul.mubr.f32.gmra.mxu0 %v5415
  %v5417 = vpop.f32.mrf.mxu0
  %v5418 = vadd.f32 %v5331, %v5417
  %v5419 = vpop.f32.mrf.mxu0
  %5420 = vdwg.mxu0
  %5421 = vmatprep.subr.mxu0 0.0
  %5422 = vmatpush1.msra.mxu0 0.0
  %5423 = vmatprep.subr.mxu0 0.0
  %5424 = vmatpush1.msra.mxu0 0.0
  %5425 = vmatprep.subr.mxu0 0.0
  %5426 = vmatpush1.msra.mxu0 0.0
  %5427 = vmatprep.subr.mxu0 0.0
  %5428 = vmatpush1.msra.mxu0 0.0
  %5429 = vmatprep.subr.mxu0 0.0
  %5430 = vmatpush1.msra.mxu0 0.0
  %5431 = vmatprep.subr.mxu0 0.0
  %5432 = vmatpush1.msra.mxu0 0.0
  %5433 = vmatprep.subr.mxu0 0.0
  %5434 = vmatpush1.msra.mxu0 0.0
  %5435 = vmatprep.subr.mxu0 0.0
  %5436 = vmatpush1.msra.mxu0 0.0
  %5437 = vmatprep.subr.mxu0 0.0
  %5438 = vmatpush1.msra.mxu0 0.0
  %5439 = vmatprep.subr.mxu0 0.0
  %5440 = vmatpush1.msra.mxu0 0.0
  %5441 = vmatprep.subr.mxu0 0.0
  %5442 = vmatpush1.msra.mxu0 0.0
  %5443 = vmatprep.subr.mxu0 0.0
  %5444 = vmatpush1.msra.mxu0 0.0
  %5445 = vmatprep.subr.mxu0 0.0
  %v5446 = vand.u32 %v5141, 4294901760
  %5447 = vmatpush1.msra.mxu0 %v5446
  %5448 = vmatprep.subr.mxu0 0.0
  %v5449 = vand.u32 %v5140, 4294901760
  %5450 = vmatpush1.msra.mxu0 %v5449
  %5451 = vmatprep.subr.mxu0 0.0
  %v5452 = vand.u32 %v5139, 4294901760
  %5453 = vmatpush1.msra.mxu0 %v5452
  %5454 = vmatprep.subr.mxu0 0.0
  %v5455 = vand.u32 %v5138, 4294901760
  %5456 = vmatpush1.msra.mxu0 %v5455
  %5457 = vmatprep.subr.mxu0 0.0
  %5458 = vmatpush2.msra.mxu0 0.0
  %5459 = vmatprep.subr.mxu0 0.0
  %5460 = vmatpush2.msra.mxu0 0.0
  %5461 = vmatprep.subr.mxu0 0.0
  %5462 = vmatpush2.msra.mxu0 0.0
  %5463 = vmatprep.subr.mxu0 0.0
  %5464 = vmatpush2.msra.mxu0 0.0
  %5465 = vmatprep.subr.mxu0 0.0
  %5466 = vmatpush2.msra.mxu0 0.0
  %5467 = vmatprep.subr.mxu0 0.0
  %5468 = vmatpush2.msra.mxu0 0.0
  %5469 = vmatprep.subr.mxu0 0.0
  %5470 = vmatpush2.msra.mxu0 0.0
  %5471 = vmatprep.subr.mxu0 0.0
  %5472 = vmatpush2.msra.mxu0 0.0
  %5473 = vmatprep.subr.mxu0 0.0
  %5474 = vmatpush2.msra.mxu0 0.0
  %5475 = vmatprep.subr.mxu0 0.0
  %5476 = vmatpush2.msra.mxu0 0.0
  %5477 = vmatprep.subr.mxu0 0.0
  %5478 = vmatpush2.msra.mxu0 0.0
  %5479 = vmatprep.subr.mxu0 0.0
  %5480 = vmatpush2.msra.mxu0 0.0
  %5481 = vmatprep.subr.mxu0 0.0
  %5482 = vmatpush2.msra.mxu0 0.0
  %5483 = vmatprep.subr.mxu0 0.0
  %5484 = vmatpush2.msra.mxu0 0.0
  %5485 = vmatprep.subr.mxu0 0.0
  %5486 = vmatpush2.msra.mxu0 0.0
  %5487 = vmatprep.subr.mxu0 0.0
  %5488 = vmatpush2.msra.mxu0 0.0
  %5489 = vmatprep.mubr.f32.mxu0 0.0
  %v5490 = vand.u32 %v5143, 4294901760
  %v5491 = vsub.f32 %v5143, %v5490
  %v5492 = vand.u32 %v5491, 4294901760
  %5493 = vmatmul.mubr.f32.gmra.mxu0 %v5492
  %v5494 = vpop.f32.mrf.mxu0
  %v5495 = vadd.f32 %v5411, %v5494
  %v5496 = vpop.f32.mrf.mxu0
  %5497 = vmatprep.mubr.f32.mxu0 0.0
  %v5498 = vand.u32 %v5146, 4294901760
  %v5499 = vsub.f32 %v5146, %v5498
  %v5500 = vand.u32 %v5499, 4294901760
  %5501 = vmatmul.mubr.f32.gmra.mxu0 %v5500
  %v5502 = vpop.f32.mrf.mxu0
  %v5503 = vadd.f32 %v5418, %v5502
  %v5504 = vpop.f32.mrf.mxu0
  %5505 = vdwg.mxu0
  %5506 = vmatprep.subr.mxu0 0.0
  %5507 = vmatpush1.msra.mxu0 0.0
  %5508 = vmatprep.subr.mxu0 0.0
  %5509 = vmatpush1.msra.mxu0 0.0
  %5510 = vmatprep.subr.mxu0 0.0
  %5511 = vmatpush1.msra.mxu0 0.0
  %5512 = vmatprep.subr.mxu0 0.0
  %5513 = vmatpush1.msra.mxu0 0.0
  %5514 = vmatprep.subr.mxu0 0.0
  %5515 = vmatpush1.msra.mxu0 0.0
  %5516 = vmatprep.subr.mxu0 0.0
  %5517 = vmatpush1.msra.mxu0 0.0
  %5518 = vmatprep.subr.mxu0 0.0
  %5519 = vmatpush1.msra.mxu0 0.0
  %5520 = vmatprep.subr.mxu0 0.0
  %5521 = vmatpush1.msra.mxu0 0.0
  %5522 = vmatprep.subr.mxu0 0.0
  %5523 = vmatpush1.msra.mxu0 0.0
  %5524 = vmatprep.subr.mxu0 0.0
  %5525 = vmatpush1.msra.mxu0 0.0
  %5526 = vmatprep.subr.mxu0 0.0
  %5527 = vmatpush1.msra.mxu0 0.0
  %5528 = vmatprep.subr.mxu0 0.0
  %5529 = vmatpush1.msra.mxu0 0.0
  %5530 = vmatprep.subr.mxu0 0.0
  %v5531 = vand.u32 %v5141, 4294901760
  %v5532 = vsub.f32 %v5141, %v5531
  %v5533 = vand.u32 %v5532, 4294901760
  %5534 = vmatpush1.msra.mxu0 %v5533
  %5535 = vmatprep.subr.mxu0 0.0
  %v5536 = vand.u32 %v5140, 4294901760
  %v5537 = vsub.f32 %v5140, %v5536
  %v5538 = vand.u32 %v5537, 4294901760
  %5539 = vmatpush1.msra.mxu0 %v5538
  %5540 = vmatprep.subr.mxu0 0.0
  %v5541 = vand.u32 %v5139, 4294901760
  %v5542 = vsub.f32 %v5139, %v5541
  %v5543 = vand.u32 %v5542, 4294901760
  %5544 = vmatpush1.msra.mxu0 %v5543
  %5545 = vmatprep.subr.mxu0 0.0
  %v5546 = vand.u32 %v5138, 4294901760
  %v5547 = vsub.f32 %v5138, %v5546
  %v5548 = vand.u32 %v5547, 4294901760
  %5549 = vmatpush1.msra.mxu0 %v5548
  %5550 = vmatprep.subr.mxu0 0.0
  %5551 = vmatpush2.msra.mxu0 0.0
  %5552 = vmatprep.subr.mxu0 0.0
  %5553 = vmatpush2.msra.mxu0 0.0
  %5554 = vmatprep.subr.mxu0 0.0
  %5555 = vmatpush2.msra.mxu0 0.0
  %5556 = vmatprep.subr.mxu0 0.0
  %5557 = vmatpush2.msra.mxu0 0.0
  %5558 = vmatprep.subr.mxu0 0.0
  %5559 = vmatpush2.msra.mxu0 0.0
  %5560 = vmatprep.subr.mxu0 0.0
  %5561 = vmatpush2.msra.mxu0 0.0
  %5562 = vmatprep.subr.mxu0 0.0
  %5563 = vmatpush2.msra.mxu0 0.0
  %5564 = vmatprep.subr.mxu0 0.0
  %5565 = vmatpush2.msra.mxu0 0.0
  %5566 = vmatprep.subr.mxu0 0.0
  %5567 = vmatpush2.msra.mxu0 0.0
  %5568 = vmatprep.subr.mxu0 0.0
  %5569 = vmatpush2.msra.mxu0 0.0
  %5570 = vmatprep.subr.mxu0 0.0
  %5571 = vmatpush2.msra.mxu0 0.0
  %5572 = vmatprep.subr.mxu0 0.0
  %5573 = vmatpush2.msra.mxu0 0.0
  %5574 = vmatprep.subr.mxu0 0.0
  %5575 = vmatpush2.msra.mxu0 0.0
  %5576 = vmatprep.subr.mxu0 0.0
  %5577 = vmatpush2.msra.mxu0 0.0
  %5578 = vmatprep.subr.mxu0 0.0
  %5579 = vmatpush2.msra.mxu0 0.0
  %5580 = vmatprep.subr.mxu0 0.0
  %5581 = vmatpush2.msra.mxu0 0.0
  %5582 = vmatprep.mubr.f32.mxu0 0.0
  %v5583 = vand.u32 %v5143, 4294901760
  %5584 = vmatmul.mubr.f32.gmra.mxu0 %v5583
  %v5585 = vpop.f32.mrf.mxu0
  %v5586 = vadd.f32 %v5495, %v5585
  %v5587 = vpop.f32.mrf.mxu0
  %5588 = vmatprep.mubr.f32.mxu0 0.0
  %v5589 = vand.u32 %v5146, 4294901760
  %5590 = vmatmul.mubr.f32.gmra.mxu0 %v5589
  %v5591 = vpop.f32.mrf.mxu0
  %v5592 = vadd.f32 %v5503, %v5591
  %v5593 = vpop.f32.mrf.mxu0
  %5594 = vdwg.mxu0
  %5595 = vmatprep.subr.mxu0 0.0
  %5596 = vmatpush1.msra.mxu0 0.0
  %5597 = vmatprep.subr.mxu0 0.0
  %5598 = vmatpush1.msra.mxu0 0.0
  %5599 = vmatprep.subr.mxu0 0.0
  %5600 = vmatpush1.msra.mxu0 0.0
  %5601 = vmatprep.subr.mxu0 0.0
  %5602 = vmatpush1.msra.mxu0 0.0
  %5603 = vmatprep.subr.mxu0 0.0
  %5604 = vmatpush1.msra.mxu0 0.0
  %5605 = vmatprep.subr.mxu0 0.0
  %5606 = vmatpush1.msra.mxu0 0.0
  %5607 = vmatprep.subr.mxu0 0.0
  %5608 = vmatpush1.msra.mxu0 0.0
  %5609 = vmatprep.subr.mxu0 0.0
  %5610 = vmatpush1.msra.mxu0 0.0
  %5611 = vmatprep.subr.mxu0 0.0
  %5612 = vmatpush1.msra.mxu0 0.0
  %5613 = vmatprep.subr.mxu0 0.0
  %5614 = vmatpush1.msra.mxu0 0.0
  %5615 = vmatprep.subr.mxu0 0.0
  %5616 = vmatpush1.msra.mxu0 0.0
  %5617 = vmatprep.subr.mxu0 0.0
  %5618 = vmatpush1.msra.mxu0 0.0
  %5619 = vmatprep.subr.mxu0 0.0
  %v5620 = vand.u32 %v5141, 4294901760
  %5621 = vmatpush1.msra.mxu0 %v5620
  %5622 = vmatprep.subr.mxu0 0.0
  %v5623 = vand.u32 %v5140, 4294901760
  %5624 = vmatpush1.msra.mxu0 %v5623
  %5625 = vmatprep.subr.mxu0 0.0
  %v5626 = vand.u32 %v5139, 4294901760
  %5627 = vmatpush1.msra.mxu0 %v5626
  %5628 = vmatprep.subr.mxu0 0.0
  %v5629 = vand.u32 %v5138, 4294901760
  %5630 = vmatpush1.msra.mxu0 %v5629
  %5631 = vmatprep.subr.mxu0 0.0
  %5632 = vmatpush2.msra.mxu0 0.0
  %5633 = vmatprep.subr.mxu0 0.0
  %5634 = vmatpush2.msra.mxu0 0.0
  %5635 = vmatprep.subr.mxu0 0.0
  %5636 = vmatpush2.msra.mxu0 0.0
  %5637 = vmatprep.subr.mxu0 0.0
  %5638 = vmatpush2.msra.mxu0 0.0
  %5639 = vmatprep.subr.mxu0 0.0
  %5640 = vmatpush2.msra.mxu0 0.0
  %5641 = vmatprep.subr.mxu0 0.0
  %5642 = vmatpush2.msra.mxu0 0.0
  %5643 = vmatprep.subr.mxu0 0.0
  %5644 = vmatpush2.msra.mxu0 0.0
  %5645 = vmatprep.subr.mxu0 0.0
  %5646 = vmatpush2.msra.mxu0 0.0
  %5647 = vmatprep.subr.mxu0 0.0
  %5648 = vmatpush2.msra.mxu0 0.0
  %5649 = vmatprep.subr.mxu0 0.0
  %5650 = vmatpush2.msra.mxu0 0.0
  %5651 = vmatprep.subr.mxu0 0.0
  %5652 = vmatpush2.msra.mxu0 0.0
  %5653 = vmatprep.subr.mxu0 0.0
  %5654 = vmatpush2.msra.mxu0 0.0
  %5655 = vmatprep.subr.mxu0 0.0
  %5656 = vmatpush2.msra.mxu0 0.0
  %5657 = vmatprep.subr.mxu0 0.0
  %5658 = vmatpush2.msra.mxu0 0.0
  %5659 = vmatprep.subr.mxu0 0.0
  %5660 = vmatpush2.msra.mxu0 0.0
  %5661 = vmatprep.subr.mxu0 0.0
  %5662 = vmatpush2.msra.mxu0 0.0
  %5663 = vmatprep.mubr.f32.mxu0 0.0
  %v5664 = vand.u32 %v5143, 4294901760
  %5665 = vmatmul.mubr.f32.gmra.mxu0 %v5664
  %v5666 = vpop.f32.mrf.mxu0
  %v5667 = vadd.f32 %v5586, %v5666
  %v5668 = vpop.f32.mrf.mxu0
  %5669 = vmatprep.mubr.f32.mxu0 0.0
  %v5670 = vand.u32 %v5146, 4294901760
  %5671 = vmatmul.mubr.f32.gmra.mxu0 %v5670
  %v5672 = vpop.f32.mrf.mxu0
  %v5673 = vadd.f32 %v5592, %v5672
  %v5674 = vpop.f32.mrf.mxu0
  %5675 = vdwg.mxu0
  %v5676 = vld [vmem:[%s41] sm:$0x1]
  %v5677 = vld [vmem:[%s43] sm:$0x1]
  %vm5678 = vcmask 130048
  %v5679 = vsel %vm5678, %v5667, 0.0
  %v5680 = vsel %vm5678, %v5673, 0.0
  %v5681 = vadd.f32 %v5679, %v5680
  %v5682 = vrot.slane %v5681, 4
  %v5683 = vadd.f32 %v5681, %v5682
  %v5684 = vrot.slane %v5683, 2
  %v5685 = vadd.f32 %v5683, %v5684
  %v5686 = vrot.slane %v5685, 1
  %v5687 = vadd.f32 %v5685, %v5686
  %v5688 = vmul.f32 %v5687, 0.0625
  %v5689 = vsub.f32 %v5667, %v5688
  %v5690 = vsub.f32 %v5673, %v5688
  %v5691 = vmul.f32 %v5689, %v5689
  %v5692 = vmul.f32 %v5690, %v5690
  %v5693 = vsel %vm5678, %v5691, 0.0
  %v5694 = vsel %vm5678, %v5692, 0.0
  %v5695 = vadd.f32 %v5693, %v5694
  %v5696 = vrot.slane %v5695, 4
  %v5697 = vadd.f32 %v5695, %v5696
  %v5698 = vrot.slane %v5697, 2
  %v5699 = vadd.f32 %v5697, %v5698
  %v5700 = vrot.slane %v5699, 1
  %v5701 = vadd.f32 %v5699, %v5700
  %v5702 = vmul.f32 %v5701, 0.0625
  %v5703 = vadd.f32 %v5702, 1e-05
  %v5704 = vrsqrt.pop %v5703
  %v5705 = vmul.f32 %v5689, %v5704
  %v5706 = vmul.f32 %v5690, %v5704
  %v5708 = vlaneseq
  %v5709 = vshrl.u32 %v5708, 7
  %v5710 = vsub.s32 0, %v5709
  %v5711 = vrot.slane %v5676, %v5710
  %v5713 = vmul.f32 %v5705, %v5711
  %v5714 = vmul.f32 %v5706, %v5711
  %v5716 = vlaneseq
  %v5717 = vshrl.u32 %v5716, 7
  %v5718 = vsub.s32 0, %v5717
  %v5719 = vrot.slane %v5677, %v5718
  %v5721 = vadd.f32 %v5713, %v5719
  %v5722 = vadd.f32 %v5714, %v5719
  %v5723 = vmax.f32 %v5721, 0.0
  %v5724 = vmax.f32 %v5722, 0.0
  loop: start=0, step=1, limit=32
  $region180: #{tpu_custom_call.1} parent=0 // loop_pre_header
    _
  $region181: #{tpu_custom_call.1} parent=0 // loop_header
    %s5726 = sphi 0, %s5730
    %p5727 = scmp.ge.s32.totalorder %s5726, 32
    %v5731 = vphi %v5723, %v6844
    %v5732 = vphi %v5724, %v6845
  $region182: #{tpu_custom_call.1} parent=0 // loop_header_branch
    %5729 = sbr.rel (%p5727) target = $region186
  $region183: #{tpu_custom_call.1} parent=0 // loop_body
    %s5733 = smul.u32 %s5726, 16
    %s5734 = scalar_lea.vmem %s45, %s5733
    %v5735 = vld [vmem:[%s5734] sm:$0xff]
    %v5736 = vld [vmem:[%s5734 + $0x8] sm:$0xff]
    %v5738 = vsel %vm5678, %v5731, 0
    %v5741 = vsel %vm5678, %v5732, 0
    %5743 = vmatprep.subr.mxu0 0.0
    %5744 = vmatpush1.msra.mxu0 0.0
    %5745 = vmatprep.subr.mxu0 0.0
    %5746 = vmatpush1.msra.mxu0 0.0
    %5747 = vmatprep.subr.mxu0 0.0
    %5748 = vmatpush1.msra.mxu0 0.0
    %5749 = vmatprep.subr.mxu0 0.0
    %5750 = vmatpush1.msra.mxu0 0.0
    %5751 = vmatprep.subr.mxu0 0.0
    %5752 = vmatpush1.msra.mxu0 0.0
    %5753 = vmatprep.subr.mxu0 0.0
    %5754 = vmatpush1.msra.mxu0 0.0
    %5755 = vmatprep.subr.mxu0 0.0
    %5756 = vmatpush1.msra.mxu0 0.0
    %5757 = vmatprep.subr.mxu0 0.0
    %5758 = vmatpush1.msra.mxu0 0.0
    %5759 = vmatprep.subr.mxu0 0.0
    %5760 = vmatpush1.msra.mxu0 0.0
    %5761 = vmatprep.subr.mxu0 0.0
    %5762 = vmatpush1.msra.mxu0 0.0
    %5763 = vmatprep.subr.mxu0 0.0
    %5764 = vmatpush1.msra.mxu0 0.0
    %5765 = vmatprep.subr.mxu0 0.0
    %5766 = vmatpush1.msra.mxu0 0.0
    %5767 = vmatprep.subr.mxu0 0.0
    %5768 = vmatpush1.msra.mxu0 0.0
    %5769 = vmatprep.subr.mxu0 0.0
    %5770 = vmatpush1.msra.mxu0 0.0
    %5771 = vmatprep.subr.mxu0 0.0
    %v5772 = vand.u32 %v5736, 4294901760
    %5773 = vmatpush1.msra.mxu0 %v5772
    %5774 = vmatprep.subr.mxu0 0.0
    %v5775 = vand.u32 %v5735, 4294901760
    %5776 = vmatpush1.msra.mxu0 %v5775
    %5777 = vmatprep.subr.mxu0 0.0
    %5778 = vmatpush2.msra.mxu0 0.0
    %5779 = vmatprep.subr.mxu0 0.0
    %5780 = vmatpush2.msra.mxu0 0.0
    %5781 = vmatprep.subr.mxu0 0.0
    %5782 = vmatpush2.msra.mxu0 0.0
    %5783 = vmatprep.subr.mxu0 0.0
    %5784 = vmatpush2.msra.mxu0 0.0
    %5785 = vmatprep.subr.mxu0 0.0
    %5786 = vmatpush2.msra.mxu0 0.0
    %5787 = vmatprep.subr.mxu0 0.0
    %5788 = vmatpush2.msra.mxu0 0.0
    %5789 = vmatprep.subr.mxu0 0.0
    %5790 = vmatpush2.msra.mxu0 0.0
    %5791 = vmatprep.subr.mxu0 0.0
    %5792 = vmatpush2.msra.mxu0 0.0
    %5793 = vmatprep.subr.mxu0 0.0
    %5794 = vmatpush2.msra.mxu0 0.0
    %5795 = vmatprep.subr.mxu0 0.0
    %5796 = vmatpush2.msra.mxu0 0.0
    %5797 = vmatprep.subr.mxu0 0.0
    %5798 = vmatpush2.msra.mxu0 0.0
    %5799 = vmatprep.subr.mxu0 0.0
    %5800 = vmatpush2.msra.mxu0 0.0
    %5801 = vmatprep.subr.mxu0 0.0
    %5802 = vmatpush2.msra.mxu0 0.0
    %5803 = vmatprep.subr.mxu0 0.0
    %5804 = vmatpush2.msra.mxu0 0.0
    %5805 = vmatprep.subr.mxu0 0.0
    %5806 = vmatpush2.msra.mxu0 0.0
    %5807 = vmatprep.subr.mxu0 0.0
    %5808 = vmatpush2.msra.mxu0 0.0
    %5809 = vmatprep.mubr.f32.mxu0 0.0
    %v5810 = vand.u32 %v5738, 4294901760
    %v5811 = vsub.f32 %v5738, %v5810
    %v5812 = vand.u32 %v5811, 4294901760
    %v5813 = vsub.f32 %v5811, %v5812
    %v5814 = vand.u32 %v5813, 4294901760
    %5815 = vmatmul.mubr.f32.gmra.mxu0 %v5814
    %v5816 = vpop.f32.mrf.mxu0
    %v5817 = vadd.f32 0.0, %v5816
    %v5818 = vpop.f32.mrf.mxu0
    %5819 = vmatprep.mubr.f32.mxu0 0.0
    %v5820 = vand.u32 %v5741, 4294901760
    %v5821 = vsub.f32 %v5741, %v5820
    %v5822 = vand.u32 %v5821, 4294901760
    %v5823 = vsub.f32 %v5821, %v5822
    %v5824 = vand.u32 %v5823, 4294901760
    %5825 = vmatmul.mubr.f32.gmra.mxu0 %v5824
    %v5826 = vpop.f32.mrf.mxu0
    %v5827 = vadd.f32 0.0, %v5826
    %v5828 = vpop.f32.mrf.mxu0
    %5829 = vdwg.mxu0
    %5830 = vmatprep.subr.mxu0 0.0
    %5831 = vmatpush1.msra.mxu0 0.0
    %5832 = vmatprep.subr.mxu0 0.0
    %5833 = vmatpush1.msra.mxu0 0.0
    %5834 = vmatprep.subr.mxu0 0.0
    %5835 = vmatpush1.msra.mxu0 0.0
    %5836 = vmatprep.subr.mxu0 0.0
    %5837 = vmatpush1.msra.mxu0 0.0
    %5838 = vmatprep.subr.mxu0 0.0
    %5839 = vmatpush1.msra.mxu0 0.0
    %5840 = vmatprep.subr.mxu0 0.0
    %5841 = vmatpush1.msra.mxu0 0.0
    %5842 = vmatprep.subr.mxu0 0.0
    %5843 = vmatpush1.msra.mxu0 0.0
    %5844 = vmatprep.subr.mxu0 0.0
    %5845 = vmatpush1.msra.mxu0 0.0
    %5846 = vmatprep.subr.mxu0 0.0
    %5847 = vmatpush1.msra.mxu0 0.0
    %5848 = vmatprep.subr.mxu0 0.0
    %5849 = vmatpush1.msra.mxu0 0.0
    %5850 = vmatprep.subr.mxu0 0.0
    %5851 = vmatpush1.msra.mxu0 0.0
    %5852 = vmatprep.subr.mxu0 0.0
    %5853 = vmatpush1.msra.mxu0 0.0
    %5854 = vmatprep.subr.mxu0 0.0
    %5855 = vmatpush1.msra.mxu0 0.0
    %5856 = vmatprep.subr.mxu0 0.0
    %5857 = vmatpush1.msra.mxu0 0.0
    %5858 = vmatprep.subr.mxu0 0.0
    %v5859 = vand.u32 %v5736, 4294901760
    %v5860 = vsub.f32 %v5736, %v5859
    %v5861 = vand.u32 %v5860, 4294901760
    %v5862 = vsub.f32 %v5860, %v5861
    %v5863 = vand.u32 %v5862, 4294901760
    %5864 = vmatpush1.msra.mxu0 %v5863
    %5865 = vmatprep.subr.mxu0 0.0
    %v5866 = vand.u32 %v5735, 4294901760
    %v5867 = vsub.f32 %v5735, %v5866
    %v5868 = vand.u32 %v5867, 4294901760
    %v5869 = vsub.f32 %v5867, %v5868
    %v5870 = vand.u32 %v5869, 4294901760
    %5871 = vmatpush1.msra.mxu0 %v5870
    %5872 = vmatprep.subr.mxu0 0.0
    %5873 = vmatpush2.msra.mxu0 0.0
    %5874 = vmatprep.subr.mxu0 0.0
    %5875 = vmatpush2.msra.mxu0 0.0
    %5876 = vmatprep.subr.mxu0 0.0
    %5877 = vmatpush2.msra.mxu0 0.0
    %5878 = vmatprep.subr.mxu0 0.0
    %5879 = vmatpush2.msra.mxu0 0.0
    %5880 = vmatprep.subr.mxu0 0.0
    %5881 = vmatpush2.msra.mxu0 0.0
    %5882 = vmatprep.subr.mxu0 0.0
    %5883 = vmatpush2.msra.mxu0 0.0
    %5884 = vmatprep.subr.mxu0 0.0
    %5885 = vmatpush2.msra.mxu0 0.0
    %5886 = vmatprep.subr.mxu0 0.0
    %5887 = vmatpush2.msra.mxu0 0.0
    %5888 = vmatprep.subr.mxu0 0.0
    %5889 = vmatpush2.msra.mxu0 0.0
    %5890 = vmatprep.subr.mxu0 0.0
    %5891 = vmatpush2.msra.mxu0 0.0
    %5892 = vmatprep.subr.mxu0 0.0
    %5893 = vmatpush2.msra.mxu0 0.0
    %5894 = vmatprep.subr.mxu0 0.0
    %5895 = vmatpush2.msra.mxu0 0.0
    %5896 = vmatprep.subr.mxu0 0.0
    %5897 = vmatpush2.msra.mxu0 0.0
    %5898 = vmatprep.subr.mxu0 0.0
    %5899 = vmatpush2.msra.mxu0 0.0
    %5900 = vmatprep.subr.mxu0 0.0
    %5901 = vmatpush2.msra.mxu0 0.0
    %5902 = vmatprep.subr.mxu0 0.0
    %5903 = vmatpush2.msra.mxu0 0.0
    %5904 = vmatprep.mubr.f32.mxu0 0.0
    %v5905 = vand.u32 %v5738, 4294901760
    %5906 = vmatmul.mubr.f32.gmra.mxu0 %v5905
    %v5907 = vpop.f32.mrf.mxu0
    %v5908 = vadd.f32 %v5817, %v5907
    %v5909 = vpop.f32.mrf.mxu0
    %5910 = vmatprep.mubr.f32.mxu0 0.0
    %v5911 = vand.u32 %v5741, 4294901760
    %5912 = vmatmul.mubr.f32.gmra.mxu0 %v5911
    %v5913 = vpop.f32.mrf.mxu0
    %v5914 = vadd.f32 %v5827, %v5913
    %v5915 = vpop.f32.mrf.mxu0
    %5916 = vdwg.mxu0
    %5917 = vmatprep.subr.mxu0 0.0
    %5918 = vmatpush1.msra.mxu0 0.0
    %5919 = vmatprep.subr.mxu0 0.0
    %5920 = vmatpush1.msra.mxu0 0.0
    %5921 = vmatprep.subr.mxu0 0.0
    %5922 = vmatpush1.msra.mxu0 0.0
    %5923 = vmatprep.subr.mxu0 0.0
    %5924 = vmatpush1.msra.mxu0 0.0
    %5925 = vmatprep.subr.mxu0 0.0
    %5926 = vmatpush1.msra.mxu0 0.0
    %5927 = vmatprep.subr.mxu0 0.0
    %5928 = vmatpush1.msra.mxu0 0.0
    %5929 = vmatprep.subr.mxu0 0.0
    %5930 = vmatpush1.msra.mxu0 0.0
    %5931 = vmatprep.subr.mxu0 0.0
    %5932 = vmatpush1.msra.mxu0 0.0
    %5933 = vmatprep.subr.mxu0 0.0
    %5934 = vmatpush1.msra.mxu0 0.0
    %5935 = vmatprep.subr.mxu0 0.0
    %5936 = vmatpush1.msra.mxu0 0.0
    %5937 = vmatprep.subr.mxu0 0.0
    %5938 = vmatpush1.msra.mxu0 0.0
    %5939 = vmatprep.subr.mxu0 0.0
    %5940 = vmatpush1.msra.mxu0 0.0
    %5941 = vmatprep.subr.mxu0 0.0
    %5942 = vmatpush1.msra.mxu0 0.0
    %5943 = vmatprep.subr.mxu0 0.0
    %5944 = vmatpush1.msra.mxu0 0.0
    %5945 = vmatprep.subr.mxu0 0.0
    %v5946 = vand.u32 %v5736, 4294901760
    %v5947 = vsub.f32 %v5736, %v5946
    %5948 = vmatpush1.msra.mxu0 %v5947
    %5949 = vmatprep.subr.mxu0 0.0
    %v5950 = vand.u32 %v5735, 4294901760
    %v5951 = vsub.f32 %v5735, %v5950
    %5952 = vmatpush1.msra.mxu0 %v5951
    %5953 = vmatprep.subr.mxu0 0.0
    %5954 = vmatpush2.msra.mxu0 0.0
    %5955 = vmatprep.subr.mxu0 0.0
    %5956 = vmatpush2.msra.mxu0 0.0
    %5957 = vmatprep.subr.mxu0 0.0
    %5958 = vmatpush2.msra.mxu0 0.0
    %5959 = vmatprep.subr.mxu0 0.0
    %5960 = vmatpush2.msra.mxu0 0.0
    %5961 = vmatprep.subr.mxu0 0.0
    %5962 = vmatpush2.msra.mxu0 0.0
    %5963 = vmatprep.subr.mxu0 0.0
    %5964 = vmatpush2.msra.mxu0 0.0
    %5965 = vmatprep.subr.mxu0 0.0
    %5966 = vmatpush2.msra.mxu0 0.0
    %5967 = vmatprep.subr.mxu0 0.0
    %5968 = vmatpush2.msra.mxu0 0.0
    %5969 = vmatprep.subr.mxu0 0.0
    %5970 = vmatpush2.msra.mxu0 0.0
    %5971 = vmatprep.subr.mxu0 0.0
    %5972 = vmatpush2.msra.mxu0 0.0
    %5973 = vmatprep.subr.mxu0 0.0
    %5974 = vmatpush2.msra.mxu0 0.0
    %5975 = vmatprep.subr.mxu0 0.0
    %5976 = vmatpush2.msra.mxu0 0.0
    %5977 = vmatprep.subr.mxu0 0.0
    %5978 = vmatpush2.msra.mxu0 0.0
    %5979 = vmatprep.subr.mxu0 0.0
    %5980 = vmatpush2.msra.mxu0 0.0
    %5981 = vmatprep.subr.mxu0 0.0
    %5982 = vmatpush2.msra.mxu0 0.0
    %5983 = vmatprep.subr.mxu0 0.0
    %5984 = vmatpush2.msra.mxu0 0.0
    %5985 = vmatprep.mubr.f32.mxu0 0.0
    %v5986 = vand.u32 %v5738, 4294901760
    %v5987 = vsub.f32 %v5738, %v5986
    %5988 = vmatmul.mubr.f32.gmra.mxu0 %v5987
    %v5989 = vpop.f32.mrf.mxu0
    %v5990 = vadd.f32 %v5908, %v5989
    %v5991 = vpop.f32.mrf.mxu0
    %5992 = vmatprep.mubr.f32.mxu0 0.0
    %v5993 = vand.u32 %v5741, 4294901760
    %v5994 = vsub.f32 %v5741, %v5993
    %5995 = vmatmul.mubr.f32.gmra.mxu0 %v5994
    %v5996 = vpop.f32.mrf.mxu0
    %v5997 = vadd.f32 %v5914, %v5996
    %v5998 = vpop.f32.mrf.mxu0
    %5999 = vdwg.mxu0
    %6000 = vmatprep.subr.mxu0 0.0
    %6001 = vmatpush1.msra.mxu0 0.0
    %6002 = vmatprep.subr.mxu0 0.0
    %6003 = vmatpush1.msra.mxu0 0.0
    %6004 = vmatprep.subr.mxu0 0.0
    %6005 = vmatpush1.msra.mxu0 0.0
    %6006 = vmatprep.subr.mxu0 0.0
    %6007 = vmatpush1.msra.mxu0 0.0
    %6008 = vmatprep.subr.mxu0 0.0
    %6009 = vmatpush1.msra.mxu0 0.0
    %6010 = vmatprep.subr.mxu0 0.0
    %6011 = vmatpush1.msra.mxu0 0.0
    %6012 = vmatprep.subr.mxu0 0.0
    %6013 = vmatpush1.msra.mxu0 0.0
    %6014 = vmatprep.subr.mxu0 0.0
    %6015 = vmatpush1.msra.mxu0 0.0
    %6016 = vmatprep.subr.mxu0 0.0
    %6017 = vmatpush1.msra.mxu0 0.0
    %6018 = vmatprep.subr.mxu0 0.0
    %6019 = vmatpush1.msra.mxu0 0.0
    %6020 = vmatprep.subr.mxu0 0.0
    %6021 = vmatpush1.msra.mxu0 0.0
    %6022 = vmatprep.subr.mxu0 0.0
    %6023 = vmatpush1.msra.mxu0 0.0
    %6024 = vmatprep.subr.mxu0 0.0
    %6025 = vmatpush1.msra.mxu0 0.0
    %6026 = vmatprep.subr.mxu0 0.0
    %6027 = vmatpush1.msra.mxu0 0.0
    %6028 = vmatprep.subr.mxu0 0.0
    %v6029 = vand.u32 %v5736, 4294901760
    %6030 = vmatpush1.msra.mxu0 %v6029
    %6031 = vmatprep.subr.mxu0 0.0
    %v6032 = vand.u32 %v5735, 4294901760
    %6033 = vmatpush1.msra.mxu0 %v6032
    %6034 = vmatprep.subr.mxu0 0.0
    %6035 = vmatpush2.msra.mxu0 0.0
    %6036 = vmatprep.subr.mxu0 0.0
    %6037 = vmatpush2.msra.mxu0 0.0
    %6038 = vmatprep.subr.mxu0 0.0
    %6039 = vmatpush2.msra.mxu0 0.0
    %6040 = vmatprep.subr.mxu0 0.0
    %6041 = vmatpush2.msra.mxu0 0.0
    %6042 = vmatprep.subr.mxu0 0.0
    %6043 = vmatpush2.msra.mxu0 0.0
    %6044 = vmatprep.subr.mxu0 0.0
    %6045 = vmatpush2.msra.mxu0 0.0
    %6046 = vmatprep.subr.mxu0 0.0
    %6047 = vmatpush2.msra.mxu0 0.0
    %6048 = vmatprep.subr.mxu0 0.0
    %6049 = vmatpush2.msra.mxu0 0.0
    %6050 = vmatprep.subr.mxu0 0.0
    %6051 = vmatpush2.msra.mxu0 0.0
    %6052 = vmatprep.subr.mxu0 0.0
    %6053 = vmatpush2.msra.mxu0 0.0
    %6054 = vmatprep.subr.mxu0 0.0
    %6055 = vmatpush2.msra.mxu0 0.0
    %6056 = vmatprep.subr.mxu0 0.0
    %6057 = vmatpush2.msra.mxu0 0.0
    %6058 = vmatprep.subr.mxu0 0.0
    %6059 = vmatpush2.msra.mxu0 0.0
    %6060 = vmatprep.subr.mxu0 0.0
    %6061 = vmatpush2.msra.mxu0 0.0
    %6062 = vmatprep.subr.mxu0 0.0
    %6063 = vmatpush2.msra.mxu0 0.0
    %6064 = vmatprep.subr.mxu0 0.0
    %6065 = vmatpush2.msra.mxu0 0.0
    %6066 = vmatprep.mubr.f32.mxu0 0.0
    %v6067 = vand.u32 %v5738, 4294901760
    %v6068 = vsub.f32 %v5738, %v6067
    %v6069 = vand.u32 %v6068, 4294901760
    %6070 = vmatmul.mubr.f32.gmra.mxu0 %v6069
    %v6071 = vpop.f32.mrf.mxu0
    %v6072 = vadd.f32 %v5990, %v6071
    %v6073 = vpop.f32.mrf.mxu0
    %6074 = vmatprep.mubr.f32.mxu0 0.0
    %v6075 = vand.u32 %v5741, 4294901760
    %v6076 = vsub.f32 %v5741, %v6075
    %v6077 = vand.u32 %v6076, 4294901760
    %6078 = vmatmul.mubr.f32.gmra.mxu0 %v6077
    %v6079 = vpop.f32.mrf.mxu0
    %v6080 = vadd.f32 %v5997, %v6079
    %v6081 = vpop.f32.mrf.mxu0
    %6082 = vdwg.mxu0
    %6083 = vmatprep.subr.mxu0 0.0
    %6084 = vmatpush1.msra.mxu0 0.0
    %6085 = vmatprep.subr.mxu0 0.0
    %6086 = vmatpush1.msra.mxu0 0.0
    %6087 = vmatprep.subr.mxu0 0.0
    %6088 = vmatpush1.msra.mxu0 0.0
    %6089 = vmatprep.subr.mxu0 0.0
    %6090 = vmatpush1.msra.mxu0 0.0
    %6091 = vmatprep.subr.mxu0 0.0
    %6092 = vmatpush1.msra.mxu0 0.0
    %6093 = vmatprep.subr.mxu0 0.0
    %6094 = vmatpush1.msra.mxu0 0.0
    %6095 = vmatprep.subr.mxu0 0.0
    %6096 = vmatpush1.msra.mxu0 0.0
    %6097 = vmatprep.subr.mxu0 0.0
    %6098 = vmatpush1.msra.mxu0 0.0
    %6099 = vmatprep.subr.mxu0 0.0
    %6100 = vmatpush1.msra.mxu0 0.0
    %6101 = vmatprep.subr.mxu0 0.0
    %6102 = vmatpush1.msra.mxu0 0.0
    %6103 = vmatprep.subr.mxu0 0.0
    %6104 = vmatpush1.msra.mxu0 0.0
    %6105 = vmatprep.subr.mxu0 0.0
    %6106 = vmatpush1.msra.mxu0 0.0
    %6107 = vmatprep.subr.mxu0 0.0
    %6108 = vmatpush1.msra.mxu0 0.0
    %6109 = vmatprep.subr.mxu0 0.0
    %6110 = vmatpush1.msra.mxu0 0.0
    %6111 = vmatprep.subr.mxu0 0.0
    %v6112 = vand.u32 %v5736, 4294901760
    %v6113 = vsub.f32 %v5736, %v6112
    %v6114 = vand.u32 %v6113, 4294901760
    %6115 = vmatpush1.msra.mxu0 %v6114
    %6116 = vmatprep.subr.mxu0 0.0
    %v6117 = vand.u32 %v5735, 4294901760
    %v6118 = vsub.f32 %v5735, %v6117
    %v6119 = vand.u32 %v6118, 4294901760
    %6120 = vmatpush1.msra.mxu0 %v6119
    %6121 = vmatprep.subr.mxu0 0.0
    %6122 = vmatpush2.msra.mxu0 0.0
    %6123 = vmatprep.subr.mxu0 0.0
    %6124 = vmatpush2.msra.mxu0 0.0
    %6125 = vmatprep.subr.mxu0 0.0
    %6126 = vmatpush2.msra.mxu0 0.0
    %6127 = vmatprep.subr.mxu0 0.0
    %6128 = vmatpush2.msra.mxu0 0.0
    %6129 = vmatprep.subr.mxu0 0.0
    %6130 = vmatpush2.msra.mxu0 0.0
    %6131 = vmatprep.subr.mxu0 0.0
    %6132 = vmatpush2.msra.mxu0 0.0
    %6133 = vmatprep.subr.mxu0 0.0
    %6134 = vmatpush2.msra.mxu0 0.0
    %6135 = vmatprep.subr.mxu0 0.0
    %6136 = vmatpush2.msra.mxu0 0.0
    %6137 = vmatprep.subr.mxu0 0.0
    %6138 = vmatpush2.msra.mxu0 0.0
    %6139 = vmatprep.subr.mxu0 0.0
    %6140 = vmatpush2.msra.mxu0 0.0
    %6141 = vmatprep.subr.mxu0 0.0
    %6142 = vmatpush2.msra.mxu0 0.0
    %6143 = vmatprep.subr.mxu0 0.0
    %6144 = vmatpush2.msra.mxu0 0.0
    %6145 = vmatprep.subr.mxu0 0.0
    %6146 = vmatpush2.msra.mxu0 0.0
    %6147 = vmatprep.subr.mxu0 0.0
    %6148 = vmatpush2.msra.mxu0 0.0
    %6149 = vmatprep.subr.mxu0 0.0
    %6150 = vmatpush2.msra.mxu0 0.0
    %6151 = vmatprep.subr.mxu0 0.0
    %6152 = vmatpush2.msra.mxu0 0.0
    %6153 = vmatprep.mubr.f32.mxu0 0.0
    %v6154 = vand.u32 %v5738, 4294901760
    %6155 = vmatmul.mubr.f32.gmra.mxu0 %v6154
    %v6156 = vpop.f32.mrf.mxu0
    %v6157 = vadd.f32 %v6072, %v6156
    %v6158 = vpop.f32.mrf.mxu0
    %6159 = vmatprep.mubr.f32.mxu0 0.0
    %v6160 = vand.u32 %v5741, 4294901760
    %6161 = vmatmul.mubr.f32.gmra.mxu0 %v6160
    %v6162 = vpop.f32.mrf.mxu0
    %v6163 = vadd.f32 %v6080, %v6162
    %v6164 = vpop.f32.mrf.mxu0
    %6165 = vdwg.mxu0
    %6166 = vmatprep.subr.mxu0 0.0
    %6167 = vmatpush1.msra.mxu0 0.0
    %6168 = vmatprep.subr.mxu0 0.0
    %6169 = vmatpush1.msra.mxu0 0.0
    %6170 = vmatprep.subr.mxu0 0.0
    %6171 = vmatpush1.msra.mxu0 0.0
    %6172 = vmatprep.subr.mxu0 0.0
    %6173 = vmatpush1.msra.mxu0 0.0
    %6174 = vmatprep.subr.mxu0 0.0
    %6175 = vmatpush1.msra.mxu0 0.0
    %6176 = vmatprep.subr.mxu0 0.0
    %6177 = vmatpush1.msra.mxu0 0.0
    %6178 = vmatprep.subr.mxu0 0.0
    %6179 = vmatpush1.msra.mxu0 0.0
    %6180 = vmatprep.subr.mxu0 0.0
    %6181 = vmatpush1.msra.mxu0 0.0
    %6182 = vmatprep.subr.mxu0 0.0
    %6183 = vmatpush1.msra.mxu0 0.0
    %6184 = vmatprep.subr.mxu0 0.0
    %6185 = vmatpush1.msra.mxu0 0.0
    %6186 = vmatprep.subr.mxu0 0.0
    %6187 = vmatpush1.msra.mxu0 0.0
    %6188 = vmatprep.subr.mxu0 0.0
    %6189 = vmatpush1.msra.mxu0 0.0
    %6190 = vmatprep.subr.mxu0 0.0
    %6191 = vmatpush1.msra.mxu0 0.0
    %6192 = vmatprep.subr.mxu0 0.0
    %6193 = vmatpush1.msra.mxu0 0.0
    %6194 = vmatprep.subr.mxu0 0.0
    %v6195 = vand.u32 %v5736, 4294901760
    %6196 = vmatpush1.msra.mxu0 %v6195
    %6197 = vmatprep.subr.mxu0 0.0
    %v6198 = vand.u32 %v5735, 4294901760
    %6199 = vmatpush1.msra.mxu0 %v6198
    %6200 = vmatprep.subr.mxu0 0.0
    %6201 = vmatpush2.msra.mxu0 0.0
    %6202 = vmatprep.subr.mxu0 0.0
    %6203 = vmatpush2.msra.mxu0 0.0
    %6204 = vmatprep.subr.mxu0 0.0
    %6205 = vmatpush2.msra.mxu0 0.0
    %6206 = vmatprep.subr.mxu0 0.0
    %6207 = vmatpush2.msra.mxu0 0.0
    %6208 = vmatprep.subr.mxu0 0.0
    %6209 = vmatpush2.msra.mxu0 0.0
    %6210 = vmatprep.subr.mxu0 0.0
    %6211 = vmatpush2.msra.mxu0 0.0
    %6212 = vmatprep.subr.mxu0 0.0
    %6213 = vmatpush2.msra.mxu0 0.0
    %6214 = vmatprep.subr.mxu0 0.0
    %6215 = vmatpush2.msra.mxu0 0.0
    %6216 = vmatprep.subr.mxu0 0.0
    %6217 = vmatpush2.msra.mxu0 0.0
    %6218 = vmatprep.subr.mxu0 0.0
    %6219 = vmatpush2.msra.mxu0 0.0
    %6220 = vmatprep.subr.mxu0 0.0
    %6221 = vmatpush2.msra.mxu0 0.0
    %6222 = vmatprep.subr.mxu0 0.0
    %6223 = vmatpush2.msra.mxu0 0.0
    %6224 = vmatprep.subr.mxu0 0.0
    %6225 = vmatpush2.msra.mxu0 0.0
    %6226 = vmatprep.subr.mxu0 0.0
    %6227 = vmatpush2.msra.mxu0 0.0
    %6228 = vmatprep.subr.mxu0 0.0
    %6229 = vmatpush2.msra.mxu0 0.0
    %6230 = vmatprep.subr.mxu0 0.0
    %6231 = vmatpush2.msra.mxu0 0.0
    %6232 = vmatprep.mubr.f32.mxu0 0.0
    %v6233 = vand.u32 %v5738, 4294901760
    %6234 = vmatmul.mubr.f32.gmra.mxu0 %v6233
    %v6235 = vpop.f32.mrf.mxu0
    %v6236 = vadd.f32 %v6157, %v6235
    %v6237 = vpop.f32.mrf.mxu0
    %6238 = vmatprep.mubr.f32.mxu0 0.0
    %v6239 = vand.u32 %v5741, 4294901760
    %6240 = vmatmul.mubr.f32.gmra.mxu0 %v6239
    %v6241 = vpop.f32.mrf.mxu0
    %v6242 = vadd.f32 %v6163, %v6241
    %v6243 = vpop.f32.mrf.mxu0
    %6244 = vdwg.mxu0
    %s6245 = scalar_lea.vmem %s47, %s5726
    %v6246 = vld [vmem:[%s6245] sm:$0x1]
    %s6247 = scalar_lea.vmem %s49, %s5726
    %v6248 = vld [vmem:[%s6247] sm:$0x1]
    %vm6249 = vcmask 64512
    %v6250 = vsel %vm6249, %v6236, 0.0
    %v6251 = vsel %vm6249, %v6242, 0.0
    %v6252 = vadd.f32 %v6250, %v6251
    %v6253 = vrot.slane %v6252, 4
    %v6254 = vadd.f32 %v6252, %v6253
    %v6255 = vrot.slane %v6254, 2
    %v6256 = vadd.f32 %v6254, %v6255
    %v6257 = vrot.slane %v6256, 1
    %v6258 = vadd.f32 %v6256, %v6257
    %v6259 = vmul.f32 %v6258, 0.0625
    %v6260 = vsub.f32 %v6236, %v6259
    %v6261 = vsub.f32 %v6242, %v6259
    %v6262 = vmul.f32 %v6260, %v6260
    %v6263 = vmul.f32 %v6261, %v6261
    %v6264 = vsel %vm6249, %v6262, 0.0
    %v6265 = vsel %vm6249, %v6263, 0.0
    %v6266 = vadd.f32 %v6264, %v6265
    %v6267 = vrot.slane %v6266, 4
    %v6268 = vadd.f32 %v6266, %v6267
    %v6269 = vrot.slane %v6268, 2
    %v6270 = vadd.f32 %v6268, %v6269
    %v6271 = vrot.slane %v6270, 1
    %v6272 = vadd.f32 %v6270, %v6271
    %v6273 = vmul.f32 %v6272, 0.0625
    %v6274 = vadd.f32 %v6273, 1e-05
    %v6275 = vrsqrt.pop %v6274
    %v6276 = vmul.f32 %v6260, %v6275
    %v6277 = vmul.f32 %v6261, %v6275
    %v6279 = vlaneseq
    %v6280 = vshrl.u32 %v6279, 7
    %v6281 = vsub.s32 0, %v6280
    %v6282 = vrot.slane %v6246, %v6281
    %v6284 = vmul.f32 %v6276, %v6282
    %v6285 = vmul.f32 %v6277, %v6282
    %v6287 = vlaneseq
    %v6288 = vshrl.u32 %v6287, 7
    %v6289 = vsub.s32 0, %v6288
    %v6290 = vrot.slane %v6248, %v6289
    %v6292 = vadd.f32 %v6284, %v6290
    %v6293 = vadd.f32 %v6285, %v6290
    %v6294 = vmax.f32 %v6292, 0.0
    %v6295 = vmax.f32 %v6293, 0.0
    %s6296 = smul.u32 %s5726, 8
    %s6297 = scalar_lea.vmem %s51, %s6296
    %v6298 = vld [vmem:[%s6297] sm:$0xff]
    %v6300 = vsel %vm6249, %v6294, 0
    %v6303 = vsel %vm6249, %v6295, 0
    %6305 = vmatprep.subr.mxu0 0.0
    %6306 = vmatpush1.msra.mxu0 0.0
    %6307 = vmatprep.subr.mxu0 0.0
    %6308 = vmatpush1.msra.mxu0 0.0
    %6309 = vmatprep.subr.mxu0 0.0
    %6310 = vmatpush1.msra.mxu0 0.0
    %6311 = vmatprep.subr.mxu0 0.0
    %6312 = vmatpush1.msra.mxu0 0.0
    %6313 = vmatprep.subr.mxu0 0.0
    %6314 = vmatpush1.msra.mxu0 0.0
    %6315 = vmatprep.subr.mxu0 0.0
    %6316 = vmatpush1.msra.mxu0 0.0
    %6317 = vmatprep.subr.mxu0 0.0
    %6318 = vmatpush1.msra.mxu0 0.0
    %6319 = vmatprep.subr.mxu0 0.0
    %6320 = vmatpush1.msra.mxu0 0.0
    %6321 = vmatprep.subr.mxu0 0.0
    %6322 = vmatpush1.msra.mxu0 0.0
    %6323 = vmatprep.subr.mxu0 0.0
    %6324 = vmatpush1.msra.mxu0 0.0
    %6325 = vmatprep.subr.mxu0 0.0
    %6326 = vmatpush1.msra.mxu0 0.0
    %6327 = vmatprep.subr.mxu0 0.0
    %6328 = vmatpush1.msra.mxu0 0.0
    %6329 = vmatprep.subr.mxu0 0.0
    %6330 = vmatpush1.msra.mxu0 0.0
    %6331 = vmatprep.subr.mxu0 0.0
    %6332 = vmatpush1.msra.mxu0 0.0
    %6333 = vmatprep.subr.mxu0 0.0
    %6334 = vmatpush1.msra.mxu0 0.0
    %6335 = vmatprep.subr.mxu0 0.0
    %v6336 = vand.u32 %v6298, 4294901760
    %6337 = vmatpush1.msra.mxu0 %v6336
    %6338 = vmatprep.subr.mxu0 0.0
    %6339 = vmatpush2.msra.mxu0 0.0
    %6340 = vmatprep.subr.mxu0 0.0
    %6341 = vmatpush2.msra.mxu0 0.0
    %6342 = vmatprep.subr.mxu0 0.0
    %6343 = vmatpush2.msra.mxu0 0.0
    %6344 = vmatprep.subr.mxu0 0.0
    %6345 = vmatpush2.msra.mxu0 0.0
    %6346 = vmatprep.subr.mxu0 0.0
    %6347 = vmatpush2.msra.mxu0 0.0
    %6348 = vmatprep.subr.mxu0 0.0
    %6349 = vmatpush2.msra.mxu0 0.0
    %6350 = vmatprep.subr.mxu0 0.0
    %6351 = vmatpush2.msra.mxu0 0.0
    %6352 = vmatprep.subr.mxu0 0.0
    %6353 = vmatpush2.msra.mxu0 0.0
    %6354 = vmatprep.subr.mxu0 0.0
    %6355 = vmatpush2.msra.mxu0 0.0
    %6356 = vmatprep.subr.mxu0 0.0
    %6357 = vmatpush2.msra.mxu0 0.0
    %6358 = vmatprep.subr.mxu0 0.0
    %6359 = vmatpush2.msra.mxu0 0.0
    %6360 = vmatprep.subr.mxu0 0.0
    %6361 = vmatpush2.msra.mxu0 0.0
    %6362 = vmatprep.subr.mxu0 0.0
    %6363 = vmatpush2.msra.mxu0 0.0
    %6364 = vmatprep.subr.mxu0 0.0
    %6365 = vmatpush2.msra.mxu0 0.0
    %6366 = vmatprep.subr.mxu0 0.0
    %6367 = vmatpush2.msra.mxu0 0.0
    %6368 = vmatprep.subr.mxu0 0.0
    %6369 = vmatpush2.msra.mxu0 0.0
    %6370 = vmatprep.mubr.f32.mxu0 0.0
    %v6371 = vand.u32 %v6300, 4294901760
    %v6372 = vsub.f32 %v6300, %v6371
    %v6373 = vand.u32 %v6372, 4294901760
    %v6374 = vsub.f32 %v6372, %v6373
    %v6375 = vand.u32 %v6374, 4294901760
    %6376 = vmatmul.mubr.f32.gmra.mxu0 %v6375
    %v6377 = vpop.f32.mrf.mxu0
    %v6378 = vadd.f32 0.0, %v6377
    %v6379 = vpop.f32.mrf.mxu0
    %6380 = vmatprep.mubr.f32.mxu0 0.0
    %v6381 = vand.u32 %v6303, 4294901760
    %v6382 = vsub.f32 %v6303, %v6381
    %v6383 = vand.u32 %v6382, 4294901760
    %v6384 = vsub.f32 %v6382, %v6383
    %v6385 = vand.u32 %v6384, 4294901760
    %6386 = vmatmul.mubr.f32.gmra.mxu0 %v6385
    %v6387 = vpop.f32.mrf.mxu0
    %v6388 = vadd.f32 0.0, %v6387
    %v6389 = vpop.f32.mrf.mxu0
    %6390 = vdwg.mxu0
    %6391 = vmatprep.subr.mxu0 0.0
    %6392 = vmatpush1.msra.mxu0 0.0
    %6393 = vmatprep.subr.mxu0 0.0
    %6394 = vmatpush1.msra.mxu0 0.0
    %6395 = vmatprep.subr.mxu0 0.0
    %6396 = vmatpush1.msra.mxu0 0.0
    %6397 = vmatprep.subr.mxu0 0.0
    %6398 = vmatpush1.msra.mxu0 0.0
    %6399 = vmatprep.subr.mxu0 0.0
    %6400 = vmatpush1.msra.mxu0 0.0
    %6401 = vmatprep.subr.mxu0 0.0
    %6402 = vmatpush1.msra.mxu0 0.0
    %6403 = vmatprep.subr.mxu0 0.0
    %6404 = vmatpush1.msra.mxu0 0.0
    %6405 = vmatprep.subr.mxu0 0.0
    %6406 = vmatpush1.msra.mxu0 0.0
    %6407 = vmatprep.subr.mxu0 0.0
    %6408 = vmatpush1.msra.mxu0 0.0
    %6409 = vmatprep.subr.mxu0 0.0
    %6410 = vmatpush1.msra.mxu0 0.0
    %6411 = vmatprep.subr.mxu0 0.0
    %6412 = vmatpush1.msra.mxu0 0.0
    %6413 = vmatprep.subr.mxu0 0.0
    %6414 = vmatpush1.msra.mxu0 0.0
    %6415 = vmatprep.subr.mxu0 0.0
    %6416 = vmatpush1.msra.mxu0 0.0
    %6417 = vmatprep.subr.mxu0 0.0
    %6418 = vmatpush1.msra.mxu0 0.0
    %6419 = vmatprep.subr.mxu0 0.0
    %6420 = vmatpush1.msra.mxu0 0.0
    %6421 = vmatprep.subr.mxu0 0.0
    %v6422 = vand.u32 %v6298, 4294901760
    %v6423 = vsub.f32 %v6298, %v6422
    %v6424 = vand.u32 %v6423, 4294901760
    %v6425 = vsub.f32 %v6423, %v6424
    %v6426 = vand.u32 %v6425, 4294901760
    %6427 = vmatpush1.msra.mxu0 %v6426
    %6428 = vmatprep.subr.mxu0 0.0
    %6429 = vmatpush2.msra.mxu0 0.0
    %6430 = vmatprep.subr.mxu0 0.0
    %6431 = vmatpush2.msra.mxu0 0.0
    %6432 = vmatprep.subr.mxu0 0.0
    %6433 = vmatpush2.msra.mxu0 0.0
    %6434 = vmatprep.subr.mxu0 0.0
    %6435 = vmatpush2.msra.mxu0 0.0
    %6436 = vmatprep.subr.mxu0 0.0
    %6437 = vmatpush2.msra.mxu0 0.0
    %6438 = vmatprep.subr.mxu0 0.0
    %6439 = vmatpush2.msra.mxu0 0.0
    %6440 = vmatprep.subr.mxu0 0.0
    %6441 = vmatpush2.msra.mxu0 0.0
    %6442 = vmatprep.subr.mxu0 0.0
    %6443 = vmatpush2.msra.mxu0 0.0
    %6444 = vmatprep.subr.mxu0 0.0
    %6445 = vmatpush2.msra.mxu0 0.0
    %6446 = vmatprep.subr.mxu0 0.0
    %6447 = vmatpush2.msra.mxu0 0.0
    %6448 = vmatprep.subr.mxu0 0.0
    %6449 = vmatpush2.msra.mxu0 0.0
    %6450 = vmatprep.subr.mxu0 0.0
    %6451 = vmatpush2.msra.mxu0 0.0
    %6452 = vmatprep.subr.mxu0 0.0
    %6453 = vmatpush2.msra.mxu0 0.0
    %6454 = vmatprep.subr.mxu0 0.0
    %6455 = vmatpush2.msra.mxu0 0.0
    %6456 = vmatprep.subr.mxu0 0.0
    %6457 = vmatpush2.msra.mxu0 0.0
    %6458 = vmatprep.subr.mxu0 0.0
    %6459 = vmatpush2.msra.mxu0 0.0
    %6460 = vmatprep.mubr.f32.mxu0 0.0
    %v6461 = vand.u32 %v6300, 4294901760
    %6462 = vmatmul.mubr.f32.gmra.mxu0 %v6461
    %v6463 = vpop.f32.mrf.mxu0
    %v6464 = vadd.f32 %v6378, %v6463
    %v6465 = vpop.f32.mrf.mxu0
    %6466 = vmatprep.mubr.f32.mxu0 0.0
    %v6467 = vand.u32 %v6303, 4294901760
    %6468 = vmatmul.mubr.f32.gmra.mxu0 %v6467
    %v6469 = vpop.f32.mrf.mxu0
    %v6470 = vadd.f32 %v6388, %v6469
    %v6471 = vpop.f32.mrf.mxu0
    %6472 = vdwg.mxu0
    %6473 = vmatprep.subr.mxu0 0.0
    %6474 = vmatpush1.msra.mxu0 0.0
    %6475 = vmatprep.subr.mxu0 0.0
    %6476 = vmatpush1.msra.mxu0 0.0
    %6477 = vmatprep.subr.mxu0 0.0
    %6478 = vmatpush1.msra.mxu0 0.0
    %6479 = vmatprep.subr.mxu0 0.0
    %6480 = vmatpush1.msra.mxu0 0.0
    %6481 = vmatprep.subr.mxu0 0.0
    %6482 = vmatpush1.msra.mxu0 0.0
    %6483 = vmatprep.subr.mxu0 0.0
    %6484 = vmatpush1.msra.mxu0 0.0
    %6485 = vmatprep.subr.mxu0 0.0
    %6486 = vmatpush1.msra.mxu0 0.0
    %6487 = vmatprep.subr.mxu0 0.0
    %6488 = vmatpush1.msra.mxu0 0.0
    %6489 = vmatprep.subr.mxu0 0.0
    %6490 = vmatpush1.msra.mxu0 0.0
    %6491 = vmatprep.subr.mxu0 0.0
    %6492 = vmatpush1.msra.mxu0 0.0
    %6493 = vmatprep.subr.mxu0 0.0
    %6494 = vmatpush1.msra.mxu0 0.0
    %6495 = vmatprep.subr.mxu0 0.0
    %6496 = vmatpush1.msra.mxu0 0.0
    %6497 = vmatprep.subr.mxu0 0.0
    %6498 = vmatpush1.msra.mxu0 0.0
    %6499 = vmatprep.subr.mxu0 0.0
    %6500 = vmatpush1.msra.mxu0 0.0
    %6501 = vmatprep.subr.mxu0 0.0
    %6502 = vmatpush1.msra.mxu0 0.0
    %6503 = vmatprep.subr.mxu0 0.0
    %v6504 = vand.u32 %v6298, 4294901760
    %v6505 = vsub.f32 %v6298, %v6504
    %6506 = vmatpush1.msra.mxu0 %v6505
    %6507 = vmatprep.subr.mxu0 0.0
    %6508 = vmatpush2.msra.mxu0 0.0
    %6509 = vmatprep.subr.mxu0 0.0
    %6510 = vmatpush2.msra.mxu0 0.0
    %6511 = vmatprep.subr.mxu0 0.0
    %6512 = vmatpush2.msra.mxu0 0.0
    %6513 = vmatprep.subr.mxu0 0.0
    %6514 = vmatpush2.msra.mxu0 0.0
    %6515 = vmatprep.subr.mxu0 0.0
    %6516 = vmatpush2.msra.mxu0 0.0
    %6517 = vmatprep.subr.mxu0 0.0
    %6518 = vmatpush2.msra.mxu0 0.0
    %6519 = vmatprep.subr.mxu0 0.0
    %6520 = vmatpush2.msra.mxu0 0.0
    %6521 = vmatprep.subr.mxu0 0.0
    %6522 = vmatpush2.msra.mxu0 0.0
    %6523 = vmatprep.subr.mxu0 0.0
    %6524 = vmatpush2.msra.mxu0 0.0
    %6525 = vmatprep.subr.mxu0 0.0
    %6526 = vmatpush2.msra.mxu0 0.0
    %6527 = vmatprep.subr.mxu0 0.0
    %6528 = vmatpush2.msra.mxu0 0.0
    %6529 = vmatprep.subr.mxu0 0.0
    %6530 = vmatpush2.msra.mxu0 0.0
    %6531 = vmatprep.subr.mxu0 0.0
    %6532 = vmatpush2.msra.mxu0 0.0
    %6533 = vmatprep.subr.mxu0 0.0
    %6534 = vmatpush2.msra.mxu0 0.0
    %6535 = vmatprep.subr.mxu0 0.0
    %6536 = vmatpush2.msra.mxu0 0.0
    %6537 = vmatprep.subr.mxu0 0.0
    %6538 = vmatpush2.msra.mxu0 0.0
    %6539 = vmatprep.mubr.f32.mxu0 0.0
    %v6540 = vand.u32 %v6300, 4294901760
    %v6541 = vsub.f32 %v6300, %v6540
    %6542 = vmatmul.mubr.f32.gmra.mxu0 %v6541
    %v6543 = vpop.f32.mrf.mxu0
    %v6544 = vadd.f32 %v6464, %v6543
    %v6545 = vpop.f32.mrf.mxu0
    %6546 = vmatprep.mubr.f32.mxu0 0.0
    %v6547 = vand.u32 %v6303, 4294901760
    %v6548 = vsub.f32 %v6303, %v6547
    %6549 = vmatmul.mubr.f32.gmra.mxu0 %v6548
    %v6550 = vpop.f32.mrf.mxu0
    %v6551 = vadd.f32 %v6470, %v6550
    %v6552 = vpop.f32.mrf.mxu0
    %6553 = vdwg.mxu0
    %6554 = vmatprep.subr.mxu0 0.0
    %6555 = vmatpush1.msra.mxu0 0.0
    %6556 = vmatprep.subr.mxu0 0.0
    %6557 = vmatpush1.msra.mxu0 0.0
    %6558 = vmatprep.subr.mxu0 0.0
    %6559 = vmatpush1.msra.mxu0 0.0
    %6560 = vmatprep.subr.mxu0 0.0
    %6561 = vmatpush1.msra.mxu0 0.0
    %6562 = vmatprep.subr.mxu0 0.0
    %6563 = vmatpush1.msra.mxu0 0.0
    %6564 = vmatprep.subr.mxu0 0.0
    %6565 = vmatpush1.msra.mxu0 0.0
    %6566 = vmatprep.subr.mxu0 0.0
    %6567 = vmatpush1.msra.mxu0 0.0
    %6568 = vmatprep.subr.mxu0 0.0
    %6569 = vmatpush1.msra.mxu0 0.0
    %6570 = vmatprep.subr.mxu0 0.0
    %6571 = vmatpush1.msra.mxu0 0.0
    %6572 = vmatprep.subr.mxu0 0.0
    %6573 = vmatpush1.msra.mxu0 0.0
    %6574 = vmatprep.subr.mxu0 0.0
    %6575 = vmatpush1.msra.mxu0 0.0
    %6576 = vmatprep.subr.mxu0 0.0
    %6577 = vmatpush1.msra.mxu0 0.0
    %6578 = vmatprep.subr.mxu0 0.0
    %6579 = vmatpush1.msra.mxu0 0.0
    %6580 = vmatprep.subr.mxu0 0.0
    %6581 = vmatpush1.msra.mxu0 0.0
    %6582 = vmatprep.subr.mxu0 0.0
    %6583 = vmatpush1.msra.mxu0 0.0
    %6584 = vmatprep.subr.mxu0 0.0
    %v6585 = vand.u32 %v6298, 4294901760
    %6586 = vmatpush1.msra.mxu0 %v6585
    %6587 = vmatprep.subr.mxu0 0.0
    %6588 = vmatpush2.msra.mxu0 0.0
    %6589 = vmatprep.subr.mxu0 0.0
    %6590 = vmatpush2.msra.mxu0 0.0
    %6591 = vmatprep.subr.mxu0 0.0
    %6592 = vmatpush2.msra.mxu0 0.0
    %6593 = vmatprep.subr.mxu0 0.0
    %6594 = vmatpush2.msra.mxu0 0.0
    %6595 = vmatprep.subr.mxu0 0.0
    %6596 = vmatpush2.msra.mxu0 0.0
    %6597 = vmatprep.subr.mxu0 0.0
    %6598 = vmatpush2.msra.mxu0 0.0
    %6599 = vmatprep.subr.mxu0 0.0
    %6600 = vmatpush2.msra.mxu0 0.0
    %6601 = vmatprep.subr.mxu0 0.0
    %6602 = vmatpush2.msra.mxu0 0.0
    %6603 = vmatprep.subr.mxu0 0.0
    %6604 = vmatpush2.msra.mxu0 0.0
    %6605 = vmatprep.subr.mxu0 0.0
    %6606 = vmatpush2.msra.mxu0 0.0
    %6607 = vmatprep.subr.mxu0 0.0
    %6608 = vmatpush2.msra.mxu0 0.0
    %6609 = vmatprep.subr.mxu0 0.0
    %6610 = vmatpush2.msra.mxu0 0.0
    %6611 = vmatprep.subr.mxu0 0.0
    %6612 = vmatpush2.msra.mxu0 0.0
    %6613 = vmatprep.subr.mxu0 0.0
    %6614 = vmatpush2.msra.mxu0 0.0
    %6615 = vmatprep.subr.mxu0 0.0
    %6616 = vmatpush2.msra.mxu0 0.0
    %6617 = vmatprep.subr.mxu0 0.0
    %6618 = vmatpush2.msra.mxu0 0.0
    %6619 = vmatprep.mubr.f32.mxu0 0.0
    %v6620 = vand.u32 %v6300, 4294901760
    %v6621 = vsub.f32 %v6300, %v6620
    %v6622 = vand.u32 %v6621, 4294901760
    %6623 = vmatmul.mubr.f32.gmra.mxu0 %v6622
    %v6624 = vpop.f32.mrf.mxu0
    %v6625 = vadd.f32 %v6544, %v6624
    %v6626 = vpop.f32.mrf.mxu0
    %6627 = vmatprep.mubr.f32.mxu0 0.0
    %v6628 = vand.u32 %v6303, 4294901760
    %v6629 = vsub.f32 %v6303, %v6628
    %v6630 = vand.u32 %v6629, 4294901760
    %6631 = vmatmul.mubr.f32.gmra.mxu0 %v6630
    %v6632 = vpop.f32.mrf.mxu0
    %v6633 = vadd.f32 %v6551, %v6632
    %v6634 = vpop.f32.mrf.mxu0
    %6635 = vdwg.mxu0
    %6636 = vmatprep.subr.mxu0 0.0
    %6637 = vmatpush1.msra.mxu0 0.0
    %6638 = vmatprep.subr.mxu0 0.0
    %6639 = vmatpush1.msra.mxu0 0.0
    %6640 = vmatprep.subr.mxu0 0.0
    %6641 = vmatpush1.msra.mxu0 0.0
    %6642 = vmatprep.subr.mxu0 0.0
    %6643 = vmatpush1.msra.mxu0 0.0
    %6644 = vmatprep.subr.mxu0 0.0
    %6645 = vmatpush1.msra.mxu0 0.0
    %6646 = vmatprep.subr.mxu0 0.0
    %6647 = vmatpush1.msra.mxu0 0.0
    %6648 = vmatprep.subr.mxu0 0.0
    %6649 = vmatpush1.msra.mxu0 0.0
    %6650 = vmatprep.subr.mxu0 0.0
    %6651 = vmatpush1.msra.mxu0 0.0
    %6652 = vmatprep.subr.mxu0 0.0
    %6653 = vmatpush1.msra.mxu0 0.0
    %6654 = vmatprep.subr.mxu0 0.0
    %6655 = vmatpush1.msra.mxu0 0.0
    %6656 = vmatprep.subr.mxu0 0.0
    %6657 = vmatpush1.msra.mxu0 0.0
    %6658 = vmatprep.subr.mxu0 0.0
    %6659 = vmatpush1.msra.mxu0 0.0
    %6660 = vmatprep.subr.mxu0 0.0
    %6661 = vmatpush1.msra.mxu0 0.0
    %6662 = vmatprep.subr.mxu0 0.0
    %6663 = vmatpush1.msra.mxu0 0.0
    %6664 = vmatprep.subr.mxu0 0.0
    %6665 = vmatpush1.msra.mxu0 0.0
    %6666 = vmatprep.subr.mxu0 0.0
    %v6667 = vand.u32 %v6298, 4294901760
    %v6668 = vsub.f32 %v6298, %v6667
    %v6669 = vand.u32 %v6668, 4294901760
    %6670 = vmatpush1.msra.mxu0 %v6669
    %6671 = vmatprep.subr.mxu0 0.0
    %6672 = vmatpush2.msra.mxu0 0.0
    %6673 = vmatprep.subr.mxu0 0.0
    %6674 = vmatpush2.msra.mxu0 0.0
    %6675 = vmatprep.subr.mxu0 0.0
    %6676 = vmatpush2.msra.mxu0 0.0
    %6677 = vmatprep.subr.mxu0 0.0
    %6678 = vmatpush2.msra.mxu0 0.0
    %6679 = vmatprep.subr.mxu0 0.0
    %6680 = vmatpush2.msra.mxu0 0.0
    %6681 = vmatprep.subr.mxu0 0.0
    %6682 = vmatpush2.msra.mxu0 0.0
    %6683 = vmatprep.subr.mxu0 0.0
    %6684 = vmatpush2.msra.mxu0 0.0
    %6685 = vmatprep.subr.mxu0 0.0
    %6686 = vmatpush2.msra.mxu0 0.0
    %6687 = vmatprep.subr.mxu0 0.0
    %6688 = vmatpush2.msra.mxu0 0.0
    %6689 = vmatprep.subr.mxu0 0.0
    %6690 = vmatpush2.msra.mxu0 0.0
    %6691 = vmatprep.subr.mxu0 0.0
    %6692 = vmatpush2.msra.mxu0 0.0
    %6693 = vmatprep.subr.mxu0 0.0
    %6694 = vmatpush2.msra.mxu0 0.0
    %6695 = vmatprep.subr.mxu0 0.0
    %6696 = vmatpush2.msra.mxu0 0.0
    %6697 = vmatprep.subr.mxu0 0.0
    %6698 = vmatpush2.msra.mxu0 0.0
    %6699 = vmatprep.subr.mxu0 0.0
    %6700 = vmatpush2.msra.mxu0 0.0
    %6701 = vmatprep.subr.mxu0 0.0
    %6702 = vmatpush2.msra.mxu0 0.0
    %6703 = vmatprep.mubr.f32.mxu0 0.0
    %v6704 = vand.u32 %v6300, 4294901760
    %6705 = vmatmul.mubr.f32.gmra.mxu0 %v6704
    %v6706 = vpop.f32.mrf.mxu0
    %v6707 = vadd.f32 %v6625, %v6706
    %v6708 = vpop.f32.mrf.mxu0
    %6709 = vmatprep.mubr.f32.mxu0 0.0
    %v6710 = vand.u32 %v6303, 4294901760
    %6711 = vmatmul.mubr.f32.gmra.mxu0 %v6710
    %v6712 = vpop.f32.mrf.mxu0
    %v6713 = vadd.f32 %v6633, %v6712
    %v6714 = vpop.f32.mrf.mxu0
    %6715 = vdwg.mxu0
    %6716 = vmatprep.subr.mxu0 0.0
    %6717 = vmatpush1.msra.mxu0 0.0
    %6718 = vmatprep.subr.mxu0 0.0
    %6719 = vmatpush1.msra.mxu0 0.0
    %6720 = vmatprep.subr.mxu0 0.0
    %6721 = vmatpush1.msra.mxu0 0.0
    %6722 = vmatprep.subr.mxu0 0.0
    %6723 = vmatpush1.msra.mxu0 0.0
    %6724 = vmatprep.subr.mxu0 0.0
    %6725 = vmatpush1.msra.mxu0 0.0
    %6726 = vmatprep.subr.mxu0 0.0
    %6727 = vmatpush1.msra.mxu0 0.0
    %6728 = vmatprep.subr.mxu0 0.0
    %6729 = vmatpush1.msra.mxu0 0.0
    %6730 = vmatprep.subr.mxu0 0.0
    %6731 = vmatpush1.msra.mxu0 0.0
    %6732 = vmatprep.subr.mxu0 0.0
    %6733 = vmatpush1.msra.mxu0 0.0
    %6734 = vmatprep.subr.mxu0 0.0
    %6735 = vmatpush1.msra.mxu0 0.0
    %6736 = vmatprep.subr.mxu0 0.0
    %6737 = vmatpush1.msra.mxu0 0.0
    %6738 = vmatprep.subr.mxu0 0.0
    %6739 = vmatpush1.msra.mxu0 0.0
    %6740 = vmatprep.subr.mxu0 0.0
    %6741 = vmatpush1.msra.mxu0 0.0
    %6742 = vmatprep.subr.mxu0 0.0
    %6743 = vmatpush1.msra.mxu0 0.0
    %6744 = vmatprep.subr.mxu0 0.0
    %6745 = vmatpush1.msra.mxu0 0.0
    %6746 = vmatprep.subr.mxu0 0.0
    %v6747 = vand.u32 %v6298, 4294901760
    %6748 = vmatpush1.msra.mxu0 %v6747
    %6749 = vmatprep.subr.mxu0 0.0
    %6750 = vmatpush2.msra.mxu0 0.0
    %6751 = vmatprep.subr.mxu0 0.0
    %6752 = vmatpush2.msra.mxu0 0.0
    %6753 = vmatprep.subr.mxu0 0.0
    %6754 = vmatpush2.msra.mxu0 0.0
    %6755 = vmatprep.subr.mxu0 0.0
    %6756 = vmatpush2.msra.mxu0 0.0
    %6757 = vmatprep.subr.mxu0 0.0
    %6758 = vmatpush2.msra.mxu0 0.0
    %6759 = vmatprep.subr.mxu0 0.0
    %6760 = vmatpush2.msra.mxu0 0.0
    %6761 = vmatprep.subr.mxu0 0.0
    %6762 = vmatpush2.msra.mxu0 0.0
    %6763 = vmatprep.subr.mxu0 0.0
    %6764 = vmatpush2.msra.mxu0 0.0
    %6765 = vmatprep.subr.mxu0 0.0
    %6766 = vmatpush2.msra.mxu0 0.0
    %6767 = vmatprep.subr.mxu0 0.0
    %6768 = vmatpush2.msra.mxu0 0.0
    %6769 = vmatprep.subr.mxu0 0.0
    %6770 = vmatpush2.msra.mxu0 0.0
    %6771 = vmatprep.subr.mxu0 0.0
    %6772 = vmatpush2.msra.mxu0 0.0
    %6773 = vmatprep.subr.mxu0 0.0
    %6774 = vmatpush2.msra.mxu0 0.0
    %6775 = vmatprep.subr.mxu0 0.0
    %6776 = vmatpush2.msra.mxu0 0.0
    %6777 = vmatprep.subr.mxu0 0.0
    %6778 = vmatpush2.msra.mxu0 0.0
    %6779 = vmatprep.subr.mxu0 0.0
    %6780 = vmatpush2.msra.mxu0 0.0
    %6781 = vmatprep.mubr.f32.mxu0 0.0
    %v6782 = vand.u32 %v6300, 4294901760
    %6783 = vmatmul.mubr.f32.gmra.mxu0 %v6782
    %v6784 = vpop.f32.mrf.mxu0
    %v6785 = vadd.f32 %v6707, %v6784
    %v6786 = vpop.f32.mrf.mxu0
    %6787 = vmatprep.mubr.f32.mxu0 0.0
    %v6788 = vand.u32 %v6303, 4294901760
    %6789 = vmatmul.mubr.f32.gmra.mxu0 %v6788
    %v6790 = vpop.f32.mrf.mxu0
    %v6791 = vadd.f32 %v6713, %v6790
    %v6792 = vpop.f32.mrf.mxu0
    %6793 = vdwg.mxu0
    %s6794 = scalar_lea.vmem %s53, %s5726
    %v6795 = vld [vmem:[%s6794] sm:$0x1]
    %s6796 = scalar_lea.vmem %s55, %s5726
    %v6797 = vld [vmem:[%s6796] sm:$0x1]
    %v6798 = vsel %vm5678, %v6785, 0.0
    %v6799 = vsel %vm5678, %v6791, 0.0
    %v6800 = vadd.f32 %v6798, %v6799
    %v6801 = vrot.slane %v6800, 4
    %v6802 = vadd.f32 %v6800, %v6801
    %v6803 = vrot.slane %v6802, 2
    %v6804 = vadd.f32 %v6802, %v6803
    %v6805 = vrot.slane %v6804, 1
    %v6806 = vadd.f32 %v6804, %v6805
    %v6807 = vmul.f32 %v6806, 0.0625
    %v6808 = vsub.f32 %v6785, %v6807
    %v6809 = vsub.f32 %v6791, %v6807
    %v6810 = vmul.f32 %v6808, %v6808
    %v6811 = vmul.f32 %v6809, %v6809
    %v6812 = vsel %vm5678, %v6810, 0.0
    %v6813 = vsel %vm5678, %v6811, 0.0
    %v6814 = vadd.f32 %v6812, %v6813
    %v6815 = vrot.slane %v6814, 4
    %v6816 = vadd.f32 %v6814, %v6815
    %v6817 = vrot.slane %v6816, 2
    %v6818 = vadd.f32 %v6816, %v6817
    %v6819 = vrot.slane %v6818, 1
    %v6820 = vadd.f32 %v6818, %v6819
    %v6821 = vmul.f32 %v6820, 0.0625
    %v6822 = vadd.f32 %v6821, 1e-05
    %v6823 = vrsqrt.pop %v6822
    %v6824 = vmul.f32 %v6808, %v6823
    %v6825 = vmul.f32 %v6809, %v6823
    %v6827 = vlaneseq
    %v6828 = vshrl.u32 %v6827, 7
    %v6829 = vsub.s32 0, %v6828
    %v6830 = vrot.slane %v6795, %v6829
    %v6832 = vmul.f32 %v6824, %v6830
    %v6833 = vmul.f32 %v6825, %v6830
    %v6835 = vlaneseq
    %v6836 = vshrl.u32 %v6835, 7
    %v6837 = vsub.s32 0, %v6836
    %v6838 = vrot.slane %v6797, %v6837
    %v6840 = vadd.f32 %v6832, %v6838
    %v6841 = vadd.f32 %v6833, %v6838
    %v6842 = vadd.f32 %v5731, %v6840
    %v6843 = vadd.f32 %v5732, %v6841
    %v6844 = vmax.f32 %v6842, 0.0
    %v6845 = vmax.f32 %v6843, 0.0
  $region184: #{tpu_custom_call.1} parent=0 // loop_footer
    %s5730 = sadd.s32 1, %s5726
  $region185: #{tpu_custom_call.1} parent=0 // loop_footer_branch
    %5725 = sbr.rel target = $region181
  $region186: #{tpu_custom_call.1} parent=0 // loop_exit
    _
  %v6846 = vld [vmem:[%s57] sm:$0xff]
  %v6847 = vld [vmem:[%s57 + $0x8] sm:$0xff]
  %v6849 = vsel %vm5678, %v5731, 0
  %v6852 = vsel %vm5678, %v5732, 0
  %6854 = vmatprep.subr.mxu0 0.0
  %6855 = vmatpush1.msra.mxu0 0.0
  %6856 = vmatprep.subr.mxu0 0.0
  %6857 = vmatpush1.msra.mxu0 0.0
  %6858 = vmatprep.subr.mxu0 0.0
  %6859 = vmatpush1.msra.mxu0 0.0
  %6860 = vmatprep.subr.mxu0 0.0
  %6861 = vmatpush1.msra.mxu0 0.0
  %6862 = vmatprep.subr.mxu0 0.0
  %6863 = vmatpush1.msra.mxu0 0.0
  %6864 = vmatprep.subr.mxu0 0.0
  %6865 = vmatpush1.msra.mxu0 0.0
  %6866 = vmatprep.subr.mxu0 0.0
  %6867 = vmatpush1.msra.mxu0 0.0
  %6868 = vmatprep.subr.mxu0 0.0
  %6869 = vmatpush1.msra.mxu0 0.0
  %6870 = vmatprep.subr.mxu0 0.0
  %6871 = vmatpush1.msra.mxu0 0.0
  %6872 = vmatprep.subr.mxu0 0.0
  %6873 = vmatpush1.msra.mxu0 0.0
  %6874 = vmatprep.subr.mxu0 0.0
  %6875 = vmatpush1.msra.mxu0 0.0
  %6876 = vmatprep.subr.mxu0 0.0
  %6877 = vmatpush1.msra.mxu0 0.0
  %6878 = vmatprep.subr.mxu0 0.0
  %6879 = vmatpush1.msra.mxu0 0.0
  %6880 = vmatprep.subr.mxu0 0.0
  %6881 = vmatpush1.msra.mxu0 0.0
  %6882 = vmatprep.subr.mxu0 0.0
  %v6883 = vand.u32 %v6847, 4294901760
  %6884 = vmatpush1.msra.mxu0 %v6883
  %6885 = vmatprep.subr.mxu0 0.0
  %v6886 = vand.u32 %v6846, 4294901760
  %6887 = vmatpush1.msra.mxu0 %v6886
  %6888 = vmatprep.subr.mxu0 0.0
  %6889 = vmatpush2.msra.mxu0 0.0
  %6890 = vmatprep.subr.mxu0 0.0
  %6891 = vmatpush2.msra.mxu0 0.0
  %6892 = vmatprep.subr.mxu0 0.0
  %6893 = vmatpush2.msra.mxu0 0.0
  %6894 = vmatprep.subr.mxu0 0.0
  %6895 = vmatpush2.msra.mxu0 0.0
  %6896 = vmatprep.subr.mxu0 0.0
  %6897 = vmatpush2.msra.mxu0 0.0
  %6898 = vmatprep.subr.mxu0 0.0
  %6899 = vmatpush2.msra.mxu0 0.0
  %6900 = vmatprep.subr.mxu0 0.0
  %6901 = vmatpush2.msra.mxu0 0.0
  %6902 = vmatprep.subr.mxu0 0.0
  %6903 = vmatpush2.msra.mxu0 0.0
  %6904 = vmatprep.subr.mxu0 0.0
  %6905 = vmatpush2.msra.mxu0 0.0
  %6906 = vmatprep.subr.mxu0 0.0
  %6907 = vmatpush2.msra.mxu0 0.0
  %6908 = vmatprep.subr.mxu0 0.0
  %6909 = vmatpush2.msra.mxu0 0.0
  %6910 = vmatprep.subr.mxu0 0.0
  %6911 = vmatpush2.msra.mxu0 0.0
  %6912 = vmatprep.subr.mxu0 0.0
  %6913 = vmatpush2.msra.mxu0 0.0
  %6914 = vmatprep.subr.mxu0 0.0
  %6915 = vmatpush2.msra.mxu0 0.0
  %6916 = vmatprep.subr.mxu0 0.0
  %6917 = vmatpush2.msra.mxu0 0.0
  %6918 = vmatprep.subr.mxu0 0.0
  %6919 = vmatpush2.msra.mxu0 0.0
  %6920 = vmatprep.mubr.f32.mxu0 0.0
  %v6921 = vand.u32 %v6849, 4294901760
  %v6922 = vsub.f32 %v6849, %v6921
  %v6923 = vand.u32 %v6922, 4294901760
  %v6924 = vsub.f32 %v6922, %v6923
  %v6925 = vand.u32 %v6924, 4294901760
  %6926 = vmatmul.mubr.f32.gmra.mxu0 %v6925
  %v6927 = vpop.f32.mrf.mxu0
  %v6928 = vadd.f32 0.0, %v6927
  %v6929 = vpop.f32.mrf.mxu0
  %6930 = vmatprep.mubr.f32.mxu0 0.0
  %v6931 = vand.u32 %v6852, 4294901760
  %v6932 = vsub.f32 %v6852, %v6931
  %v6933 = vand.u32 %v6932, 4294901760
  %v6934 = vsub.f32 %v6932, %v6933
  %v6935 = vand.u32 %v6934, 4294901760
  %6936 = vmatmul.mubr.f32.gmra.mxu0 %v6935
  %v6937 = vpop.f32.mrf.mxu0
  %v6938 = vadd.f32 0.0, %v6937
  %v6939 = vpop.f32.mrf.mxu0
  %6940 = vdwg.mxu0
  %6941 = vmatprep.subr.mxu0 0.0
  %6942 = vmatpush1.msra.mxu0 0.0
  %6943 = vmatprep.subr.mxu0 0.0
  %6944 = vmatpush1.msra.mxu0 0.0
  %6945 = vmatprep.subr.mxu0 0.0
  %6946 = vmatpush1.msra.mxu0 0.0
  %6947 = vmatprep.subr.mxu0 0.0
  %6948 = vmatpush1.msra.mxu0 0.0
  %6949 = vmatprep.subr.mxu0 0.0
  %6950 = vmatpush1.msra.mxu0 0.0
  %6951 = vmatprep.subr.mxu0 0.0
  %6952 = vmatpush1.msra.mxu0 0.0
  %6953 = vmatprep.subr.mxu0 0.0
  %6954 = vmatpush1.msra.mxu0 0.0
  %6955 = vmatprep.subr.mxu0 0.0
  %6956 = vmatpush1.msra.mxu0 0.0
  %6957 = vmatprep.subr.mxu0 0.0
  %6958 = vmatpush1.msra.mxu0 0.0
  %6959 = vmatprep.subr.mxu0 0.0
  %6960 = vmatpush1.msra.mxu0 0.0
  %6961 = vmatprep.subr.mxu0 0.0
  %6962 = vmatpush1.msra.mxu0 0.0
  %6963 = vmatprep.subr.mxu0 0.0
  %6964 = vmatpush1.msra.mxu0 0.0
  %6965 = vmatprep.subr.mxu0 0.0
  %6966 = vmatpush1.msra.mxu0 0.0
  %6967 = vmatprep.subr.mxu0 0.0
  %6968 = vmatpush1.msra.mxu0 0.0
  %6969 = vmatprep.subr.mxu0 0.0
  %v6970 = vand.u32 %v6847, 4294901760
  %v6971 = vsub.f32 %v6847, %v6970
  %v6972 = vand.u32 %v6971, 4294901760
  %v6973 = vsub.f32 %v6971, %v6972
  %v6974 = vand.u32 %v6973, 4294901760
  %6975 = vmatpush1.msra.mxu0 %v6974
  %6976 = vmatprep.subr.mxu0 0.0
  %v6977 = vand.u32 %v6846, 4294901760
  %v6978 = vsub.f32 %v6846, %v6977
  %v6979 = vand.u32 %v6978, 4294901760
  %v6980 = vsub.f32 %v6978, %v6979
  %v6981 = vand.u32 %v6980, 4294901760
  %6982 = vmatpush1.msra.mxu0 %v6981
  %6983 = vmatprep.subr.mxu0 0.0
  %6984 = vmatpush2.msra.mxu0 0.0
  %6985 = vmatprep.subr.mxu0 0.0
  %6986 = vmatpush2.msra.mxu0 0.0
  %6987 = vmatprep.subr.mxu0 0.0
  %6988 = vmatpush2.msra.mxu0 0.0
  %6989 = vmatprep.subr.mxu0 0.0
  %6990 = vmatpush2.msra.mxu0 0.0
  %6991 = vmatprep.subr.mxu0 0.0
  %6992 = vmatpush2.msra.mxu0 0.0
  %6993 = vmatprep.subr.mxu0 0.0
  %6994 = vmatpush2.msra.mxu0 0.0
  %6995 = vmatprep.subr.mxu0 0.0
  %6996 = vmatpush2.msra.mxu0 0.0
  %6997 = vmatprep.subr.mxu0 0.0
  %6998 = vmatpush2.msra.mxu0 0.0
  %6999 = vmatprep.subr.mxu0 0.0
  %7000 = vmatpush2.msra.mxu0 0.0
  %7001 = vmatprep.subr.mxu0 0.0
  %7002 = vmatpush2.msra.mxu0 0.0
  %7003 = vmatprep.subr.mxu0 0.0
  %7004 = vmatpush2.msra.mxu0 0.0
  %7005 = vmatprep.subr.mxu0 0.0
  %7006 = vmatpush2.msra.mxu0 0.0
  %7007 = vmatprep.subr.mxu0 0.0
  %7008 = vmatpush2.msra.mxu0 0.0
  %7009 = vmatprep.subr.mxu0 0.0
  %7010 = vmatpush2.msra.mxu0 0.0
  %7011 = vmatprep.subr.mxu0 0.0
  %7012 = vmatpush2.msra.mxu0 0.0
  %7013 = vmatprep.subr.mxu0 0.0
  %7014 = vmatpush2.msra.mxu0 0.0
  %7015 = vmatprep.mubr.f32.mxu0 0.0
  %v7016 = vand.u32 %v6849, 4294901760
  %7017 = vmatmul.mubr.f32.gmra.mxu0 %v7016
  %v7018 = vpop.f32.mrf.mxu0
  %v7019 = vadd.f32 %v6928, %v7018
  %v7020 = vpop.f32.mrf.mxu0
  %7021 = vmatprep.mubr.f32.mxu0 0.0
  %v7022 = vand.u32 %v6852, 4294901760
  %7023 = vmatmul.mubr.f32.gmra.mxu0 %v7022
  %v7024 = vpop.f32.mrf.mxu0
  %v7025 = vadd.f32 %v6938, %v7024
  %v7026 = vpop.f32.mrf.mxu0
  %7027 = vdwg.mxu0
  %7028 = vmatprep.subr.mxu0 0.0
  %7029 = vmatpush1.msra.mxu0 0.0
  %7030 = vmatprep.subr.mxu0 0.0
  %7031 = vmatpush1.msra.mxu0 0.0
  %7032 = vmatprep.subr.mxu0 0.0
  %7033 = vmatpush1.msra.mxu0 0.0
  %7034 = vmatprep.subr.mxu0 0.0
  %7035 = vmatpush1.msra.mxu0 0.0
  %7036 = vmatprep.subr.mxu0 0.0
  %7037 = vmatpush1.msra.mxu0 0.0
  %7038 = vmatprep.subr.mxu0 0.0
  %7039 = vmatpush1.msra.mxu0 0.0
  %7040 = vmatprep.subr.mxu0 0.0
  %7041 = vmatpush1.msra.mxu0 0.0
  %7042 = vmatprep.subr.mxu0 0.0
  %7043 = vmatpush1.msra.mxu0 0.0
  %7044 = vmatprep.subr.mxu0 0.0
  %7045 = vmatpush1.msra.mxu0 0.0
  %7046 = vmatprep.subr.mxu0 0.0
  %7047 = vmatpush1.msra.mxu0 0.0
  %7048 = vmatprep.subr.mxu0 0.0
  %7049 = vmatpush1.msra.mxu0 0.0
  %7050 = vmatprep.subr.mxu0 0.0
  %7051 = vmatpush1.msra.mxu0 0.0
  %7052 = vmatprep.subr.mxu0 0.0
  %7053 = vmatpush1.msra.mxu0 0.0
  %7054 = vmatprep.subr.mxu0 0.0
  %7055 = vmatpush1.msra.mxu0 0.0
  %7056 = vmatprep.subr.mxu0 0.0
  %v7057 = vand.u32 %v6847, 4294901760
  %v7058 = vsub.f32 %v6847, %v7057
  %7059 = vmatpush1.msra.mxu0 %v7058
  %7060 = vmatprep.subr.mxu0 0.0
  %v7061 = vand.u32 %v6846, 4294901760
  %v7062 = vsub.f32 %v6846, %v7061
  %7063 = vmatpush1.msra.mxu0 %v7062
  %7064 = vmatprep.subr.mxu0 0.0
  %7065 = vmatpush2.msra.mxu0 0.0
  %7066 = vmatprep.subr.mxu0 0.0
  %7067 = vmatpush2.msra.mxu0 0.0
  %7068 = vmatprep.subr.mxu0 0.0
  %7069 = vmatpush2.msra.mxu0 0.0
  %7070 = vmatprep.subr.mxu0 0.0
  %7071 = vmatpush2.msra.mxu0 0.0
  %7072 = vmatprep.subr.mxu0 0.0
  %7073 = vmatpush2.msra.mxu0 0.0
  %7074 = vmatprep.subr.mxu0 0.0
  %7075 = vmatpush2.msra.mxu0 0.0
  %7076 = vmatprep.subr.mxu0 0.0
  %7077 = vmatpush2.msra.mxu0 0.0
  %7078 = vmatprep.subr.mxu0 0.0
  %7079 = vmatpush2.msra.mxu0 0.0
  %7080 = vmatprep.subr.mxu0 0.0
  %7081 = vmatpush2.msra.mxu0 0.0
  %7082 = vmatprep.subr.mxu0 0.0
  %7083 = vmatpush2.msra.mxu0 0.0
  %7084 = vmatprep.subr.mxu0 0.0
  %7085 = vmatpush2.msra.mxu0 0.0
  %7086 = vmatprep.subr.mxu0 0.0
  %7087 = vmatpush2.msra.mxu0 0.0
  %7088 = vmatprep.subr.mxu0 0.0
  %7089 = vmatpush2.msra.mxu0 0.0
  %7090 = vmatprep.subr.mxu0 0.0
  %7091 = vmatpush2.msra.mxu0 0.0
  %7092 = vmatprep.subr.mxu0 0.0
  %7093 = vmatpush2.msra.mxu0 0.0
  %7094 = vmatprep.subr.mxu0 0.0
  %7095 = vmatpush2.msra.mxu0 0.0
  %7096 = vmatprep.mubr.f32.mxu0 0.0
  %v7097 = vand.u32 %v6849, 4294901760
  %v7098 = vsub.f32 %v6849, %v7097
  %7099 = vmatmul.mubr.f32.gmra.mxu0 %v7098
  %v7100 = vpop.f32.mrf.mxu0
  %v7101 = vadd.f32 %v7019, %v7100
  %v7102 = vpop.f32.mrf.mxu0
  %7103 = vmatprep.mubr.f32.mxu0 0.0
  %v7104 = vand.u32 %v6852, 4294901760
  %v7105 = vsub.f32 %v6852, %v7104
  %7106 = vmatmul.mubr.f32.gmra.mxu0 %v7105
  %v7107 = vpop.f32.mrf.mxu0
  %v7108 = vadd.f32 %v7025, %v7107
  %v7109 = vpop.f32.mrf.mxu0
  %7110 = vdwg.mxu0
  %7111 = vmatprep.subr.mxu0 0.0
  %7112 = vmatpush1.msra.mxu0 0.0
  %7113 = vmatprep.subr.mxu0 0.0
  %7114 = vmatpush1.msra.mxu0 0.0
  %7115 = vmatprep.subr.mxu0 0.0
  %7116 = vmatpush1.msra.mxu0 0.0
  %7117 = vmatprep.subr.mxu0 0.0
  %7118 = vmatpush1.msra.mxu0 0.0
  %7119 = vmatprep.subr.mxu0 0.0
  %7120 = vmatpush1.msra.mxu0 0.0
  %7121 = vmatprep.subr.mxu0 0.0
  %7122 = vmatpush1.msra.mxu0 0.0
  %7123 = vmatprep.subr.mxu0 0.0
  %7124 = vmatpush1.msra.mxu0 0.0
  %7125 = vmatprep.subr.mxu0 0.0
  %7126 = vmatpush1.msra.mxu0 0.0
  %7127 = vmatprep.subr.mxu0 0.0
  %7128 = vmatpush1.msra.mxu0 0.0
  %7129 = vmatprep.subr.mxu0 0.0
  %7130 = vmatpush1.msra.mxu0 0.0
  %7131 = vmatprep.subr.mxu0 0.0
  %7132 = vmatpush1.msra.mxu0 0.0
  %7133 = vmatprep.subr.mxu0 0.0
  %7134 = vmatpush1.msra.mxu0 0.0
  %7135 = vmatprep.subr.mxu0 0.0
  %7136 = vmatpush1.msra.mxu0 0.0
  %7137 = vmatprep.subr.mxu0 0.0
  %7138 = vmatpush1.msra.mxu0 0.0
  %7139 = vmatprep.subr.mxu0 0.0
  %v7140 = vand.u32 %v6847, 4294901760
  %7141 = vmatpush1.msra.mxu0 %v7140
  %7142 = vmatprep.subr.mxu0 0.0
  %v7143 = vand.u32 %v6846, 4294901760
  %7144 = vmatpush1.msra.mxu0 %v7143
  %7145 = vmatprep.subr.mxu0 0.0
  %7146 = vmatpush2.msra.mxu0 0.0
  %7147 = vmatprep.subr.mxu0 0.0
  %7148 = vmatpush2.msra.mxu0 0.0
  %7149 = vmatprep.subr.mxu0 0.0
  %7150 = vmatpush2.msra.mxu0 0.0
  %7151 = vmatprep.subr.mxu0 0.0
  %7152 = vmatpush2.msra.mxu0 0.0
  %7153 = vmatprep.subr.mxu0 0.0
  %7154 = vmatpush2.msra.mxu0 0.0
  %7155 = vmatprep.subr.mxu0 0.0
  %7156 = vmatpush2.msra.mxu0 0.0
  %7157 = vmatprep.subr.mxu0 0.0
  %7158 = vmatpush2.msra.mxu0 0.0
  %7159 = vmatprep.subr.mxu0 0.0
  %7160 = vmatpush2.msra.mxu0 0.0
  %7161 = vmatprep.subr.mxu0 0.0
  %7162 = vmatpush2.msra.mxu0 0.0
  %7163 = vmatprep.subr.mxu0 0.0
  %7164 = vmatpush2.msra.mxu0 0.0
  %7165 = vmatprep.subr.mxu0 0.0
  %7166 = vmatpush2.msra.mxu0 0.0
  %7167 = vmatprep.subr.mxu0 0.0
  %7168 = vmatpush2.msra.mxu0 0.0
  %7169 = vmatprep.subr.mxu0 0.0
  %7170 = vmatpush2.msra.mxu0 0.0
  %7171 = vmatprep.subr.mxu0 0.0
  %7172 = vmatpush2.msra.mxu0 0.0
  %7173 = vmatprep.subr.mxu0 0.0
  %7174 = vmatpush2.msra.mxu0 0.0
  %7175 = vmatprep.subr.mxu0 0.0
  %7176 = vmatpush2.msra.mxu0 0.0
  %7177 = vmatprep.mubr.f32.mxu0 0.0
  %v7178 = vand.u32 %v6849, 4294901760
  %v7179 = vsub.f32 %v6849, %v7178
  %v7180 = vand.u32 %v7179, 4294901760
  %7181 = vmatmul.mubr.f32.gmra.mxu0 %v7180
  %v7182 = vpop.f32.mrf.mxu0
  %v7183 = vadd.f32 %v7101, %v7182
  %v7184 = vpop.f32.mrf.mxu0
  %7185 = vmatprep.mubr.f32.mxu0 0.0
  %v7186 = vand.u32 %v6852, 4294901760
  %v7187 = vsub.f32 %v6852, %v7186
  %v7188 = vand.u32 %v7187, 4294901760
  %7189 = vmatmul.mubr.f32.gmra.mxu0 %v7188
  %v7190 = vpop.f32.mrf.mxu0
  %v7191 = vadd.f32 %v7108, %v7190
  %v7192 = vpop.f32.mrf.mxu0
  %7193 = vdwg.mxu0
  %7194 = vmatprep.subr.mxu0 0.0
  %7195 = vmatpush1.msra.mxu0 0.0
  %7196 = vmatprep.subr.mxu0 0.0
  %7197 = vmatpush1.msra.mxu0 0.0
  %7198 = vmatprep.subr.mxu0 0.0
  %7199 = vmatpush1.msra.mxu0 0.0
  %7200 = vmatprep.subr.mxu0 0.0
  %7201 = vmatpush1.msra.mxu0 0.0
  %7202 = vmatprep.subr.mxu0 0.0
  %7203 = vmatpush1.msra.mxu0 0.0
  %7204 = vmatprep.subr.mxu0 0.0
  %7205 = vmatpush1.msra.mxu0 0.0
  %7206 = vmatprep.subr.mxu0 0.0
  %7207 = vmatpush1.msra.mxu0 0.0
  %7208 = vmatprep.subr.mxu0 0.0
  %7209 = vmatpush1.msra.mxu0 0.0
  %7210 = vmatprep.subr.mxu0 0.0
  %7211 = vmatpush1.msra.mxu0 0.0
  %7212 = vmatprep.subr.mxu0 0.0
  %7213 = vmatpush1.msra.mxu0 0.0
  %7214 = vmatprep.subr.mxu0 0.0
  %7215 = vmatpush1.msra.mxu0 0.0
  %7216 = vmatprep.subr.mxu0 0.0
  %7217 = vmatpush1.msra.mxu0 0.0
  %7218 = vmatprep.subr.mxu0 0.0
  %7219 = vmatpush1.msra.mxu0 0.0
  %7220 = vmatprep.subr.mxu0 0.0
  %7221 = vmatpush1.msra.mxu0 0.0
  %7222 = vmatprep.subr.mxu0 0.0
  %v7223 = vand.u32 %v6847, 4294901760
  %v7224 = vsub.f32 %v6847, %v7223
  %v7225 = vand.u32 %v7224, 4294901760
  %7226 = vmatpush1.msra.mxu0 %v7225
  %7227 = vmatprep.subr.mxu0 0.0
  %v7228 = vand.u32 %v6846, 4294901760
  %v7229 = vsub.f32 %v6846, %v7228
  %v7230 = vand.u32 %v7229, 4294901760
  %7231 = vmatpush1.msra.mxu0 %v7230
  %7232 = vmatprep.subr.mxu0 0.0
  %7233 = vmatpush2.msra.mxu0 0.0
  %7234 = vmatprep.subr.mxu0 0.0
  %7235 = vmatpush2.msra.mxu0 0.0
  %7236 = vmatprep.subr.mxu0 0.0
  %7237 = vmatpush2.msra.mxu0 0.0
  %7238 = vmatprep.subr.mxu0 0.0
  %7239 = vmatpush2.msra.mxu0 0.0
  %7240 = vmatprep.subr.mxu0 0.0
  %7241 = vmatpush2.msra.mxu0 0.0
  %7242 = vmatprep.subr.mxu0 0.0
  %7243 = vmatpush2.msra.mxu0 0.0
  %7244 = vmatprep.subr.mxu0 0.0
  %7245 = vmatpush2.msra.mxu0 0.0
  %7246 = vmatprep.subr.mxu0 0.0
  %7247 = vmatpush2.msra.mxu0 0.0
  %7248 = vmatprep.subr.mxu0 0.0
  %7249 = vmatpush2.msra.mxu0 0.0
  %7250 = vmatprep.subr.mxu0 0.0
  %7251 = vmatpush2.msra.mxu0 0.0
  %7252 = vmatprep.subr.mxu0 0.0
  %7253 = vmatpush2.msra.mxu0 0.0
  %7254 = vmatprep.subr.mxu0 0.0
  %7255 = vmatpush2.msra.mxu0 0.0
  %7256 = vmatprep.subr.mxu0 0.0
  %7257 = vmatpush2.msra.mxu0 0.0
  %7258 = vmatprep.subr.mxu0 0.0
  %7259 = vmatpush2.msra.mxu0 0.0
  %7260 = vmatprep.subr.mxu0 0.0
  %7261 = vmatpush2.msra.mxu0 0.0
  %7262 = vmatprep.subr.mxu0 0.0
  %7263 = vmatpush2.msra.mxu0 0.0
  %7264 = vmatprep.mubr.f32.mxu0 0.0
  %v7265 = vand.u32 %v6849, 4294901760
  %7266 = vmatmul.mubr.f32.gmra.mxu0 %v7265
  %v7267 = vpop.f32.mrf.mxu0
  %v7268 = vadd.f32 %v7183, %v7267
  %v7269 = vpop.f32.mrf.mxu0
  %7270 = vmatprep.mubr.f32.mxu0 0.0
  %v7271 = vand.u32 %v6852, 4294901760
  %7272 = vmatmul.mubr.f32.gmra.mxu0 %v7271
  %v7273 = vpop.f32.mrf.mxu0
  %v7274 = vadd.f32 %v7191, %v7273
  %v7275 = vpop.f32.mrf.mxu0
  %7276 = vdwg.mxu0
  %7277 = vmatprep.subr.mxu0 0.0
  %7278 = vmatpush1.msra.mxu0 0.0
  %7279 = vmatprep.subr.mxu0 0.0
  %7280 = vmatpush1.msra.mxu0 0.0
  %7281 = vmatprep.subr.mxu0 0.0
  %7282 = vmatpush1.msra.mxu0 0.0
  %7283 = vmatprep.subr.mxu0 0.0
  %7284 = vmatpush1.msra.mxu0 0.0
  %7285 = vmatprep.subr.mxu0 0.0
  %7286 = vmatpush1.msra.mxu0 0.0
  %7287 = vmatprep.subr.mxu0 0.0
  %7288 = vmatpush1.msra.mxu0 0.0
  %7289 = vmatprep.subr.mxu0 0.0
  %7290 = vmatpush1.msra.mxu0 0.0
  %7291 = vmatprep.subr.mxu0 0.0
  %7292 = vmatpush1.msra.mxu0 0.0
  %7293 = vmatprep.subr.mxu0 0.0
  %7294 = vmatpush1.msra.mxu0 0.0
  %7295 = vmatprep.subr.mxu0 0.0
  %7296 = vmatpush1.msra.mxu0 0.0
  %7297 = vmatprep.subr.mxu0 0.0
  %7298 = vmatpush1.msra.mxu0 0.0
  %7299 = vmatprep.subr.mxu0 0.0
  %7300 = vmatpush1.msra.mxu0 0.0
  %7301 = vmatprep.subr.mxu0 0.0
  %7302 = vmatpush1.msra.mxu0 0.0
  %7303 = vmatprep.subr.mxu0 0.0
  %7304 = vmatpush1.msra.mxu0 0.0
  %7305 = vmatprep.subr.mxu0 0.0
  %v7306 = vand.u32 %v6847, 4294901760
  %7307 = vmatpush1.msra.mxu0 %v7306
  %7308 = vmatprep.subr.mxu0 0.0
  %v7309 = vand.u32 %v6846, 4294901760
  %7310 = vmatpush1.msra.mxu0 %v7309
  %7311 = vmatprep.subr.mxu0 0.0
  %7312 = vmatpush2.msra.mxu0 0.0
  %7313 = vmatprep.subr.mxu0 0.0
  %7314 = vmatpush2.msra.mxu0 0.0
  %7315 = vmatprep.subr.mxu0 0.0
  %7316 = vmatpush2.msra.mxu0 0.0
  %7317 = vmatprep.subr.mxu0 0.0
  %7318 = vmatpush2.msra.mxu0 0.0
  %7319 = vmatprep.subr.mxu0 0.0
  %7320 = vmatpush2.msra.mxu0 0.0
  %7321 = vmatprep.subr.mxu0 0.0
  %7322 = vmatpush2.msra.mxu0 0.0
  %7323 = vmatprep.subr.mxu0 0.0
  %7324 = vmatpush2.msra.mxu0 0.0
  %7325 = vmatprep.subr.mxu0 0.0
  %7326 = vmatpush2.msra.mxu0 0.0
  %7327 = vmatprep.subr.mxu0 0.0
  %7328 = vmatpush2.msra.mxu0 0.0
  %7329 = vmatprep.subr.mxu0 0.0
  %7330 = vmatpush2.msra.mxu0 0.0
  %7331 = vmatprep.subr.mxu0 0.0
  %7332 = vmatpush2.msra.mxu0 0.0
  %7333 = vmatprep.subr.mxu0 0.0
  %7334 = vmatpush2.msra.mxu0 0.0
  %7335 = vmatprep.subr.mxu0 0.0
  %7336 = vmatpush2.msra.mxu0 0.0
  %7337 = vmatprep.subr.mxu0 0.0
  %7338 = vmatpush2.msra.mxu0 0.0
  %7339 = vmatprep.subr.mxu0 0.0
  %7340 = vmatpush2.msra.mxu0 0.0
  %7341 = vmatprep.subr.mxu0 0.0
  %7342 = vmatpush2.msra.mxu0 0.0
  %7343 = vmatprep.mubr.f32.mxu0 0.0
  %v7344 = vand.u32 %v6849, 4294901760
  %7345 = vmatmul.mubr.f32.gmra.mxu0 %v7344
  %v7346 = vpop.f32.mrf.mxu0
  %v7347 = vadd.f32 %v7268, %v7346
  %v7348 = vpop.f32.mrf.mxu0
  %7349 = vmatprep.mubr.f32.mxu0 0.0
  %v7350 = vand.u32 %v6852, 4294901760
  %7351 = vmatmul.mubr.f32.gmra.mxu0 %v7350
  %v7352 = vpop.f32.mrf.mxu0
  %v7353 = vadd.f32 %v7274, %v7352
  %v7354 = vpop.f32.mrf.mxu0
  %7355 = vdwg.mxu0
  %v7356 = vld [vmem:[%s59] sm:$0x1]
  %v7357 = vld [vmem:[%s61] sm:$0x1]
  %vm7358 = vcmask 64512
  %v7359 = vsel %vm7358, %v7347, 0.0
  %v7360 = vsel %vm7358, %v7353, 0.0
  %v7361 = vadd.f32 %v7359, %v7360
  %v7362 = vrot.slane %v7361, 4
  %v7363 = vadd.f32 %v7361, %v7362
  %v7364 = vrot.slane %v7363, 2
  %v7365 = vadd.f32 %v7363, %v7364
  %v7366 = vrot.slane %v7365, 1
  %v7367 = vadd.f32 %v7365, %v7366
  %v7368 = vmul.f32 %v7367, 0.0625
  %v7369 = vsub.f32 %v7347, %v7368
  %v7370 = vsub.f32 %v7353, %v7368
  %v7371 = vmul.f32 %v7369, %v7369
  %v7372 = vmul.f32 %v7370, %v7370
  %v7373 = vsel %vm7358, %v7371, 0.0
  %v7374 = vsel %vm7358, %v7372, 0.0
  %v7375 = vadd.f32 %v7373, %v7374
  %v7376 = vrot.slane %v7375, 4
  %v7377 = vadd.f32 %v7375, %v7376
  %v7378 = vrot.slane %v7377, 2
  %v7379 = vadd.f32 %v7377, %v7378
  %v7380 = vrot.slane %v7379, 1
  %v7381 = vadd.f32 %v7379, %v7380
  %v7382 = vmul.f32 %v7381, 0.0625
  %v7383 = vadd.f32 %v7382, 1e-05
  %v7384 = vrsqrt.pop %v7383
  %v7385 = vmul.f32 %v7369, %v7384
  %v7386 = vmul.f32 %v7370, %v7384
  %v7388 = vlaneseq
  %v7389 = vshrl.u32 %v7388, 7
  %v7390 = vsub.s32 0, %v7389
  %v7391 = vrot.slane %v7356, %v7390
  %v7393 = vmul.f32 %v7385, %v7391
  %v7394 = vmul.f32 %v7386, %v7391
  %v7396 = vlaneseq
  %v7397 = vshrl.u32 %v7396, 7
  %v7398 = vsub.s32 0, %v7397
  %v7399 = vrot.slane %v7357, %v7398
  %v7401 = vadd.f32 %v7393, %v7399
  %v7402 = vadd.f32 %v7394, %v7399
  %v7403 = vmax.f32 %v7401, 0.0
  %v7404 = vmax.f32 %v7402, 0.0
  loop: start=0, step=1, limit=64
  $region187: #{tpu_custom_call.1} parent=0 // loop_pre_header
    _
  $region188: #{tpu_custom_call.1} parent=0 // loop_header
    %s7406 = sphi 0, %s7410
    %p7407 = scmp.ge.s32.totalorder %s7406, 64
    %v7411 = vphi %v7403, %v8508
    %v7412 = vphi %v7404, %v8509
  $region189: #{tpu_custom_call.1} parent=0 // loop_header_branch
    %7409 = sbr.rel (%p7407) target = $region193
  $region190: #{tpu_custom_call.1} parent=0 // loop_body
    %s7413 = smul.u32 %s7406, 8
    %s7414 = scalar_lea.vmem %s63, %s7413
    %v7415 = vld [vmem:[%s7414] sm:$0xff]
    %v7417 = vsel %vm7358, %v7411, 0
    %v7420 = vsel %vm7358, %v7412, 0
    %7422 = vmatprep.subr.mxu0 0.0
    %7423 = vmatpush1.msra.mxu0 0.0
    %7424 = vmatprep.subr.mxu0 0.0
    %7425 = vmatpush1.msra.mxu0 0.0
    %7426 = vmatprep.subr.mxu0 0.0
    %7427 = vmatpush1.msra.mxu0 0.0
    %7428 = vmatprep.subr.mxu0 0.0
    %7429 = vmatpush1.msra.mxu0 0.0
    %7430 = vmatprep.subr.mxu0 0.0
    %7431 = vmatpush1.msra.mxu0 0.0
    %7432 = vmatprep.subr.mxu0 0.0
    %7433 = vmatpush1.msra.mxu0 0.0
    %7434 = vmatprep.subr.mxu0 0.0
    %7435 = vmatpush1.msra.mxu0 0.0
    %7436 = vmatprep.subr.mxu0 0.0
    %7437 = vmatpush1.msra.mxu0 0.0
    %7438 = vmatprep.subr.mxu0 0.0
    %7439 = vmatpush1.msra.mxu0 0.0
    %7440 = vmatprep.subr.mxu0 0.0
    %7441 = vmatpush1.msra.mxu0 0.0
    %7442 = vmatprep.subr.mxu0 0.0
    %7443 = vmatpush1.msra.mxu0 0.0
    %7444 = vmatprep.subr.mxu0 0.0
    %7445 = vmatpush1.msra.mxu0 0.0
    %7446 = vmatprep.subr.mxu0 0.0
    %7447 = vmatpush1.msra.mxu0 0.0
    %7448 = vmatprep.subr.mxu0 0.0
    %7449 = vmatpush1.msra.mxu0 0.0
    %7450 = vmatprep.subr.mxu0 0.0
    %7451 = vmatpush1.msra.mxu0 0.0
    %7452 = vmatprep.subr.mxu0 0.0
    %v7453 = vand.u32 %v7415, 4294901760
    %7454 = vmatpush1.msra.mxu0 %v7453
    %7455 = vmatprep.subr.mxu0 0.0
    %7456 = vmatpush2.msra.mxu0 0.0
    %7457 = vmatprep.subr.mxu0 0.0
    %7458 = vmatpush2.msra.mxu0 0.0
    %7459 = vmatprep.subr.mxu0 0.0
    %7460 = vmatpush2.msra.mxu0 0.0
    %7461 = vmatprep.subr.mxu0 0.0
    %7462 = vmatpush2.msra.mxu0 0.0
    %7463 = vmatprep.subr.mxu0 0.0
    %7464 = vmatpush2.msra.mxu0 0.0
    %7465 = vmatprep.subr.mxu0 0.0
    %7466 = vmatpush2.msra.mxu0 0.0
    %7467 = vmatprep.subr.mxu0 0.0
    %7468 = vmatpush2.msra.mxu0 0.0
    %7469 = vmatprep.subr.mxu0 0.0
    %7470 = vmatpush2.msra.mxu0 0.0
    %7471 = vmatprep.subr.mxu0 0.0
    %7472 = vmatpush2.msra.mxu0 0.0
    %7473 = vmatprep.subr.mxu0 0.0
    %7474 = vmatpush2.msra.mxu0 0.0
    %7475 = vmatprep.subr.mxu0 0.0
    %7476 = vmatpush2.msra.mxu0 0.0
    %7477 = vmatprep.subr.mxu0 0.0
    %7478 = vmatpush2.msra.mxu0 0.0
    %7479 = vmatprep.subr.mxu0 0.0
    %7480 = vmatpush2.msra.mxu0 0.0
    %7481 = vmatprep.subr.mxu0 0.0
    %7482 = vmatpush2.msra.mxu0 0.0
    %7483 = vmatprep.subr.mxu0 0.0
    %7484 = vmatpush2.msra.mxu0 0.0
    %7485 = vmatprep.subr.mxu0 0.0
    %7486 = vmatpush2.msra.mxu0 0.0
    %7487 = vmatprep.mubr.f32.mxu0 0.0
    %v7488 = vand.u32 %v7417, 4294901760
    %v7489 = vsub.f32 %v7417, %v7488
    %v7490 = vand.u32 %v7489, 4294901760
    %v7491 = vsub.f32 %v7489, %v7490
    %v7492 = vand.u32 %v7491, 4294901760
    %7493 = vmatmul.mubr.f32.gmra.mxu0 %v7492
    %v7494 = vpop.f32.mrf.mxu0
    %v7495 = vadd.f32 0.0, %v7494
    %v7496 = vpop.f32.mrf.mxu0
    %7497 = vmatprep.mubr.f32.mxu0 0.0
    %v7498 = vand.u32 %v7420, 4294901760
    %v7499 = vsub.f32 %v7420, %v7498
    %v7500 = vand.u32 %v7499, 4294901760
    %v7501 = vsub.f32 %v7499, %v7500
    %v7502 = vand.u32 %v7501, 4294901760
    %7503 = vmatmul.mubr.f32.gmra.mxu0 %v7502
    %v7504 = vpop.f32.mrf.mxu0
    %v7505 = vadd.f32 0.0, %v7504
    %v7506 = vpop.f32.mrf.mxu0
    %7507 = vdwg.mxu0
    %7508 = vmatprep.subr.mxu0 0.0
    %7509 = vmatpush1.msra.mxu0 0.0
    %7510 = vmatprep.subr.mxu0 0.0
    %7511 = vmatpush1.msra.mxu0 0.0
    %7512 = vmatprep.subr.mxu0 0.0
    %7513 = vmatpush1.msra.mxu0 0.0
    %7514 = vmatprep.subr.mxu0 0.0
    %7515 = vmatpush1.msra.mxu0 0.0
    %7516 = vmatprep.subr.mxu0 0.0
    %7517 = vmatpush1.msra.mxu0 0.0
    %7518 = vmatprep.subr.mxu0 0.0
    %7519 = vmatpush1.msra.mxu0 0.0
    %7520 = vmatprep.subr.mxu0 0.0
    %7521 = vmatpush1.msra.mxu0 0.0
    %7522 = vmatprep.subr.mxu0 0.0
    %7523 = vmatpush1.msra.mxu0 0.0
    %7524 = vmatprep.subr.mxu0 0.0
    %7525 = vmatpush1.msra.mxu0 0.0
    %7526 = vmatprep.subr.mxu0 0.0
    %7527 = vmatpush1.msra.mxu0 0.0
    %7528 = vmatprep.subr.mxu0 0.0
    %7529 = vmatpush1.msra.mxu0 0.0
    %7530 = vmatprep.subr.mxu0 0.0
    %7531 = vmatpush1.msra.mxu0 0.0
    %7532 = vmatprep.subr.mxu0 0.0
    %7533 = vmatpush1.msra.mxu0 0.0
    %7534 = vmatprep.subr.mxu0 0.0
    %7535 = vmatpush1.msra.mxu0 0.0
    %7536 = vmatprep.subr.mxu0 0.0
    %7537 = vmatpush1.msra.mxu0 0.0
    %7538 = vmatprep.subr.mxu0 0.0
    %v7539 = vand.u32 %v7415, 4294901760
    %v7540 = vsub.f32 %v7415, %v7539
    %v7541 = vand.u32 %v7540, 4294901760
    %v7542 = vsub.f32 %v7540, %v7541
    %v7543 = vand.u32 %v7542, 4294901760
    %7544 = vmatpush1.msra.mxu0 %v7543
    %7545 = vmatprep.subr.mxu0 0.0
    %7546 = vmatpush2.msra.mxu0 0.0
    %7547 = vmatprep.subr.mxu0 0.0
    %7548 = vmatpush2.msra.mxu0 0.0
    %7549 = vmatprep.subr.mxu0 0.0
    %7550 = vmatpush2.msra.mxu0 0.0
    %7551 = vmatprep.subr.mxu0 0.0
    %7552 = vmatpush2.msra.mxu0 0.0
    %7553 = vmatprep.subr.mxu0 0.0
    %7554 = vmatpush2.msra.mxu0 0.0
    %7555 = vmatprep.subr.mxu0 0.0
    %7556 = vmatpush2.msra.mxu0 0.0
    %7557 = vmatprep.subr.mxu0 0.0
    %7558 = vmatpush2.msra.mxu0 0.0
    %7559 = vmatprep.subr.mxu0 0.0
    %7560 = vmatpush2.msra.mxu0 0.0
    %7561 = vmatprep.subr.mxu0 0.0
    %7562 = vmatpush2.msra.mxu0 0.0
    %7563 = vmatprep.subr.mxu0 0.0
    %7564 = vmatpush2.msra.mxu0 0.0
    %7565 = vmatprep.subr.mxu0 0.0
    %7566 = vmatpush2.msra.mxu0 0.0
    %7567 = vmatprep.subr.mxu0 0.0
    %7568 = vmatpush2.msra.mxu0 0.0
    %7569 = vmatprep.subr.mxu0 0.0
    %7570 = vmatpush2.msra.mxu0 0.0
    %7571 = vmatprep.subr.mxu0 0.0
    %7572 = vmatpush2.msra.mxu0 0.0
    %7573 = vmatprep.subr.mxu0 0.0
    %7574 = vmatpush2.msra.mxu0 0.0
    %7575 = vmatprep.subr.mxu0 0.0
    %7576 = vmatpush2.msra.mxu0 0.0
    %7577 = vmatprep.mubr.f32.mxu0 0.0
    %v7578 = vand.u32 %v7417, 4294901760
    %7579 = vmatmul.mubr.f32.gmra.mxu0 %v7578
    %v7580 = vpop.f32.mrf.mxu0
    %v7581 = vadd.f32 %v7495, %v7580
    %v7582 = vpop.f32.mrf.mxu0
    %7583 = vmatprep.mubr.f32.mxu0 0.0
    %v7584 = vand.u32 %v7420, 4294901760
    %7585 = vmatmul.mubr.f32.gmra.mxu0 %v7584
    %v7586 = vpop.f32.mrf.mxu0
    %v7587 = vadd.f32 %v7505, %v7586
    %v7588 = vpop.f32.mrf.mxu0
    %7589 = vdwg.mxu0
    %7590 = vmatprep.subr.mxu0 0.0
    %7591 = vmatpush1.msra.mxu0 0.0
    %7592 = vmatprep.subr.mxu0 0.0
    %7593 = vmatpush1.msra.mxu0 0.0
    %7594 = vmatprep.subr.mxu0 0.0
    %7595 = vmatpush1.msra.mxu0 0.0
    %7596 = vmatprep.subr.mxu0 0.0
    %7597 = vmatpush1.msra.mxu0 0.0
    %7598 = vmatprep.subr.mxu0 0.0
    %7599 = vmatpush1.msra.mxu0 0.0
    %7600 = vmatprep.subr.mxu0 0.0
    %7601 = vmatpush1.msra.mxu0 0.0
    %7602 = vmatprep.subr.mxu0 0.0
    %7603 = vmatpush1.msra.mxu0 0.0
    %7604 = vmatprep.subr.mxu0 0.0
    %7605 = vmatpush1.msra.mxu0 0.0
    %7606 = vmatprep.subr.mxu0 0.0
    %7607 = vmatpush1.msra.mxu0 0.0
    %7608 = vmatprep.subr.mxu0 0.0
    %7609 = vmatpush1.msra.mxu0 0.0
    %7610 = vmatprep.subr.mxu0 0.0
    %7611 = vmatpush1.msra.mxu0 0.0
    %7612 = vmatprep.subr.mxu0 0.0
    %7613 = vmatpush1.msra.mxu0 0.0
    %7614 = vmatprep.subr.mxu0 0.0
    %7615 = vmatpush1.msra.mxu0 0.0
    %7616 = vmatprep.subr.mxu0 0.0
    %7617 = vmatpush1.msra.mxu0 0.0
    %7618 = vmatprep.subr.mxu0 0.0
    %7619 = vmatpush1.msra.mxu0 0.0
    %7620 = vmatprep.subr.mxu0 0.0
    %v7621 = vand.u32 %v7415, 4294901760
    %v7622 = vsub.f32 %v7415, %v7621
    %7623 = vmatpush1.msra.mxu0 %v7622
    %7624 = vmatprep.subr.mxu0 0.0
    %7625 = vmatpush2.msra.mxu0 0.0
    %7626 = vmatprep.subr.mxu0 0.0
    %7627 = vmatpush2.msra.mxu0 0.0
    %7628 = vmatprep.subr.mxu0 0.0
    %7629 = vmatpush2.msra.mxu0 0.0
    %7630 = vmatprep.subr.mxu0 0.0
    %7631 = vmatpush2.msra.mxu0 0.0
    %7632 = vmatprep.subr.mxu0 0.0
    %7633 = vmatpush2.msra.mxu0 0.0
    %7634 = vmatprep.subr.mxu0 0.0
    %7635 = vmatpush2.msra.mxu0 0.0
    %7636 = vmatprep.subr.mxu0 0.0
    %7637 = vmatpush2.msra.mxu0 0.0
    %7638 = vmatprep.subr.mxu0 0.0
    %7639 = vmatpush2.msra.mxu0 0.0
    %7640 = vmatprep.subr.mxu0 0.0
    %7641 = vmatpush2.msra.mxu0 0.0
    %7642 = vmatprep.subr.mxu0 0.0
    %7643 = vmatpush2.msra.mxu0 0.0
    %7644 = vmatprep.subr.mxu0 0.0
    %7645 = vmatpush2.msra.mxu0 0.0
    %7646 = vmatprep.subr.mxu0 0.0
    %7647 = vmatpush2.msra.mxu0 0.0
    %7648 = vmatprep.subr.mxu0 0.0
    %7649 = vmatpush2.msra.mxu0 0.0
    %7650 = vmatprep.subr.mxu0 0.0
    %7651 = vmatpush2.msra.mxu0 0.0
    %7652 = vmatprep.subr.mxu0 0.0
    %7653 = vmatpush2.msra.mxu0 0.0
    %7654 = vmatprep.subr.mxu0 0.0
    %7655 = vmatpush2.msra.mxu0 0.0
    %7656 = vmatprep.mubr.f32.mxu0 0.0
    %v7657 = vand.u32 %v7417, 4294901760
    %v7658 = vsub.f32 %v7417, %v7657
    %7659 = vmatmul.mubr.f32.gmra.mxu0 %v7658
    %v7660 = vpop.f32.mrf.mxu0
    %v7661 = vadd.f32 %v7581, %v7660
    %v7662 = vpop.f32.mrf.mxu0
    %7663 = vmatprep.mubr.f32.mxu0 0.0
    %v7664 = vand.u32 %v7420, 4294901760
    %v7665 = vsub.f32 %v7420, %v7664
    %7666 = vmatmul.mubr.f32.gmra.mxu0 %v7665
    %v7667 = vpop.f32.mrf.mxu0
    %v7668 = vadd.f32 %v7587, %v7667
    %v7669 = vpop.f32.mrf.mxu0
    %7670 = vdwg.mxu0
    %7671 = vmatprep.subr.mxu0 0.0
    %7672 = vmatpush1.msra.mxu0 0.0
    %7673 = vmatprep.subr.mxu0 0.0
    %7674 = vmatpush1.msra.mxu0 0.0
    %7675 = vmatprep.subr.mxu0 0.0
    %7676 = vmatpush1.msra.mxu0 0.0
    %7677 = vmatprep.subr.mxu0 0.0
    %7678 = vmatpush1.msra.mxu0 0.0
    %7679 = vmatprep.subr.mxu0 0.0
    %7680 = vmatpush1.msra.mxu0 0.0
    %7681 = vmatprep.subr.mxu0 0.0
    %7682 = vmatpush1.msra.mxu0 0.0
    %7683 = vmatprep.subr.mxu0 0.0
    %7684 = vmatpush1.msra.mxu0 0.0
    %7685 = vmatprep.subr.mxu0 0.0
    %7686 = vmatpush1.msra.mxu0 0.0
    %7687 = vmatprep.subr.mxu0 0.0
    %7688 = vmatpush1.msra.mxu0 0.0
    %7689 = vmatprep.subr.mxu0 0.0
    %7690 = vmatpush1.msra.mxu0 0.0
    %7691 = vmatprep.subr.mxu0 0.0
    %7692 = vmatpush1.msra.mxu0 0.0
    %7693 = vmatprep.subr.mxu0 0.0
    %7694 = vmatpush1.msra.mxu0 0.0
    %7695 = vmatprep.subr.mxu0 0.0
    %7696 = vmatpush1.msra.mxu0 0.0
    %7697 = vmatprep.subr.mxu0 0.0
    %7698 = vmatpush1.msra.mxu0 0.0
    %7699 = vmatprep.subr.mxu0 0.0
    %7700 = vmatpush1.msra.mxu0 0.0
    %7701 = vmatprep.subr.mxu0 0.0
    %v7702 = vand.u32 %v7415, 4294901760
    %7703 = vmatpush1.msra.mxu0 %v7702
    %7704 = vmatprep.subr.mxu0 0.0
    %7705 = vmatpush2.msra.mxu0 0.0
    %7706 = vmatprep.subr.mxu0 0.0
    %7707 = vmatpush2.msra.mxu0 0.0
    %7708 = vmatprep.subr.mxu0 0.0
    %7709 = vmatpush2.msra.mxu0 0.0
    %7710 = vmatprep.subr.mxu0 0.0
    %7711 = vmatpush2.msra.mxu0 0.0
    %7712 = vmatprep.subr.mxu0 0.0
    %7713 = vmatpush2.msra.mxu0 0.0
    %7714 = vmatprep.subr.mxu0 0.0
    %7715 = vmatpush2.msra.mxu0 0.0
    %7716 = vmatprep.subr.mxu0 0.0
    %7717 = vmatpush2.msra.mxu0 0.0
    %7718 = vmatprep.subr.mxu0 0.0
    %7719 = vmatpush2.msra.mxu0 0.0
    %7720 = vmatprep.subr.mxu0 0.0
    %7721 = vmatpush2.msra.mxu0 0.0
    %7722 = vmatprep.subr.mxu0 0.0
    %7723 = vmatpush2.msra.mxu0 0.0
    %7724 = vmatprep.subr.mxu0 0.0
    %7725 = vmatpush2.msra.mxu0 0.0
    %7726 = vmatprep.subr.mxu0 0.0
    %7727 = vmatpush2.msra.mxu0 0.0
    %7728 = vmatprep.subr.mxu0 0.0
    %7729 = vmatpush2.msra.mxu0 0.0
    %7730 = vmatprep.subr.mxu0 0.0
    %7731 = vmatpush2.msra.mxu0 0.0
    %7732 = vmatprep.subr.mxu0 0.0
    %7733 = vmatpush2.msra.mxu0 0.0
    %7734 = vmatprep.subr.mxu0 0.0
    %7735 = vmatpush2.msra.mxu0 0.0
    %7736 = vmatprep.mubr.f32.mxu0 0.0
    %v7737 = vand.u32 %v7417, 4294901760
    %v7738 = vsub.f32 %v7417, %v7737
    %v7739 = vand.u32 %v7738, 4294901760
    %7740 = vmatmul.mubr.f32.gmra.mxu0 %v7739
    %v7741 = vpop.f32.mrf.mxu0
    %v7742 = vadd.f32 %v7661, %v7741
    %v7743 = vpop.f32.mrf.mxu0
    %7744 = vmatprep.mubr.f32.mxu0 0.0
    %v7745 = vand.u32 %v7420, 4294901760
    %v7746 = vsub.f32 %v7420, %v7745
    %v7747 = vand.u32 %v7746, 4294901760
    %7748 = vmatmul.mubr.f32.gmra.mxu0 %v7747
    %v7749 = vpop.f32.mrf.mxu0
    %v7750 = vadd.f32 %v7668, %v7749
    %v7751 = vpop.f32.mrf.mxu0
    %7752 = vdwg.mxu0
    %7753 = vmatprep.subr.mxu0 0.0
    %7754 = vmatpush1.msra.mxu0 0.0
    %7755 = vmatprep.subr.mxu0 0.0
    %7756 = vmatpush1.msra.mxu0 0.0
    %7757 = vmatprep.subr.mxu0 0.0
    %7758 = vmatpush1.msra.mxu0 0.0
    %7759 = vmatprep.subr.mxu0 0.0
    %7760 = vmatpush1.msra.mxu0 0.0
    %7761 = vmatprep.subr.mxu0 0.0
    %7762 = vmatpush1.msra.mxu0 0.0
    %7763 = vmatprep.subr.mxu0 0.0
    %7764 = vmatpush1.msra.mxu0 0.0
    %7765 = vmatprep.subr.mxu0 0.0
    %7766 = vmatpush1.msra.mxu0 0.0
    %7767 = vmatprep.subr.mxu0 0.0
    %7768 = vmatpush1.msra.mxu0 0.0
    %7769 = vmatprep.subr.mxu0 0.0
    %7770 = vmatpush1.msra.mxu0 0.0
    %7771 = vmatprep.subr.mxu0 0.0
    %7772 = vmatpush1.msra.mxu0 0.0
    %7773 = vmatprep.subr.mxu0 0.0
    %7774 = vmatpush1.msra.mxu0 0.0
    %7775 = vmatprep.subr.mxu0 0.0
    %7776 = vmatpush1.msra.mxu0 0.0
    %7777 = vmatprep.subr.mxu0 0.0
    %7778 = vmatpush1.msra.mxu0 0.0
    %7779 = vmatprep.subr.mxu0 0.0
    %7780 = vmatpush1.msra.mxu0 0.0
    %7781 = vmatprep.subr.mxu0 0.0
    %7782 = vmatpush1.msra.mxu0 0.0
    %7783 = vmatprep.subr.mxu0 0.0
    %v7784 = vand.u32 %v7415, 4294901760
    %v7785 = vsub.f32 %v7415, %v7784
    %v7786 = vand.u32 %v7785, 4294901760
    %7787 = vmatpush1.msra.mxu0 %v7786
    %7788 = vmatprep.subr.mxu0 0.0
    %7789 = vmatpush2.msra.mxu0 0.0
    %7790 = vmatprep.subr.mxu0 0.0
    %7791 = vmatpush2.msra.mxu0 0.0
    %7792 = vmatprep.subr.mxu0 0.0
    %7793 = vmatpush2.msra.mxu0 0.0
    %7794 = vmatprep.subr.mxu0 0.0
    %7795 = vmatpush2.msra.mxu0 0.0
    %7796 = vmatprep.subr.mxu0 0.0
    %7797 = vmatpush2.msra.mxu0 0.0
    %7798 = vmatprep.subr.mxu0 0.0
    %7799 = vmatpush2.msra.mxu0 0.0
    %7800 = vmatprep.subr.mxu0 0.0
    %7801 = vmatpush2.msra.mxu0 0.0
    %7802 = vmatprep.subr.mxu0 0.0
    %7803 = vmatpush2.msra.mxu0 0.0
    %7804 = vmatprep.subr.mxu0 0.0
    %7805 = vmatpush2.msra.mxu0 0.0
    %7806 = vmatprep.subr.mxu0 0.0
    %7807 = vmatpush2.msra.mxu0 0.0
    %7808 = vmatprep.subr.mxu0 0.0
    %7809 = vmatpush2.msra.mxu0 0.0
    %7810 = vmatprep.subr.mxu0 0.0
    %7811 = vmatpush2.msra.mxu0 0.0
    %7812 = vmatprep.subr.mxu0 0.0
    %7813 = vmatpush2.msra.mxu0 0.0
    %7814 = vmatprep.subr.mxu0 0.0
    %7815 = vmatpush2.msra.mxu0 0.0
    %7816 = vmatprep.subr.mxu0 0.0
    %7817 = vmatpush2.msra.mxu0 0.0
    %7818 = vmatprep.subr.mxu0 0.0
    %7819 = vmatpush2.msra.mxu0 0.0
    %7820 = vmatprep.mubr.f32.mxu0 0.0
    %v7821 = vand.u32 %v7417, 4294901760
    %7822 = vmatmul.mubr.f32.gmra.mxu0 %v7821
    %v7823 = vpop.f32.mrf.mxu0
    %v7824 = vadd.f32 %v7742, %v7823
    %v7825 = vpop.f32.mrf.mxu0
    %7826 = vmatprep.mubr.f32.mxu0 0.0
    %v7827 = vand.u32 %v7420, 4294901760
    %7828 = vmatmul.mubr.f32.gmra.mxu0 %v7827
    %v7829 = vpop.f32.mrf.mxu0
    %v7830 = vadd.f32 %v7750, %v7829
    %v7831 = vpop.f32.mrf.mxu0
    %7832 = vdwg.mxu0
    %7833 = vmatprep.subr.mxu0 0.0
    %7834 = vmatpush1.msra.mxu0 0.0
    %7835 = vmatprep.subr.mxu0 0.0
    %7836 = vmatpush1.msra.mxu0 0.0
    %7837 = vmatprep.subr.mxu0 0.0
    %7838 = vmatpush1.msra.mxu0 0.0
    %7839 = vmatprep.subr.mxu0 0.0
    %7840 = vmatpush1.msra.mxu0 0.0
    %7841 = vmatprep.subr.mxu0 0.0
    %7842 = vmatpush1.msra.mxu0 0.0
    %7843 = vmatprep.subr.mxu0 0.0
    %7844 = vmatpush1.msra.mxu0 0.0
    %7845 = vmatprep.subr.mxu0 0.0
    %7846 = vmatpush1.msra.mxu0 0.0
    %7847 = vmatprep.subr.mxu0 0.0
    %7848 = vmatpush1.msra.mxu0 0.0
    %7849 = vmatprep.subr.mxu0 0.0
    %7850 = vmatpush1.msra.mxu0 0.0
    %7851 = vmatprep.subr.mxu0 0.0
    %7852 = vmatpush1.msra.mxu0 0.0
    %7853 = vmatprep.subr.mxu0 0.0
    %7854 = vmatpush1.msra.mxu0 0.0
    %7855 = vmatprep.subr.mxu0 0.0
    %7856 = vmatpush1.msra.mxu0 0.0
    %7857 = vmatprep.subr.mxu0 0.0
    %7858 = vmatpush1.msra.mxu0 0.0
    %7859 = vmatprep.subr.mxu0 0.0
    %7860 = vmatpush1.msra.mxu0 0.0
    %7861 = vmatprep.subr.mxu0 0.0
    %7862 = vmatpush1.msra.mxu0 0.0
    %7863 = vmatprep.subr.mxu0 0.0
    %v7864 = vand.u32 %v7415, 4294901760
    %7865 = vmatpush1.msra.mxu0 %v7864
    %7866 = vmatprep.subr.mxu0 0.0
    %7867 = vmatpush2.msra.mxu0 0.0
    %7868 = vmatprep.subr.mxu0 0.0
    %7869 = vmatpush2.msra.mxu0 0.0
    %7870 = vmatprep.subr.mxu0 0.0
    %7871 = vmatpush2.msra.mxu0 0.0
    %7872 = vmatprep.subr.mxu0 0.0
    %7873 = vmatpush2.msra.mxu0 0.0
    %7874 = vmatprep.subr.mxu0 0.0
    %7875 = vmatpush2.msra.mxu0 0.0
    %7876 = vmatprep.subr.mxu0 0.0
    %7877 = vmatpush2.msra.mxu0 0.0
    %7878 = vmatprep.subr.mxu0 0.0
    %7879 = vmatpush2.msra.mxu0 0.0
    %7880 = vmatprep.subr.mxu0 0.0
    %7881 = vmatpush2.msra.mxu0 0.0
    %7882 = vmatprep.subr.mxu0 0.0
    %7883 = vmatpush2.msra.mxu0 0.0
    %7884 = vmatprep.subr.mxu0 0.0
    %7885 = vmatpush2.msra.mxu0 0.0
    %7886 = vmatprep.subr.mxu0 0.0
    %7887 = vmatpush2.msra.mxu0 0.0
    %7888 = vmatprep.subr.mxu0 0.0
    %7889 = vmatpush2.msra.mxu0 0.0
    %7890 = vmatprep.subr.mxu0 0.0
    %7891 = vmatpush2.msra.mxu0 0.0
    %7892 = vmatprep.subr.mxu0 0.0
    %7893 = vmatpush2.msra.mxu0 0.0
    %7894 = vmatprep.subr.mxu0 0.0
    %7895 = vmatpush2.msra.mxu0 0.0
    %7896 = vmatprep.subr.mxu0 0.0
    %7897 = vmatpush2.msra.mxu0 0.0
    %7898 = vmatprep.mubr.f32.mxu0 0.0
    %v7899 = vand.u32 %v7417, 4294901760
    %7900 = vmatmul.mubr.f32.gmra.mxu0 %v7899
    %v7901 = vpop.f32.mrf.mxu0
    %v7902 = vadd.f32 %v7824, %v7901
    %v7903 = vpop.f32.mrf.mxu0
    %7904 = vmatprep.mubr.f32.mxu0 0.0
    %v7905 = vand.u32 %v7420, 4294901760
    %7906 = vmatmul.mubr.f32.gmra.mxu0 %v7905
    %v7907 = vpop.f32.mrf.mxu0
    %v7908 = vadd.f32 %v7830, %v7907
    %v7909 = vpop.f32.mrf.mxu0
    %7910 = vdwg.mxu0
    %s7911 = scalar_lea.vmem %s65, %s7406
    %v7912 = vld [vmem:[%s7911] sm:$0x1]
    %s7913 = scalar_lea.vmem %s67, %s7406
    %v7914 = vld [vmem:[%s7913] sm:$0x1]
    %v7915 = vsel %vm7358, %v7902, 0.0
    %v7916 = vsel %vm7358, %v7908, 0.0
    %v7917 = vadd.f32 %v7915, %v7916
    %v7918 = vrot.slane %v7917, 4
    %v7919 = vadd.f32 %v7917, %v7918
    %v7920 = vrot.slane %v7919, 2
    %v7921 = vadd.f32 %v7919, %v7920
    %v7922 = vrot.slane %v7921, 1
    %v7923 = vadd.f32 %v7921, %v7922
    %v7924 = vmul.f32 %v7923, 0.0625
    %v7925 = vsub.f32 %v7902, %v7924
    %v7926 = vsub.f32 %v7908, %v7924
    %v7927 = vmul.f32 %v7925, %v7925
    %v7928 = vmul.f32 %v7926, %v7926
    %v7929 = vsel %vm7358, %v7927, 0.0
    %v7930 = vsel %vm7358, %v7928, 0.0
    %v7931 = vadd.f32 %v7929, %v7930
    %v7932 = vrot.slane %v7931, 4
    %v7933 = vadd.f32 %v7931, %v7932
    %v7934 = vrot.slane %v7933, 2
    %v7935 = vadd.f32 %v7933, %v7934
    %v7936 = vrot.slane %v7935, 1
    %v7937 = vadd.f32 %v7935, %v7936
    %v7938 = vmul.f32 %v7937, 0.0625
    %v7939 = vadd.f32 %v7938, 1e-05
    %v7940 = vrsqrt.pop %v7939
    %v7941 = vmul.f32 %v7925, %v7940
    %v7942 = vmul.f32 %v7926, %v7940
    %v7944 = vlaneseq
    %v7945 = vshrl.u32 %v7944, 7
    %v7946 = vsub.s32 0, %v7945
    %v7947 = vrot.slane %v7912, %v7946
    %v7949 = vmul.f32 %v7941, %v7947
    %v7950 = vmul.f32 %v7942, %v7947
    %v7952 = vlaneseq
    %v7953 = vshrl.u32 %v7952, 7
    %v7954 = vsub.s32 0, %v7953
    %v7955 = vrot.slane %v7914, %v7954
    %v7957 = vadd.f32 %v7949, %v7955
    %v7958 = vadd.f32 %v7950, %v7955
    %v7959 = vmax.f32 %v7957, 0.0
    %v7960 = vmax.f32 %v7958, 0.0
    %s7961 = scalar_lea.vmem %s69, %s7413
    %v7962 = vld [vmem:[%s7961] sm:$0xff]
    %v7964 = vsel %vm7358, %v7959, 0
    %v7967 = vsel %vm7358, %v7960, 0
    %7969 = vmatprep.subr.mxu0 0.0
    %7970 = vmatpush1.msra.mxu0 0.0
    %7971 = vmatprep.subr.mxu0 0.0
    %7972 = vmatpush1.msra.mxu0 0.0
    %7973 = vmatprep.subr.mxu0 0.0
    %7974 = vmatpush1.msra.mxu0 0.0
    %7975 = vmatprep.subr.mxu0 0.0
    %7976 = vmatpush1.msra.mxu0 0.0
    %7977 = vmatprep.subr.mxu0 0.0
    %7978 = vmatpush1.msra.mxu0 0.0
    %7979 = vmatprep.subr.mxu0 0.0
    %7980 = vmatpush1.msra.mxu0 0.0
    %7981 = vmatprep.subr.mxu0 0.0
    %7982 = vmatpush1.msra.mxu0 0.0
    %7983 = vmatprep.subr.mxu0 0.0
    %7984 = vmatpush1.msra.mxu0 0.0
    %7985 = vmatprep.subr.mxu0 0.0
    %7986 = vmatpush1.msra.mxu0 0.0
    %7987 = vmatprep.subr.mxu0 0.0
    %7988 = vmatpush1.msra.mxu0 0.0
    %7989 = vmatprep.subr.mxu0 0.0
    %7990 = vmatpush1.msra.mxu0 0.0
    %7991 = vmatprep.subr.mxu0 0.0
    %7992 = vmatpush1.msra.mxu0 0.0
    %7993 = vmatprep.subr.mxu0 0.0
    %7994 = vmatpush1.msra.mxu0 0.0
    %7995 = vmatprep.subr.mxu0 0.0
    %7996 = vmatpush1.msra.mxu0 0.0
    %7997 = vmatprep.subr.mxu0 0.0
    %7998 = vmatpush1.msra.mxu0 0.0
    %7999 = vmatprep.subr.mxu0 0.0
    %v8000 = vand.u32 %v7962, 4294901760
    %8001 = vmatpush1.msra.mxu0 %v8000
    %8002 = vmatprep.subr.mxu0 0.0
    %8003 = vmatpush2.msra.mxu0 0.0
    %8004 = vmatprep.subr.mxu0 0.0
    %8005 = vmatpush2.msra.mxu0 0.0
    %8006 = vmatprep.subr.mxu0 0.0
    %8007 = vmatpush2.msra.mxu0 0.0
    %8008 = vmatprep.subr.mxu0 0.0
    %8009 = vmatpush2.msra.mxu0 0.0
    %8010 = vmatprep.subr.mxu0 0.0
    %8011 = vmatpush2.msra.mxu0 0.0
    %8012 = vmatprep.subr.mxu0 0.0
    %8013 = vmatpush2.msra.mxu0 0.0
    %8014 = vmatprep.subr.mxu0 0.0
    %8015 = vmatpush2.msra.mxu0 0.0
    %8016 = vmatprep.subr.mxu0 0.0
    %8017 = vmatpush2.msra.mxu0 0.0
    %8018 = vmatprep.subr.mxu0 0.0
    %8019 = vmatpush2.msra.mxu0 0.0
    %8020 = vmatprep.subr.mxu0 0.0
    %8021 = vmatpush2.msra.mxu0 0.0
    %8022 = vmatprep.subr.mxu0 0.0
    %8023 = vmatpush2.msra.mxu0 0.0
    %8024 = vmatprep.subr.mxu0 0.0
    %8025 = vmatpush2.msra.mxu0 0.0
    %8026 = vmatprep.subr.mxu0 0.0
    %8027 = vmatpush2.msra.mxu0 0.0
    %8028 = vmatprep.subr.mxu0 0.0
    %8029 = vmatpush2.msra.mxu0 0.0
    %8030 = vmatprep.subr.mxu0 0.0
    %8031 = vmatpush2.msra.mxu0 0.0
    %8032 = vmatprep.subr.mxu0 0.0
    %8033 = vmatpush2.msra.mxu0 0.0
    %8034 = vmatprep.mubr.f32.mxu0 0.0
    %v8035 = vand.u32 %v7964, 4294901760
    %v8036 = vsub.f32 %v7964, %v8035
    %v8037 = vand.u32 %v8036, 4294901760
    %v8038 = vsub.f32 %v8036, %v8037
    %v8039 = vand.u32 %v8038, 4294901760
    %8040 = vmatmul.mubr.f32.gmra.mxu0 %v8039
    %v8041 = vpop.f32.mrf.mxu0
    %v8042 = vadd.f32 0.0, %v8041
    %v8043 = vpop.f32.mrf.mxu0
    %8044 = vmatprep.mubr.f32.mxu0 0.0
    %v8045 = vand.u32 %v7967, 4294901760
    %v8046 = vsub.f32 %v7967, %v8045
    %v8047 = vand.u32 %v8046, 4294901760
    %v8048 = vsub.f32 %v8046, %v8047
    %v8049 = vand.u32 %v8048, 4294901760
    %8050 = vmatmul.mubr.f32.gmra.mxu0 %v8049
    %v8051 = vpop.f32.mrf.mxu0
    %v8052 = vadd.f32 0.0, %v8051
    %v8053 = vpop.f32.mrf.mxu0
    %8054 = vdwg.mxu0
    %8055 = vmatprep.subr.mxu0 0.0
    %8056 = vmatpush1.msra.mxu0 0.0
    %8057 = vmatprep.subr.mxu0 0.0
    %8058 = vmatpush1.msra.mxu0 0.0
    %8059 = vmatprep.subr.mxu0 0.0
    %8060 = vmatpush1.msra.mxu0 0.0
    %8061 = vmatprep.subr.mxu0 0.0
    %8062 = vmatpush1.msra.mxu0 0.0
    %8063 = vmatprep.subr.mxu0 0.0
    %8064 = vmatpush1.msra.mxu0 0.0
    %8065 = vmatprep.subr.mxu0 0.0
    %8066 = vmatpush1.msra.mxu0 0.0
    %8067 = vmatprep.subr.mxu0 0.0
    %8068 = vmatpush1.msra.mxu0 0.0
    %8069 = vmatprep.subr.mxu0 0.0
    %8070 = vmatpush1.msra.mxu0 0.0
    %8071 = vmatprep.subr.mxu0 0.0
    %8072 = vmatpush1.msra.mxu0 0.0
    %8073 = vmatprep.subr.mxu0 0.0
    %8074 = vmatpush1.msra.mxu0 0.0
    %8075 = vmatprep.subr.mxu0 0.0
    %8076 = vmatpush1.msra.mxu0 0.0
    %8077 = vmatprep.subr.mxu0 0.0
    %8078 = vmatpush1.msra.mxu0 0.0
    %8079 = vmatprep.subr.mxu0 0.0
    %8080 = vmatpush1.msra.mxu0 0.0
    %8081 = vmatprep.subr.mxu0 0.0
    %8082 = vmatpush1.msra.mxu0 0.0
    %8083 = vmatprep.subr.mxu0 0.0
    %8084 = vmatpush1.msra.mxu0 0.0
    %8085 = vmatprep.subr.mxu0 0.0
    %v8086 = vand.u32 %v7962, 4294901760
    %v8087 = vsub.f32 %v7962, %v8086
    %v8088 = vand.u32 %v8087, 4294901760
    %v8089 = vsub.f32 %v8087, %v8088
    %v8090 = vand.u32 %v8089, 4294901760
    %8091 = vmatpush1.msra.mxu0 %v8090
    %8092 = vmatprep.subr.mxu0 0.0
    %8093 = vmatpush2.msra.mxu0 0.0
    %8094 = vmatprep.subr.mxu0 0.0
    %8095 = vmatpush2.msra.mxu0 0.0
    %8096 = vmatprep.subr.mxu0 0.0
    %8097 = vmatpush2.msra.mxu0 0.0
    %8098 = vmatprep.subr.mxu0 0.0
    %8099 = vmatpush2.msra.mxu0 0.0
    %8100 = vmatprep.subr.mxu0 0.0
    %8101 = vmatpush2.msra.mxu0 0.0
    %8102 = vmatprep.subr.mxu0 0.0
    %8103 = vmatpush2.msra.mxu0 0.0
    %8104 = vmatprep.subr.mxu0 0.0
    %8105 = vmatpush2.msra.mxu0 0.0
    %8106 = vmatprep.subr.mxu0 0.0
    %8107 = vmatpush2.msra.mxu0 0.0
    %8108 = vmatprep.subr.mxu0 0.0
    %8109 = vmatpush2.msra.mxu0 0.0
    %8110 = vmatprep.subr.mxu0 0.0
    %8111 = vmatpush2.msra.mxu0 0.0
    %8112 = vmatprep.subr.mxu0 0.0
    %8113 = vmatpush2.msra.mxu0 0.0
    %8114 = vmatprep.subr.mxu0 0.0
    %8115 = vmatpush2.msra.mxu0 0.0
    %8116 = vmatprep.subr.mxu0 0.0
    %8117 = vmatpush2.msra.mxu0 0.0
    %8118 = vmatprep.subr.mxu0 0.0
    %8119 = vmatpush2.msra.mxu0 0.0
    %8120 = vmatprep.subr.mxu0 0.0
    %8121 = vmatpush2.msra.mxu0 0.0
    %8122 = vmatprep.subr.mxu0 0.0
    %8123 = vmatpush2.msra.mxu0 0.0
    %8124 = vmatprep.mubr.f32.mxu0 0.0
    %v8125 = vand.u32 %v7964, 4294901760
    %8126 = vmatmul.mubr.f32.gmra.mxu0 %v8125
    %v8127 = vpop.f32.mrf.mxu0
    %v8128 = vadd.f32 %v8042, %v8127
    %v8129 = vpop.f32.mrf.mxu0
    %8130 = vmatprep.mubr.f32.mxu0 0.0
    %v8131 = vand.u32 %v7967, 4294901760
    %8132 = vmatmul.mubr.f32.gmra.mxu0 %v8131
    %v8133 = vpop.f32.mrf.mxu0
    %v8134 = vadd.f32 %v8052, %v8133
    %v8135 = vpop.f32.mrf.mxu0
    %8136 = vdwg.mxu0
    %8137 = vmatprep.subr.mxu0 0.0
    %8138 = vmatpush1.msra.mxu0 0.0
    %8139 = vmatprep.subr.mxu0 0.0
    %8140 = vmatpush1.msra.mxu0 0.0
    %8141 = vmatprep.subr.mxu0 0.0
    %8142 = vmatpush1.msra.mxu0 0.0
    %8143 = vmatprep.subr.mxu0 0.0
    %8144 = vmatpush1.msra.mxu0 0.0
    %8145 = vmatprep.subr.mxu0 0.0
    %8146 = vmatpush1.msra.mxu0 0.0
    %8147 = vmatprep.subr.mxu0 0.0
    %8148 = vmatpush1.msra.mxu0 0.0
    %8149 = vmatprep.subr.mxu0 0.0
    %8150 = vmatpush1.msra.mxu0 0.0
    %8151 = vmatprep.subr.mxu0 0.0
    %8152 = vmatpush1.msra.mxu0 0.0
    %8153 = vmatprep.subr.mxu0 0.0
    %8154 = vmatpush1.msra.mxu0 0.0
    %8155 = vmatprep.subr.mxu0 0.0
    %8156 = vmatpush1.msra.mxu0 0.0
    %8157 = vmatprep.subr.mxu0 0.0
    %8158 = vmatpush1.msra.mxu0 0.0
    %8159 = vmatprep.subr.mxu0 0.0
    %8160 = vmatpush1.msra.mxu0 0.0
    %8161 = vmatprep.subr.mxu0 0.0
    %8162 = vmatpush1.msra.mxu0 0.0
    %8163 = vmatprep.subr.mxu0 0.0
    %8164 = vmatpush1.msra.mxu0 0.0
    %8165 = vmatprep.subr.mxu0 0.0
    %8166 = vmatpush1.msra.mxu0 0.0
    %8167 = vmatprep.subr.mxu0 0.0
    %v8168 = vand.u32 %v7962, 4294901760
    %v8169 = vsub.f32 %v7962, %v8168
    %8170 = vmatpush1.msra.mxu0 %v8169
    %8171 = vmatprep.subr.mxu0 0.0
    %8172 = vmatpush2.msra.mxu0 0.0
    %8173 = vmatprep.subr.mxu0 0.0
    %8174 = vmatpush2.msra.mxu0 0.0
    %8175 = vmatprep.subr.mxu0 0.0
    %8176 = vmatpush2.msra.mxu0 0.0
    %8177 = vmatprep.subr.mxu0 0.0
    %8178 = vmatpush2.msra.mxu0 0.0
    %8179 = vmatprep.subr.mxu0 0.0
    %8180 = vmatpush2.msra.mxu0 0.0
    %8181 = vmatprep.subr.mxu0 0.0
    %8182 = vmatpush2.msra.mxu0 0.0
    %8183 = vmatprep.subr.mxu0 0.0
    %8184 = vmatpush2.msra.mxu0 0.0
    %8185 = vmatprep.subr.mxu0 0.0
    %8186 = vmatpush2.msra.mxu0 0.0
    %8187 = vmatprep.subr.mxu0 0.0
    %8188 = vmatpush2.msra.mxu0 0.0
    %8189 = vmatprep.subr.mxu0 0.0
    %8190 = vmatpush2.msra.mxu0 0.0
    %8191 = vmatprep.subr.mxu0 0.0
    %8192 = vmatpush2.msra.mxu0 0.0
    %8193 = vmatprep.subr.mxu0 0.0
    %8194 = vmatpush2.msra.mxu0 0.0
    %8195 = vmatprep.subr.mxu0 0.0
    %8196 = vmatpush2.msra.mxu0 0.0
    %8197 = vmatprep.subr.mxu0 0.0
    %8198 = vmatpush2.msra.mxu0 0.0
    %8199 = vmatprep.subr.mxu0 0.0
    %8200 = vmatpush2.msra.mxu0 0.0
    %8201 = vmatprep.subr.mxu0 0.0
    %8202 = vmatpush2.msra.mxu0 0.0
    %8203 = vmatprep.mubr.f32.mxu0 0.0
    %v8204 = vand.u32 %v7964, 4294901760
    %v8205 = vsub.f32 %v7964, %v8204
    %8206 = vmatmul.mubr.f32.gmra.mxu0 %v8205
    %v8207 = vpop.f32.mrf.mxu0
    %v8208 = vadd.f32 %v8128, %v8207
    %v8209 = vpop.f32.mrf.mxu0
    %8210 = vmatprep.mubr.f32.mxu0 0.0
    %v8211 = vand.u32 %v7967, 4294901760
    %v8212 = vsub.f32 %v7967, %v8211
    %8213 = vmatmul.mubr.f32.gmra.mxu0 %v8212
    %v8214 = vpop.f32.mrf.mxu0
    %v8215 = vadd.f32 %v8134, %v8214
    %v8216 = vpop.f32.mrf.mxu0
    %8217 = vdwg.mxu0
    %8218 = vmatprep.subr.mxu0 0.0
    %8219 = vmatpush1.msra.mxu0 0.0
    %8220 = vmatprep.subr.mxu0 0.0
    %8221 = vmatpush1.msra.mxu0 0.0
    %8222 = vmatprep.subr.mxu0 0.0
    %8223 = vmatpush1.msra.mxu0 0.0
    %8224 = vmatprep.subr.mxu0 0.0
    %8225 = vmatpush1.msra.mxu0 0.0
    %8226 = vmatprep.subr.mxu0 0.0
    %8227 = vmatpush1.msra.mxu0 0.0
    %8228 = vmatprep.subr.mxu0 0.0
    %8229 = vmatpush1.msra.mxu0 0.0
    %8230 = vmatprep.subr.mxu0 0.0
    %8231 = vmatpush1.msra.mxu0 0.0
    %8232 = vmatprep.subr.mxu0 0.0
    %8233 = vmatpush1.msra.mxu0 0.0
    %8234 = vmatprep.subr.mxu0 0.0
    %8235 = vmatpush1.msra.mxu0 0.0
    %8236 = vmatprep.subr.mxu0 0.0
    %8237 = vmatpush1.msra.mxu0 0.0
    %8238 = vmatprep.subr.mxu0 0.0
    %8239 = vmatpush1.msra.mxu0 0.0
    %8240 = vmatprep.subr.mxu0 0.0
    %8241 = vmatpush1.msra.mxu0 0.0
    %8242 = vmatprep.subr.mxu0 0.0
    %8243 = vmatpush1.msra.mxu0 0.0
    %8244 = vmatprep.subr.mxu0 0.0
    %8245 = vmatpush1.msra.mxu0 0.0
    %8246 = vmatprep.subr.mxu0 0.0
    %8247 = vmatpush1.msra.mxu0 0.0
    %8248 = vmatprep.subr.mxu0 0.0
    %v8249 = vand.u32 %v7962, 4294901760
    %8250 = vmatpush1.msra.mxu0 %v8249
    %8251 = vmatprep.subr.mxu0 0.0
    %8252 = vmatpush2.msra.mxu0 0.0
    %8253 = vmatprep.subr.mxu0 0.0
    %8254 = vmatpush2.msra.mxu0 0.0
    %8255 = vmatprep.subr.mxu0 0.0
    %8256 = vmatpush2.msra.mxu0 0.0
    %8257 = vmatprep.subr.mxu0 0.0
    %8258 = vmatpush2.msra.mxu0 0.0
    %8259 = vmatprep.subr.mxu0 0.0
    %8260 = vmatpush2.msra.mxu0 0.0
    %8261 = vmatprep.subr.mxu0 0.0
    %8262 = vmatpush2.msra.mxu0 0.0
    %8263 = vmatprep.subr.mxu0 0.0
    %8264 = vmatpush2.msra.mxu0 0.0
    %8265 = vmatprep.subr.mxu0 0.0
    %8266 = vmatpush2.msra.mxu0 0.0
    %8267 = vmatprep.subr.mxu0 0.0
    %8268 = vmatpush2.msra.mxu0 0.0
    %8269 = vmatprep.subr.mxu0 0.0
    %8270 = vmatpush2.msra.mxu0 0.0
    %8271 = vmatprep.subr.mxu0 0.0
    %8272 = vmatpush2.msra.mxu0 0.0
    %8273 = vmatprep.subr.mxu0 0.0
    %8274 = vmatpush2.msra.mxu0 0.0
    %8275 = vmatprep.subr.mxu0 0.0
    %8276 = vmatpush2.msra.mxu0 0.0
    %8277 = vmatprep.subr.mxu0 0.0
    %8278 = vmatpush2.msra.mxu0 0.0
    %8279 = vmatprep.subr.mxu0 0.0
    %8280 = vmatpush2.msra.mxu0 0.0
    %8281 = vmatprep.subr.mxu0 0.0
    %8282 = vmatpush2.msra.mxu0 0.0
    %8283 = vmatprep.mubr.f32.mxu0 0.0
    %v8284 = vand.u32 %v7964, 4294901760
    %v8285 = vsub.f32 %v7964, %v8284
    %v8286 = vand.u32 %v8285, 4294901760
    %8287 = vmatmul.mubr.f32.gmra.mxu0 %v8286
    %v8288 = vpop.f32.mrf.mxu0
    %v8289 = vadd.f32 %v8208, %v8288
    %v8290 = vpop.f32.mrf.mxu0
    %8291 = vmatprep.mubr.f32.mxu0 0.0
    %v8292 = vand.u32 %v7967, 4294901760
    %v8293 = vsub.f32 %v7967, %v8292
    %v8294 = vand.u32 %v8293, 4294901760
    %8295 = vmatmul.mubr.f32.gmra.mxu0 %v8294
    %v8296 = vpop.f32.mrf.mxu0
    %v8297 = vadd.f32 %v8215, %v8296
    %v8298 = vpop.f32.mrf.mxu0
    %8299 = vdwg.mxu0
    %8300 = vmatprep.subr.mxu0 0.0
    %8301 = vmatpush1.msra.mxu0 0.0
    %8302 = vmatprep.subr.mxu0 0.0
    %8303 = vmatpush1.msra.mxu0 0.0
    %8304 = vmatprep.subr.mxu0 0.0
    %8305 = vmatpush1.msra.mxu0 0.0
    %8306 = vmatprep.subr.mxu0 0.0
    %8307 = vmatpush1.msra.mxu0 0.0
    %8308 = vmatprep.subr.mxu0 0.0
    %8309 = vmatpush1.msra.mxu0 0.0
    %8310 = vmatprep.subr.mxu0 0.0
    %8311 = vmatpush1.msra.mxu0 0.0
    %8312 = vmatprep.subr.mxu0 0.0
    %8313 = vmatpush1.msra.mxu0 0.0
    %8314 = vmatprep.subr.mxu0 0.0
    %8315 = vmatpush1.msra.mxu0 0.0
    %8316 = vmatprep.subr.mxu0 0.0
    %8317 = vmatpush1.msra.mxu0 0.0
    %8318 = vmatprep.subr.mxu0 0.0
    %8319 = vmatpush1.msra.mxu0 0.0
    %8320 = vmatprep.subr.mxu0 0.0
    %8321 = vmatpush1.msra.mxu0 0.0
    %8322 = vmatprep.subr.mxu0 0.0
    %8323 = vmatpush1.msra.mxu0 0.0
    %8324 = vmatprep.subr.mxu0 0.0
    %8325 = vmatpush1.msra.mxu0 0.0
    %8326 = vmatprep.subr.mxu0 0.0
    %8327 = vmatpush1.msra.mxu0 0.0
    %8328 = vmatprep.subr.mxu0 0.0
    %8329 = vmatpush1.msra.mxu0 0.0
    %8330 = vmatprep.subr.mxu0 0.0
    %v8331 = vand.u32 %v7962, 4294901760
    %v8332 = vsub.f32 %v7962, %v8331
    %v8333 = vand.u32 %v8332, 4294901760
    %8334 = vmatpush1.msra.mxu0 %v8333
    %8335 = vmatprep.subr.mxu0 0.0
    %8336 = vmatpush2.msra.mxu0 0.0
    %8337 = vmatprep.subr.mxu0 0.0
    %8338 = vmatpush2.msra.mxu0 0.0
    %8339 = vmatprep.subr.mxu0 0.0
    %8340 = vmatpush2.msra.mxu0 0.0
    %8341 = vmatprep.subr.mxu0 0.0
    %8342 = vmatpush2.msra.mxu0 0.0
    %8343 = vmatprep.subr.mxu0 0.0
    %8344 = vmatpush2.msra.mxu0 0.0
    %8345 = vmatprep.subr.mxu0 0.0
    %8346 = vmatpush2.msra.mxu0 0.0
    %8347 = vmatprep.subr.mxu0 0.0
    %8348 = vmatpush2.msra.mxu0 0.0
    %8349 = vmatprep.subr.mxu0 0.0
    %8350 = vmatpush2.msra.mxu0 0.0
    %8351 = vmatprep.subr.mxu0 0.0
    %8352 = vmatpush2.msra.mxu0 0.0
    %8353 = vmatprep.subr.mxu0 0.0
    %8354 = vmatpush2.msra.mxu0 0.0
    %8355 = vmatprep.subr.mxu0 0.0
    %8356 = vmatpush2.msra.mxu0 0.0
    %8357 = vmatprep.subr.mxu0 0.0
    %8358 = vmatpush2.msra.mxu0 0.0
    %8359 = vmatprep.subr.mxu0 0.0
    %8360 = vmatpush2.msra.mxu0 0.0
    %8361 = vmatprep.subr.mxu0 0.0
    %8362 = vmatpush2.msra.mxu0 0.0
    %8363 = vmatprep.subr.mxu0 0.0
    %8364 = vmatpush2.msra.mxu0 0.0
    %8365 = vmatprep.subr.mxu0 0.0
    %8366 = vmatpush2.msra.mxu0 0.0
    %8367 = vmatprep.mubr.f32.mxu0 0.0
    %v8368 = vand.u32 %v7964, 4294901760
    %8369 = vmatmul.mubr.f32.gmra.mxu0 %v8368
    %v8370 = vpop.f32.mrf.mxu0
    %v8371 = vadd.f32 %v8289, %v8370
    %v8372 = vpop.f32.mrf.mxu0
    %8373 = vmatprep.mubr.f32.mxu0 0.0
    %v8374 = vand.u32 %v7967, 4294901760
    %8375 = vmatmul.mubr.f32.gmra.mxu0 %v8374
    %v8376 = vpop.f32.mrf.mxu0
    %v8377 = vadd.f32 %v8297, %v8376
    %v8378 = vpop.f32.mrf.mxu0
    %8379 = vdwg.mxu0
    %8380 = vmatprep.subr.mxu0 0.0
    %8381 = vmatpush1.msra.mxu0 0.0
    %8382 = vmatprep.subr.mxu0 0.0
    %8383 = vmatpush1.msra.mxu0 0.0
    %8384 = vmatprep.subr.mxu0 0.0
    %8385 = vmatpush1.msra.mxu0 0.0
    %8386 = vmatprep.subr.mxu0 0.0
    %8387 = vmatpush1.msra.mxu0 0.0
    %8388 = vmatprep.subr.mxu0 0.0
    %8389 = vmatpush1.msra.mxu0 0.0
    %8390 = vmatprep.subr.mxu0 0.0
    %8391 = vmatpush1.msra.mxu0 0.0
    %8392 = vmatprep.subr.mxu0 0.0
    %8393 = vmatpush1.msra.mxu0 0.0
    %8394 = vmatprep.subr.mxu0 0.0
    %8395 = vmatpush1.msra.mxu0 0.0
    %8396 = vmatprep.subr.mxu0 0.0
    %8397 = vmatpush1.msra.mxu0 0.0
    %8398 = vmatprep.subr.mxu0 0.0
    %8399 = vmatpush1.msra.mxu0 0.0
    %8400 = vmatprep.subr.mxu0 0.0
    %8401 = vmatpush1.msra.mxu0 0.0
    %8402 = vmatprep.subr.mxu0 0.0
    %8403 = vmatpush1.msra.mxu0 0.0
    %8404 = vmatprep.subr.mxu0 0.0
    %8405 = vmatpush1.msra.mxu0 0.0
    %8406 = vmatprep.subr.mxu0 0.0
    %8407 = vmatpush1.msra.mxu0 0.0
    %8408 = vmatprep.subr.mxu0 0.0
    %8409 = vmatpush1.msra.mxu0 0.0
    %8410 = vmatprep.subr.mxu0 0.0
    %v8411 = vand.u32 %v7962, 4294901760
    %8412 = vmatpush1.msra.mxu0 %v8411
    %8413 = vmatprep.subr.mxu0 0.0
    %8414 = vmatpush2.msra.mxu0 0.0
    %8415 = vmatprep.subr.mxu0 0.0
    %8416 = vmatpush2.msra.mxu0 0.0
    %8417 = vmatprep.subr.mxu0 0.0
    %8418 = vmatpush2.msra.mxu0 0.0
    %8419 = vmatprep.subr.mxu0 0.0
    %8420 = vmatpush2.msra.mxu0 0.0
    %8421 = vmatprep.subr.mxu0 0.0
    %8422 = vmatpush2.msra.mxu0 0.0
    %8423 = vmatprep.subr.mxu0 0.0
    %8424 = vmatpush2.msra.mxu0 0.0
    %8425 = vmatprep.subr.mxu0 0.0
    %8426 = vmatpush2.msra.mxu0 0.0
    %8427 = vmatprep.subr.mxu0 0.0
    %8428 = vmatpush2.msra.mxu0 0.0
    %8429 = vmatprep.subr.mxu0 0.0
    %8430 = vmatpush2.msra.mxu0 0.0
    %8431 = vmatprep.subr.mxu0 0.0
    %8432 = vmatpush2.msra.mxu0 0.0
    %8433 = vmatprep.subr.mxu0 0.0
    %8434 = vmatpush2.msra.mxu0 0.0
    %8435 = vmatprep.subr.mxu0 0.0
    %8436 = vmatpush2.msra.mxu0 0.0
    %8437 = vmatprep.subr.mxu0 0.0
    %8438 = vmatpush2.msra.mxu0 0.0
    %8439 = vmatprep.subr.mxu0 0.0
    %8440 = vmatpush2.msra.mxu0 0.0
    %8441 = vmatprep.subr.mxu0 0.0
    %8442 = vmatpush2.msra.mxu0 0.0
    %8443 = vmatprep.subr.mxu0 0.0
    %8444 = vmatpush2.msra.mxu0 0.0
    %8445 = vmatprep.mubr.f32.mxu0 0.0
    %v8446 = vand.u32 %v7964, 4294901760
    %8447 = vmatmul.mubr.f32.gmra.mxu0 %v8446
    %v8448 = vpop.f32.mrf.mxu0
    %v8449 = vadd.f32 %v8371, %v8448
    %v8450 = vpop.f32.mrf.mxu0
    %8451 = vmatprep.mubr.f32.mxu0 0.0
    %v8452 = vand.u32 %v7967, 4294901760
    %8453 = vmatmul.mubr.f32.gmra.mxu0 %v8452
    %v8454 = vpop.f32.mrf.mxu0
    %v8455 = vadd.f32 %v8377, %v8454
    %v8456 = vpop.f32.mrf.mxu0
    %8457 = vdwg.mxu0
    %s8458 = scalar_lea.vmem %s71, %s7406
    %v8459 = vld [vmem:[%s8458] sm:$0x1]
    %s8460 = scalar_lea.vmem %s73, %s7406
    %v8461 = vld [vmem:[%s8460] sm:$0x1]
    %v8462 = vsel %vm7358, %v8449, 0.0
    %v8463 = vsel %vm7358, %v8455, 0.0
    %v8464 = vadd.f32 %v8462, %v8463
    %v8465 = vrot.slane %v8464, 4
    %v8466 = vadd.f32 %v8464, %v8465
    %v8467 = vrot.slane %v8466, 2
    %v8468 = vadd.f32 %v8466, %v8467
    %v8469 = vrot.slane %v8468, 1
    %v8470 = vadd.f32 %v8468, %v8469
    %v8471 = vmul.f32 %v8470, 0.0625
    %v8472 = vsub.f32 %v8449, %v8471
    %v8473 = vsub.f32 %v8455, %v8471
    %v8474 = vmul.f32 %v8472, %v8472
    %v8475 = vmul.f32 %v8473, %v8473
    %v8476 = vsel %vm7358, %v8474, 0.0
    %v8477 = vsel %vm7358, %v8475, 0.0
    %v8478 = vadd.f32 %v8476, %v8477
    %v8479 = vrot.slane %v8478, 4
    %v8480 = vadd.f32 %v8478, %v8479
    %v8481 = vrot.slane %v8480, 2
    %v8482 = vadd.f32 %v8480, %v8481
    %v8483 = vrot.slane %v8482, 1
    %v8484 = vadd.f32 %v8482, %v8483
    %v8485 = vmul.f32 %v8484, 0.0625
    %v8486 = vadd.f32 %v8485, 1e-05
    %v8487 = vrsqrt.pop %v8486
    %v8488 = vmul.f32 %v8472, %v8487
    %v8489 = vmul.f32 %v8473, %v8487
    %v8491 = vlaneseq
    %v8492 = vshrl.u32 %v8491, 7
    %v8493 = vsub.s32 0, %v8492
    %v8494 = vrot.slane %v8459, %v8493
    %v8496 = vmul.f32 %v8488, %v8494
    %v8497 = vmul.f32 %v8489, %v8494
    %v8499 = vlaneseq
    %v8500 = vshrl.u32 %v8499, 7
    %v8501 = vsub.s32 0, %v8500
    %v8502 = vrot.slane %v8461, %v8501
    %v8504 = vadd.f32 %v8496, %v8502
    %v8505 = vadd.f32 %v8497, %v8502
    %v8506 = vadd.f32 %v7411, %v8504
    %v8507 = vadd.f32 %v7412, %v8505
    %v8508 = vmax.f32 %v8506, 0.0
    %v8509 = vmax.f32 %v8507, 0.0
  $region191: #{tpu_custom_call.1} parent=0 // loop_footer
    %s7410 = sadd.s32 1, %s7406
  $region192: #{tpu_custom_call.1} parent=0 // loop_footer_branch
    %7405 = sbr.rel target = $region188
  $region193: #{tpu_custom_call.1} parent=0 // loop_exit
    _
  %v8510 = vld [vmem:[%s75] sm:$0xff]
  %v8512 = vsel %vm7358, %v7411, 0
  %v8515 = vsel %vm7358, %v7412, 0
  %8517 = vmatprep.subr.mxu0 0.0
  %8518 = vmatpush1.msra.mxu0 0.0
  %8519 = vmatprep.subr.mxu0 0.0
  %8520 = vmatpush1.msra.mxu0 0.0
  %8521 = vmatprep.subr.mxu0 0.0
  %8522 = vmatpush1.msra.mxu0 0.0
  %8523 = vmatprep.subr.mxu0 0.0
  %8524 = vmatpush1.msra.mxu0 0.0
  %8525 = vmatprep.subr.mxu0 0.0
  %8526 = vmatpush1.msra.mxu0 0.0
  %8527 = vmatprep.subr.mxu0 0.0
  %8528 = vmatpush1.msra.mxu0 0.0
  %8529 = vmatprep.subr.mxu0 0.0
  %8530 = vmatpush1.msra.mxu0 0.0
  %8531 = vmatprep.subr.mxu0 0.0
  %8532 = vmatpush1.msra.mxu0 0.0
  %8533 = vmatprep.subr.mxu0 0.0
  %8534 = vmatpush1.msra.mxu0 0.0
  %8535 = vmatprep.subr.mxu0 0.0
  %8536 = vmatpush1.msra.mxu0 0.0
  %8537 = vmatprep.subr.mxu0 0.0
  %8538 = vmatpush1.msra.mxu0 0.0
  %8539 = vmatprep.subr.mxu0 0.0
  %8540 = vmatpush1.msra.mxu0 0.0
  %8541 = vmatprep.subr.mxu0 0.0
  %8542 = vmatpush1.msra.mxu0 0.0
  %8543 = vmatprep.subr.mxu0 0.0
  %8544 = vmatpush1.msra.mxu0 0.0
  %8545 = vmatprep.subr.mxu0 0.0
  %8546 = vmatpush1.msra.mxu0 0.0
  %8547 = vmatprep.subr.mxu0 0.0
  %v8548 = vand.u32 %v8510, 4294901760
  %8549 = vmatpush1.msra.mxu0 %v8548
  %8550 = vmatprep.subr.mxu0 0.0
  %8551 = vmatpush2.msra.mxu0 0.0
  %8552 = vmatprep.subr.mxu0 0.0
  %8553 = vmatpush2.msra.mxu0 0.0
  %8554 = vmatprep.subr.mxu0 0.0
  %8555 = vmatpush2.msra.mxu0 0.0
  %8556 = vmatprep.subr.mxu0 0.0
  %8557 = vmatpush2.msra.mxu0 0.0
  %8558 = vmatprep.subr.mxu0 0.0
  %8559 = vmatpush2.msra.mxu0 0.0
  %8560 = vmatprep.subr.mxu0 0.0
  %8561 = vmatpush2.msra.mxu0 0.0
  %8562 = vmatprep.subr.mxu0 0.0
  %8563 = vmatpush2.msra.mxu0 0.0
  %8564 = vmatprep.subr.mxu0 0.0
  %8565 = vmatpush2.msra.mxu0 0.0
  %8566 = vmatprep.subr.mxu0 0.0
  %8567 = vmatpush2.msra.mxu0 0.0
  %8568 = vmatprep.subr.mxu0 0.0
  %8569 = vmatpush2.msra.mxu0 0.0
  %8570 = vmatprep.subr.mxu0 0.0
  %8571 = vmatpush2.msra.mxu0 0.0
  %8572 = vmatprep.subr.mxu0 0.0
  %8573 = vmatpush2.msra.mxu0 0.0
  %8574 = vmatprep.subr.mxu0 0.0
  %8575 = vmatpush2.msra.mxu0 0.0
  %8576 = vmatprep.subr.mxu0 0.0
  %8577 = vmatpush2.msra.mxu0 0.0
  %8578 = vmatprep.subr.mxu0 0.0
  %8579 = vmatpush2.msra.mxu0 0.0
  %8580 = vmatprep.subr.mxu0 0.0
  %8581 = vmatpush2.msra.mxu0 0.0
  %8582 = vmatprep.mubr.f32.mxu0 0.0
  %v8583 = vand.u32 %v8512, 4294901760
  %v8584 = vsub.f32 %v8512, %v8583
  %v8585 = vand.u32 %v8584, 4294901760
  %v8586 = vsub.f32 %v8584, %v8585
  %v8587 = vand.u32 %v8586, 4294901760
  %8588 = vmatmul.mubr.f32.gmra.mxu0 %v8587
  %v8589 = vpop.f32.mrf.mxu0
  %v8590 = vadd.f32 0.0, %v8589
  %v8591 = vpop.f32.mrf.mxu0
  %8592 = vmatprep.mubr.f32.mxu0 0.0
  %v8593 = vand.u32 %v8515, 4294901760
  %v8594 = vsub.f32 %v8515, %v8593
  %v8595 = vand.u32 %v8594, 4294901760
  %v8596 = vsub.f32 %v8594, %v8595
  %v8597 = vand.u32 %v8596, 4294901760
  %8598 = vmatmul.mubr.f32.gmra.mxu0 %v8597
  %v8599 = vpop.f32.mrf.mxu0
  %v8600 = vadd.f32 0.0, %v8599
  %v8601 = vpop.f32.mrf.mxu0
  %8602 = vdwg.mxu0
  %8603 = vmatprep.subr.mxu0 0.0
  %8604 = vmatpush1.msra.mxu0 0.0
  %8605 = vmatprep.subr.mxu0 0.0
  %8606 = vmatpush1.msra.mxu0 0.0
  %8607 = vmatprep.subr.mxu0 0.0
  %8608 = vmatpush1.msra.mxu0 0.0
  %8609 = vmatprep.subr.mxu0 0.0
  %8610 = vmatpush1.msra.mxu0 0.0
  %8611 = vmatprep.subr.mxu0 0.0
  %8612 = vmatpush1.msra.mxu0 0.0
  %8613 = vmatprep.subr.mxu0 0.0
  %8614 = vmatpush1.msra.mxu0 0.0
  %8615 = vmatprep.subr.mxu0 0.0
  %8616 = vmatpush1.msra.mxu0 0.0
  %8617 = vmatprep.subr.mxu0 0.0
  %8618 = vmatpush1.msra.mxu0 0.0
  %8619 = vmatprep.subr.mxu0 0.0
  %8620 = vmatpush1.msra.mxu0 0.0
  %8621 = vmatprep.subr.mxu0 0.0
  %8622 = vmatpush1.msra.mxu0 0.0
  %8623 = vmatprep.subr.mxu0 0.0
  %8624 = vmatpush1.msra.mxu0 0.0
  %8625 = vmatprep.subr.mxu0 0.0
  %8626 = vmatpush1.msra.mxu0 0.0
  %8627 = vmatprep.subr.mxu0 0.0
  %8628 = vmatpush1.msra.mxu0 0.0
  %8629 = vmatprep.subr.mxu0 0.0
  %8630 = vmatpush1.msra.mxu0 0.0
  %8631 = vmatprep.subr.mxu0 0.0
  %8632 = vmatpush1.msra.mxu0 0.0
  %8633 = vmatprep.subr.mxu0 0.0
  %v8634 = vand.u32 %v8510, 4294901760
  %v8635 = vsub.f32 %v8510, %v8634
  %v8636 = vand.u32 %v8635, 4294901760
  %v8637 = vsub.f32 %v8635, %v8636
  %v8638 = vand.u32 %v8637, 4294901760
  %8639 = vmatpush1.msra.mxu0 %v8638
  %8640 = vmatprep.subr.mxu0 0.0
  %8641 = vmatpush2.msra.mxu0 0.0
  %8642 = vmatprep.subr.mxu0 0.0
  %8643 = vmatpush2.msra.mxu0 0.0
  %8644 = vmatprep.subr.mxu0 0.0
  %8645 = vmatpush2.msra.mxu0 0.0
  %8646 = vmatprep.subr.mxu0 0.0
  %8647 = vmatpush2.msra.mxu0 0.0
  %8648 = vmatprep.subr.mxu0 0.0
  %8649 = vmatpush2.msra.mxu0 0.0
  %8650 = vmatprep.subr.mxu0 0.0
  %8651 = vmatpush2.msra.mxu0 0.0
  %8652 = vmatprep.subr.mxu0 0.0
  %8653 = vmatpush2.msra.mxu0 0.0
  %8654 = vmatprep.subr.mxu0 0.0
  %8655 = vmatpush2.msra.mxu0 0.0
  %8656 = vmatprep.subr.mxu0 0.0
  %8657 = vmatpush2.msra.mxu0 0.0
  %8658 = vmatprep.subr.mxu0 0.0
  %8659 = vmatpush2.msra.mxu0 0.0
  %8660 = vmatprep.subr.mxu0 0.0
  %8661 = vmatpush2.msra.mxu0 0.0
  %8662 = vmatprep.subr.mxu0 0.0
  %8663 = vmatpush2.msra.mxu0 0.0
  %8664 = vmatprep.subr.mxu0 0.0
  %8665 = vmatpush2.msra.mxu0 0.0
  %8666 = vmatprep.subr.mxu0 0.0
  %8667 = vmatpush2.msra.mxu0 0.0
  %8668 = vmatprep.subr.mxu0 0.0
  %8669 = vmatpush2.msra.mxu0 0.0
  %8670 = vmatprep.subr.mxu0 0.0
  %8671 = vmatpush2.msra.mxu0 0.0
  %8672 = vmatprep.mubr.f32.mxu0 0.0
  %v8673 = vand.u32 %v8512, 4294901760
  %8674 = vmatmul.mubr.f32.gmra.mxu0 %v8673
  %v8675 = vpop.f32.mrf.mxu0
  %v8676 = vadd.f32 %v8590, %v8675
  %v8677 = vpop.f32.mrf.mxu0
  %8678 = vmatprep.mubr.f32.mxu0 0.0
  %v8679 = vand.u32 %v8515, 4294901760
  %8680 = vmatmul.mubr.f32.gmra.mxu0 %v8679
  %v8681 = vpop.f32.mrf.mxu0
  %v8682 = vadd.f32 %v8600, %v8681
  %v8683 = vpop.f32.mrf.mxu0
  %8684 = vdwg.mxu0
  %8685 = vmatprep.subr.mxu0 0.0
  %8686 = vmatpush1.msra.mxu0 0.0
  %8687 = vmatprep.subr.mxu0 0.0
  %8688 = vmatpush1.msra.mxu0 0.0
  %8689 = vmatprep.subr.mxu0 0.0
  %8690 = vmatpush1.msra.mxu0 0.0
  %8691 = vmatprep.subr.mxu0 0.0
  %8692 = vmatpush1.msra.mxu0 0.0
  %8693 = vmatprep.subr.mxu0 0.0
  %8694 = vmatpush1.msra.mxu0 0.0
  %8695 = vmatprep.subr.mxu0 0.0
  %8696 = vmatpush1.msra.mxu0 0.0
  %8697 = vmatprep.subr.mxu0 0.0
  %8698 = vmatpush1.msra.mxu0 0.0
  %8699 = vmatprep.subr.mxu0 0.0
  %8700 = vmatpush1.msra.mxu0 0.0
  %8701 = vmatprep.subr.mxu0 0.0
  %8702 = vmatpush1.msra.mxu0 0.0
  %8703 = vmatprep.subr.mxu0 0.0
  %8704 = vmatpush1.msra.mxu0 0.0
  %8705 = vmatprep.subr.mxu0 0.0
  %8706 = vmatpush1.msra.mxu0 0.0
  %8707 = vmatprep.subr.mxu0 0.0
  %8708 = vmatpush1.msra.mxu0 0.0
  %8709 = vmatprep.subr.mxu0 0.0
  %8710 = vmatpush1.msra.mxu0 0.0
  %8711 = vmatprep.subr.mxu0 0.0
  %8712 = vmatpush1.msra.mxu0 0.0
  %8713 = vmatprep.subr.mxu0 0.0
  %8714 = vmatpush1.msra.mxu0 0.0
  %8715 = vmatprep.subr.mxu0 0.0
  %v8716 = vand.u32 %v8510, 4294901760
  %v8717 = vsub.f32 %v8510, %v8716
  %8718 = vmatpush1.msra.mxu0 %v8717
  %8719 = vmatprep.subr.mxu0 0.0
  %8720 = vmatpush2.msra.mxu0 0.0
  %8721 = vmatprep.subr.mxu0 0.0
  %8722 = vmatpush2.msra.mxu0 0.0
  %8723 = vmatprep.subr.mxu0 0.0
  %8724 = vmatpush2.msra.mxu0 0.0
  %8725 = vmatprep.subr.mxu0 0.0
  %8726 = vmatpush2.msra.mxu0 0.0
  %8727 = vmatprep.subr.mxu0 0.0
  %8728 = vmatpush2.msra.mxu0 0.0
  %8729 = vmatprep.subr.mxu0 0.0
  %8730 = vmatpush2.msra.mxu0 0.0
  %8731 = vmatprep.subr.mxu0 0.0
  %8732 = vmatpush2.msra.mxu0 0.0
  %8733 = vmatprep.subr.mxu0 0.0
  %8734 = vmatpush2.msra.mxu0 0.0
  %8735 = vmatprep.subr.mxu0 0.0
  %8736 = vmatpush2.msra.mxu0 0.0
  %8737 = vmatprep.subr.mxu0 0.0
  %8738 = vmatpush2.msra.mxu0 0.0
  %8739 = vmatprep.subr.mxu0 0.0
  %8740 = vmatpush2.msra.mxu0 0.0
  %8741 = vmatprep.subr.mxu0 0.0
  %8742 = vmatpush2.msra.mxu0 0.0
  %8743 = vmatprep.subr.mxu0 0.0
  %8744 = vmatpush2.msra.mxu0 0.0
  %8745 = vmatprep.subr.mxu0 0.0
  %8746 = vmatpush2.msra.mxu0 0.0
  %8747 = vmatprep.subr.mxu0 0.0
  %8748 = vmatpush2.msra.mxu0 0.0
  %8749 = vmatprep.subr.mxu0 0.0
  %8750 = vmatpush2.msra.mxu0 0.0
  %8751 = vmatprep.mubr.f32.mxu0 0.0
  %v8752 = vand.u32 %v8512, 4294901760
  %v8753 = vsub.f32 %v8512, %v8752
  %8754 = vmatmul.mubr.f32.gmra.mxu0 %v8753
  %v8755 = vpop.f32.mrf.mxu0
  %v8756 = vadd.f32 %v8676, %v8755
  %v8757 = vpop.f32.mrf.mxu0
  %8758 = vmatprep.mubr.f32.mxu0 0.0
  %v8759 = vand.u32 %v8515, 4294901760
  %v8760 = vsub.f32 %v8515, %v8759
  %8761 = vmatmul.mubr.f32.gmra.mxu0 %v8760
  %v8762 = vpop.f32.mrf.mxu0
  %v8763 = vadd.f32 %v8682, %v8762
  %v8764 = vpop.f32.mrf.mxu0
  %8765 = vdwg.mxu0
  %8766 = vmatprep.subr.mxu0 0.0
  %8767 = vmatpush1.msra.mxu0 0.0
  %8768 = vmatprep.subr.mxu0 0.0
  %8769 = vmatpush1.msra.mxu0 0.0
  %8770 = vmatprep.subr.mxu0 0.0
  %8771 = vmatpush1.msra.mxu0 0.0
  %8772 = vmatprep.subr.mxu0 0.0
  %8773 = vmatpush1.msra.mxu0 0.0
  %8774 = vmatprep.subr.mxu0 0.0
  %8775 = vmatpush1.msra.mxu0 0.0
  %8776 = vmatprep.subr.mxu0 0.0
  %8777 = vmatpush1.msra.mxu0 0.0
  %8778 = vmatprep.subr.mxu0 0.0
  %8779 = vmatpush1.msra.mxu0 0.0
  %8780 = vmatprep.subr.mxu0 0.0
  %8781 = vmatpush1.msra.mxu0 0.0
  %8782 = vmatprep.subr.mxu0 0.0
  %8783 = vmatpush1.msra.mxu0 0.0
  %8784 = vmatprep.subr.mxu0 0.0
  %8785 = vmatpush1.msra.mxu0 0.0
  %8786 = vmatprep.subr.mxu0 0.0
  %8787 = vmatpush1.msra.mxu0 0.0
  %8788 = vmatprep.subr.mxu0 0.0
  %8789 = vmatpush1.msra.mxu0 0.0
  %8790 = vmatprep.subr.mxu0 0.0
  %8791 = vmatpush1.msra.mxu0 0.0
  %8792 = vmatprep.subr.mxu0 0.0
  %8793 = vmatpush1.msra.mxu0 0.0
  %8794 = vmatprep.subr.mxu0 0.0
  %8795 = vmatpush1.msra.mxu0 0.0
  %8796 = vmatprep.subr.mxu0 0.0
  %v8797 = vand.u32 %v8510, 4294901760
  %8798 = vmatpush1.msra.mxu0 %v8797
  %8799 = vmatprep.subr.mxu0 0.0
  %8800 = vmatpush2.msra.mxu0 0.0
  %8801 = vmatprep.subr.mxu0 0.0
  %8802 = vmatpush2.msra.mxu0 0.0
  %8803 = vmatprep.subr.mxu0 0.0
  %8804 = vmatpush2.msra.mxu0 0.0
  %8805 = vmatprep.subr.mxu0 0.0
  %8806 = vmatpush2.msra.mxu0 0.0
  %8807 = vmatprep.subr.mxu0 0.0
  %8808 = vmatpush2.msra.mxu0 0.0
  %8809 = vmatprep.subr.mxu0 0.0
  %8810 = vmatpush2.msra.mxu0 0.0
  %8811 = vmatprep.subr.mxu0 0.0
  %8812 = vmatpush2.msra.mxu0 0.0
  %8813 = vmatprep.subr.mxu0 0.0
  %8814 = vmatpush2.msra.mxu0 0.0
  %8815 = vmatprep.subr.mxu0 0.0
  %8816 = vmatpush2.msra.mxu0 0.0
  %8817 = vmatprep.subr.mxu0 0.0
  %8818 = vmatpush2.msra.mxu0 0.0
  %8819 = vmatprep.subr.mxu0 0.0
  %8820 = vmatpush2.msra.mxu0 0.0
  %8821 = vmatprep.subr.mxu0 0.0
  %8822 = vmatpush2.msra.mxu0 0.0
  %8823 = vmatprep.subr.mxu0 0.0
  %8824 = vmatpush2.msra.mxu0 0.0
  %8825 = vmatprep.subr.mxu0 0.0
  %8826 = vmatpush2.msra.mxu0 0.0
  %8827 = vmatprep.subr.mxu0 0.0
  %8828 = vmatpush2.msra.mxu0 0.0
  %8829 = vmatprep.subr.mxu0 0.0
  %8830 = vmatpush2.msra.mxu0 0.0
  %8831 = vmatprep.mubr.f32.mxu0 0.0
  %v8832 = vand.u32 %v8512, 4294901760
  %v8833 = vsub.f32 %v8512, %v8832
  %v8834 = vand.u32 %v8833, 4294901760
  %8835 = vmatmul.mubr.f32.gmra.mxu0 %v8834
  %v8836 = vpop.f32.mrf.mxu0
  %v8837 = vadd.f32 %v8756, %v8836
  %v8838 = vpop.f32.mrf.mxu0
  %8839 = vmatprep.mubr.f32.mxu0 0.0
  %v8840 = vand.u32 %v8515, 4294901760
  %v8841 = vsub.f32 %v8515, %v8840
  %v8842 = vand.u32 %v8841, 4294901760
  %8843 = vmatmul.mubr.f32.gmra.mxu0 %v8842
  %v8844 = vpop.f32.mrf.mxu0
  %v8845 = vadd.f32 %v8763, %v8844
  %v8846 = vpop.f32.mrf.mxu0
  %8847 = vdwg.mxu0
  %8848 = vmatprep.subr.mxu0 0.0
  %8849 = vmatpush1.msra.mxu0 0.0
  %8850 = vmatprep.subr.mxu0 0.0
  %8851 = vmatpush1.msra.mxu0 0.0
  %8852 = vmatprep.subr.mxu0 0.0
  %8853 = vmatpush1.msra.mxu0 0.0
  %8854 = vmatprep.subr.mxu0 0.0
  %8855 = vmatpush1.msra.mxu0 0.0
  %8856 = vmatprep.subr.mxu0 0.0
  %8857 = vmatpush1.msra.mxu0 0.0
  %8858 = vmatprep.subr.mxu0 0.0
  %8859 = vmatpush1.msra.mxu0 0.0
  %8860 = vmatprep.subr.mxu0 0.0
  %8861 = vmatpush1.msra.mxu0 0.0
  %8862 = vmatprep.subr.mxu0 0.0
  %8863 = vmatpush1.msra.mxu0 0.0
  %8864 = vmatprep.subr.mxu0 0.0
  %8865 = vmatpush1.msra.mxu0 0.0
  %8866 = vmatprep.subr.mxu0 0.0
  %8867 = vmatpush1.msra.mxu0 0.0
  %8868 = vmatprep.subr.mxu0 0.0
  %8869 = vmatpush1.msra.mxu0 0.0
  %8870 = vmatprep.subr.mxu0 0.0
  %8871 = vmatpush1.msra.mxu0 0.0
  %8872 = vmatprep.subr.mxu0 0.0
  %8873 = vmatpush1.msra.mxu0 0.0
  %8874 = vmatprep.subr.mxu0 0.0
  %8875 = vmatpush1.msra.mxu0 0.0
  %8876 = vmatprep.subr.mxu0 0.0
  %8877 = vmatpush1.msra.mxu0 0.0
  %8878 = vmatprep.subr.mxu0 0.0
  %v8879 = vand.u32 %v8510, 4294901760
  %v8880 = vsub.f32 %v8510, %v8879
  %v8881 = vand.u32 %v8880, 4294901760
  %8882 = vmatpush1.msra.mxu0 %v8881
  %8883 = vmatprep.subr.mxu0 0.0
  %8884 = vmatpush2.msra.mxu0 0.0
  %8885 = vmatprep.subr.mxu0 0.0
  %8886 = vmatpush2.msra.mxu0 0.0
  %8887 = vmatprep.subr.mxu0 0.0
  %8888 = vmatpush2.msra.mxu0 0.0
  %8889 = vmatprep.subr.mxu0 0.0
  %8890 = vmatpush2.msra.mxu0 0.0
  %8891 = vmatprep.subr.mxu0 0.0
  %8892 = vmatpush2.msra.mxu0 0.0
  %8893 = vmatprep.subr.mxu0 0.0
  %8894 = vmatpush2.msra.mxu0 0.0
  %8895 = vmatprep.subr.mxu0 0.0
  %8896 = vmatpush2.msra.mxu0 0.0
  %8897 = vmatprep.subr.mxu0 0.0
  %8898 = vmatpush2.msra.mxu0 0.0
  %8899 = vmatprep.subr.mxu0 0.0
  %8900 = vmatpush2.msra.mxu0 0.0
  %8901 = vmatprep.subr.mxu0 0.0
  %8902 = vmatpush2.msra.mxu0 0.0
  %8903 = vmatprep.subr.mxu0 0.0
  %8904 = vmatpush2.msra.mxu0 0.0
  %8905 = vmatprep.subr.mxu0 0.0
  %8906 = vmatpush2.msra.mxu0 0.0
  %8907 = vmatprep.subr.mxu0 0.0
  %8908 = vmatpush2.msra.mxu0 0.0
  %8909 = vmatprep.subr.mxu0 0.0
  %8910 = vmatpush2.msra.mxu0 0.0
  %8911 = vmatprep.subr.mxu0 0.0
  %8912 = vmatpush2.msra.mxu0 0.0
  %8913 = vmatprep.subr.mxu0 0.0
  %8914 = vmatpush2.msra.mxu0 0.0
  %8915 = vmatprep.mubr.f32.mxu0 0.0
  %v8916 = vand.u32 %v8512, 4294901760
  %8917 = vmatmul.mubr.f32.gmra.mxu0 %v8916
  %v8918 = vpop.f32.mrf.mxu0
  %v8919 = vadd.f32 %v8837, %v8918
  %v8920 = vpop.f32.mrf.mxu0
  %8921 = vmatprep.mubr.f32.mxu0 0.0
  %v8922 = vand.u32 %v8515, 4294901760
  %8923 = vmatmul.mubr.f32.gmra.mxu0 %v8922
  %v8924 = vpop.f32.mrf.mxu0
  %v8925 = vadd.f32 %v8845, %v8924
  %v8926 = vpop.f32.mrf.mxu0
  %8927 = vdwg.mxu0
  %8928 = vmatprep.subr.mxu0 0.0
  %8929 = vmatpush1.msra.mxu0 0.0
  %8930 = vmatprep.subr.mxu0 0.0
  %8931 = vmatpush1.msra.mxu0 0.0
  %8932 = vmatprep.subr.mxu0 0.0
  %8933 = vmatpush1.msra.mxu0 0.0
  %8934 = vmatprep.subr.mxu0 0.0
  %8935 = vmatpush1.msra.mxu0 0.0
  %8936 = vmatprep.subr.mxu0 0.0
  %8937 = vmatpush1.msra.mxu0 0.0
  %8938 = vmatprep.subr.mxu0 0.0
  %8939 = vmatpush1.msra.mxu0 0.0
  %8940 = vmatprep.subr.mxu0 0.0
  %8941 = vmatpush1.msra.mxu0 0.0
  %8942 = vmatprep.subr.mxu0 0.0
  %8943 = vmatpush1.msra.mxu0 0.0
  %8944 = vmatprep.subr.mxu0 0.0
  %8945 = vmatpush1.msra.mxu0 0.0
  %8946 = vmatprep.subr.mxu0 0.0
  %8947 = vmatpush1.msra.mxu0 0.0
  %8948 = vmatprep.subr.mxu0 0.0
  %8949 = vmatpush1.msra.mxu0 0.0
  %8950 = vmatprep.subr.mxu0 0.0
  %8951 = vmatpush1.msra.mxu0 0.0
  %8952 = vmatprep.subr.mxu0 0.0
  %8953 = vmatpush1.msra.mxu0 0.0
  %8954 = vmatprep.subr.mxu0 0.0
  %8955 = vmatpush1.msra.mxu0 0.0
  %8956 = vmatprep.subr.mxu0 0.0
  %8957 = vmatpush1.msra.mxu0 0.0
  %8958 = vmatprep.subr.mxu0 0.0
  %v8959 = vand.u32 %v8510, 4294901760
  %8960 = vmatpush1.msra.mxu0 %v8959
  %8961 = vmatprep.subr.mxu0 0.0
  %8962 = vmatpush2.msra.mxu0 0.0
  %8963 = vmatprep.subr.mxu0 0.0
  %8964 = vmatpush2.msra.mxu0 0.0
  %8965 = vmatprep.subr.mxu0 0.0
  %8966 = vmatpush2.msra.mxu0 0.0
  %8967 = vmatprep.subr.mxu0 0.0
  %8968 = vmatpush2.msra.mxu0 0.0
  %8969 = vmatprep.subr.mxu0 0.0
  %8970 = vmatpush2.msra.mxu0 0.0
  %8971 = vmatprep.subr.mxu0 0.0
  %8972 = vmatpush2.msra.mxu0 0.0
  %8973 = vmatprep.subr.mxu0 0.0
  %8974 = vmatpush2.msra.mxu0 0.0
  %8975 = vmatprep.subr.mxu0 0.0
  %8976 = vmatpush2.msra.mxu0 0.0
  %8977 = vmatprep.subr.mxu0 0.0
  %8978 = vmatpush2.msra.mxu0 0.0
  %8979 = vmatprep.subr.mxu0 0.0
  %8980 = vmatpush2.msra.mxu0 0.0
  %8981 = vmatprep.subr.mxu0 0.0
  %8982 = vmatpush2.msra.mxu0 0.0
  %8983 = vmatprep.subr.mxu0 0.0
  %8984 = vmatpush2.msra.mxu0 0.0
  %8985 = vmatprep.subr.mxu0 0.0
  %8986 = vmatpush2.msra.mxu0 0.0
  %8987 = vmatprep.subr.mxu0 0.0
  %8988 = vmatpush2.msra.mxu0 0.0
  %8989 = vmatprep.subr.mxu0 0.0
  %8990 = vmatpush2.msra.mxu0 0.0
  %8991 = vmatprep.subr.mxu0 0.0
  %8992 = vmatpush2.msra.mxu0 0.0
  %8993 = vmatprep.mubr.f32.mxu0 0.0
  %v8994 = vand.u32 %v8512, 4294901760
  %8995 = vmatmul.mubr.f32.gmra.mxu0 %v8994
  %v8996 = vpop.f32.mrf.mxu0
  %v8997 = vadd.f32 %v8919, %v8996
  %v8998 = vpop.f32.mrf.mxu0
  %8999 = vmatprep.mubr.f32.mxu0 0.0
  %v9000 = vand.u32 %v8515, 4294901760
  %9001 = vmatmul.mubr.f32.gmra.mxu0 %v9000
  %v9002 = vpop.f32.mrf.mxu0
  %v9003 = vadd.f32 %v8925, %v9002
  %v9004 = vpop.f32.mrf.mxu0
  %9005 = vdwg.mxu0
  %v9006 = vld [vmem:[%s77] sm:$0x1]
  %v9007 = vld [vmem:[%s79] sm:$0x1]
  %v9008 = vsel %vm7358, %v8997, 0.0
  %v9009 = vsel %vm7358, %v9003, 0.0
  %v9010 = vadd.f32 %v9008, %v9009
  %v9011 = vrot.slane %v9010, 4
  %v9012 = vadd.f32 %v9010, %v9011
  %v9013 = vrot.slane %v9012, 2
  %v9014 = vadd.f32 %v9012, %v9013
  %v9015 = vrot.slane %v9014, 1
  %v9016 = vadd.f32 %v9014, %v9015
  %v9017 = vmul.f32 %v9016, 0.0625
  %v9018 = vsub.f32 %v8997, %v9017
  %v9019 = vsub.f32 %v9003, %v9017
  %v9020 = vmul.f32 %v9018, %v9018
  %v9021 = vmul.f32 %v9019, %v9019
  %v9022 = vsel %vm7358, %v9020, 0.0
  %v9023 = vsel %vm7358, %v9021, 0.0
  %v9024 = vadd.f32 %v9022, %v9023
  %v9025 = vrot.slane %v9024, 4
  %v9026 = vadd.f32 %v9024, %v9025
  %v9027 = vrot.slane %v9026, 2
  %v9028 = vadd.f32 %v9026, %v9027
  %v9029 = vrot.slane %v9028, 1
  %v9030 = vadd.f32 %v9028, %v9029
  %v9031 = vmul.f32 %v9030, 0.0625
  %v9032 = vadd.f32 %v9031, 1e-05
  %v9033 = vrsqrt.pop %v9032
  %v9034 = vmul.f32 %v9018, %v9033
  %v9035 = vmul.f32 %v9019, %v9033
  %v9037 = vlaneseq
  %v9038 = vshrl.u32 %v9037, 7
  %v9039 = vsub.s32 0, %v9038
  %v9040 = vrot.slane %v9006, %v9039
  %v9042 = vmul.f32 %v9034, %v9040
  %v9043 = vmul.f32 %v9035, %v9040
  %v9045 = vlaneseq
  %v9046 = vshrl.u32 %v9045, 7
  %v9047 = vsub.s32 0, %v9046
  %v9048 = vrot.slane %v9007, %v9047
  %v9050 = vadd.f32 %v9042, %v9048
  %v9051 = vadd.f32 %v9043, %v9048
  %v9052 = vmax.f32 %v9050, 0.0
  %v9053 = vmax.f32 %v9051, 0.0
  %v9054 = vld [vmem:[%s81] sm:$0xff]
  %v9056 = vsel %vm7358, %v9052, 0
  %v9059 = vsel %vm7358, %v9053, 0
  %9061 = vmatprep.subr.mxu0 0.0
  %9062 = vmatpush1.msra.mxu0 0.0
  %9063 = vmatprep.subr.mxu0 0.0
  %9064 = vmatpush1.msra.mxu0 0.0
  %9065 = vmatprep.subr.mxu0 0.0
  %9066 = vmatpush1.msra.mxu0 0.0
  %9067 = vmatprep.subr.mxu0 0.0
  %9068 = vmatpush1.msra.mxu0 0.0
  %9069 = vmatprep.subr.mxu0 0.0
  %9070 = vmatpush1.msra.mxu0 0.0
  %9071 = vmatprep.subr.mxu0 0.0
  %9072 = vmatpush1.msra.mxu0 0.0
  %9073 = vmatprep.subr.mxu0 0.0
  %9074 = vmatpush1.msra.mxu0 0.0
  %9075 = vmatprep.subr.mxu0 0.0
  %9076 = vmatpush1.msra.mxu0 0.0
  %9077 = vmatprep.subr.mxu0 0.0
  %9078 = vmatpush1.msra.mxu0 0.0
  %9079 = vmatprep.subr.mxu0 0.0
  %9080 = vmatpush1.msra.mxu0 0.0
  %9081 = vmatprep.subr.mxu0 0.0
  %9082 = vmatpush1.msra.mxu0 0.0
  %9083 = vmatprep.subr.mxu0 0.0
  %9084 = vmatpush1.msra.mxu0 0.0
  %9085 = vmatprep.subr.mxu0 0.0
  %9086 = vmatpush1.msra.mxu0 0.0
  %9087 = vmatprep.subr.mxu0 0.0
  %9088 = vmatpush1.msra.mxu0 0.0
  %9089 = vmatprep.subr.mxu0 0.0
  %9090 = vmatpush1.msra.mxu0 0.0
  %9091 = vmatprep.subr.mxu0 0.0
  %v9092 = vand.u32 %v9054, 4294901760
  %9093 = vmatpush1.msra.mxu0 %v9092
  %9094 = vmatprep.subr.mxu0 0.0
  %9095 = vmatpush2.msra.mxu0 0.0
  %9096 = vmatprep.subr.mxu0 0.0
  %9097 = vmatpush2.msra.mxu0 0.0
  %9098 = vmatprep.subr.mxu0 0.0
  %9099 = vmatpush2.msra.mxu0 0.0
  %9100 = vmatprep.subr.mxu0 0.0
  %9101 = vmatpush2.msra.mxu0 0.0
  %9102 = vmatprep.subr.mxu0 0.0
  %9103 = vmatpush2.msra.mxu0 0.0
  %9104 = vmatprep.subr.mxu0 0.0
  %9105 = vmatpush2.msra.mxu0 0.0
  %9106 = vmatprep.subr.mxu0 0.0
  %9107 = vmatpush2.msra.mxu0 0.0
  %9108 = vmatprep.subr.mxu0 0.0
  %9109 = vmatpush2.msra.mxu0 0.0
  %9110 = vmatprep.subr.mxu0 0.0
  %9111 = vmatpush2.msra.mxu0 0.0
  %9112 = vmatprep.subr.mxu0 0.0
  %9113 = vmatpush2.msra.mxu0 0.0
  %9114 = vmatprep.subr.mxu0 0.0
  %9115 = vmatpush2.msra.mxu0 0.0
  %9116 = vmatprep.subr.mxu0 0.0
  %9117 = vmatpush2.msra.mxu0 0.0
  %9118 = vmatprep.subr.mxu0 0.0
  %9119 = vmatpush2.msra.mxu0 0.0
  %9120 = vmatprep.subr.mxu0 0.0
  %9121 = vmatpush2.msra.mxu0 0.0
  %9122 = vmatprep.subr.mxu0 0.0
  %9123 = vmatpush2.msra.mxu0 0.0
  %9124 = vmatprep.subr.mxu0 0.0
  %9125 = vmatpush2.msra.mxu0 0.0
  %9126 = vmatprep.mubr.f32.mxu0 0.0
  %v9127 = vand.u32 %v9056, 4294901760
  %v9128 = vsub.f32 %v9056, %v9127
  %v9129 = vand.u32 %v9128, 4294901760
  %v9130 = vsub.f32 %v9128, %v9129
  %v9131 = vand.u32 %v9130, 4294901760
  %9132 = vmatmul.mubr.f32.gmra.mxu0 %v9131
  %v9133 = vpop.f32.mrf.mxu0
  %v9134 = vadd.f32 0.0, %v9133
  %v9135 = vpop.f32.mrf.mxu0
  %9136 = vmatprep.mubr.f32.mxu0 0.0
  %v9137 = vand.u32 %v9059, 4294901760
  %v9138 = vsub.f32 %v9059, %v9137
  %v9139 = vand.u32 %v9138, 4294901760
  %v9140 = vsub.f32 %v9138, %v9139
  %v9141 = vand.u32 %v9140, 4294901760
  %9142 = vmatmul.mubr.f32.gmra.mxu0 %v9141
  %v9143 = vpop.f32.mrf.mxu0
  %v9144 = vadd.f32 0.0, %v9143
  %v9145 = vpop.f32.mrf.mxu0
  %9146 = vdwg.mxu0
  %9147 = vmatprep.subr.mxu0 0.0
  %9148 = vmatpush1.msra.mxu0 0.0
  %9149 = vmatprep.subr.mxu0 0.0
  %9150 = vmatpush1.msra.mxu0 0.0
  %9151 = vmatprep.subr.mxu0 0.0
  %9152 = vmatpush1.msra.mxu0 0.0
  %9153 = vmatprep.subr.mxu0 0.0
  %9154 = vmatpush1.msra.mxu0 0.0
  %9155 = vmatprep.subr.mxu0 0.0
  %9156 = vmatpush1.msra.mxu0 0.0
  %9157 = vmatprep.subr.mxu0 0.0
  %9158 = vmatpush1.msra.mxu0 0.0
  %9159 = vmatprep.subr.mxu0 0.0
  %9160 = vmatpush1.msra.mxu0 0.0
  %9161 = vmatprep.subr.mxu0 0.0
  %9162 = vmatpush1.msra.mxu0 0.0
  %9163 = vmatprep.subr.mxu0 0.0
  %9164 = vmatpush1.msra.mxu0 0.0
  %9165 = vmatprep.subr.mxu0 0.0
  %9166 = vmatpush1.msra.mxu0 0.0
  %9167 = vmatprep.subr.mxu0 0.0
  %9168 = vmatpush1.msra.mxu0 0.0
  %9169 = vmatprep.subr.mxu0 0.0
  %9170 = vmatpush1.msra.mxu0 0.0
  %9171 = vmatprep.subr.mxu0 0.0
  %9172 = vmatpush1.msra.mxu0 0.0
  %9173 = vmatprep.subr.mxu0 0.0
  %9174 = vmatpush1.msra.mxu0 0.0
  %9175 = vmatprep.subr.mxu0 0.0
  %9176 = vmatpush1.msra.mxu0 0.0
  %9177 = vmatprep.subr.mxu0 0.0
  %v9178 = vand.u32 %v9054, 4294901760
  %v9179 = vsub.f32 %v9054, %v9178
  %v9180 = vand.u32 %v9179, 4294901760
  %v9181 = vsub.f32 %v9179, %v9180
  %v9182 = vand.u32 %v9181, 4294901760
  %9183 = vmatpush1.msra.mxu0 %v9182
  %9184 = vmatprep.subr.mxu0 0.0
  %9185 = vmatpush2.msra.mxu0 0.0
  %9186 = vmatprep.subr.mxu0 0.0
  %9187 = vmatpush2.msra.mxu0 0.0
  %9188 = vmatprep.subr.mxu0 0.0
  %9189 = vmatpush2.msra.mxu0 0.0
  %9190 = vmatprep.subr.mxu0 0.0
  %9191 = vmatpush2.msra.mxu0 0.0
  %9192 = vmatprep.subr.mxu0 0.0
  %9193 = vmatpush2.msra.mxu0 0.0
  %9194 = vmatprep.subr.mxu0 0.0
  %9195 = vmatpush2.msra.mxu0 0.0
  %9196 = vmatprep.subr.mxu0 0.0
  %9197 = vmatpush2.msra.mxu0 0.0
  %9198 = vmatprep.subr.mxu0 0.0
  %9199 = vmatpush2.msra.mxu0 0.0
  %9200 = vmatprep.subr.mxu0 0.0
  %9201 = vmatpush2.msra.mxu0 0.0
  %9202 = vmatprep.subr.mxu0 0.0
  %9203 = vmatpush2.msra.mxu0 0.0
  %9204 = vmatprep.subr.mxu0 0.0
  %9205 = vmatpush2.msra.mxu0 0.0
  %9206 = vmatprep.subr.mxu0 0.0
  %9207 = vmatpush2.msra.mxu0 0.0
  %9208 = vmatprep.subr.mxu0 0.0
  %9209 = vmatpush2.msra.mxu0 0.0
  %9210 = vmatprep.subr.mxu0 0.0
  %9211 = vmatpush2.msra.mxu0 0.0
  %9212 = vmatprep.subr.mxu0 0.0
  %9213 = vmatpush2.msra.mxu0 0.0
  %9214 = vmatprep.subr.mxu0 0.0
  %9215 = vmatpush2.msra.mxu0 0.0
  %9216 = vmatprep.mubr.f32.mxu0 0.0
  %v9217 = vand.u32 %v9056, 4294901760
  %9218 = vmatmul.mubr.f32.gmra.mxu0 %v9217
  %v9219 = vpop.f32.mrf.mxu0
  %v9220 = vadd.f32 %v9134, %v9219
  %v9221 = vpop.f32.mrf.mxu0
  %9222 = vmatprep.mubr.f32.mxu0 0.0
  %v9223 = vand.u32 %v9059, 4294901760
  %9224 = vmatmul.mubr.f32.gmra.mxu0 %v9223
  %v9225 = vpop.f32.mrf.mxu0
  %v9226 = vadd.f32 %v9144, %v9225
  %v9227 = vpop.f32.mrf.mxu0
  %9228 = vdwg.mxu0
  %9229 = vmatprep.subr.mxu0 0.0
  %9230 = vmatpush1.msra.mxu0 0.0
  %9231 = vmatprep.subr.mxu0 0.0
  %9232 = vmatpush1.msra.mxu0 0.0
  %9233 = vmatprep.subr.mxu0 0.0
  %9234 = vmatpush1.msra.mxu0 0.0
  %9235 = vmatprep.subr.mxu0 0.0
  %9236 = vmatpush1.msra.mxu0 0.0
  %9237 = vmatprep.subr.mxu0 0.0
  %9238 = vmatpush1.msra.mxu0 0.0
  %9239 = vmatprep.subr.mxu0 0.0
  %9240 = vmatpush1.msra.mxu0 0.0
  %9241 = vmatprep.subr.mxu0 0.0
  %9242 = vmatpush1.msra.mxu0 0.0
  %9243 = vmatprep.subr.mxu0 0.0
  %9244 = vmatpush1.msra.mxu0 0.0
  %9245 = vmatprep.subr.mxu0 0.0
  %9246 = vmatpush1.msra.mxu0 0.0
  %9247 = vmatprep.subr.mxu0 0.0
  %9248 = vmatpush1.msra.mxu0 0.0
  %9249 = vmatprep.subr.mxu0 0.0
  %9250 = vmatpush1.msra.mxu0 0.0
  %9251 = vmatprep.subr.mxu0 0.0
  %9252 = vmatpush1.msra.mxu0 0.0
  %9253 = vmatprep.subr.mxu0 0.0
  %9254 = vmatpush1.msra.mxu0 0.0
  %9255 = vmatprep.subr.mxu0 0.0
  %9256 = vmatpush1.msra.mxu0 0.0
  %9257 = vmatprep.subr.mxu0 0.0
  %9258 = vmatpush1.msra.mxu0 0.0
  %9259 = vmatprep.subr.mxu0 0.0
  %v9260 = vand.u32 %v9054, 4294901760
  %v9261 = vsub.f32 %v9054, %v9260
  %9262 = vmatpush1.msra.mxu0 %v9261
  %9263 = vmatprep.subr.mxu0 0.0
  %9264 = vmatpush2.msra.mxu0 0.0
  %9265 = vmatprep.subr.mxu0 0.0
  %9266 = vmatpush2.msra.mxu0 0.0
  %9267 = vmatprep.subr.mxu0 0.0
  %9268 = vmatpush2.msra.mxu0 0.0
  %9269 = vmatprep.subr.mxu0 0.0
  %9270 = vmatpush2.msra.mxu0 0.0
  %9271 = vmatprep.subr.mxu0 0.0
  %9272 = vmatpush2.msra.mxu0 0.0
  %9273 = vmatprep.subr.mxu0 0.0
  %9274 = vmatpush2.msra.mxu0 0.0
  %9275 = vmatprep.subr.mxu0 0.0
  %9276 = vmatpush2.msra.mxu0 0.0
  %9277 = vmatprep.subr.mxu0 0.0
  %9278 = vmatpush2.msra.mxu0 0.0
  %9279 = vmatprep.subr.mxu0 0.0
  %9280 = vmatpush2.msra.mxu0 0.0
  %9281 = vmatprep.subr.mxu0 0.0
  %9282 = vmatpush2.msra.mxu0 0.0
  %9283 = vmatprep.subr.mxu0 0.0
  %9284 = vmatpush2.msra.mxu0 0.0
  %9285 = vmatprep.subr.mxu0 0.0
  %9286 = vmatpush2.msra.mxu0 0.0
  %9287 = vmatprep.subr.mxu0 0.0
  %9288 = vmatpush2.msra.mxu0 0.0
  %9289 = vmatprep.subr.mxu0 0.0
  %9290 = vmatpush2.msra.mxu0 0.0
  %9291 = vmatprep.subr.mxu0 0.0
  %9292 = vmatpush2.msra.mxu0 0.0
  %9293 = vmatprep.subr.mxu0 0.0
  %9294 = vmatpush2.msra.mxu0 0.0
  %9295 = vmatprep.mubr.f32.mxu0 0.0
  %v9296 = vand.u32 %v9056, 4294901760
  %v9297 = vsub.f32 %v9056, %v9296
  %9298 = vmatmul.mubr.f32.gmra.mxu0 %v9297
  %v9299 = vpop.f32.mrf.mxu0
  %v9300 = vadd.f32 %v9220, %v9299
  %v9301 = vpop.f32.mrf.mxu0
  %9302 = vmatprep.mubr.f32.mxu0 0.0
  %v9303 = vand.u32 %v9059, 4294901760
  %v9304 = vsub.f32 %v9059, %v9303
  %9305 = vmatmul.mubr.f32.gmra.mxu0 %v9304
  %v9306 = vpop.f32.mrf.mxu0
  %v9307 = vadd.f32 %v9226, %v9306
  %v9308 = vpop.f32.mrf.mxu0
  %9309 = vdwg.mxu0
  %9310 = vmatprep.subr.mxu0 0.0
  %9311 = vmatpush1.msra.mxu0 0.0
  %9312 = vmatprep.subr.mxu0 0.0
  %9313 = vmatpush1.msra.mxu0 0.0
  %9314 = vmatprep.subr.mxu0 0.0
  %9315 = vmatpush1.msra.mxu0 0.0
  %9316 = vmatprep.subr.mxu0 0.0
  %9317 = vmatpush1.msra.mxu0 0.0
  %9318 = vmatprep.subr.mxu0 0.0
  %9319 = vmatpush1.msra.mxu0 0.0
  %9320 = vmatprep.subr.mxu0 0.0
  %9321 = vmatpush1.msra.mxu0 0.0
  %9322 = vmatprep.subr.mxu0 0.0
  %9323 = vmatpush1.msra.mxu0 0.0
  %9324 = vmatprep.subr.mxu0 0.0
  %9325 = vmatpush1.msra.mxu0 0.0
  %9326 = vmatprep.subr.mxu0 0.0
  %9327 = vmatpush1.msra.mxu0 0.0
  %9328 = vmatprep.subr.mxu0 0.0
  %9329 = vmatpush1.msra.mxu0 0.0
  %9330 = vmatprep.subr.mxu0 0.0
  %9331 = vmatpush1.msra.mxu0 0.0
  %9332 = vmatprep.subr.mxu0 0.0
  %9333 = vmatpush1.msra.mxu0 0.0
  %9334 = vmatprep.subr.mxu0 0.0
  %9335 = vmatpush1.msra.mxu0 0.0
  %9336 = vmatprep.subr.mxu0 0.0
  %9337 = vmatpush1.msra.mxu0 0.0
  %9338 = vmatprep.subr.mxu0 0.0
  %9339 = vmatpush1.msra.mxu0 0.0
  %9340 = vmatprep.subr.mxu0 0.0
  %v9341 = vand.u32 %v9054, 4294901760
  %9342 = vmatpush1.msra.mxu0 %v9341
  %9343 = vmatprep.subr.mxu0 0.0
  %9344 = vmatpush2.msra.mxu0 0.0
  %9345 = vmatprep.subr.mxu0 0.0
  %9346 = vmatpush2.msra.mxu0 0.0
  %9347 = vmatprep.subr.mxu0 0.0
  %9348 = vmatpush2.msra.mxu0 0.0
  %9349 = vmatprep.subr.mxu0 0.0
  %9350 = vmatpush2.msra.mxu0 0.0
  %9351 = vmatprep.subr.mxu0 0.0
  %9352 = vmatpush2.msra.mxu0 0.0
  %9353 = vmatprep.subr.mxu0 0.0
  %9354 = vmatpush2.msra.mxu0 0.0
  %9355 = vmatprep.subr.mxu0 0.0
  %9356 = vmatpush2.msra.mxu0 0.0
  %9357 = vmatprep.subr.mxu0 0.0
  %9358 = vmatpush2.msra.mxu0 0.0
  %9359 = vmatprep.subr.mxu0 0.0
  %9360 = vmatpush2.msra.mxu0 0.0
  %9361 = vmatprep.subr.mxu0 0.0
  %9362 = vmatpush2.msra.mxu0 0.0
  %9363 = vmatprep.subr.mxu0 0.0
  %9364 = vmatpush2.msra.mxu0 0.0
  %9365 = vmatprep.subr.mxu0 0.0
  %9366 = vmatpush2.msra.mxu0 0.0
  %9367 = vmatprep.subr.mxu0 0.0
  %9368 = vmatpush2.msra.mxu0 0.0
  %9369 = vmatprep.subr.mxu0 0.0
  %9370 = vmatpush2.msra.mxu0 0.0
  %9371 = vmatprep.subr.mxu0 0.0
  %9372 = vmatpush2.msra.mxu0 0.0
  %9373 = vmatprep.subr.mxu0 0.0
  %9374 = vmatpush2.msra.mxu0 0.0
  %9375 = vmatprep.mubr.f32.mxu0 0.0
  %v9376 = vand.u32 %v9056, 4294901760
  %v9377 = vsub.f32 %v9056, %v9376
  %v9378 = vand.u32 %v9377, 4294901760
  %9379 = vmatmul.mubr.f32.gmra.mxu0 %v9378
  %v9380 = vpop.f32.mrf.mxu0
  %v9381 = vadd.f32 %v9300, %v9380
  %v9382 = vpop.f32.mrf.mxu0
  %9383 = vmatprep.mubr.f32.mxu0 0.0
  %v9384 = vand.u32 %v9059, 4294901760
  %v9385 = vsub.f32 %v9059, %v9384
  %v9386 = vand.u32 %v9385, 4294901760
  %9387 = vmatmul.mubr.f32.gmra.mxu0 %v9386
  %v9388 = vpop.f32.mrf.mxu0
  %v9389 = vadd.f32 %v9307, %v9388
  %v9390 = vpop.f32.mrf.mxu0
  %9391 = vdwg.mxu0
  %9392 = vmatprep.subr.mxu0 0.0
  %9393 = vmatpush1.msra.mxu0 0.0
  %9394 = vmatprep.subr.mxu0 0.0
  %9395 = vmatpush1.msra.mxu0 0.0
  %9396 = vmatprep.subr.mxu0 0.0
  %9397 = vmatpush1.msra.mxu0 0.0
  %9398 = vmatprep.subr.mxu0 0.0
  %9399 = vmatpush1.msra.mxu0 0.0
  %9400 = vmatprep.subr.mxu0 0.0
  %9401 = vmatpush1.msra.mxu0 0.0
  %9402 = vmatprep.subr.mxu0 0.0
  %9403 = vmatpush1.msra.mxu0 0.0
  %9404 = vmatprep.subr.mxu0 0.0
  %9405 = vmatpush1.msra.mxu0 0.0
  %9406 = vmatprep.subr.mxu0 0.0
  %9407 = vmatpush1.msra.mxu0 0.0
  %9408 = vmatprep.subr.mxu0 0.0
  %9409 = vmatpush1.msra.mxu0 0.0
  %9410 = vmatprep.subr.mxu0 0.0
  %9411 = vmatpush1.msra.mxu0 0.0
  %9412 = vmatprep.subr.mxu0 0.0
  %9413 = vmatpush1.msra.mxu0 0.0
  %9414 = vmatprep.subr.mxu0 0.0
  %9415 = vmatpush1.msra.mxu0 0.0
  %9416 = vmatprep.subr.mxu0 0.0
  %9417 = vmatpush1.msra.mxu0 0.0
  %9418 = vmatprep.subr.mxu0 0.0
  %9419 = vmatpush1.msra.mxu0 0.0
  %9420 = vmatprep.subr.mxu0 0.0
  %9421 = vmatpush1.msra.mxu0 0.0
  %9422 = vmatprep.subr.mxu0 0.0
  %v9423 = vand.u32 %v9054, 4294901760
  %v9424 = vsub.f32 %v9054, %v9423
  %v9425 = vand.u32 %v9424, 4294901760
  %9426 = vmatpush1.msra.mxu0 %v9425
  %9427 = vmatprep.subr.mxu0 0.0
  %9428 = vmatpush2.msra.mxu0 0.0
  %9429 = vmatprep.subr.mxu0 0.0
  %9430 = vmatpush2.msra.mxu0 0.0
  %9431 = vmatprep.subr.mxu0 0.0
  %9432 = vmatpush2.msra.mxu0 0.0
  %9433 = vmatprep.subr.mxu0 0.0
  %9434 = vmatpush2.msra.mxu0 0.0
  %9435 = vmatprep.subr.mxu0 0.0
  %9436 = vmatpush2.msra.mxu0 0.0
  %9437 = vmatprep.subr.mxu0 0.0
  %9438 = vmatpush2.msra.mxu0 0.0
  %9439 = vmatprep.subr.mxu0 0.0
  %9440 = vmatpush2.msra.mxu0 0.0
  %9441 = vmatprep.subr.mxu0 0.0
  %9442 = vmatpush2.msra.mxu0 0.0
  %9443 = vmatprep.subr.mxu0 0.0
  %9444 = vmatpush2.msra.mxu0 0.0
  %9445 = vmatprep.subr.mxu0 0.0
  %9446 = vmatpush2.msra.mxu0 0.0
  %9447 = vmatprep.subr.mxu0 0.0
  %9448 = vmatpush2.msra.mxu0 0.0
  %9449 = vmatprep.subr.mxu0 0.0
  %9450 = vmatpush2.msra.mxu0 0.0
  %9451 = vmatprep.subr.mxu0 0.0
  %9452 = vmatpush2.msra.mxu0 0.0
  %9453 = vmatprep.subr.mxu0 0.0
  %9454 = vmatpush2.msra.mxu0 0.0
  %9455 = vmatprep.subr.mxu0 0.0
  %9456 = vmatpush2.msra.mxu0 0.0
  %9457 = vmatprep.subr.mxu0 0.0
  %9458 = vmatpush2.msra.mxu0 0.0
  %9459 = vmatprep.mubr.f32.mxu0 0.0
  %v9460 = vand.u32 %v9056, 4294901760
  %9461 = vmatmul.mubr.f32.gmra.mxu0 %v9460
  %v9462 = vpop.f32.mrf.mxu0
  %v9463 = vadd.f32 %v9381, %v9462
  %v9464 = vpop.f32.mrf.mxu0
  %9465 = vmatprep.mubr.f32.mxu0 0.0
  %v9466 = vand.u32 %v9059, 4294901760
  %9467 = vmatmul.mubr.f32.gmra.mxu0 %v9466
  %v9468 = vpop.f32.mrf.mxu0
  %v9469 = vadd.f32 %v9389, %v9468
  %v9470 = vpop.f32.mrf.mxu0
  %9471 = vdwg.mxu0
  %9472 = vmatprep.subr.mxu0 0.0
  %9473 = vmatpush1.msra.mxu0 0.0
  %9474 = vmatprep.subr.mxu0 0.0
  %9475 = vmatpush1.msra.mxu0 0.0
  %9476 = vmatprep.subr.mxu0 0.0
  %9477 = vmatpush1.msra.mxu0 0.0
  %9478 = vmatprep.subr.mxu0 0.0
  %9479 = vmatpush1.msra.mxu0 0.0
  %9480 = vmatprep.subr.mxu0 0.0
  %9481 = vmatpush1.msra.mxu0 0.0
  %9482 = vmatprep.subr.mxu0 0.0
  %9483 = vmatpush1.msra.mxu0 0.0
  %9484 = vmatprep.subr.mxu0 0.0
  %9485 = vmatpush1.msra.mxu0 0.0
  %9486 = vmatprep.subr.mxu0 0.0
  %9487 = vmatpush1.msra.mxu0 0.0
  %9488 = vmatprep.subr.mxu0 0.0
  %9489 = vmatpush1.msra.mxu0 0.0
  %9490 = vmatprep.subr.mxu0 0.0
  %9491 = vmatpush1.msra.mxu0 0.0
  %9492 = vmatprep.subr.mxu0 0.0
  %9493 = vmatpush1.msra.mxu0 0.0
  %9494 = vmatprep.subr.mxu0 0.0
  %9495 = vmatpush1.msra.mxu0 0.0
  %9496 = vmatprep.subr.mxu0 0.0
  %9497 = vmatpush1.msra.mxu0 0.0
  %9498 = vmatprep.subr.mxu0 0.0
  %9499 = vmatpush1.msra.mxu0 0.0
  %9500 = vmatprep.subr.mxu0 0.0
  %9501 = vmatpush1.msra.mxu0 0.0
  %9502 = vmatprep.subr.mxu0 0.0
  %v9503 = vand.u32 %v9054, 4294901760
  %9504 = vmatpush1.msra.mxu0 %v9503
  %9505 = vmatprep.subr.mxu0 0.0
  %9506 = vmatpush2.msra.mxu0 0.0
  %9507 = vmatprep.subr.mxu0 0.0
  %9508 = vmatpush2.msra.mxu0 0.0
  %9509 = vmatprep.subr.mxu0 0.0
  %9510 = vmatpush2.msra.mxu0 0.0
  %9511 = vmatprep.subr.mxu0 0.0
  %9512 = vmatpush2.msra.mxu0 0.0
  %9513 = vmatprep.subr.mxu0 0.0
  %9514 = vmatpush2.msra.mxu0 0.0
  %9515 = vmatprep.subr.mxu0 0.0
  %9516 = vmatpush2.msra.mxu0 0.0
  %9517 = vmatprep.subr.mxu0 0.0
  %9518 = vmatpush2.msra.mxu0 0.0
  %9519 = vmatprep.subr.mxu0 0.0
  %9520 = vmatpush2.msra.mxu0 0.0
  %9521 = vmatprep.subr.mxu0 0.0
  %9522 = vmatpush2.msra.mxu0 0.0
  %9523 = vmatprep.subr.mxu0 0.0
  %9524 = vmatpush2.msra.mxu0 0.0
  %9525 = vmatprep.subr.mxu0 0.0
  %9526 = vmatpush2.msra.mxu0 0.0
  %9527 = vmatprep.subr.mxu0 0.0
  %9528 = vmatpush2.msra.mxu0 0.0
  %9529 = vmatprep.subr.mxu0 0.0
  %9530 = vmatpush2.msra.mxu0 0.0
  %9531 = vmatprep.subr.mxu0 0.0
  %9532 = vmatpush2.msra.mxu0 0.0
  %9533 = vmatprep.subr.mxu0 0.0
  %9534 = vmatpush2.msra.mxu0 0.0
  %9535 = vmatprep.subr.mxu0 0.0
  %9536 = vmatpush2.msra.mxu0 0.0
  %9537 = vmatprep.mubr.f32.mxu0 0.0
  %v9538 = vand.u32 %v9056, 4294901760
  %9539 = vmatmul.mubr.f32.gmra.mxu0 %v9538
  %v9540 = vpop.f32.mrf.mxu0
  %v9541 = vadd.f32 %v9463, %v9540
  %v9542 = vpop.f32.mrf.mxu0
  %9543 = vmatprep.mubr.f32.mxu0 0.0
  %v9544 = vand.u32 %v9059, 4294901760
  %9545 = vmatmul.mubr.f32.gmra.mxu0 %v9544
  %v9546 = vpop.f32.mrf.mxu0
  %v9547 = vadd.f32 %v9469, %v9546
  %v9548 = vpop.f32.mrf.mxu0
  %9549 = vdwg.mxu0
  %9550 = vst.msk [vmem:[%s83] sm:$0xff] %vm7358, %v9541
  %9551 = vst.msk [vmem:[%s83 + $0x8] sm:$0xff] %vm7358, %v9547
  // Predicated region
  $region194: #{tpu_custom_call.1} parent=0 // pred_check
    _
  $region195: #{tpu_custom_call.1} parent=0 // pred_check_branch
    %9553 = sbr.rel (0) target = $region197
  $region196: #{tpu_custom_call.1} parent=0 // pred_region
    _
  $region197: #{tpu_custom_call.1} parent=0 // pred_fallthru
    _
  // Predicated region
  $region198: #{tpu_custom_call.1} parent=0 // pred_check
    _
  $region199: #{tpu_custom_call.1} parent=0 // pred_check_branch
    %9555 = sbr.rel (0) target = $region201
  $region200: #{tpu_custom_call.1} parent=0 // pred_region
    _
  $region201: #{tpu_custom_call.1} parent=0 // pred_fallthru
    _

</llo_original>
